<compile_context>
chip_gen: v5e
topology: v5e:2x2
jax: 0.10.0
libtpu: 0.0.40
codegen_flags: <defaults>
</compile_context>

<pallas_src>
import jax
import jax.numpy as jnp
import numpy as np
from jax import lax
from jax.experimental import pallas as pl
from jax.experimental.pallas import tpu as pltpu

_VMEM_LIMIT = 32 * 1024 * 1024          # safe on v5e/v6e/v7x, lifts v5e's 16 MiB default
_INV_SQRT2 = 0.7071067811865476


# ----------------------------------------------------------------------------
# elementwise helpers (exact GELU, matching nn.GELU() default)
# ----------------------------------------------------------------------------
def _erf_approx(z):
    # Abramowitz & Stegun 7.1.26 rational approximation, |err| <= 1.5e-7.
    # The divide is done on the EUP (approx reciprocal) + one Newton step so
    # the VALU-bound epilogue gets the heavy op essentially for free while
    # keeping full f32 accuracy.
    az = jnp.abs(z)
    d = 1.0 + 0.3275911 * az
    t = pl.reciprocal(d, approx=True)
    t = t * (2.0 - d * t)                       # Newton refinement: ~f32-exact
    poly = t * (0.254829592 + t * (-0.284496736 + t * (1.421413741
               + t * (-1.453152027 + t * 1.061405429))))
    e = 1.0 - poly * jnp.exp(-az * az)
    return jnp.where(z >= 0.0, e, -e)


def _gelu_exact(x):
    return 0.5 * x * (1.0 + _erf_approx(x * _INV_SQRT2))


# ----------------------------------------------------------------------------
# fused Pallas kernel: upsample + concat + conv1 + GELU + conv2 + GELU
# ----------------------------------------------------------------------------
def _unet_up_fused_kernel(x1_ref, x2_ref, u_ref,
                          w1_ref, b1_ref, w2_ref, b2_ref,
                          o_ref,
                          patch1_ref, y1p_ref, patch2_ref):
    # x1_ref: (1, hp, wp, c1)   zero-padded skip branch (NHWC)
    # x2_ref: (1, h2*w2, c2)    low-res branch, spatial dims flattened
    # u_ref : (hp*wp, h2*w2)    kron(u_h, u_w) bilinear matrix, pad folded in
    # w1_ref: (9*(c1+c2), co)   conv1 weights, HWIO flattened (tap-major)
    # w2_ref: (9*co, co)        conv2 weights, HWIO flattened
    # o_ref : (1, h*w, co)
    hp, wp, c1 = x1_ref.shape[1], x1_ref.shape[2], x1_ref.shape[3]
    h, w = hp - 2, wp - 2
    c2 = x2_ref.shape[2]
    co = o_ref.shape[2]
    cin1 = c1 + c2
    dt = x1_ref.dtype

    # ---- bilinear x2 upsample (align_corners=True) of the low-res branch as a
    #      single MXU matmul; the result (with conv1's zero border already
    #      baked in) lives only in VMEM.
    up2 = jnp.dot(u_ref[...], x2_ref[0].astype(jnp.float32),
                  preferred_element_type=jnp.float32)            # (hp*wp, c2)
    up = up2.reshape(hp, wp, c2).astype(dt)                      # (hp, wp, c2)

    x1p = x1_ref[0]                                              # (hp, wp, c1)

    # ---- conv1 over concat([inputs1, up], channel):
    #      torch.cat is realized by writing the two channel groups into
    #      disjoint lane ranges of the im2col patch (K = 9*(c1+c2)).
    for dy in range(3):
        for dx in range(3):
            k0 = (dy * 3 + dx) * cin1
            s1 = x1p[dy:dy + h, dx:dx + w, :]
            patch1_ref[:, k0:k0 + c1] = s1.reshape(h * w, c1)
            s2 = up[dy:dy + h, dx:dx + w, :]
            patch1_ref[:, k0 + c1:k0 + cin1] = s2.reshape(h * w, c2)

    acc1 = jnp.dot(patch1_ref[...], w1_ref[...],
                   preferred_element_type=jnp.float32)           # (h*w, co)
    acc1 = acc1 + b1_ref[...].astype(jnp.float32)
    y1 = _gelu_exact(acc1)                                       # f32

    # ---- conv2: y1 never leaves VMEM; zero-padded copy in scratch.
    y1p_ref[...] = jnp.zeros((hp, wp, co), jnp.float32)
    y1p_ref[1:h + 1, 1:w + 1, :] = y1.reshape(h, w, co)

    for dy in range(3):
        for dx in range(3):
            k0 = (dy * 3 + dx) * co
            s = y1p_ref[dy:dy + h, dx:dx + w, :]
            patch2_ref[:, k0:k0 + co] = s.reshape(h * w, co)

    acc2 = jnp.dot(patch2_ref[...], w2_ref[...],
                   preferred_element_type=jnp.float32)           # (h*w, co)
    acc2 = acc2 + b2_ref[...].astype(jnp.float32)
    y2 = _gelu_exact(acc2)

    # DropPath(0.2) -> identity at inference.
    o_ref[0] = y2.astype(o_ref.dtype)


# ----------------------------------------------------------------------------
# host-side helpers
# ----------------------------------------------------------------------------
def _bilinear_matrix_np(in_size, out_size, pad=0):
    """Interpolation matrix for bilinear resize, align_corners=True (PyTorch
    UpsamplingBilinear2d).  Optional `pad` adds zero border rows (conv pad)."""
    m = np.zeros((out_size + 2 * pad, in_size), dtype=np.float32)
    if out_size == 1:
        src = np.zeros((1,), dtype=np.float64)
    else:
        src = np.arange(out_size, dtype=np.float64) * (in_size - 1) / (out_size - 1)
    i0 = np.clip(np.floor(src).astype(np.int64), 0, in_size - 1)
    i1 = np.minimum(i0 + 1, in_size - 1)
    frac = (src - i0).astype(np.float32)
    rows = np.arange(out_size) + pad
    m[rows, i0] += 1.0 - frac
    m[rows, i1] += frac
    return m


def unet_up_forward(inputs1, inputs2, params):
    """Pallas forward pass of unetUp.  inputs1/inputs2 are NCHW, output is NCHW.

    params: w1 (3,3,C1+C2,Co) HWIO, b1 (Co,), w2 (3,3,Co,Co) HWIO, b2 (Co,)
    (HWIO = PyTorch conv weight (O,I,3,3) permuted to (2,3,1,0))."""
    w1, b1, w2, b2 = params["w1"], params["b1"], params["w2"], params["b2"]
    bsz, c1, h, wdt = inputs1.shape
    _, c2, h2, w2s = inputs2.shape
    co = int(w1.shape[-1])
    cin1 = c1 + c2
    hp, wp = h + 2, wdt + 2
    dtype = inputs1.dtype
    act_bytes = jnp.dtype(dtype).itemsize
    wgt_bytes = jnp.dtype(w1.dtype).itemsize

    # ---- host-built constants (free: pure layout / weight plumbing) --------
    u_h = _bilinear_matrix_np(h2, h, pad=1)          # (hp, h2), zero border rows
    u_w = _bilinear_matrix_np(w2s, wdt, pad=1)       # (wp, w2s), zero border cols
    u_kron = jnp.asarray(np.kron(u_h, u_w))          # (hp*wp, h2*w2s)

    w1_flat = w1.reshape(9 * cin1, co)               # tap-major, matches im2col
    w2_flat = w2.reshape(9 * co, co)
    b1_2d = b1.reshape(1, co)
    b2_2d = b2.reshape(1, co)

    # ---- host-side layout plumbing -----------------------------------------
    x1_nhwc = jnp.transpose(inputs1, (0, 2, 3, 1))
    x1_pad = jnp.pad(x1_nhwc, ((0, 0), (1, 1), (1, 1), (0, 0)))      # (B,hp,wp,c1)
    x2_2d = jnp.transpose(inputs2, (0, 2, 3, 1)).reshape(bsz, h2 * w2s, c2)

    cparams = pltpu.CompilerParams(
        dimension_semantics=("parallel",),
        vmem_limit_bytes=_VMEM_LIMIT,
    )

    cost = pl.CostEstimate(
        flops=2 * bsz * ((hp * wp) * (h2 * w2s) * c2
                         + (h * wdt) * (9 * cin1) * co
                         + (h * wdt) * (9 * co) * co),
        transcendentals=2 * bsz * h * wdt * co,
        bytes_accessed=(act_bytes * (x1_pad.size + x2_2d.size + bsz * h * wdt * co)
                        + wgt_bytes * (w1_flat.size + w2_flat.size
                                       + b1.size + b2.size)
                        + 4 * u_kron.size),
    )

    resident = dict(pipeline_mode=pl.Buffered(1))    # constant across the grid

    out = pl.pallas_call(
        _unet_up_fused_kernel,
        out_shape=jax.ShapeDtypeStruct((bsz, h * wdt, co), dtype),
        grid_spec=pltpu.PrefetchScalarGridSpec(
            num_scalar_prefetch=0,
            grid=(bsz,),
            in_specs=[
                pl.BlockSpec((1, hp, wp, c1), lambda b: (b, 0, 0, 0)),
                pl.BlockSpec((1, h2 * w2s, c2), lambda b: (b, 0, 0)),
                pl.BlockSpec((hp * wp, h2 * w2s), lambda b: (0, 0), **resident),
                pl.BlockSpec((9 * cin1, co), lambda b: (0, 0), **resident),
                pl.BlockSpec((1, co), lambda b: (0, 0), **resident),
                pl.BlockSpec((9 * co, co), lambda b: (0, 0), **resident),
                pl.BlockSpec((1, co), lambda b: (0, 0), **resident),
            ],
            out_specs=pl.BlockSpec((1, h * wdt, co), lambda b: (b, 0, 0)),
            scratch_shapes=[
                pltpu.VMEM((h * wdt, 9 * cin1), dtype),      # conv1 im2col patch
                pltpu.VMEM((hp, wp, co), jnp.float32),       # zero-padded y1
                pltpu.VMEM((h * wdt, 9 * co), jnp.float32),  # conv2 im2col patch
            ],
        ),
        compiler_params=cparams,
        cost_estimate=cost,
    )(x1_pad, x2_2d, u_kron, w1_flat, b1_2d, w2_flat, b2_2d)

    y = out.reshape(bsz, h, wdt, co)
    return jnp.transpose(y, (0, 3, 1, 2))            # back to NCHW


# ----------------------------------------------------------------------------
# pure-JAX reference (same inference semantics) for correctness checking
# ----------------------------------------------------------------------------
def reference_unet_up(inputs1, inputs2, params):
    w1, b1, w2, b2 = params["w1"], params["b1"], params["w2"], params["b2"]
    _, _, h2, w2s = inputs2.shape
    h, wdt = inputs1.shape[2], inputs1.shape[3]
    hi = lax.Precision.HIGHEST

    u_h = jnp.asarray(_bilinear_matrix_np(h2, h))        # (H, h2) align_corners=True
    u_w = jnp.asarray(_bilinear_matrix_np(w2s, wdt))     # (W, w2s)

    x2 = jnp.transpose(inputs2, (0, 2, 3, 1))
    up = jnp.einsum("Yh,bhwc->bYwc", u_h, x2, precision=hi)
    up = jnp.einsum("Xw,bhwc->bhXc", u_w, up, precision=hi)

    x1 = jnp.transpose(inputs1, (0, 2, 3, 1))
    x = jnp.concatenate([x1, up], axis=-1)

    def conv_gelu(v, wgt, bias):
        y = lax.conv_general_dilated(
            v, wgt, window_strides=(1, 1), padding=((1, 1), (1, 1)),
            dimension_numbers=("NHWC", "HWIO", "NHWC"), precision=hi) + bias
        return 0.5 * y * (1.0 + lax.erf(y * _INV_SQRT2))   # exact GELU

    y = conv_gelu(x, w1, b1)
    y = conv_gelu(y, w2, b2)
    return jnp.transpose(y, (0, 3, 1, 2))


# ----------------------------------------------------------------------------
if __name__ == "__main__":
    key = jax.random.PRNGKey(0)
    k1, k2, kw1, kb1, kw2, kb2 = jax.random.split(key, 6)

    batch, out_size = 2, 8
    c_skip, c_low = 8, 8                 # in_size = c_skip + c_low = 16
    h, w = 16, 16                        # inputs1 spatial; inputs2 is (h//2, w//2)
    in_size = c_skip + c_low

    inputs1 = jax.random.normal(k1, (batch, c_skip, h, w), dtype=jnp.float32)
    inputs2 = jax.random.normal(k2, (batch, c_low, h // 2, w // 2), dtype=jnp.float32)

    # Conv weights stored HWIO (== PyTorch (O,I,3,3) permuted to (2,3,1,0)).
    params = {
        "w1": jax.random.normal(kw1, (3, 3, in_size, out_size), jnp.float32) * 0.08,
        "b1": jax.random.normal(kb1, (out_size,), jnp.float32) * 0.05,
        "w2": jax.random.normal(kw2, (3, 3, out_size, out_size), jnp.float32) * 0.08,
        "b2": jax.random.normal(kb2, (out_size,), jnp.float32) * 0.05,
    }

    fwd = jax.jit(unet_up_forward)
    out = jax.block_until_ready(fwd(inputs1, inputs2, params))
    ref = jax.block_until_ready(reference_unet_up(inputs1, inputs2, params))

    assert out.shape == (batch, out_size, h, w), out.shape
    # Tight f32 tolerance: only MXU accumulation-order differences and the
    # (Newton-refined) erf approximation separate kernel and reference.
    assert jnp.allclose(out, ref, atol=2e-4, rtol=2e-4), (
        "max abs diff = %.3e" % float(jnp.max(jnp.abs(out - ref))))

    print("KERNEL_OK")
</pallas_src>

<mosaic_0001>
module attributes {stable_mosaic.version = 11 : i64} {
  func.func @_unet_up_fused_kernel(%arg0: i32, %arg1: memref<1x18x18x8xf32, #tpu.memory_space<vmem>>, %arg2: memref<1x64x8xf32, #tpu.memory_space<vmem>>, %arg3: memref<324x64xf32, #tpu.memory_space<vmem>>, %arg4: memref<144x8xf32, #tpu.memory_space<vmem>>, %arg5: memref<1x8xf32, #tpu.memory_space<vmem>>, %arg6: memref<72x8xf32, #tpu.memory_space<vmem>>, %arg7: memref<1x8xf32, #tpu.memory_space<vmem>>, %arg8: memref<1x256x8xf32, #tpu.memory_space<vmem>>, %arg9: memref<256x144xf32, #tpu.memory_space<vmem>>, %arg10: memref<18x18x8xf32, #tpu.memory_space<vmem>>, %arg11: memref<256x72xf32, #tpu.memory_space<vmem>>) attributes {dimension_semantics = [#tpu.dimension_semantics<parallel>], iteration_bounds = array<i64: 2>, scalar_prefetch = 0 : i64, scratch_operands = 3 : i64, tpu.core_type = #tpu.core_type<tc>, window_params = [{transform_indices = @transform_0, window_bounds = array<i64: 1, 18, 18, 8>}, {transform_indices = @transform_1, window_bounds = array<i64: 1, 64, 8>}, {pipeline_mode = #tpu.pipeline_mode<synchronous>, transform_indices = @transform_2, window_bounds = array<i64: 324, 64>}, {pipeline_mode = #tpu.pipeline_mode<synchronous>, transform_indices = @transform_3, window_bounds = array<i64: 144, 8>}, {pipeline_mode = #tpu.pipeline_mode<synchronous>, transform_indices = @transform_4, window_bounds = array<i64: 1, 8>}, {pipeline_mode = #tpu.pipeline_mode<synchronous>, transform_indices = @transform_5, window_bounds = array<i64: 72, 8>}, {pipeline_mode = #tpu.pipeline_mode<synchronous>, transform_indices = @transform_6, window_bounds = array<i64: 1, 8>}, {transform_indices = @transform_7, window_bounds = array<i64: 1, 256, 8>}]} {
    %c0 = arith.constant 0 : index
    %c0_0 = arith.constant 0 : index
    %0 = vector.load %arg3[%c0, %c0_0] : memref<324x64xf32, #tpu.memory_space<vmem>>, vector<324x64xf32>
    %c0_1 = arith.constant 0 : index
    %c0_2 = arith.constant 0 : index
    %c0_3 = arith.constant 0 : index
    %1 = vector.load %arg2[%c0_1, %c0_2, %c0_3] : memref<1x64x8xf32, #tpu.memory_space<vmem>>, vector<1x64x8xf32>
    %2 = vector.shape_cast %1 : vector<1x64x8xf32> to vector<64x8xf32>
    %cst = arith.constant dense<0.000000e+00> : vector<324x8xf32>
    %3 = tpu.matmul %0, %2, %cst {dimension_numbers = #tpu.dot_dimension_numbers<[1], [0], [0], [1], [0, 0, 1, 1], [], []>} : vector<324x64xf32>, vector<64x8xf32>, vector<324x8xf32> -> vector<324x8xf32>
    %4 = vector.shape_cast %3 : vector<324x8xf32> to vector<18x18x8xf32>
    %c0_4 = arith.constant 0 : index
    %c0_5 = arith.constant 0 : index
    %c0_6 = arith.constant 0 : index
    %c0_7 = arith.constant 0 : index
    %5 = vector.load %arg1[%c0_4, %c0_5, %c0_6, %c0_7] : memref<1x18x18x8xf32, #tpu.memory_space<vmem>>, vector<1x18x18x8xf32>
    %6 = vector.shape_cast %5 : vector<1x18x18x8xf32> to vector<18x18x8xf32>
    %7 = vector.extract_strided_slice %6 {offsets = [0, 0, 0], sizes = [16, 16, 8], strides = [1, 1, 1]} : vector<18x18x8xf32> to vector<16x16x8xf32>
    %8 = vector.shape_cast %7 : vector<16x16x8xf32> to vector<256x8xf32>
    %c0_8 = arith.constant 0 : index
    %c0_9 = arith.constant 0 : index
    %9 = vector.load %arg9[%c0_8, %c0_9] : memref<256x144xf32, #tpu.memory_space<vmem>>, vector<256x8xf32>
    tpu.vector_store %arg9[%c0_8, %c0_9], %8 {strides = array<i32>} : memref<256x144xf32, #tpu.memory_space<vmem>>, vector<256x8xf32>,
    %10 = vector.extract_strided_slice %4 {offsets = [0, 0, 0], sizes = [16, 16, 8], strides = [1, 1, 1]} : vector<18x18x8xf32> to vector<16x16x8xf32>
    %11 = vector.shape_cast %10 : vector<16x16x8xf32> to vector<256x8xf32>
    %c0_10 = arith.constant 0 : index
    %c8 = arith.constant 8 : index
    %12 = vector.load %arg9[%c0_10, %c8] : memref<256x144xf32, #tpu.memory_space<vmem>>, vector<256x8xf32>
    tpu.vector_store %arg9[%c0_10, %c8], %11 {strides = array<i32>} : memref<256x144xf32, #tpu.memory_space<vmem>>, vector<256x8xf32>,
    %13 = vector.extract_strided_slice %6 {offsets = [0, 1, 0], sizes = [16, 16, 8], strides = [1, 1, 1]} : vector<18x18x8xf32> to vector<16x16x8xf32>
    %14 = vector.shape_cast %13 : vector<16x16x8xf32> to vector<256x8xf32>
    %c0_11 = arith.constant 0 : index
    %c16 = arith.constant 16 : index
    %15 = vector.load %arg9[%c0_11, %c16] : memref<256x144xf32, #tpu.memory_space<vmem>>, vector<256x8xf32>
    tpu.vector_store %arg9[%c0_11, %c16], %14 {strides = array<i32>} : memref<256x144xf32, #tpu.memory_space<vmem>>, vector<256x8xf32>,
    %16 = vector.extract_strided_slice %4 {offsets = [0, 1, 0], sizes = [16, 16, 8], strides = [1, 1, 1]} : vector<18x18x8xf32> to vector<16x16x8xf32>
    %17 = vector.shape_cast %16 : vector<16x16x8xf32> to vector<256x8xf32>
    %c0_12 = arith.constant 0 : index
    %c24 = arith.constant 24 : index
    %18 = vector.load %arg9[%c0_12, %c24] : memref<256x144xf32, #tpu.memory_space<vmem>>, vector<256x8xf32>
    tpu.vector_store %arg9[%c0_12, %c24], %17 {strides = array<i32>} : memref<256x144xf32, #tpu.memory_space<vmem>>, vector<256x8xf32>,
    %19 = vector.extract_strided_slice %6 {offsets = [0, 2, 0], sizes = [16, 16, 8], strides = [1, 1, 1]} : vector<18x18x8xf32> to vector<16x16x8xf32>
    %20 = vector.shape_cast %19 : vector<16x16x8xf32> to vector<256x8xf32>
    %c0_13 = arith.constant 0 : index
    %c32 = arith.constant 32 : index
    %21 = vector.load %arg9[%c0_13, %c32] : memref<256x144xf32, #tpu.memory_space<vmem>>, vector<256x8xf32>
    tpu.vector_store %arg9[%c0_13, %c32], %20 {strides = array<i32>} : memref<256x144xf32, #tpu.memory_space<vmem>>, vector<256x8xf32>,
    %22 = vector.extract_strided_slice %4 {offsets = [0, 2, 0], sizes = [16, 16, 8], strides = [1, 1, 1]} : vector<18x18x8xf32> to vector<16x16x8xf32>
    %23 = vector.shape_cast %22 : vector<16x16x8xf32> to vector<256x8xf32>
    %c0_14 = arith.constant 0 : index
    %c40 = arith.constant 40 : index
    %24 = vector.load %arg9[%c0_14, %c40] : memref<256x144xf32, #tpu.memory_space<vmem>>, vector<256x8xf32>
    tpu.vector_store %arg9[%c0_14, %c40], %23 {strides = array<i32>} : memref<256x144xf32, #tpu.memory_space<vmem>>, vector<256x8xf32>,
    %25 = vector.extract_strided_slice %6 {offsets = [1, 0, 0], sizes = [16, 16, 8], strides = [1, 1, 1]} : vector<18x18x8xf32> to vector<16x16x8xf32>
    %26 = vector.shape_cast %25 : vector<16x16x8xf32> to vector<256x8xf32>
    %c0_15 = arith.constant 0 : index
    %c48 = arith.constant 48 : index
    %27 = vector.load %arg9[%c0_15, %c48] : memref<256x144xf32, #tpu.memory_space<vmem>>, vector<256x8xf32>
    tpu.vector_store %arg9[%c0_15, %c48], %26 {strides = array<i32>} : memref<256x144xf32, #tpu.memory_space<vmem>>, vector<256x8xf32>,
    %28 = vector.extract_strided_slice %4 {offsets = [1, 0, 0], sizes = [16, 16, 8], strides = [1, 1, 1]} : vector<18x18x8xf32> to vector<16x16x8xf32>
    %29 = vector.shape_cast %28 : vector<16x16x8xf32> to vector<256x8xf32>
    %c0_16 = arith.constant 0 : index
    %c56 = arith.constant 56 : index
    %30 = vector.load %arg9[%c0_16, %c56] : memref<256x144xf32, #tpu.memory_space<vmem>>, vector<256x8xf32>
    tpu.vector_store %arg9[%c0_16, %c56], %29 {strides = array<i32>} : memref<256x144xf32, #tpu.memory_space<vmem>>, vector<256x8xf32>,
    %31 = vector.extract_strided_slice %6 {offsets = [1, 1, 0], sizes = [16, 16, 8], strides = [1, 1, 1]} : vector<18x18x8xf32> to vector<16x16x8xf32>
    %32 = vector.shape_cast %31 : vector<16x16x8xf32> to vector<256x8xf32>
    %c0_17 = arith.constant 0 : index
    %c64 = arith.constant 64 : index
    %33 = vector.load %arg9[%c0_17, %c64] : memref<256x144xf32, #tpu.memory_space<vmem>>, vector<256x8xf32>
    tpu.vector_store %arg9[%c0_17, %c64], %32 {strides = array<i32>} : memref<256x144xf32, #tpu.memory_space<vmem>>, vector<256x8xf32>,
    %34 = vector.extract_strided_slice %4 {offsets = [1, 1, 0], sizes = [16, 16, 8], strides = [1, 1, 1]} : vector<18x18x8xf32> to vector<16x16x8xf32>
    %35 = vector.shape_cast %34 : vector<16x16x8xf32> to vector<256x8xf32>
    %c0_18 = arith.constant 0 : index
    %c72 = arith.constant 72 : index
    %36 = vector.load %arg9[%c0_18, %c72] : memref<256x144xf32, #tpu.memory_space<vmem>>, vector<256x8xf32>
    tpu.vector_store %arg9[%c0_18, %c72], %35 {strides = array<i32>} : memref<256x144xf32, #tpu.memory_space<vmem>>, vector<256x8xf32>,
    %37 = vector.extract_strided_slice %6 {offsets = [1, 2, 0], sizes = [16, 16, 8], strides = [1, 1, 1]} : vector<18x18x8xf32> to vector<16x16x8xf32>
    %38 = vector.shape_cast %37 : vector<16x16x8xf32> to vector<256x8xf32>
    %c0_19 = arith.constant 0 : index
    %c80 = arith.constant 80 : index
    %39 = vector.load %arg9[%c0_19, %c80] : memref<256x144xf32, #tpu.memory_space<vmem>>, vector<256x8xf32>
    tpu.vector_store %arg9[%c0_19, %c80], %38 {strides = array<i32>} : memref<256x144xf32, #tpu.memory_space<vmem>>, vector<256x8xf32>,
    %40 = vector.extract_strided_slice %4 {offsets = [1, 2, 0], sizes = [16, 16, 8], strides = [1, 1, 1]} : vector<18x18x8xf32> to vector<16x16x8xf32>
    %41 = vector.shape_cast %40 : vector<16x16x8xf32> to vector<256x8xf32>
    %c0_20 = arith.constant 0 : index
    %c88 = arith.constant 88 : index
    %42 = vector.load %arg9[%c0_20, %c88] : memref<256x144xf32, #tpu.memory_space<vmem>>, vector<256x8xf32>
    tpu.vector_store %arg9[%c0_20, %c88], %41 {strides = array<i32>} : memref<256x144xf32, #tpu.memory_space<vmem>>, vector<256x8xf32>,
    %43 = vector.extract_strided_slice %6 {offsets = [2, 0, 0], sizes = [16, 16, 8], strides = [1, 1, 1]} : vector<18x18x8xf32> to vector<16x16x8xf32>
    %44 = vector.shape_cast %43 : vector<16x16x8xf32> to vector<256x8xf32>
    %c0_21 = arith.constant 0 : index
    %c96 = arith.constant 96 : index
    %45 = vector.load %arg9[%c0_21, %c96] : memref<256x144xf32, #tpu.memory_space<vmem>>, vector<256x8xf32>
    tpu.vector_store %arg9[%c0_21, %c96], %44 {strides = array<i32>} : memref<256x144xf32, #tpu.memory_space<vmem>>, vector<256x8xf32>,
    %46 = vector.extract_strided_slice %4 {offsets = [2, 0, 0], sizes = [16, 16, 8], strides = [1, 1, 1]} : vector<18x18x8xf32> to vector<16x16x8xf32>
    %47 = vector.shape_cast %46 : vector<16x16x8xf32> to vector<256x8xf32>
    %c0_22 = arith.constant 0 : index
    %c104 = arith.constant 104 : index
    %48 = vector.load %arg9[%c0_22, %c104] : memref<256x144xf32, #tpu.memory_space<vmem>>, vector<256x8xf32>
    tpu.vector_store %arg9[%c0_22, %c104], %47 {strides = array<i32>} : memref<256x144xf32, #tpu.memory_space<vmem>>, vector<256x8xf32>,
    %49 = vector.extract_strided_slice %6 {offsets = [2, 1, 0], sizes = [16, 16, 8], strides = [1, 1, 1]} : vector<18x18x8xf32> to vector<16x16x8xf32>
    %50 = vector.shape_cast %49 : vector<16x16x8xf32> to vector<256x8xf32>
    %c0_23 = arith.constant 0 : index
    %c112 = arith.constant 112 : index
    %51 = vector.load %arg9[%c0_23, %c112] : memref<256x144xf32, #tpu.memory_space<vmem>>, vector<256x8xf32>
    tpu.vector_store %arg9[%c0_23, %c112], %50 {strides = array<i32>} : memref<256x144xf32, #tpu.memory_space<vmem>>, vector<256x8xf32>,
    %52 = vector.extract_strided_slice %4 {offsets = [2, 1, 0], sizes = [16, 16, 8], strides = [1, 1, 1]} : vector<18x18x8xf32> to vector<16x16x8xf32>
    %53 = vector.shape_cast %52 : vector<16x16x8xf32> to vector<256x8xf32>
    %c0_24 = arith.constant 0 : index
    %c120 = arith.constant 120 : index
    %54 = vector.load %arg9[%c0_24, %c120] : memref<256x144xf32, #tpu.memory_space<vmem>>, vector<256x8xf32>
    tpu.vector_store %arg9[%c0_24, %c120], %53 {strides = array<i32>} : memref<256x144xf32, #tpu.memory_space<vmem>>, vector<256x8xf32>,
    %55 = vector.extract_strided_slice %6 {offsets = [2, 2, 0], sizes = [16, 16, 8], strides = [1, 1, 1]} : vector<18x18x8xf32> to vector<16x16x8xf32>
    %56 = vector.shape_cast %55 : vector<16x16x8xf32> to vector<256x8xf32>
    %c0_25 = arith.constant 0 : index
    %c128 = arith.constant 128 : index
    %57 = vector.load %arg9[%c0_25, %c128] : memref<256x144xf32, #tpu.memory_space<vmem>>, vector<256x8xf32>
    tpu.vector_store %arg9[%c0_25, %c128], %56 {strides = array<i32>} : memref<256x144xf32, #tpu.memory_space<vmem>>, vector<256x8xf32>,
    %58 = vector.extract_strided_slice %4 {offsets = [2, 2, 0], sizes = [16, 16, 8], strides = [1, 1, 1]} : vector<18x18x8xf32> to vector<16x16x8xf32>
    %59 = vector.shape_cast %58 : vector<16x16x8xf32> to vector<256x8xf32>
    %c0_26 = arith.constant 0 : index
    %c136 = arith.constant 136 : index
    %60 = vector.load %arg9[%c0_26, %c136] : memref<256x144xf32, #tpu.memory_space<vmem>>, vector<256x8xf32>
    tpu.vector_store %arg9[%c0_26, %c136], %59 {strides = array<i32>} : memref<256x144xf32, #tpu.memory_space<vmem>>, vector<256x8xf32>,
    %c0_27 = arith.constant 0 : index
    %c0_28 = arith.constant 0 : index
    %61 = vector.load %arg9[%c0_27, %c0_28] : memref<256x144xf32, #tpu.memory_space<vmem>>, vector<256x144xf32>
    %c0_29 = arith.constant 0 : index
    %c0_30 = arith.constant 0 : index
    %62 = vector.load %arg4[%c0_29, %c0_30] : memref<144x8xf32, #tpu.memory_space<vmem>>, vector<144x8xf32>
    %cst_31 = arith.constant dense<0.000000e+00> : vector<256x8xf32>
    %63 = tpu.matmul %61, %62, %cst_31 {dimension_numbers = #tpu.dot_dimension_numbers<[1], [0], [0], [1], [0, 0, 1, 1], [], []>} : vector<256x144xf32>, vector<144x8xf32>, vector<256x8xf32> -> vector<256x8xf32>
    %c0_32 = arith.constant 0 : index
    %c0_33 = arith.constant 0 : index
    %64 = vector.load %arg5[%c0_32, %c0_33] : memref<1x8xf32, #tpu.memory_space<vmem>>, vector<1x8xf32>
    %65 = vector.broadcast %64 : vector<1x8xf32> to vector<256x8xf32>
    %66 = arith.addf %63, %65 : vector<256x8xf32>
    %cst_34 = arith.constant 5.000000e-01 : f32
    %67 = vector.broadcast %cst_34 : f32 to vector<256x8xf32>
    %68 = arith.mulf %67, %66 : vector<256x8xf32>
    %cst_35 = arith.constant 0.707106769 : f32
    %69 = vector.broadcast %cst_35 : f32 to vector<256x8xf32>
    %70 = arith.mulf %66, %69 : vector<256x8xf32>
    %71 = math.absf %70 : vector<256x8xf32>
    %cst_36 = arith.constant 0.327591091 : f32
    %72 = vector.broadcast %cst_36 : f32 to vector<256x8xf32>
    %73 = arith.mulf %72, %71 : vector<256x8xf32>
    %cst_37 = arith.constant 1.000000e+00 : f32
    %74 = vector.broadcast %cst_37 : f32 to vector<256x8xf32>
    %75 = arith.addf %74, %73 : vector<256x8xf32>
    %76 = tpu.reciprocal %75 {approx = true} : vector<256x8xf32> -> vector<256x8xf32>
    %77 = arith.mulf %75, %76 : vector<256x8xf32>
    %cst_38 = arith.constant 2.000000e+00 : f32
    %78 = vector.broadcast %cst_38 : f32 to vector<256x8xf32>
    %79 = arith.subf %78, %77 : vector<256x8xf32>
    %80 = arith.mulf %76, %79 : vector<256x8xf32>
    %cst_39 = arith.constant 1.06140542 : f32
    %81 = vector.broadcast %cst_39 : f32 to vector<256x8xf32>
    %82 = arith.mulf %80, %81 : vector<256x8xf32>
    %cst_40 = arith.constant -1.45315206 : f32
    %83 = vector.broadcast %cst_40 : f32 to vector<256x8xf32>
    %84 = arith.addf %83, %82 : vector<256x8xf32>
    %85 = arith.mulf %80, %84 : vector<256x8xf32>
    %cst_41 = arith.constant 1.42141378 : f32
    %86 = vector.broadcast %cst_41 : f32 to vector<256x8xf32>
    %87 = arith.addf %86, %85 : vector<256x8xf32>
    %88 = arith.mulf %80, %87 : vector<256x8xf32>
    %cst_42 = arith.constant -0.284496725 : f32
    %89 = vector.broadcast %cst_42 : f32 to vector<256x8xf32>
    %90 = arith.addf %89, %88 : vector<256x8xf32>
    %91 = arith.mulf %80, %90 : vector<256x8xf32>
    %cst_43 = arith.constant 0.254829586 : f32
    %92 = vector.broadcast %cst_43 : f32 to vector<256x8xf32>
    %93 = arith.addf %92, %91 : vector<256x8xf32>
    %94 = arith.mulf %80, %93 : vector<256x8xf32>
    %cst_44 = arith.constant 0.000000e+00 : f32
    %95 = vector.broadcast %cst_44 : f32 to vector<256x8xf32>
    %96 = arith.subf %95, %71 : vector<256x8xf32>
    %97 = arith.mulf %96, %71 : vector<256x8xf32>
    %98 = math.exp %97 : vector<256x8xf32>
    %99 = arith.mulf %94, %98 : vector<256x8xf32>
    %cst_45 = arith.constant 1.000000e+00 : f32
    %100 = vector.broadcast %cst_45 : f32 to vector<256x8xf32>
    %101 = arith.subf %100, %99 : vector<256x8xf32>
    %cst_46 = arith.constant 0.000000e+00 : f32
    %102 = vector.broadcast %cst_46 : f32 to vector<256x8xf32>
    %103 = arith.cmpf oge, %70, %102 : vector<256x8xf32>
    %cst_47 = arith.constant 0.000000e+00 : f32
    %104 = vector.broadcast %cst_47 : f32 to vector<256x8xf32>
    %105 = arith.subf %104, %101 : vector<256x8xf32>
    %106 = arith.select %103, %101, %105 : vector<256x8xi1>, vector<256x8xf32>
    %cst_48 = arith.constant 1.000000e+00 : f32
    %107 = vector.broadcast %cst_48 : f32 to vector<256x8xf32>
    %108 = arith.addf %107, %106 : vector<256x8xf32>
    %109 = arith.mulf %68, %108 : vector<256x8xf32>
    %cst_49 = arith.constant 0.000000e+00 : f32
    %110 = vector.broadcast %cst_49 : f32 to vector<18x18x8xf32>
    %c0_50 = arith.constant 0 : index
    %c0_51 = arith.constant 0 : index
    %c0_52 = arith.constant 0 : index
    %111 = vector.load %arg10[%c0_50, %c0_51, %c0_52] : memref<18x18x8xf32, #tpu.memory_space<vmem>>, vector<18x18x8xf32>
    tpu.vector_store %arg10[%c0_50, %c0_51, %c0_52], %110 {strides = array<i32>} : memref<18x18x8xf32, #tpu.memory_space<vmem>>, vector<18x18x8xf32>,
    %112 = vector.shape_cast %109 : vector<256x8xf32> to vector<16x16x8xf32>
    %c1 = arith.constant 1 : index
    %c1_53 = arith.constant 1 : index
    %c0_54 = arith.constant 0 : index
    %113 = vector.load %arg10[%c1, %c1_53, %c0_54] : memref<18x18x8xf32, #tpu.memory_space<vmem>>, vector<16x16x8xf32>
    tpu.vector_store %arg10[%c1, %c1_53, %c0_54], %112 {strides = array<i32>} : memref<18x18x8xf32, #tpu.memory_space<vmem>>, vector<16x16x8xf32>,
    %c0_55 = arith.constant 0 : index
    %c0_56 = arith.constant 0 : index
    %c0_57 = arith.constant 0 : index
    %114 = vector.load %arg10[%c0_55, %c0_56, %c0_57] : memref<18x18x8xf32, #tpu.memory_space<vmem>>, vector<16x16x8xf32>
    %115 = vector.shape_cast %114 : vector<16x16x8xf32> to vector<256x8xf32>
    %c0_58 = arith.constant 0 : index
    %c0_59 = arith.constant 0 : index
    %116 = vector.load %arg11[%c0_58, %c0_59] : memref<256x72xf32, #tpu.memory_space<vmem>>, vector<256x8xf32>
    tpu.vector_store %arg11[%c0_58, %c0_59], %115 {strides = array<i32>} : memref<256x72xf32, #tpu.memory_space<vmem>>, vector<256x8xf32>,
    %c0_60 = arith.constant 0 : index
    %c1_61 = arith.constant 1 : index
    %c0_62 = arith.constant 0 : index
    %117 = vector.load %arg10[%c0_60, %c1_61, %c0_62] : memref<18x18x8xf32, #tpu.memory_space<vmem>>, vector<16x16x8xf32>
    %118 = vector.shape_cast %117 : vector<16x16x8xf32> to vector<256x8xf32>
    %c0_63 = arith.constant 0 : index
    %c8_64 = arith.constant 8 : index
    %119 = vector.load %arg11[%c0_63, %c8_64] : memref<256x72xf32, #tpu.memory_space<vmem>>, vector<256x8xf32>
    tpu.vector_store %arg11[%c0_63, %c8_64], %118 {strides = array<i32>} : memref<256x72xf32, #tpu.memory_space<vmem>>, vector<256x8xf32>,
    %c0_65 = arith.constant 0 : index
    %c2 = arith.constant 2 : index
    %c0_66 = arith.constant 0 : index
    %120 = vector.load %arg10[%c0_65, %c2, %c0_66] : memref<18x18x8xf32, #tpu.memory_space<vmem>>, vector<16x16x8xf32>
    %121 = vector.shape_cast %120 : vector<16x16x8xf32> to vector<256x8xf32>
    %c0_67 = arith.constant 0 : index
    %c16_68 = arith.constant 16 : index
    %122 = vector.load %arg11[%c0_67, %c16_68] : memref<256x72xf32, #tpu.memory_space<vmem>>, vector<256x8xf32>
    tpu.vector_store %arg11[%c0_67, %c16_68], %121 {strides = array<i32>} : memref<256x72xf32, #tpu.memory_space<vmem>>, vector<256x8xf32>,
    %c1_69 = arith.constant 1 : index
    %c0_70 = arith.constant 0 : index
    %c0_71 = arith.constant 0 : index
    %123 = vector.load %arg10[%c1_69, %c0_70, %c0_71] : memref<18x18x8xf32, #tpu.memory_space<vmem>>, vector<16x16x8xf32>
    %124 = vector.shape_cast %123 : vector<16x16x8xf32> to vector<256x8xf32>
    %c0_72 = arith.constant 0 : index
    %c24_73 = arith.constant 24 : index
    %125 = vector.load %arg11[%c0_72, %c24_73] : memref<256x72xf32, #tpu.memory_space<vmem>>, vector<256x8xf32>
    tpu.vector_store %arg11[%c0_72, %c24_73], %124 {strides = array<i32>} : memref<256x72xf32, #tpu.memory_space<vmem>>, vector<256x8xf32>,
    %c1_74 = arith.constant 1 : index
    %c1_75 = arith.constant 1 : index
    %c0_76 = arith.constant 0 : index
    %126 = vector.load %arg10[%c1_74, %c1_75, %c0_76] : memref<18x18x8xf32, #tpu.memory_space<vmem>>, vector<16x16x8xf32>
    %127 = vector.shape_cast %126 : vector<16x16x8xf32> to vector<256x8xf32>
    %c0_77 = arith.constant 0 : index
    %c32_78 = arith.constant 32 : index
    %128 = vector.load %arg11[%c0_77, %c32_78] : memref<256x72xf32, #tpu.memory_space<vmem>>, vector<256x8xf32>
    tpu.vector_store %arg11[%c0_77, %c32_78], %127 {strides = array<i32>} : memref<256x72xf32, #tpu.memory_space<vmem>>, vector<256x8xf32>,
    %c1_79 = arith.constant 1 : index
    %c2_80 = arith.constant 2 : index
    %c0_81 = arith.constant 0 : index
    %129 = vector.load %arg10[%c1_79, %c2_80, %c0_81] : memref<18x18x8xf32, #tpu.memory_space<vmem>>, vector<16x16x8xf32>
    %130 = vector.shape_cast %129 : vector<16x16x8xf32> to vector<256x8xf32>
    %c0_82 = arith.constant 0 : index
    %c40_83 = arith.constant 40 : index
    %131 = vector.load %arg11[%c0_82, %c40_83] : memref<256x72xf32, #tpu.memory_space<vmem>>, vector<256x8xf32>
    tpu.vector_store %arg11[%c0_82, %c40_83], %130 {strides = array<i32>} : memref<256x72xf32, #tpu.memory_space<vmem>>, vector<256x8xf32>,
    %c2_84 = arith.constant 2 : index
    %c0_85 = arith.constant 0 : index
    %c0_86 = arith.constant 0 : index
    %132 = vector.load %arg10[%c2_84, %c0_85, %c0_86] : memref<18x18x8xf32, #tpu.memory_space<vmem>>, vector<16x16x8xf32>
    %133 = vector.shape_cast %132 : vector<16x16x8xf32> to vector<256x8xf32>
    %c0_87 = arith.constant 0 : index
    %c48_88 = arith.constant 48 : index
    %134 = vector.load %arg11[%c0_87, %c48_88] : memref<256x72xf32, #tpu.memory_space<vmem>>, vector<256x8xf32>
    tpu.vector_store %arg11[%c0_87, %c48_88], %133 {strides = array<i32>} : memref<256x72xf32, #tpu.memory_space<vmem>>, vector<256x8xf32>,
    %c2_89 = arith.constant 2 : index
    %c1_90 = arith.constant 1 : index
    %c0_91 = arith.constant 0 : index
    %135 = vector.load %arg10[%c2_89, %c1_90, %c0_91] : memref<18x18x8xf32, #tpu.memory_space<vmem>>, vector<16x16x8xf32>
    %136 = vector.shape_cast %135 : vector<16x16x8xf32> to vector<256x8xf32>
    %c0_92 = arith.constant 0 : index
    %c56_93 = arith.constant 56 : index
    %137 = vector.load %arg11[%c0_92, %c56_93] : memref<256x72xf32, #tpu.memory_space<vmem>>, vector<256x8xf32>
    tpu.vector_store %arg11[%c0_92, %c56_93], %136 {strides = array<i32>} : memref<256x72xf32, #tpu.memory_space<vmem>>, vector<256x8xf32>,
    %c2_94 = arith.constant 2 : index
    %c2_95 = arith.constant 2 : index
    %c0_96 = arith.constant 0 : index
    %138 = vector.load %arg10[%c2_94, %c2_95, %c0_96] : memref<18x18x8xf32, #tpu.memory_space<vmem>>, vector<16x16x8xf32>
    %139 = vector.shape_cast %138 : vector<16x16x8xf32> to vector<256x8xf32>
    %c0_97 = arith.constant 0 : index
    %c64_98 = arith.constant 64 : index
    %140 = vector.load %arg11[%c0_97, %c64_98] : memref<256x72xf32, #tpu.memory_space<vmem>>, vector<256x8xf32>
    tpu.vector_store %arg11[%c0_97, %c64_98], %139 {strides = array<i32>} : memref<256x72xf32, #tpu.memory_space<vmem>>, vector<256x8xf32>,
    %c0_99 = arith.constant 0 : index
    %c0_100 = arith.constant 0 : index
    %141 = vector.load %arg11[%c0_99, %c0_100] : memref<256x72xf32, #tpu.memory_space<vmem>>, vector<256x72xf32>
    %c0_101 = arith.constant 0 : index
    %c0_102 = arith.constant 0 : index
    %142 = vector.load %arg6[%c0_101, %c0_102] : memref<72x8xf32, #tpu.memory_space<vmem>>, vector<72x8xf32>
    %cst_103 = arith.constant dense<0.000000e+00> : vector<256x8xf32>
    %143 = tpu.matmul %141, %142, %cst_103 {dimension_numbers = #tpu.dot_dimension_numbers<[1], [0], [0], [1], [0, 0, 1, 1], [], []>} : vector<256x72xf32>, vector<72x8xf32>, vector<256x8xf32> -> vector<256x8xf32>
    %c0_104 = arith.constant 0 : index
    %c0_105 = arith.constant 0 : index
    %144 = vector.load %arg7[%c0_104, %c0_105] : memref<1x8xf32, #tpu.memory_space<vmem>>, vector<1x8xf32>
    %145 = vector.broadcast %144 : vector<1x8xf32> to vector<256x8xf32>
    %146 = arith.addf %143, %145 : vector<256x8xf32>
    %cst_106 = arith.constant 5.000000e-01 : f32
    %147 = vector.broadcast %cst_106 : f32 to vector<256x8xf32>
    %148 = arith.mulf %147, %146 : vector<256x8xf32>
    %cst_107 = arith.constant 0.707106769 : f32
    %149 = vector.broadcast %cst_107 : f32 to vector<256x8xf32>
    %150 = arith.mulf %146, %149 : vector<256x8xf32>
    %151 = math.absf %150 : vector<256x8xf32>
    %cst_108 = arith.constant 0.327591091 : f32
    %152 = vector.broadcast %cst_108 : f32 to vector<256x8xf32>
    %153 = arith.mulf %152, %151 : vector<256x8xf32>
    %cst_109 = arith.constant 1.000000e+00 : f32
    %154 = vector.broadcast %cst_109 : f32 to vector<256x8xf32>
    %155 = arith.addf %154, %153 : vector<256x8xf32>
    %156 = tpu.reciprocal %155 {approx = true} : vector<256x8xf32> -> vector<256x8xf32>
    %157 = arith.mulf %155, %156 : vector<256x8xf32>
    %cst_110 = arith.constant 2.000000e+00 : f32
    %158 = vector.broadcast %cst_110 : f32 to vector<256x8xf32>
    %159 = arith.subf %158, %157 : vector<256x8xf32>
    %160 = arith.mulf %156, %159 : vector<256x8xf32>
    %cst_111 = arith.constant 1.06140542 : f32
    %161 = vector.broadcast %cst_111 : f32 to vector<256x8xf32>
    %162 = arith.mulf %160, %161 : vector<256x8xf32>
    %cst_112 = arith.constant -1.45315206 : f32
    %163 = vector.broadcast %cst_112 : f32 to vector<256x8xf32>
    %164 = arith.addf %163, %162 : vector<256x8xf32>
    %165 = arith.mulf %160, %164 : vector<256x8xf32>
    %cst_113 = arith.constant 1.42141378 : f32
    %166 = vector.broadcast %cst_113 : f32 to vector<256x8xf32>
    %167 = arith.addf %166, %165 : vector<256x8xf32>
    %168 = arith.mulf %160, %167 : vector<256x8xf32>
    %cst_114 = arith.constant -0.284496725 : f32
    %169 = vector.broadcast %cst_114 : f32 to vector<256x8xf32>
    %170 = arith.addf %169, %168 : vector<256x8xf32>
    %171 = arith.mulf %160, %170 : vector<256x8xf32>
    %cst_115 = arith.constant 0.254829586 : f32
    %172 = vector.broadcast %cst_115 : f32 to vector<256x8xf32>
    %173 = arith.addf %172, %171 : vector<256x8xf32>
    %174 = arith.mulf %160, %173 : vector<256x8xf32>
    %cst_116 = arith.constant 0.000000e+00 : f32
    %175 = vector.broadcast %cst_116 : f32 to vector<256x8xf32>
    %176 = arith.subf %175, %151 : vector<256x8xf32>
    %177 = arith.mulf %176, %151 : vector<256x8xf32>
    %178 = math.exp %177 : vector<256x8xf32>
    %179 = arith.mulf %174, %178 : vector<256x8xf32>
    %cst_117 = arith.constant 1.000000e+00 : f32
    %180 = vector.broadcast %cst_117 : f32 to vector<256x8xf32>
    %181 = arith.subf %180, %179 : vector<256x8xf32>
    %cst_118 = arith.constant 0.000000e+00 : f32
    %182 = vector.broadcast %cst_118 : f32 to vector<256x8xf32>
    %183 = arith.cmpf oge, %150, %182 : vector<256x8xf32>
    %cst_119 = arith.constant 0.000000e+00 : f32
    %184 = vector.broadcast %cst_119 : f32 to vector<256x8xf32>
    %185 = arith.subf %184, %181 : vector<256x8xf32>
    %186 = arith.select %183, %181, %185 : vector<256x8xi1>, vector<256x8xf32>
    %cst_120 = arith.constant 1.000000e+00 : f32
    %187 = vector.broadcast %cst_120 : f32 to vector<256x8xf32>
    %188 = arith.addf %187, %186 : vector<256x8xf32>
    %189 = arith.mulf %148, %188 : vector<256x8xf32>
    %c0_121 = arith.constant 0 : index
    %c0_122 = arith.constant 0 : index
    %c0_123 = arith.constant 0 : index
    %190 = vector.load %arg8[%c0_121, %c0_122, %c0_123] : memref<1x256x8xf32, #tpu.memory_space<vmem>>, vector<1x256x8xf32>
    %191 = vector.shape_cast %190 : vector<1x256x8xf32> to vector<256x8xf32>
    %192 = vector.shape_cast %189 : vector<256x8xf32> to vector<1x256x8xf32>
    tpu.vector_store %arg8[%c0_121, %c0_122, %c0_123], %192 {strides = array<i32>} : memref<1x256x8xf32, #tpu.memory_space<vmem>>, vector<1x256x8xf32>,
    return
  }
  func.func @transform_0(%arg0: i32) -> (i32, i32, i32, i32) {
    %c0_i32 = arith.constant 0 : i32
    %c0_i32_0 = arith.constant 0 : i32
    %c0_i32_1 = arith.constant 0 : i32
    %c0_i32_2 = arith.constant 0 : i32
    return %arg0, %c0_i32, %c0_i32_0, %c0_i32_1 : i32, i32, i32, i32
  }
  func.func @transform_1(%arg0: i32) -> (i32, i32, i32) {
    %c0_i32 = arith.constant 0 : i32
    %c0_i32_0 = arith.constant 0 : i32
    %c0_i32_1 = arith.constant 0 : i32
    return %arg0, %c0_i32, %c0_i32_0 : i32, i32, i32
  }
  func.func @transform_2(%arg0: i32) -> (i32, i32) {
    %c0_i32 = arith.constant 0 : i32
    %c0_i32_0 = arith.constant 0 : i32
    %c0_i32_1 = arith.constant 0 : i32
    return %c0_i32, %c0_i32_0 : i32, i32
  }
  func.func @transform_3(%arg0: i32) -> (i32, i32) {
    %c0_i32 = arith.constant 0 : i32
    %c0_i32_0 = arith.constant 0 : i32
    %c0_i32_1 = arith.constant 0 : i32
    return %c0_i32, %c0_i32_0 : i32, i32
  }
  func.func @transform_4(%arg0: i32) -> (i32, i32) {
    %c0_i32 = arith.constant 0 : i32
    %c0_i32_0 = arith.constant 0 : i32
    %c0_i32_1 = arith.constant 0 : i32
    return %c0_i32, %c0_i32_0 : i32, i32
  }
  func.func @transform_5(%arg0: i32) -> (i32, i32) {
    %c0_i32 = arith.constant 0 : i32
    %c0_i32_0 = arith.constant 0 : i32
    %c0_i32_1 = arith.constant 0 : i32
    return %c0_i32, %c0_i32_0 : i32, i32
  }
  func.func @transform_6(%arg0: i32) -> (i32, i32) {
    %c0_i32 = arith.constant 0 : i32
    %c0_i32_0 = arith.constant 0 : i32
    %c0_i32_1 = arith.constant 0 : i32
    return %c0_i32, %c0_i32_0 : i32, i32
  }
  func.func @transform_7(%arg0: i32) -> (i32, i32, i32) {
    %c0_i32 = arith.constant 0 : i32
    %c0_i32_0 = arith.constant 0 : i32
    %c0_i32_1 = arith.constant 0 : i32
    return %arg0, %c0_i32, %c0_i32_0 : i32, i32, i32
  }
}

</mosaic_0001>

<llo_original>
// kernel: unet_up_forward.1
$region0: #{unet_up_forward.1}
  #allocation0 [shape = 'u32[]', space=smem, size = 0x4, offset = 0x4, fixed_abs, tag = 'smem constant byte address 0x4 - core index']
  #allocation1 [shape = 'u32[72,128]{1,0:T(1,128)}', space=vmem, size = 0x9000, scoped, tag = 'internal scratch']
  #allocation2 [shape = 'f32[256,144]{1,0:T(8,128)}', space=vmem, size = 0x40000, scoped, tag = 'scratch operand']
  #allocation3 [shape = 'f32[18,18,8]{2,1,0:T(8,128)}', space=vmem, size = 0x36000, scoped, tag = 'scratch operand']
  #allocation4 [shape = 'f32[256,72]{1,0:T(8,128)}', space=vmem, size = 0x20000, scoped, tag = 'scratch operand']
  %s0 = inlined_call_operand.vmem [shape: f32[2,18,18,8], index: 0, kind: input, shape index: {}]
  %s1 = inlined_call_operand.vmem [shape: f32[2,64,8], index: 1, kind: input, shape index: {}]
  %s2 = inlined_call_operand.vmem [shape: f32[324,64], index: 2, kind: input, shape index: {}]
  %s3 = inlined_call_operand.vmem [shape: f32[144,8], index: 3, kind: input, shape index: {}]
  %s4 = inlined_call_operand.vmem [shape: f32[1,8], index: 4, kind: input, shape index: {}]
  %s5 = inlined_call_operand.vmem [shape: f32[72,8], index: 5, kind: input, shape index: {}]
  %s6 = inlined_call_operand.vmem [shape: f32[1,8], index: 6, kind: input, shape index: {}]
  %s7 = inlined_call_operand.vmem [shape: f32[2,256,8], index: 7, kind: output, shape index: {}]
  %s8 = sld [smem:[#allocation0]]
  $region61: #{unet_up_forward.1} parent=0
    _
  %s10 = ssub.s32 1, %s8
  %s11 = scalar_select 0, %s10, %s8
  loop: start=0, step=1, limit=4
  $region2: #{unet_up_forward.1} parent=0 // loop_pre_header
    _
  $region3: #{unet_up_forward.1} parent=0 // loop_header
    %s13 = sphi 0, %s17
    %p14 = scmp.ge.s32.totalorder %s13, 4
    %s23 = sphi 0, %s25
    %s26 = sphi 0, %s23
    %s27 = sphi 0, %s26
    %s43 = sphi 0, %s27
    %s49 = sphi 0, %s51
    %s52 = sphi 0, %s49
    %s53 = sphi 0, %s52
    %s69 = sphi 0, %s53
    %s73 = sphi 0, %s73
    %s75 = sphi 0, %s73
    %s76 = sphi 0, %s75
    %s90 = sphi 0, %s76
    %s94 = sphi 0, %s94
    %s96 = sphi 0, %s94
    %s97 = sphi 0, %s96
    %s111 = sphi 0, %s97
    %s115 = sphi 0, %s115
    %s117 = sphi 0, %s115
    %s118 = sphi 0, %s117
    %s132 = sphi 0, %s118
    %s136 = sphi 0, %s136
    %s138 = sphi 0, %s136
    %s139 = sphi 0, %s138
    %s153 = sphi 0, %s139
    %s157 = sphi 0, %s157
    %s159 = sphi 0, %s157
    %s160 = sphi 0, %s159
    %s174 = sphi 0, %s160
    %s180 = sphi 0, %s182
    %s183 = sphi 0, %s180
    %s184 = sphi 0, %s183
    %s200 = sphi 0, %s184
  $region4: #{unet_up_forward.1} parent=0 // loop_header_branch
    %16 = sbr.rel (%p14) target = $region8
  $region5: #{unet_up_forward.1} parent=0 // loop_body
    %s18 = ssub.s32 %s13, 1
    %s19 = ssub.s32 %s13, 2
    %s20 = sadd.s32 %s13, 1
    %s21 = ssub.s32 %s13, %s20
    %p22 = scmp.eq.s32.totalorder %s21, 0
    %s24 = sadd.s32 %s23, 1
    %s25 = scalar_select %p22, %s23, %s24
    %p28 = pneg %p22
    %p29 = scmp.eq.s32.totalorder %s13, 1
    %p30 = por %p28, %p29
    %p31 = scmp.ne.s32.totalorder %s23, %s26
    %p32 = scmp.eq.s32.totalorder %s13, 0
    %p33 = por %p31, %p32
    %p34 = scmp.ne.s32.totalorder %s23, %s26
    %p35 = scmp.eq.s32.totalorder %s18, 1
    %p36 = por %p34, %p35
    %p37 = scmp.ne.s32.totalorder %s26, %s27
    %p38 = scmp.eq.s32.totalorder %s18, 0
    %p39 = por %p37, %p38
    %p40 = scmp.ne.s32.totalorder %s26, %s27
    %p41 = scmp.eq.s32.totalorder %s19, 1
    %p42 = por %p40, %p41
    %p44 = scmp.ne.s32.totalorder %s27, %s43
    %p45 = scmp.eq.s32.totalorder %s19, 0
    %p46 = por %p44, %p45
    %s47 = ssub.s32 %s13, %s20
    %p48 = scmp.eq.s32.totalorder %s47, 0
    %s50 = sadd.s32 %s49, 1
    %s51 = scalar_select %p48, %s49, %s50
    %p54 = pneg %p48
    %p55 = scmp.eq.s32.totalorder %s13, 1
    %p56 = por %p54, %p55
    %p57 = scmp.ne.s32.totalorder %s49, %s52
    %p58 = scmp.eq.s32.totalorder %s13, 0
    %p59 = por %p57, %p58
    %p60 = scmp.ne.s32.totalorder %s49, %s52
    %p61 = scmp.eq.s32.totalorder %s18, 1
    %p62 = por %p60, %p61
    %p63 = scmp.ne.s32.totalorder %s52, %s53
    %p64 = scmp.eq.s32.totalorder %s18, 0
    %p65 = por %p63, %p64
    %p66 = scmp.ne.s32.totalorder %s52, %s53
    %p67 = scmp.eq.s32.totalorder %s19, 1
    %p68 = por %p66, %p67
    %p70 = scmp.ne.s32.totalorder %s53, %s69
    %p71 = scmp.eq.s32.totalorder %s19, 0
    %p72 = por %p70, %p71
    %s74 = sadd.s32 %s73, 1
    %p77 = scmp.eq.s32.totalorder %s13, 1
    %p78 = scmp.ne.s32.totalorder %s73, %s75
    %p79 = scmp.eq.s32.totalorder %s13, 0
    %p80 = por %p78, %p79
    %p81 = scmp.ne.s32.totalorder %s73, %s75
    %p82 = scmp.eq.s32.totalorder %s18, 1
    %p83 = por %p81, %p82
    %p84 = scmp.ne.s32.totalorder %s75, %s76
    %p85 = scmp.eq.s32.totalorder %s18, 0
    %p86 = por %p84, %p85
    %p87 = scmp.ne.s32.totalorder %s75, %s76
    %p88 = scmp.eq.s32.totalorder %s19, 1
    %p89 = por %p87, %p88
    %p91 = scmp.ne.s32.totalorder %s76, %s90
    %p92 = scmp.eq.s32.totalorder %s19, 0
    %p93 = por %p91, %p92
    %s95 = sadd.s32 %s94, 1
    %p98 = scmp.eq.s32.totalorder %s13, 1
    %p99 = scmp.ne.s32.totalorder %s94, %s96
    %p100 = scmp.eq.s32.totalorder %s13, 0
    %p101 = por %p99, %p100
    %p102 = scmp.ne.s32.totalorder %s94, %s96
    %p103 = scmp.eq.s32.totalorder %s18, 1
    %p104 = por %p102, %p103
    %p105 = scmp.ne.s32.totalorder %s96, %s97
    %p106 = scmp.eq.s32.totalorder %s18, 0
    %p107 = por %p105, %p106
    %p108 = scmp.ne.s32.totalorder %s96, %s97
    %p109 = scmp.eq.s32.totalorder %s19, 1
    %p110 = por %p108, %p109
    %p112 = scmp.ne.s32.totalorder %s97, %s111
    %p113 = scmp.eq.s32.totalorder %s19, 0
    %p114 = por %p112, %p113
    %s116 = sadd.s32 %s115, 1
    %p119 = scmp.eq.s32.totalorder %s13, 1
    %p120 = scmp.ne.s32.totalorder %s115, %s117
    %p121 = scmp.eq.s32.totalorder %s13, 0
    %p122 = por %p120, %p121
    %p123 = scmp.ne.s32.totalorder %s115, %s117
    %p124 = scmp.eq.s32.totalorder %s18, 1
    %p125 = por %p123, %p124
    %p126 = scmp.ne.s32.totalorder %s117, %s118
    %p127 = scmp.eq.s32.totalorder %s18, 0
    %p128 = por %p126, %p127
    %p129 = scmp.ne.s32.totalorder %s117, %s118
    %p130 = scmp.eq.s32.totalorder %s19, 1
    %p131 = por %p129, %p130
    %p133 = scmp.ne.s32.totalorder %s118, %s132
    %p134 = scmp.eq.s32.totalorder %s19, 0
    %p135 = por %p133, %p134
    %s137 = sadd.s32 %s136, 1
    %p140 = scmp.eq.s32.totalorder %s13, 1
    %p141 = scmp.ne.s32.totalorder %s136, %s138
    %p142 = scmp.eq.s32.totalorder %s13, 0
    %p143 = por %p141, %p142
    %p144 = scmp.ne.s32.totalorder %s136, %s138
    %p145 = scmp.eq.s32.totalorder %s18, 1
    %p146 = por %p144, %p145
    %p147 = scmp.ne.s32.totalorder %s138, %s139
    %p148 = scmp.eq.s32.totalorder %s18, 0
    %p149 = por %p147, %p148
    %p150 = scmp.ne.s32.totalorder %s138, %s139
    %p151 = scmp.eq.s32.totalorder %s19, 1
    %p152 = por %p150, %p151
    %p154 = scmp.ne.s32.totalorder %s139, %s153
    %p155 = scmp.eq.s32.totalorder %s19, 0
    %p156 = por %p154, %p155
    %s158 = sadd.s32 %s157, 1
    %p161 = scmp.eq.s32.totalorder %s13, 1
    %p162 = scmp.ne.s32.totalorder %s157, %s159
    %p163 = scmp.eq.s32.totalorder %s13, 0
    %p164 = por %p162, %p163
    %p165 = scmp.ne.s32.totalorder %s157, %s159
    %p166 = scmp.eq.s32.totalorder %s18, 1
    %p167 = por %p165, %p166
    %p168 = scmp.ne.s32.totalorder %s159, %s160
    %p169 = scmp.eq.s32.totalorder %s18, 0
    %p170 = por %p168, %p169
    %p171 = scmp.ne.s32.totalorder %s159, %s160
    %p172 = scmp.eq.s32.totalorder %s19, 1
    %p173 = por %p171, %p172
    %p175 = scmp.ne.s32.totalorder %s160, %s174
    %p176 = scmp.eq.s32.totalorder %s19, 0
    %p177 = por %p175, %p176
    %s178 = ssub.s32 %s13, %s20
    %p179 = scmp.eq.s32.totalorder %s178, 0
    %s181 = sadd.s32 %s180, 1
    %s182 = scalar_select %p179, %s180, %s181
    %p185 = pneg %p179
    %p186 = scmp.eq.s32.totalorder %s13, 1
    %p187 = por %p185, %p186
    %p188 = scmp.ne.s32.totalorder %s180, %s183
    %p189 = scmp.eq.s32.totalorder %s13, 0
    %p190 = por %p188, %p189
    %p191 = scmp.ne.s32.totalorder %s180, %s183
    %p192 = scmp.eq.s32.totalorder %s18, 1
    %p193 = por %p191, %p192
    %p194 = scmp.ne.s32.totalorder %s183, %s184
    %p195 = scmp.eq.s32.totalorder %s18, 0
    %p196 = por %p194, %p195
    %p197 = scmp.ne.s32.totalorder %s183, %s184
    %p198 = scmp.eq.s32.totalorder %s19, 1
    %p199 = por %p197, %p198
    %p201 = scmp.ne.s32.totalorder %s184, %s200
    %p202 = scmp.eq.s32.totalorder %s19, 0
    %p203 = por %p201, %p202
    %p204 = scmp.le.s32.totalorder 1, %s13
    %p205 = scmp.lt.s32.totalorder %s13, 3
    %p206 = pnand %p204, %p205
    %p207 = pneg %p206
    // Predicated region
    $region9: #{unet_up_forward.1} parent=5 // pred_check
      _
    $region10: #{unet_up_forward.1} parent=5 // pred_check_branch
      %209 = sbr.rel (%p206) target = $region12
    $region11: #{unet_up_forward.1} parent=5 // pred_region
      %s210 = ssub.s32 %s13, 1
      // Predicated region
      $region13: #{unet_up_forward.1} parent=11 // pred_check
        %p211 = pneg %p86
      $region14: #{unet_up_forward.1} parent=11 // pred_check_branch
        %213 = sbr.rel (%p211) target = $region16
      $region15: #{unet_up_forward.1} parent=11 // pred_region
        _
      $region16: #{unet_up_forward.1} parent=11 // pred_fallthru
        _
      // Predicated region
      $region17: #{unet_up_forward.1} parent=11 // pred_check
        %p214 = pneg %p107
      $region18: #{unet_up_forward.1} parent=11 // pred_check_branch
        %216 = sbr.rel (%p214) target = $region20
      $region19: #{unet_up_forward.1} parent=11 // pred_region
        _
      $region20: #{unet_up_forward.1} parent=11 // pred_fallthru
        _
      // Predicated region
      $region21: #{unet_up_forward.1} parent=11 // pred_check
        %p217 = pneg %p128
      $region22: #{unet_up_forward.1} parent=11 // pred_check_branch
        %219 = sbr.rel (%p217) target = $region24
      $region23: #{unet_up_forward.1} parent=11 // pred_region
        _
      $region24: #{unet_up_forward.1} parent=11 // pred_fallthru
        _
      // Predicated region
      $region25: #{unet_up_forward.1} parent=11 // pred_check
        %p220 = pneg %p149
      $region26: #{unet_up_forward.1} parent=11 // pred_check_branch
        %222 = sbr.rel (%p220) target = $region28
      $region27: #{unet_up_forward.1} parent=11 // pred_region
        _
      $region28: #{unet_up_forward.1} parent=11 // pred_fallthru
        _
      // Predicated region
      $region29: #{unet_up_forward.1} parent=11 // pred_check
        %p223 = pneg %p170
      $region30: #{unet_up_forward.1} parent=11 // pred_check_branch
        %225 = sbr.rel (%p223) target = $region32
      $region31: #{unet_up_forward.1} parent=11 // pred_region
        _
      $region32: #{unet_up_forward.1} parent=11 // pred_fallthru
        _
    $region12: #{unet_up_forward.1} parent=5 // pred_fallthru
      _
    %p226 = scmp.lt.s32.totalorder %s13, 2
    // Predicated region
    $region33: #{unet_up_forward.1} parent=5 // pred_check
      %p227 = pneg %p226
    $region34: #{unet_up_forward.1} parent=5 // pred_check_branch
      %229 = sbr.rel (%p227) target = $region36
    $region35: #{unet_up_forward.1} parent=5 // pred_region
      // Predicated region
      $region37: #{unet_up_forward.1} parent=35 // pred_check
        %p230 = pneg %p33
      $region38: #{unet_up_forward.1} parent=35 // pred_check_branch
        %232 = sbr.rel (%p230) target = $region40
      $region39: #{unet_up_forward.1} parent=35 // pred_region
        %p233 = scmp.lt.s32.totalorder %s13, 1
        %s234 = scalar_select %p233, %s13, 1
        %s235 = smul.addr %s234, 54
        %s236 = smul.addr %s235, 8
        %s237 = scalar_lea.vmem %s0, %s236
      $region40: #{unet_up_forward.1} parent=35 // pred_fallthru
        _
      // Predicated region
      $region41: #{unet_up_forward.1} parent=35 // pred_check
        %p238 = pneg %p59
      $region42: #{unet_up_forward.1} parent=35 // pred_check_branch
        %240 = sbr.rel (%p238) target = $region44
      $region43: #{unet_up_forward.1} parent=35 // pred_region
        %p241 = scmp.lt.s32.totalorder %s13, 1
        %s242 = scalar_select %p241, %s13, 1
        %s243 = smul.addr %s242, 8
        %s244 = smul.addr %s243, 8
        %s245 = scalar_lea.vmem %s1, %s244
      $region44: #{unet_up_forward.1} parent=35 // pred_fallthru
        _
    $region36: #{unet_up_forward.1} parent=5 // pred_fallthru
      _
    %p246 = scmp.le.s32.totalorder 1, %s13
    %p247 = scmp.lt.s32.totalorder %s13, 3
    %p248 = pnand %p246, %p247
    %p249 = pneg %p248
    // Predicated region
    $region45: #{unet_up_forward.1} parent=5 // pred_check
      _
    $region46: #{unet_up_forward.1} parent=5 // pred_check_branch
      %251 = sbr.rel (%p248) target = $region48
    $region47: #{unet_up_forward.1} parent=5 // pred_region
      %s252 = ssub.s32 %s13, 1
      %p253 = scmp.lt.s32.totalorder %s18, 1
      %s254 = scalar_select %p253, %s18, 1
      %s255 = smul.addr %s254, 54
      %s256 = smul.addr %s255, 8
      %s257 = scalar_lea.vmem %s0, %s256
      %p258 = pneg %p39
      %p259 = pneg %p36
      %p260 = scmp.lt.s32.totalorder %s18, 1
      %s261 = scalar_select %p260, %s18, 1
      %s262 = smul.addr %s261, 8
      %s263 = smul.addr %s262, 8
      %s264 = scalar_lea.vmem %s1, %s263
      %p265 = pneg %p65
      %p266 = pneg %p62
      %p267 = pneg %p86
      %p268 = pneg %p83
      %p269 = pneg %p107
      %p270 = pneg %p104
      %p271 = pneg %p128
      %p272 = pneg %p125
      %p273 = pneg %p149
      %p274 = pneg %p146
      %p275 = pneg %p170
      %p276 = pneg %p167
      %p277 = pneg %p196
      %p278 = pneg %p193
      %p279 = scmp.lt.s32.totalorder %s18, 1
      %s280 = scalar_select %p279, %s18, 1
      %s281 = smul.addr %s280, 32
      %s282 = smul.addr %s281, 8
      %s283 = scalar_lea.vmem %s7, %s282
      %p284 = scmp.lt.s32.totalorder %s18, 1
      %s285 = scalar_select %p284, %s18, 1
      %s286 = smul.addr %s285, 54
      %s287 = smul.addr %s286, 8
      %s288 = scalar_lea.vmem %s0, %s287
      %p289 = scmp.lt.s32.totalorder %s18, 1
      %s290 = scalar_select %p289, %s18, 1
      %s291 = smul.addr %s290, 8
      %s292 = smul.addr %s291, 8
      %s293 = scalar_lea.vmem %s1, %s292
      %p294 = scmp.lt.s32.totalorder %s18, 1
      %s295 = scalar_select %p294, %s18, 1
      %s296 = smul.addr %s295, 32
      %s297 = smul.addr %s296, 8
      %s298 = scalar_lea.vmem %s7, %s297
      %v299 = vld [vmem:[%s2] sm:$0xff]
      %v300 = vld [vmem:[%s2 + $0x8] sm:$0xff]
      %v301 = vld [vmem:[%s2 + $0x10] sm:$0xff]
      %v302 = vld [vmem:[%s2 + $0x18] sm:$0xff]
      %v303 = vld [vmem:[%s2 + $0x20] sm:$0xff]
      %v304 = vld [vmem:[%s2 + $0x28] sm:$0xff]
      %v305 = vld [vmem:[%s2 + $0x30] sm:$0xff]
      %v306 = vld [vmem:[%s2 + $0x38] sm:$0xff]
      %v307 = vld [vmem:[%s2 + $0x40] sm:$0xff]
      %v308 = vld [vmem:[%s2 + $0x48] sm:$0xff]
      %v309 = vld [vmem:[%s2 + $0x50] sm:$0xff]
      %v310 = vld [vmem:[%s2 + $0x58] sm:$0xff]
      %v311 = vld [vmem:[%s2 + $0x60] sm:$0xff]
      %v312 = vld [vmem:[%s2 + $0x68] sm:$0xff]
      %v313 = vld [vmem:[%s2 + $0x70] sm:$0xff]
      %v314 = vld [vmem:[%s2 + $0x78] sm:$0xff]
      %v315 = vld [vmem:[%s2 + $0x80] sm:$0xff]
      %v316 = vld [vmem:[%s2 + $0x88] sm:$0xff]
      %v317 = vld [vmem:[%s2 + $0x90] sm:$0xff]
      %v318 = vld [vmem:[%s2 + $0x98] sm:$0xff]
      %v319 = vld [vmem:[%s2 + $0xa0] sm:$0xff]
      %v320 = vld [vmem:[%s2 + $0xa8] sm:$0xff]
      %v321 = vld [vmem:[%s2 + $0xb0] sm:$0xff]
      %v322 = vld [vmem:[%s2 + $0xb8] sm:$0xff]
      %v323 = vld [vmem:[%s2 + $0xc0] sm:$0xff]
      %v324 = vld [vmem:[%s2 + $0xc8] sm:$0xff]
      %v325 = vld [vmem:[%s2 + $0xd0] sm:$0xff]
      %v326 = vld [vmem:[%s2 + $0xd8] sm:$0xff]
      %v327 = vld [vmem:[%s2 + $0xe0] sm:$0xff]
      %v328 = vld [vmem:[%s2 + $0xe8] sm:$0xff]
      %v329 = vld [vmem:[%s2 + $0xf0] sm:$0xff]
      %v330 = vld [vmem:[%s2 + $0xf8] sm:$0xff]
      %v331 = vld [vmem:[%s2 + $0x100] sm:$0xff]
      %v332 = vld [vmem:[%s2 + $0x108] sm:$0xff]
      %v333 = vld [vmem:[%s2 + $0x110] sm:$0xff]
      %v334 = vld [vmem:[%s2 + $0x118] sm:$0xff]
      %v335 = vld [vmem:[%s2 + $0x120] sm:$0xff]
      %v336 = vld [vmem:[%s2 + $0x128] sm:$0xff]
      %v337 = vld [vmem:[%s2 + $0x130] sm:$0xff]
      %v338 = vld [vmem:[%s2 + $0x138] sm:$0xff]
      %v339 = vld [vmem:[%s2 + $0x140] sm:$0xf]
      %v340 = vld [vmem:[%s293] sm:$0xff]
      %v341 = vld [vmem:[%s293 + $0x8] sm:$0xff]
      %v342 = vld [vmem:[%s293 + $0x10] sm:$0xff]
      %v343 = vld [vmem:[%s293 + $0x18] sm:$0xff]
      %v344 = vld [vmem:[%s293 + $0x20] sm:$0xff]
      %v345 = vld [vmem:[%s293 + $0x28] sm:$0xff]
      %v346 = vld [vmem:[%s293 + $0x30] sm:$0xff]
      %v347 = vld [vmem:[%s293 + $0x38] sm:$0xff]
      %vm348 = vcmask 523264
      %v350 = vsel %vm348, %v299, 0
      %v353 = vsel %vm348, %v300, 0
      %v356 = vsel %vm348, %v301, 0
      %v359 = vsel %vm348, %v302, 0
      %v362 = vsel %vm348, %v303, 0
      %v365 = vsel %vm348, %v304, 0
      %v368 = vsel %vm348, %v305, 0
      %v371 = vsel %vm348, %v306, 0
      %v374 = vsel %vm348, %v307, 0
      %v377 = vsel %vm348, %v308, 0
      %v380 = vsel %vm348, %v309, 0
      %v383 = vsel %vm348, %v310, 0
      %v386 = vsel %vm348, %v311, 0
      %v389 = vsel %vm348, %v312, 0
      %v392 = vsel %vm348, %v313, 0
      %v395 = vsel %vm348, %v314, 0
      %v398 = vsel %vm348, %v315, 0
      %v401 = vsel %vm348, %v316, 0
      %v404 = vsel %vm348, %v317, 0
      %v407 = vsel %vm348, %v318, 0
      %v410 = vsel %vm348, %v319, 0
      %v413 = vsel %vm348, %v320, 0
      %v416 = vsel %vm348, %v321, 0
      %v419 = vsel %vm348, %v322, 0
      %v422 = vsel %vm348, %v323, 0
      %v425 = vsel %vm348, %v324, 0
      %v428 = vsel %vm348, %v325, 0
      %v431 = vsel %vm348, %v326, 0
      %v434 = vsel %vm348, %v327, 0
      %v437 = vsel %vm348, %v328, 0
      %v440 = vsel %vm348, %v329, 0
      %v443 = vsel %vm348, %v330, 0
      %v446 = vsel %vm348, %v331, 0
      %v449 = vsel %vm348, %v332, 0
      %v452 = vsel %vm348, %v333, 0
      %v455 = vsel %vm348, %v334, 0
      %v458 = vsel %vm348, %v335, 0
      %v461 = vsel %vm348, %v336, 0
      %v464 = vsel %vm348, %v337, 0
      %v467 = vsel %vm348, %v338, 0
      %v470 = vsel %vm348, %v339, 0
      %472 = vmatpush.msra.mxu0 0.0
      %473 = vmatpush.msra.mxu0 0.0
      %474 = vmatpush.msra.mxu0 0.0
      %475 = vmatpush.msra.mxu0 0.0
      %476 = vmatpush.msra.mxu0 0.0
      %477 = vmatpush.msra.mxu0 0.0
      %478 = vmatpush.msra.mxu0 0.0
      %479 = vmatpush.msra.mxu0 0.0
      %480 = vmatpush.msra.mxu0 %v347
      %481 = vmatpush.msra.mxu0 %v346
      %482 = vmatpush.msra.mxu0 %v345
      %483 = vmatpush.msra.mxu0 %v344
      %484 = vmatpush.msra.mxu0 %v343
      %485 = vmatpush.msra.mxu0 %v342
      %486 = vmatpush.msra.mxu0 %v341
      %487 = vmatpush.msra.mxu0 %v340
      %488 = vmatmul.f32.gmra.mxu0 %v350
      %v489 = vpop.f32.mrf.mxu0
      %v490 = vadd.f32 0.0, %v489
      %491 = vmatmul.f32.gmra.mxu0 %v353
      %v492 = vpop.f32.mrf.mxu0
      %v493 = vadd.f32 0.0, %v492
      %494 = vmatmul.f32.gmra.mxu0 %v356
      %v495 = vpop.f32.mrf.mxu0
      %v496 = vadd.f32 0.0, %v495
      %497 = vmatmul.f32.gmra.mxu0 %v359
      %v498 = vpop.f32.mrf.mxu0
      %v499 = vadd.f32 0.0, %v498
      %500 = vmatmul.f32.gmra.mxu0 %v362
      %v501 = vpop.f32.mrf.mxu0
      %v502 = vadd.f32 0.0, %v501
      %503 = vmatmul.f32.gmra.mxu0 %v365
      %v504 = vpop.f32.mrf.mxu0
      %v505 = vadd.f32 0.0, %v504
      %506 = vmatmul.f32.gmra.mxu0 %v368
      %v507 = vpop.f32.mrf.mxu0
      %v508 = vadd.f32 0.0, %v507
      %509 = vmatmul.f32.gmra.mxu0 %v371
      %v510 = vpop.f32.mrf.mxu0
      %v511 = vadd.f32 0.0, %v510
      %512 = vmatmul.f32.gmra.mxu0 %v374
      %v513 = vpop.f32.mrf.mxu0
      %v514 = vadd.f32 0.0, %v513
      %515 = vmatmul.f32.gmra.mxu0 %v377
      %v516 = vpop.f32.mrf.mxu0
      %v517 = vadd.f32 0.0, %v516
      %518 = vmatmul.f32.gmra.mxu0 %v380
      %v519 = vpop.f32.mrf.mxu0
      %v520 = vadd.f32 0.0, %v519
      %521 = vmatmul.f32.gmra.mxu0 %v383
      %v522 = vpop.f32.mrf.mxu0
      %v523 = vadd.f32 0.0, %v522
      %524 = vmatmul.f32.gmra.mxu0 %v386
      %v525 = vpop.f32.mrf.mxu0
      %v526 = vadd.f32 0.0, %v525
      %527 = vmatmul.f32.gmra.mxu0 %v389
      %v528 = vpop.f32.mrf.mxu0
      %v529 = vadd.f32 0.0, %v528
      %530 = vmatmul.f32.gmra.mxu0 %v392
      %v531 = vpop.f32.mrf.mxu0
      %v532 = vadd.f32 0.0, %v531
      %533 = vmatmul.f32.gmra.mxu0 %v395
      %v534 = vpop.f32.mrf.mxu0
      %v535 = vadd.f32 0.0, %v534
      %536 = vmatmul.f32.gmra.mxu0 %v398
      %v537 = vpop.f32.mrf.mxu0
      %v538 = vadd.f32 0.0, %v537
      %539 = vmatmul.f32.gmra.mxu0 %v401
      %v540 = vpop.f32.mrf.mxu0
      %v541 = vadd.f32 0.0, %v540
      %542 = vmatmul.f32.gmra.mxu0 %v404
      %v543 = vpop.f32.mrf.mxu0
      %v544 = vadd.f32 0.0, %v543
      %545 = vmatmul.f32.gmra.mxu0 %v407
      %v546 = vpop.f32.mrf.mxu0
      %v547 = vadd.f32 0.0, %v546
      %548 = vmatmul.f32.gmra.mxu0 %v410
      %v549 = vpop.f32.mrf.mxu0
      %v550 = vadd.f32 0.0, %v549
      %551 = vmatmul.f32.gmra.mxu0 %v413
      %v552 = vpop.f32.mrf.mxu0
      %v553 = vadd.f32 0.0, %v552
      %554 = vmatmul.f32.gmra.mxu0 %v416
      %v555 = vpop.f32.mrf.mxu0
      %v556 = vadd.f32 0.0, %v555
      %557 = vmatmul.f32.gmra.mxu0 %v419
      %v558 = vpop.f32.mrf.mxu0
      %v559 = vadd.f32 0.0, %v558
      %560 = vmatmul.f32.gmra.mxu0 %v422
      %v561 = vpop.f32.mrf.mxu0
      %v562 = vadd.f32 0.0, %v561
      %563 = vmatmul.f32.gmra.mxu0 %v425
      %v564 = vpop.f32.mrf.mxu0
      %v565 = vadd.f32 0.0, %v564
      %566 = vmatmul.f32.gmra.mxu0 %v428
      %v567 = vpop.f32.mrf.mxu0
      %v568 = vadd.f32 0.0, %v567
      %569 = vmatmul.f32.gmra.mxu0 %v431
      %v570 = vpop.f32.mrf.mxu0
      %v571 = vadd.f32 0.0, %v570
      %572 = vmatmul.f32.gmra.mxu0 %v434
      %v573 = vpop.f32.mrf.mxu0
      %v574 = vadd.f32 0.0, %v573
      %575 = vmatmul.f32.gmra.mxu0 %v437
      %v576 = vpop.f32.mrf.mxu0
      %v577 = vadd.f32 0.0, %v576
      %578 = vmatmul.f32.gmra.mxu0 %v440
      %v579 = vpop.f32.mrf.mxu0
      %v580 = vadd.f32 0.0, %v579
      %581 = vmatmul.f32.gmra.mxu0 %v443
      %v582 = vpop.f32.mrf.mxu0
      %v583 = vadd.f32 0.0, %v582
      %584 = vmatmul.f32.gmra.mxu0 %v446
      %v585 = vpop.f32.mrf.mxu0
      %v586 = vadd.f32 0.0, %v585
      %587 = vmatmul.f32.gmra.mxu0 %v449
      %v588 = vpop.f32.mrf.mxu0
      %v589 = vadd.f32 0.0, %v588
      %590 = vmatmul.f32.gmra.mxu0 %v452
      %v591 = vpop.f32.mrf.mxu0
      %v592 = vadd.f32 0.0, %v591
      %593 = vmatmul.f32.gmra.mxu0 %v455
      %v594 = vpop.f32.mrf.mxu0
      %v595 = vadd.f32 0.0, %v594
      %596 = vmatmul.f32.gmra.mxu0 %v458
      %v597 = vpop.f32.mrf.mxu0
      %v598 = vadd.f32 0.0, %v597
      %599 = vmatmul.f32.gmra.mxu0 %v461
      %v600 = vpop.f32.mrf.mxu0
      %v601 = vadd.f32 0.0, %v600
      %602 = vmatmul.f32.gmra.mxu0 %v464
      %v603 = vpop.f32.mrf.mxu0
      %v604 = vadd.f32 0.0, %v603
      %605 = vmatmul.f32.gmra.mxu0 %v467
      %v606 = vpop.f32.mrf.mxu0
      %v607 = vadd.f32 0.0, %v606
      %608 = vmatmul.f32.gmra.mxu0 %v470
      %v609 = vpop.f32.mrf.mxu0
      %v610 = vadd.f32 0.0, %v609
      %611 = vdwg.mxu0
      %v653 = vrot.slane %v490, 2
      %v654 = vrot.slane %v490, 4
      %v655 = vrot.slane %v490, 6
      %v656 = vrot.slane %v493, 2
      %v657 = vrot.slane %v493, 4
      %v658 = vrot.slane %v493, 6
      %v659 = vrot.slane %v496, 2
      %v660 = vrot.slane %v496, 4
      %v661 = vrot.slane %v496, 6
      %v662 = vrot.slane %v499, 2
      %v663 = vrot.slane %v499, 4
      %v664 = vrot.slane %v499, 6
      %v665 = vrot.slane %v502, 2
      %v666 = vrot.slane %v502, 4
      %v667 = vrot.slane %v502, 6
      %v668 = vrot.slane %v505, 2
      %v669 = vrot.slane %v505, 4
      %v670 = vrot.slane %v505, 6
      %v671 = vrot.slane %v508, 2
      %v672 = vrot.slane %v508, 4
      %v673 = vrot.slane %v508, 6
      %v674 = vrot.slane %v511, 2
      %v675 = vrot.slane %v511, 4
      %v676 = vrot.slane %v511, 6
      %v677 = vrot.slane %v514, 2
      %v678 = vrot.slane %v514, 4
      %v679 = vrot.slane %v514, 6
      %v680 = vrot.slane %v517, 2
      %v681 = vrot.slane %v517, 4
      %v682 = vrot.slane %v517, 6
      %v683 = vrot.slane %v520, 2
      %v684 = vrot.slane %v520, 4
      %v685 = vrot.slane %v520, 6
      %v686 = vrot.slane %v523, 2
      %v687 = vrot.slane %v523, 4
      %v688 = vrot.slane %v523, 6
      %v689 = vrot.slane %v526, 2
      %v690 = vrot.slane %v526, 4
      %v691 = vrot.slane %v526, 6
      %v692 = vrot.slane %v529, 2
      %v693 = vrot.slane %v529, 4
      %v694 = vrot.slane %v529, 6
      %v695 = vrot.slane %v532, 2
      %v696 = vrot.slane %v532, 4
      %v697 = vrot.slane %v532, 6
      %v698 = vrot.slane %v535, 2
      %v699 = vrot.slane %v535, 4
      %v700 = vrot.slane %v535, 6
      %v701 = vrot.slane %v538, 2
      %v702 = vrot.slane %v538, 4
      %v703 = vrot.slane %v538, 6
      %v704 = vrot.slane %v541, 2
      %v705 = vrot.slane %v541, 4
      %v706 = vrot.slane %v541, 6
      %v707 = vrot.slane %v544, 2
      %v708 = vrot.slane %v544, 4
      %v709 = vrot.slane %v544, 6
      %v710 = vrot.slane %v547, 2
      %v711 = vrot.slane %v547, 4
      %v712 = vrot.slane %v547, 6
      %v713 = vrot.slane %v550, 2
      %v714 = vrot.slane %v550, 4
      %v715 = vrot.slane %v550, 6
      %v716 = vrot.slane %v553, 2
      %v717 = vrot.slane %v553, 4
      %v718 = vrot.slane %v553, 6
      %v719 = vrot.slane %v556, 2
      %v720 = vrot.slane %v556, 4
      %v721 = vrot.slane %v556, 6
      %v722 = vrot.slane %v559, 2
      %v723 = vrot.slane %v559, 4
      %v724 = vrot.slane %v559, 6
      %v725 = vrot.slane %v562, 2
      %v726 = vrot.slane %v562, 4
      %v727 = vrot.slane %v562, 6
      %v728 = vrot.slane %v565, 2
      %v729 = vrot.slane %v565, 4
      %v730 = vrot.slane %v565, 6
      %v731 = vrot.slane %v568, 2
      %v732 = vrot.slane %v568, 4
      %v733 = vrot.slane %v568, 6
      %v734 = vrot.slane %v571, 2
      %v735 = vrot.slane %v571, 4
      %v736 = vrot.slane %v571, 6
      %v737 = vrot.slane %v574, 2
      %v738 = vrot.slane %v574, 4
      %v739 = vrot.slane %v574, 6
      %v740 = vrot.slane %v577, 2
      %v741 = vrot.slane %v577, 4
      %v742 = vrot.slane %v577, 6
      %v743 = vrot.slane %v580, 2
      %v744 = vrot.slane %v580, 4
      %v745 = vrot.slane %v580, 6
      %v746 = vrot.slane %v583, 2
      %v747 = vrot.slane %v583, 4
      %v748 = vrot.slane %v583, 6
      %v749 = vrot.slane %v586, 2
      %v750 = vrot.slane %v586, 4
      %v751 = vrot.slane %v586, 6
      %v752 = vrot.slane %v589, 2
      %v753 = vrot.slane %v589, 4
      %v754 = vrot.slane %v589, 6
      %v755 = vrot.slane %v592, 2
      %v756 = vrot.slane %v592, 4
      %v757 = vrot.slane %v592, 6
      %v758 = vrot.slane %v595, 2
      %v759 = vrot.slane %v595, 4
      %v760 = vrot.slane %v595, 6
      %v761 = vrot.slane %v598, 2
      %v762 = vrot.slane %v598, 4
      %v763 = vrot.slane %v598, 6
      %v764 = vrot.slane %v601, 2
      %v765 = vrot.slane %v601, 4
      %v766 = vrot.slane %v601, 6
      %v767 = vrot.slane %v604, 2
      %v768 = vrot.slane %v604, 4
      %v769 = vrot.slane %v604, 6
      %v770 = vrot.slane %v607, 2
      %v771 = vrot.slane %v607, 4
      %v772 = vrot.slane %v607, 6
      %v773 = vrot.slane %v610, 2
      %v774 = vld [vmem:[%s288] sm:$0xff]
      %v775 = vld [vmem:[%s288 + $0x8] sm:$0xff]
      %v776 = vld [vmem:[%s288 + $0x10] sm:$0x3]
      %v777 = vld [vmem:[%s288 + $0x18] sm:$0xff]
      %v778 = vld [vmem:[%s288 + $0x20] sm:$0xff]
      %v779 = vld [vmem:[%s288 + $0x28] sm:$0x3]
      %v780 = vld [vmem:[%s288 + $0x30] sm:$0xff]
      %v781 = vld [vmem:[%s288 + $0x38] sm:$0xff]
      %v782 = vld [vmem:[%s288 + $0x40] sm:$0x3]
      %v783 = vld [vmem:[%s288 + $0x48] sm:$0xff]
      %v784 = vld [vmem:[%s288 + $0x50] sm:$0xff]
      %v785 = vld [vmem:[%s288 + $0x58] sm:$0x3]
      %v786 = vld [vmem:[%s288 + $0x60] sm:$0xff]
      %v787 = vld [vmem:[%s288 + $0x68] sm:$0xff]
      %v788 = vld [vmem:[%s288 + $0x70] sm:$0x3]
      %v789 = vld [vmem:[%s288 + $0x78] sm:$0xff]
      %v790 = vld [vmem:[%s288 + $0x80] sm:$0xff]
      %v791 = vld [vmem:[%s288 + $0x88] sm:$0x3]
      %v792 = vld [vmem:[%s288 + $0x90] sm:$0xff]
      %v793 = vld [vmem:[%s288 + $0x98] sm:$0xff]
      %v794 = vld [vmem:[%s288 + $0xa0] sm:$0x3]
      %v795 = vld [vmem:[%s288 + $0xa8] sm:$0xff]
      %v796 = vld [vmem:[%s288 + $0xb0] sm:$0xff]
      %v797 = vld [vmem:[%s288 + $0xb8] sm:$0x3]
      %v798 = vld [vmem:[%s288 + $0xc0] sm:$0xff]
      %v799 = vld [vmem:[%s288 + $0xc8] sm:$0xff]
      %v800 = vld [vmem:[%s288 + $0xd0] sm:$0x3]
      %v801 = vld [vmem:[%s288 + $0xd8] sm:$0xff]
      %v802 = vld [vmem:[%s288 + $0xe0] sm:$0xff]
      %v803 = vld [vmem:[%s288 + $0xe8] sm:$0x3]
      %v804 = vld [vmem:[%s288 + $0xf0] sm:$0xff]
      %v805 = vld [vmem:[%s288 + $0xf8] sm:$0xff]
      %v806 = vld [vmem:[%s288 + $0x100] sm:$0x3]
      %v807 = vld [vmem:[%s288 + $0x108] sm:$0xff]
      %v808 = vld [vmem:[%s288 + $0x110] sm:$0xff]
      %v809 = vld [vmem:[%s288 + $0x118] sm:$0x3]
      %v810 = vld [vmem:[%s288 + $0x120] sm:$0xff]
      %v811 = vld [vmem:[%s288 + $0x128] sm:$0xff]
      %v812 = vld [vmem:[%s288 + $0x130] sm:$0x3]
      %v813 = vld [vmem:[%s288 + $0x138] sm:$0xff]
      %v814 = vld [vmem:[%s288 + $0x140] sm:$0xff]
      %v815 = vld [vmem:[%s288 + $0x148] sm:$0x3]
      %v816 = vld [vmem:[%s288 + $0x150] sm:$0xff]
      %v817 = vld [vmem:[%s288 + $0x158] sm:$0xff]
      %v818 = vld [vmem:[%s288 + $0x160] sm:$0x3]
      %v819 = vld [vmem:[%s288 + $0x168] sm:$0xff]
      %v820 = vld [vmem:[%s288 + $0x170] sm:$0xff]
      %v821 = vld [vmem:[%s288 + $0x178] sm:$0x3]
      %v822 = vld [vmem:[%s288 + $0x180] sm:$0xff]
      %v823 = vld [vmem:[%s288 + $0x188] sm:$0xff]
      %v824 = vld [vmem:[%s288 + $0x190] sm:$0x3]
      %v825 = vld [vmem:[%s288 + $0x198] sm:$0xff]
      %v826 = vld [vmem:[%s288 + $0x1a0] sm:$0xff]
      %v827 = vld [vmem:[%s288 + $0x1a8] sm:$0x3]
      %vm828 = vcmask 64512
      %829 = vst.msk [vmem:[#allocation2] sm:$0xff] %vm828, %v774
      %830 = vst.msk [vmem:[#allocation2 + $0x10] sm:$0xff] %vm828, %v775
      %831 = vst.msk [vmem:[#allocation2 + $0x20] sm:$0xff] %vm828, %v777
      %832 = vst.msk [vmem:[#allocation2 + $0x30] sm:$0xff] %vm828, %v778
      %833 = vst.msk [vmem:[#allocation2 + $0x40] sm:$0xff] %vm828, %v780
      %834 = vst.msk [vmem:[#allocation2 + $0x50] sm:$0xff] %vm828, %v781
      %835 = vst.msk [vmem:[#allocation2 + $0x60] sm:$0xff] %vm828, %v783
      %836 = vst.msk [vmem:[#allocation2 + $0x70] sm:$0xff] %vm828, %v784
      %837 = vst.msk [vmem:[#allocation2 + $0x80] sm:$0xff] %vm828, %v786
      %838 = vst.msk [vmem:[#allocation2 + $0x90] sm:$0xff] %vm828, %v787
      %839 = vst.msk [vmem:[#allocation2 + $0xa0] sm:$0xff] %vm828, %v789
      %840 = vst.msk [vmem:[#allocation2 + $0xb0] sm:$0xff] %vm828, %v790
      %841 = vst.msk [vmem:[#allocation2 + $0xc0] sm:$0xff] %vm828, %v792
      %842 = vst.msk [vmem:[#allocation2 + $0xd0] sm:$0xff] %vm828, %v793
      %843 = vst.msk [vmem:[#allocation2 + $0xe0] sm:$0xff] %vm828, %v795
      %844 = vst.msk [vmem:[#allocation2 + $0xf0] sm:$0xff] %vm828, %v796
      %845 = vst.msk [vmem:[#allocation2 + $0x100] sm:$0xff] %vm828, %v798
      %846 = vst.msk [vmem:[#allocation2 + $0x110] sm:$0xff] %vm828, %v799
      %847 = vst.msk [vmem:[#allocation2 + $0x120] sm:$0xff] %vm828, %v801
      %848 = vst.msk [vmem:[#allocation2 + $0x130] sm:$0xff] %vm828, %v802
      %849 = vst.msk [vmem:[#allocation2 + $0x140] sm:$0xff] %vm828, %v804
      %850 = vst.msk [vmem:[#allocation2 + $0x150] sm:$0xff] %vm828, %v805
      %851 = vst.msk [vmem:[#allocation2 + $0x160] sm:$0xff] %vm828, %v807
      %852 = vst.msk [vmem:[#allocation2 + $0x170] sm:$0xff] %vm828, %v808
      %853 = vst.msk [vmem:[#allocation2 + $0x180] sm:$0xff] %vm828, %v810
      %854 = vst.msk [vmem:[#allocation2 + $0x190] sm:$0xff] %vm828, %v811
      %855 = vst.msk [vmem:[#allocation2 + $0x1a0] sm:$0xff] %vm828, %v813
      %856 = vst.msk [vmem:[#allocation2 + $0x1b0] sm:$0xff] %vm828, %v814
      %857 = vst.msk [vmem:[#allocation2 + $0x1c0] sm:$0xff] %vm828, %v816
      %858 = vst.msk [vmem:[#allocation2 + $0x1d0] sm:$0xff] %vm828, %v817
      %859 = vst.msk [vmem:[#allocation2 + $0x1e0] sm:$0xff] %vm828, %v819
      %860 = vst.msk [vmem:[#allocation2 + $0x1f0] sm:$0xff] %vm828, %v820
      %861 = vst [vmem:[#allocation1] ss:$4 sm:$0xff] %v490
      %s862 = scalar_lea.vmem [#allocation1], 1
      %863 = vst [vmem:[%s862] ss:$4 sm:$0xff] %v653
      %s864 = scalar_lea.vmem [#allocation1], 2
      %865 = vst [vmem:[%s864] ss:$4 sm:$0xff] %v654
      %s866 = scalar_lea.vmem [#allocation1], 3
      %867 = vst [vmem:[%s866] ss:$4 sm:$0xff] %v655
      %s868 = scalar_lea.vmem [#allocation1], 32
      %869 = vst [vmem:[%s868] ss:$4 sm:$0xff] %v493
      %s870 = scalar_lea.vmem [#allocation1], 33
      %871 = vst [vmem:[%s870] ss:$4 sm:$0xff] %v656
      %s872 = scalar_lea.vmem [#allocation1], 34
      %873 = vst [vmem:[%s872] ss:$4 sm:$0xff] %v657
      %s874 = scalar_lea.vmem [#allocation1], 35
      %875 = vst [vmem:[%s874] ss:$4 sm:$0xff] %v658
      %v876 = vld.sshfl [vmem:[#allocation1] sm:$0xff pattern:$0x73625140]
      %v877 = vld.sshfl [vmem:[#allocation1 + $0x20] sm:$0xff pattern:$0x73625140]
      %878 = vst [vmem:[#allocation1] ss:$4 sm:$0xff] %v659
      %879 = vst [vmem:[%s862] ss:$4 sm:$0xff] %v660
      %880 = vst [vmem:[%s864] ss:$4 sm:$0xff] %v661
      %881 = vst [vmem:[%s866] ss:$4 sm:$0xff] %v499
      %882 = vst [vmem:[%s868] ss:$4 sm:$0xff] %v662
      %883 = vst [vmem:[%s870] ss:$4 sm:$0xff] %v663
      %884 = vst [vmem:[%s872] ss:$4 sm:$0xff] %v664
      %885 = vst [vmem:[%s874] ss:$4 sm:$0xff] %v502
      %v886 = vld.sshfl [vmem:[#allocation1] sm:$0xff pattern:$0x73625140]
      %v887 = vld.sshfl [vmem:[#allocation1 + $0x20] sm:$0xff pattern:$0x73625140]
      %888 = vst [vmem:[#allocation1] ss:$4 sm:$0xff] %v666
      %889 = vst [vmem:[%s862] ss:$4 sm:$0xff] %v667
      %890 = vst [vmem:[%s864] ss:$4 sm:$0xff] %v505
      %891 = vst [vmem:[%s866] ss:$4 sm:$0xff] %v668
      %892 = vst [vmem:[%s868] ss:$4 sm:$0xff] %v669
      %893 = vst [vmem:[%s870] ss:$4 sm:$0xff] %v670
      %894 = vst [vmem:[%s872] ss:$4 sm:$0xff] %v508
      %895 = vst [vmem:[%s874] ss:$4 sm:$0xff] %v671
      %v896 = vld.sshfl [vmem:[#allocation1] sm:$0xff pattern:$0x73625140]
      %v897 = vld.sshfl [vmem:[#allocation1 + $0x20] sm:$0xff pattern:$0x73625140]
      %898 = vst [vmem:[#allocation1] ss:$4 sm:$0xff] %v673
      %899 = vst [vmem:[%s862] ss:$4 sm:$0xff] %v511
      %900 = vst [vmem:[%s864] ss:$4 sm:$0xff] %v674
      %901 = vst [vmem:[%s866] ss:$4 sm:$0xff] %v675
      %902 = vst [vmem:[%s868] ss:$4 sm:$0xff] %v676
      %903 = vst [vmem:[%s870] ss:$4 sm:$0xff] %v514
      %904 = vst [vmem:[%s872] ss:$4 sm:$0xff] %v677
      %905 = vst [vmem:[%s874] ss:$4 sm:$0xff] %v678
      %v906 = vld.sshfl [vmem:[#allocation1] sm:$0xff pattern:$0x73625140]
      %v907 = vld.sshfl [vmem:[#allocation1 + $0x20] sm:$0xff pattern:$0x73625140]
      %908 = vst [vmem:[#allocation1] ss:$4 sm:$0xff] %v517
      %909 = vst [vmem:[%s862] ss:$4 sm:$0xff] %v680
      %910 = vst [vmem:[%s864] ss:$4 sm:$0xff] %v681
      %911 = vst [vmem:[%s866] ss:$4 sm:$0xff] %v682
      %912 = vst [vmem:[%s868] ss:$4 sm:$0xff] %v520
      %913 = vst [vmem:[%s870] ss:$4 sm:$0xff] %v683
      %914 = vst [vmem:[%s872] ss:$4 sm:$0xff] %v684
      %915 = vst [vmem:[%s874] ss:$4 sm:$0xff] %v685
      %v916 = vld.sshfl [vmem:[#allocation1] sm:$0xff pattern:$0x73625140]
      %v917 = vld.sshfl [vmem:[#allocation1 + $0x20] sm:$0xff pattern:$0x73625140]
      %918 = vst [vmem:[#allocation1] ss:$4 sm:$0xff] %v686
      %919 = vst [vmem:[%s862] ss:$4 sm:$0xff] %v687
      %920 = vst [vmem:[%s864] ss:$4 sm:$0xff] %v688
      %921 = vst [vmem:[%s866] ss:$4 sm:$0xff] %v526
      %922 = vst [vmem:[%s868] ss:$4 sm:$0xff] %v689
      %923 = vst [vmem:[%s870] ss:$4 sm:$0xff] %v690
      %924 = vst [vmem:[%s872] ss:$4 sm:$0xff] %v691
      %925 = vst [vmem:[%s874] ss:$4 sm:$0xff] %v529
      %v926 = vld.sshfl [vmem:[#allocation1] sm:$0xff pattern:$0x73625140]
      %v927 = vld.sshfl [vmem:[#allocation1 + $0x20] sm:$0xff pattern:$0x73625140]
      %928 = vst [vmem:[#allocation1] ss:$4 sm:$0xff] %v693
      %929 = vst [vmem:[%s862] ss:$4 sm:$0xff] %v694
      %930 = vst [vmem:[%s864] ss:$4 sm:$0xff] %v532
      %931 = vst [vmem:[%s866] ss:$4 sm:$0xff] %v695
      %932 = vst [vmem:[%s868] ss:$4 sm:$0xff] %v696
      %933 = vst [vmem:[%s870] ss:$4 sm:$0xff] %v697
      %934 = vst [vmem:[%s872] ss:$4 sm:$0xff] %v535
      %935 = vst [vmem:[%s874] ss:$4 sm:$0xff] %v698
      %v936 = vld.sshfl [vmem:[#allocation1] sm:$0xff pattern:$0x73625140]
      %v937 = vld.sshfl [vmem:[#allocation1 + $0x20] sm:$0xff pattern:$0x73625140]
      %938 = vst [vmem:[#allocation1] ss:$4 sm:$0xff] %v700
      %939 = vst [vmem:[%s862] ss:$4 sm:$0xff] %v538
      %940 = vst [vmem:[%s864] ss:$4 sm:$0xff] %v701
      %941 = vst [vmem:[%s866] ss:$4 sm:$0xff] %v702
      %942 = vst [vmem:[%s868] ss:$4 sm:$0xff] %v703
      %943 = vst [vmem:[%s870] ss:$4 sm:$0xff] %v541
      %944 = vst [vmem:[%s872] ss:$4 sm:$0xff] %v704
      %945 = vst [vmem:[%s874] ss:$4 sm:$0xff] %v705
      %v946 = vld.sshfl [vmem:[#allocation1] sm:$0xff pattern:$0x73625140]
      %v947 = vld.sshfl [vmem:[#allocation1 + $0x20] sm:$0xff pattern:$0x73625140]
      %948 = vst [vmem:[#allocation1] ss:$4 sm:$0xff] %v544
      %949 = vst [vmem:[%s862] ss:$4 sm:$0xff] %v707
      %950 = vst [vmem:[%s864] ss:$4 sm:$0xff] %v708
      %951 = vst [vmem:[%s866] ss:$4 sm:$0xff] %v709
      %952 = vst [vmem:[%s868] ss:$4 sm:$0xff] %v547
      %953 = vst [vmem:[%s870] ss:$4 sm:$0xff] %v710
      %954 = vst [vmem:[%s872] ss:$4 sm:$0xff] %v711
      %955 = vst [vmem:[%s874] ss:$4 sm:$0xff] %v712
      %v956 = vld.sshfl [vmem:[#allocation1] sm:$0xff pattern:$0x73625140]
      %v957 = vld.sshfl [vmem:[#allocation1 + $0x20] sm:$0xff pattern:$0x73625140]
      %958 = vst [vmem:[#allocation1] ss:$4 sm:$0xff] %v713
      %959 = vst [vmem:[%s862] ss:$4 sm:$0xff] %v714
      %960 = vst [vmem:[%s864] ss:$4 sm:$0xff] %v715
      %961 = vst [vmem:[%s866] ss:$4 sm:$0xff] %v553
      %962 = vst [vmem:[%s868] ss:$4 sm:$0xff] %v716
      %963 = vst [vmem:[%s870] ss:$4 sm:$0xff] %v717
      %964 = vst [vmem:[%s872] ss:$4 sm:$0xff] %v718
      %965 = vst [vmem:[%s874] ss:$4 sm:$0xff] %v556
      %v966 = vld.sshfl [vmem:[#allocation1] sm:$0xff pattern:$0x73625140]
      %v967 = vld.sshfl [vmem:[#allocation1 + $0x20] sm:$0xff pattern:$0x73625140]
      %968 = vst [vmem:[#allocation1] ss:$4 sm:$0xff] %v720
      %969 = vst [vmem:[%s862] ss:$4 sm:$0xff] %v721
      %970 = vst [vmem:[%s864] ss:$4 sm:$0xff] %v559
      %971 = vst [vmem:[%s866] ss:$4 sm:$0xff] %v722
      %972 = vst [vmem:[%s868] ss:$4 sm:$0xff] %v723
      %973 = vst [vmem:[%s870] ss:$4 sm:$0xff] %v724
      %974 = vst [vmem:[%s872] ss:$4 sm:$0xff] %v562
      %975 = vst [vmem:[%s874] ss:$4 sm:$0xff] %v725
      %v976 = vld.sshfl [vmem:[#allocation1] sm:$0xff pattern:$0x73625140]
      %v977 = vld.sshfl [vmem:[#allocation1 + $0x20] sm:$0xff pattern:$0x73625140]
      %978 = vst [vmem:[#allocation1] ss:$4 sm:$0xff] %v727
      %979 = vst [vmem:[%s862] ss:$4 sm:$0xff] %v565
      %980 = vst [vmem:[%s864] ss:$4 sm:$0xff] %v728
      %981 = vst [vmem:[%s866] ss:$4 sm:$0xff] %v729
      %982 = vst [vmem:[%s868] ss:$4 sm:$0xff] %v730
      %983 = vst [vmem:[%s870] ss:$4 sm:$0xff] %v568
      %984 = vst [vmem:[%s872] ss:$4 sm:$0xff] %v731
      %985 = vst [vmem:[%s874] ss:$4 sm:$0xff] %v732
      %v986 = vld.sshfl [vmem:[#allocation1] sm:$0xff pattern:$0x73625140]
      %v987 = vld.sshfl [vmem:[#allocation1 + $0x20] sm:$0xff pattern:$0x73625140]
      %988 = vst [vmem:[#allocation1] ss:$4 sm:$0xff] %v571
      %989 = vst [vmem:[%s862] ss:$4 sm:$0xff] %v734
      %990 = vst [vmem:[%s864] ss:$4 sm:$0xff] %v735
      %991 = vst [vmem:[%s866] ss:$4 sm:$0xff] %v736
      %992 = vst [vmem:[%s868] ss:$4 sm:$0xff] %v574
      %993 = vst [vmem:[%s870] ss:$4 sm:$0xff] %v737
      %994 = vst [vmem:[%s872] ss:$4 sm:$0xff] %v738
      %995 = vst [vmem:[%s874] ss:$4 sm:$0xff] %v739
      %v996 = vld.sshfl [vmem:[#allocation1] sm:$0xff pattern:$0x73625140]
      %v997 = vld.sshfl [vmem:[#allocation1 + $0x20] sm:$0xff pattern:$0x73625140]
      %998 = vst [vmem:[#allocation1] ss:$4 sm:$0xff] %v740
      %999 = vst [vmem:[%s862] ss:$4 sm:$0xff] %v741
      %1000 = vst [vmem:[%s864] ss:$4 sm:$0xff] %v742
      %1001 = vst [vmem:[%s866] ss:$4 sm:$0xff] %v580
      %1002 = vst [vmem:[%s868] ss:$4 sm:$0xff] %v743
      %1003 = vst [vmem:[%s870] ss:$4 sm:$0xff] %v744
      %1004 = vst [vmem:[%s872] ss:$4 sm:$0xff] %v745
      %1005 = vst [vmem:[%s874] ss:$4 sm:$0xff] %v583
      %v1006 = vld.sshfl [vmem:[#allocation1] sm:$0xff pattern:$0x73625140]
      %v1007 = vld.sshfl [vmem:[#allocation1 + $0x20] sm:$0xff pattern:$0x73625140]
      %1008 = vst [vmem:[#allocation1] ss:$4 sm:$0xff] %v747
      %1009 = vst [vmem:[%s862] ss:$4 sm:$0xff] %v748
      %1010 = vst [vmem:[%s864] ss:$4 sm:$0xff] %v586
      %1011 = vst [vmem:[%s866] ss:$4 sm:$0xff] %v749
      %1012 = vst [vmem:[%s868] ss:$4 sm:$0xff] %v750
      %1013 = vst [vmem:[%s870] ss:$4 sm:$0xff] %v751
      %1014 = vst [vmem:[%s872] ss:$4 sm:$0xff] %v589
      %1015 = vst [vmem:[%s874] ss:$4 sm:$0xff] %v752
      %v1016 = vld.sshfl [vmem:[#allocation1] sm:$0xff pattern:$0x73625140]
      %v1017 = vld.sshfl [vmem:[#allocation1 + $0x20] sm:$0xff pattern:$0x73625140]
      %1018 = vst [vmem:[#allocation1] ss:$4 sm:$0xff] %v754
      %1019 = vst [vmem:[%s862] ss:$4 sm:$0xff] %v592
      %1020 = vst [vmem:[%s864] ss:$4 sm:$0xff] %v755
      %1021 = vst [vmem:[%s866] ss:$4 sm:$0xff] %v756
      %1022 = vst [vmem:[%s868] ss:$4 sm:$0xff] %v757
      %1023 = vst [vmem:[%s870] ss:$4 sm:$0xff] %v595
      %1024 = vst [vmem:[%s872] ss:$4 sm:$0xff] %v758
      %1025 = vst [vmem:[%s874] ss:$4 sm:$0xff] %v759
      %v1026 = vld.sshfl [vmem:[#allocation1] sm:$0xff pattern:$0x73625140]
      %v1027 = vld.sshfl [vmem:[#allocation1 + $0x20] sm:$0xff pattern:$0x73625140]
      %1028 = vrot.lane.b32.xlu0 %v876, 8
      %v1029 = vpop.permute.xlu0 %1028
      %1030 = vrot.lane.b32.xlu0 %v877, 8
      %v1031 = vpop.permute.xlu0 %1030
      %1032 = vrot.lane.b32.xlu0 %v886, 8
      %v1033 = vpop.permute.xlu0 %1032
      %1034 = vrot.lane.b32.xlu0 %v887, 8
      %v1035 = vpop.permute.xlu0 %1034
      %1036 = vrot.lane.b32.xlu0 %v896, 8
      %v1037 = vpop.permute.xlu0 %1036
      %1038 = vrot.lane.b32.xlu0 %v897, 8
      %v1039 = vpop.permute.xlu0 %1038
      %1040 = vrot.lane.b32.xlu0 %v906, 8
      %v1041 = vpop.permute.xlu0 %1040
      %1042 = vrot.lane.b32.xlu0 %v907, 8
      %v1043 = vpop.permute.xlu0 %1042
      %1044 = vrot.lane.b32.xlu0 %v916, 8
      %v1045 = vpop.permute.xlu0 %1044
      %1046 = vrot.lane.b32.xlu0 %v917, 8
      %v1047 = vpop.permute.xlu0 %1046
      %1048 = vrot.lane.b32.xlu0 %v926, 8
      %v1049 = vpop.permute.xlu0 %1048
      %1050 = vrot.lane.b32.xlu0 %v927, 8
      %v1051 = vpop.permute.xlu0 %1050
      %1052 = vrot.lane.b32.xlu0 %v936, 8
      %v1053 = vpop.permute.xlu0 %1052
      %1054 = vrot.lane.b32.xlu0 %v937, 8
      %v1055 = vpop.permute.xlu0 %1054
      %1056 = vrot.lane.b32.xlu0 %v946, 8
      %v1057 = vpop.permute.xlu0 %1056
      %1058 = vrot.lane.b32.xlu0 %v947, 8
      %v1059 = vpop.permute.xlu0 %1058
      %1060 = vrot.lane.b32.xlu0 %v956, 8
      %v1061 = vpop.permute.xlu0 %1060
      %1062 = vrot.lane.b32.xlu0 %v957, 8
      %v1063 = vpop.permute.xlu0 %1062
      %1064 = vrot.lane.b32.xlu0 %v966, 8
      %v1065 = vpop.permute.xlu0 %1064
      %1066 = vrot.lane.b32.xlu0 %v967, 8
      %v1067 = vpop.permute.xlu0 %1066
      %1068 = vrot.lane.b32.xlu0 %v976, 8
      %v1069 = vpop.permute.xlu0 %1068
      %1070 = vrot.lane.b32.xlu0 %v977, 8
      %v1071 = vpop.permute.xlu0 %1070
      %1072 = vrot.lane.b32.xlu0 %v986, 8
      %v1073 = vpop.permute.xlu0 %1072
      %1074 = vrot.lane.b32.xlu0 %v987, 8
      %v1075 = vpop.permute.xlu0 %1074
      %1076 = vrot.lane.b32.xlu0 %v996, 8
      %v1077 = vpop.permute.xlu0 %1076
      %1078 = vrot.lane.b32.xlu0 %v997, 8
      %v1079 = vpop.permute.xlu0 %1078
      %1080 = vrot.lane.b32.xlu0 %v1006, 8
      %v1081 = vpop.permute.xlu0 %1080
      %1082 = vrot.lane.b32.xlu0 %v1007, 8
      %v1083 = vpop.permute.xlu0 %1082
      %1084 = vrot.lane.b32.xlu0 %v1016, 8
      %v1085 = vpop.permute.xlu0 %1084
      %1086 = vrot.lane.b32.xlu0 %v1017, 8
      %v1087 = vpop.permute.xlu0 %1086
      %1088 = vrot.lane.b32.xlu0 %v1026, 8
      %v1089 = vpop.permute.xlu0 %1088
      %1090 = vrot.lane.b32.xlu0 %v1027, 8
      %v1091 = vpop.permute.xlu0 %1090
      %vm1124 = vcmask 130112
      %1125 = vst.msk [vmem:[#allocation2] sm:$0xff] %vm1124, %v1029
      %1126 = vst.msk [vmem:[#allocation2 + $0x10] sm:$0xff] %vm1124, %v1031
      %1127 = vst.msk [vmem:[#allocation2 + $0x20] sm:$0xff] %vm1124, %v1033
      %1128 = vst.msk [vmem:[#allocation2 + $0x30] sm:$0xff] %vm1124, %v1035
      %1129 = vst.msk [vmem:[#allocation2 + $0x40] sm:$0xff] %vm1124, %v1037
      %1130 = vst.msk [vmem:[#allocation2 + $0x50] sm:$0xff] %vm1124, %v1039
      %1131 = vst.msk [vmem:[#allocation2 + $0x60] sm:$0xff] %vm1124, %v1041
      %1132 = vst.msk [vmem:[#allocation2 + $0x70] sm:$0xff] %vm1124, %v1043
      %1133 = vst.msk [vmem:[#allocation2 + $0x80] sm:$0xff] %vm1124, %v1045
      %1134 = vst.msk [vmem:[#allocation2 + $0x90] sm:$0xff] %vm1124, %v1047
      %1135 = vst.msk [vmem:[#allocation2 + $0xa0] sm:$0xff] %vm1124, %v1049
      %1136 = vst.msk [vmem:[#allocation2 + $0xb0] sm:$0xff] %vm1124, %v1051
      %1137 = vst.msk [vmem:[#allocation2 + $0xc0] sm:$0xff] %vm1124, %v1053
      %1138 = vst.msk [vmem:[#allocation2 + $0xd0] sm:$0xff] %vm1124, %v1055
      %1139 = vst.msk [vmem:[#allocation2 + $0xe0] sm:$0xff] %vm1124, %v1057
      %1140 = vst.msk [vmem:[#allocation2 + $0xf0] sm:$0xff] %vm1124, %v1059
      %1141 = vst.msk [vmem:[#allocation2 + $0x100] sm:$0xff] %vm1124, %v1061
      %1142 = vst.msk [vmem:[#allocation2 + $0x110] sm:$0xff] %vm1124, %v1063
      %1143 = vst.msk [vmem:[#allocation2 + $0x120] sm:$0xff] %vm1124, %v1065
      %1144 = vst.msk [vmem:[#allocation2 + $0x130] sm:$0xff] %vm1124, %v1067
      %1145 = vst.msk [vmem:[#allocation2 + $0x140] sm:$0xff] %vm1124, %v1069
      %1146 = vst.msk [vmem:[#allocation2 + $0x150] sm:$0xff] %vm1124, %v1071
      %1147 = vst.msk [vmem:[#allocation2 + $0x160] sm:$0xff] %vm1124, %v1073
      %1148 = vst.msk [vmem:[#allocation2 + $0x170] sm:$0xff] %vm1124, %v1075
      %1149 = vst.msk [vmem:[#allocation2 + $0x180] sm:$0xff] %vm1124, %v1077
      %1150 = vst.msk [vmem:[#allocation2 + $0x190] sm:$0xff] %vm1124, %v1079
      %1151 = vst.msk [vmem:[#allocation2 + $0x1a0] sm:$0xff] %vm1124, %v1081
      %1152 = vst.msk [vmem:[#allocation2 + $0x1b0] sm:$0xff] %vm1124, %v1083
      %1153 = vst.msk [vmem:[#allocation2 + $0x1c0] sm:$0xff] %vm1124, %v1085
      %1154 = vst.msk [vmem:[#allocation2 + $0x1d0] sm:$0xff] %vm1124, %v1087
      %1155 = vst.msk [vmem:[#allocation2 + $0x1e0] sm:$0xff] %vm1124, %v1089
      %1156 = vst.msk [vmem:[#allocation2 + $0x1f0] sm:$0xff] %vm1124, %v1091
      %vm1205 = vcmask 1046528
      %v1206 = vrot.slane %v774, 1
      %v1207 = vrot.slane %v775, 1
      %v1208 = vsel %vm1205, %v1206, %v1207
      %v1209 = vrot.slane %v776, 1
      %v1210 = vsel %vm1205, %v1207, %v1209
      %v1211 = vrot.slane %v777, 1
      %v1212 = vrot.slane %v778, 1
      %v1213 = vsel %vm1205, %v1211, %v1212
      %v1214 = vrot.slane %v779, 1
      %v1215 = vsel %vm1205, %v1212, %v1214
      %v1216 = vrot.slane %v780, 1
      %v1217 = vrot.slane %v781, 1
      %v1218 = vsel %vm1205, %v1216, %v1217
      %v1219 = vrot.slane %v782, 1
      %v1220 = vsel %vm1205, %v1217, %v1219
      %v1221 = vrot.slane %v783, 1
      %v1222 = vrot.slane %v784, 1
      %v1223 = vsel %vm1205, %v1221, %v1222
      %v1224 = vrot.slane %v785, 1
      %v1225 = vsel %vm1205, %v1222, %v1224
      %v1226 = vrot.slane %v786, 1
      %v1227 = vrot.slane %v787, 1
      %v1228 = vsel %vm1205, %v1226, %v1227
      %v1229 = vrot.slane %v788, 1
      %v1230 = vsel %vm1205, %v1227, %v1229
      %v1231 = vrot.slane %v789, 1
      %v1232 = vrot.slane %v790, 1
      %v1233 = vsel %vm1205, %v1231, %v1232
      %v1234 = vrot.slane %v791, 1
      %v1235 = vsel %vm1205, %v1232, %v1234
      %v1236 = vrot.slane %v792, 1
      %v1237 = vrot.slane %v793, 1
      %v1238 = vsel %vm1205, %v1236, %v1237
      %v1239 = vrot.slane %v794, 1
      %v1240 = vsel %vm1205, %v1237, %v1239
      %v1241 = vrot.slane %v795, 1
      %v1242 = vrot.slane %v796, 1
      %v1243 = vsel %vm1205, %v1241, %v1242
      %v1244 = vrot.slane %v797, 1
      %v1245 = vsel %vm1205, %v1242, %v1244
      %v1246 = vrot.slane %v798, 1
      %v1247 = vrot.slane %v799, 1
      %v1248 = vsel %vm1205, %v1246, %v1247
      %v1249 = vrot.slane %v800, 1
      %v1250 = vsel %vm1205, %v1247, %v1249
      %v1251 = vrot.slane %v801, 1
      %v1252 = vrot.slane %v802, 1
      %v1253 = vsel %vm1205, %v1251, %v1252
      %v1254 = vrot.slane %v803, 1
      %v1255 = vsel %vm1205, %v1252, %v1254
      %v1256 = vrot.slane %v804, 1
      %v1257 = vrot.slane %v805, 1
      %v1258 = vsel %vm1205, %v1256, %v1257
      %v1259 = vrot.slane %v806, 1
      %v1260 = vsel %vm1205, %v1257, %v1259
      %v1261 = vrot.slane %v807, 1
      %v1262 = vrot.slane %v808, 1
      %v1263 = vsel %vm1205, %v1261, %v1262
      %v1264 = vrot.slane %v809, 1
      %v1265 = vsel %vm1205, %v1262, %v1264
      %v1266 = vrot.slane %v810, 1
      %v1267 = vrot.slane %v811, 1
      %v1268 = vsel %vm1205, %v1266, %v1267
      %v1269 = vrot.slane %v812, 1
      %v1270 = vsel %vm1205, %v1267, %v1269
      %v1271 = vrot.slane %v813, 1
      %v1272 = vrot.slane %v814, 1
      %v1273 = vsel %vm1205, %v1271, %v1272
      %v1274 = vrot.slane %v815, 1
      %v1275 = vsel %vm1205, %v1272, %v1274
      %v1276 = vrot.slane %v816, 1
      %v1277 = vrot.slane %v817, 1
      %v1278 = vsel %vm1205, %v1276, %v1277
      %v1279 = vrot.slane %v818, 1
      %v1280 = vsel %vm1205, %v1277, %v1279
      %v1281 = vrot.slane %v819, 1
      %v1282 = vrot.slane %v820, 1
      %v1283 = vsel %vm1205, %v1281, %v1282
      %v1284 = vrot.slane %v821, 1
      %v1285 = vsel %vm1205, %v1282, %v1284
      %1286 = vrot.lane.b32.xlu0 %v1208, 16
      %v1287 = vpop.permute.xlu0 %1286
      %1288 = vrot.lane.b32.xlu0 %v1210, 16
      %v1289 = vpop.permute.xlu0 %1288
      %1290 = vrot.lane.b32.xlu0 %v1213, 16
      %v1291 = vpop.permute.xlu0 %1290
      %1292 = vrot.lane.b32.xlu0 %v1215, 16
      %v1293 = vpop.permute.xlu0 %1292
      %1294 = vrot.lane.b32.xlu0 %v1218, 16
      %v1295 = vpop.permute.xlu0 %1294
      %1296 = vrot.lane.b32.xlu0 %v1220, 16
      %v1297 = vpop.permute.xlu0 %1296
      %1298 = vrot.lane.b32.xlu0 %v1223, 16
      %v1299 = vpop.permute.xlu0 %1298
      %1300 = vrot.lane.b32.xlu0 %v1225, 16
      %v1301 = vpop.permute.xlu0 %1300
      %1302 = vrot.lane.b32.xlu0 %v1228, 16
      %v1303 = vpop.permute.xlu0 %1302
      %1304 = vrot.lane.b32.xlu0 %v1230, 16
      %v1305 = vpop.permute.xlu0 %1304
      %1306 = vrot.lane.b32.xlu0 %v1233, 16
      %v1307 = vpop.permute.xlu0 %1306
      %1308 = vrot.lane.b32.xlu0 %v1235, 16
      %v1309 = vpop.permute.xlu0 %1308
      %1310 = vrot.lane.b32.xlu0 %v1238, 16
      %v1311 = vpop.permute.xlu0 %1310
      %1312 = vrot.lane.b32.xlu0 %v1240, 16
      %v1313 = vpop.permute.xlu0 %1312
      %1314 = vrot.lane.b32.xlu0 %v1243, 16
      %v1315 = vpop.permute.xlu0 %1314
      %1316 = vrot.lane.b32.xlu0 %v1245, 16
      %v1317 = vpop.permute.xlu0 %1316
      %1318 = vrot.lane.b32.xlu0 %v1248, 16
      %v1319 = vpop.permute.xlu0 %1318
      %1320 = vrot.lane.b32.xlu0 %v1250, 16
      %v1321 = vpop.permute.xlu0 %1320
      %1322 = vrot.lane.b32.xlu0 %v1253, 16
      %v1323 = vpop.permute.xlu0 %1322
      %1324 = vrot.lane.b32.xlu0 %v1255, 16
      %v1325 = vpop.permute.xlu0 %1324
      %1326 = vrot.lane.b32.xlu0 %v1258, 16
      %v1327 = vpop.permute.xlu0 %1326
      %1328 = vrot.lane.b32.xlu0 %v1260, 16
      %v1329 = vpop.permute.xlu0 %1328
      %1330 = vrot.lane.b32.xlu0 %v1263, 16
      %v1331 = vpop.permute.xlu0 %1330
      %1332 = vrot.lane.b32.xlu0 %v1265, 16
      %v1333 = vpop.permute.xlu0 %1332
      %1334 = vrot.lane.b32.xlu0 %v1268, 16
      %v1335 = vpop.permute.xlu0 %1334
      %1336 = vrot.lane.b32.xlu0 %v1270, 16
      %v1337 = vpop.permute.xlu0 %1336
      %1338 = vrot.lane.b32.xlu0 %v1273, 16
      %v1339 = vpop.permute.xlu0 %1338
      %1340 = vrot.lane.b32.xlu0 %v1275, 16
      %v1341 = vpop.permute.xlu0 %1340
      %1342 = vrot.lane.b32.xlu0 %v1278, 16
      %v1343 = vpop.permute.xlu0 %1342
      %1344 = vrot.lane.b32.xlu0 %v1280, 16
      %v1345 = vpop.permute.xlu0 %1344
      %1346 = vrot.lane.b32.xlu0 %v1283, 16
      %v1347 = vpop.permute.xlu0 %1346
      %1348 = vrot.lane.b32.xlu0 %v1285, 16
      %v1349 = vpop.permute.xlu0 %1348
      %vm1382 = vcmask 195712
      %1383 = vst.msk [vmem:[#allocation2] sm:$0xff] %vm1382, %v1287
      %1384 = vst.msk [vmem:[#allocation2 + $0x10] sm:$0xff] %vm1382, %v1289
      %1385 = vst.msk [vmem:[#allocation2 + $0x20] sm:$0xff] %vm1382, %v1291
      %1386 = vst.msk [vmem:[#allocation2 + $0x30] sm:$0xff] %vm1382, %v1293
      %1387 = vst.msk [vmem:[#allocation2 + $0x40] sm:$0xff] %vm1382, %v1295
      %1388 = vst.msk [vmem:[#allocation2 + $0x50] sm:$0xff] %vm1382, %v1297
      %1389 = vst.msk [vmem:[#allocation2 + $0x60] sm:$0xff] %vm1382, %v1299
      %1390 = vst.msk [vmem:[#allocation2 + $0x70] sm:$0xff] %vm1382, %v1301
      %1391 = vst.msk [vmem:[#allocation2 + $0x80] sm:$0xff] %vm1382, %v1303
      %1392 = vst.msk [vmem:[#allocation2 + $0x90] sm:$0xff] %vm1382, %v1305
      %1393 = vst.msk [vmem:[#allocation2 + $0xa0] sm:$0xff] %vm1382, %v1307
      %1394 = vst.msk [vmem:[#allocation2 + $0xb0] sm:$0xff] %vm1382, %v1309
      %1395 = vst.msk [vmem:[#allocation2 + $0xc0] sm:$0xff] %vm1382, %v1311
      %1396 = vst.msk [vmem:[#allocation2 + $0xd0] sm:$0xff] %vm1382, %v1313
      %1397 = vst.msk [vmem:[#allocation2 + $0xe0] sm:$0xff] %vm1382, %v1315
      %1398 = vst.msk [vmem:[#allocation2 + $0xf0] sm:$0xff] %vm1382, %v1317
      %1399 = vst.msk [vmem:[#allocation2 + $0x100] sm:$0xff] %vm1382, %v1319
      %1400 = vst.msk [vmem:[#allocation2 + $0x110] sm:$0xff] %vm1382, %v1321
      %1401 = vst.msk [vmem:[#allocation2 + $0x120] sm:$0xff] %vm1382, %v1323
      %1402 = vst.msk [vmem:[#allocation2 + $0x130] sm:$0xff] %vm1382, %v1325
      %1403 = vst.msk [vmem:[#allocation2 + $0x140] sm:$0xff] %vm1382, %v1327
      %1404 = vst.msk [vmem:[#allocation2 + $0x150] sm:$0xff] %vm1382, %v1329
      %1405 = vst.msk [vmem:[#allocation2 + $0x160] sm:$0xff] %vm1382, %v1331
      %1406 = vst.msk [vmem:[#allocation2 + $0x170] sm:$0xff] %vm1382, %v1333
      %1407 = vst.msk [vmem:[#allocation2 + $0x180] sm:$0xff] %vm1382, %v1335
      %1408 = vst.msk [vmem:[#allocation2 + $0x190] sm:$0xff] %vm1382, %v1337
      %1409 = vst.msk [vmem:[#allocation2 + $0x1a0] sm:$0xff] %vm1382, %v1339
      %1410 = vst.msk [vmem:[#allocation2 + $0x1b0] sm:$0xff] %vm1382, %v1341
      %1411 = vst.msk [vmem:[#allocation2 + $0x1c0] sm:$0xff] %vm1382, %v1343
      %1412 = vst.msk [vmem:[#allocation2 + $0x1d0] sm:$0xff] %vm1382, %v1345
      %1413 = vst.msk [vmem:[#allocation2 + $0x1e0] sm:$0xff] %vm1382, %v1347
      %1414 = vst.msk [vmem:[#allocation2 + $0x1f0] sm:$0xff] %vm1382, %v1349
      %vm1415 = vcmask 1040384
      %vm1416 = vcmask 1042434
      %vm1417 = vmor %vm1415, %vm1416
      %vm1418 = vcmask 1044484
      %vm1419 = vmor %vm1417, %vm1418
      %vm1420 = vcmask 1046534
      %vm1421 = vmor %vm1419, %vm1420
      %v1422 = vrot.slane %v490, 7
      %v1423 = vrot.slane %v1422, 2
      %v1424 = vrot.slane %v653, 7
      %v1425 = vsel %vm1421, %v1423, %v1424
      %v1426 = vrot.slane %v1424, 2
      %v1427 = vrot.slane %v654, 7
      %v1428 = vsel %vm1421, %v1426, %v1427
      %v1429 = vrot.slane %v1427, 2
      %v1430 = vrot.slane %v655, 7
      %v1431 = vsel %vm1421, %v1429, %v1430
      %v1432 = vrot.slane %v1430, 2
      %v1433 = vrot.slane %v493, 7
      %v1434 = vsel %vm1421, %v1432, %v1433
      %v1435 = vrot.slane %v1433, 2
      %v1436 = vrot.slane %v656, 7
      %v1437 = vsel %vm1421, %v1435, %v1436
      %v1438 = vrot.slane %v1436, 2
      %v1439 = vrot.slane %v657, 7
      %v1440 = vsel %vm1421, %v1438, %v1439
      %v1441 = vrot.slane %v1439, 2
      %v1442 = vrot.slane %v658, 7
      %v1443 = vsel %vm1421, %v1441, %v1442
      %v1444 = vrot.slane %v1442, 2
      %v1445 = vrot.slane %v496, 7
      %v1446 = vsel %vm1421, %v1444, %v1445
      %v1447 = vrot.slane %v659, 7
      %v1448 = vrot.slane %v1447, 2
      %v1449 = vrot.slane %v660, 7
      %v1450 = vsel %vm1421, %v1448, %v1449
      %v1451 = vrot.slane %v1449, 2
      %v1452 = vrot.slane %v661, 7
      %v1453 = vsel %vm1421, %v1451, %v1452
      %v1454 = vrot.slane %v1452, 2
      %v1455 = vrot.slane %v499, 7
      %v1456 = vsel %vm1421, %v1454, %v1455
      %v1457 = vrot.slane %v1455, 2
      %v1458 = vrot.slane %v662, 7
      %v1459 = vsel %vm1421, %v1457, %v1458
      %v1460 = vrot.slane %v1458, 2
      %v1461 = vrot.slane %v663, 7
      %v1462 = vsel %vm1421, %v1460, %v1461
      %v1463 = vrot.slane %v1461, 2
      %v1464 = vrot.slane %v664, 7
      %v1465 = vsel %vm1421, %v1463, %v1464
      %v1466 = vrot.slane %v1464, 2
      %v1467 = vrot.slane %v502, 7
      %v1468 = vsel %vm1421, %v1466, %v1467
      %v1469 = vrot.slane %v1467, 2
      %v1470 = vrot.slane %v665, 7
      %v1471 = vsel %vm1421, %v1469, %v1470
      %v1472 = vrot.slane %v666, 7
      %v1473 = vrot.slane %v1472, 2
      %v1474 = vrot.slane %v667, 7
      %v1475 = vsel %vm1421, %v1473, %v1474
      %v1476 = vrot.slane %v1474, 2
      %v1477 = vrot.slane %v505, 7
      %v1478 = vsel %vm1421, %v1476, %v1477
      %v1479 = vrot.slane %v1477, 2
      %v1480 = vrot.slane %v668, 7
      %v1481 = vsel %vm1421, %v1479, %v1480
      %v1482 = vrot.slane %v1480, 2
      %v1483 = vrot.slane %v669, 7
      %v1484 = vsel %vm1421, %v1482, %v1483
      %v1485 = vrot.slane %v1483, 2
      %v1486 = vrot.slane %v670, 7
      %v1487 = vsel %vm1421, %v1485, %v1486
      %v1488 = vrot.slane %v1486, 2
      %v1489 = vrot.slane %v508, 7
      %v1490 = vsel %vm1421, %v1488, %v1489
      %v1491 = vrot.slane %v1489, 2
      %v1492 = vrot.slane %v671, 7
      %v1493 = vsel %vm1421, %v1491, %v1492
      %v1494 = vrot.slane %v1492, 2
      %v1495 = vrot.slane %v672, 7
      %v1496 = vsel %vm1421, %v1494, %v1495
      %v1497 = vrot.slane %v673, 7
      %v1498 = vrot.slane %v1497, 2
      %v1499 = vrot.slane %v511, 7
      %v1500 = vsel %vm1421, %v1498, %v1499
      %v1501 = vrot.slane %v1499, 2
      %v1502 = vrot.slane %v674, 7
      %v1503 = vsel %vm1421, %v1501, %v1502
      %v1504 = vrot.slane %v1502, 2
      %v1505 = vrot.slane %v675, 7
      %v1506 = vsel %vm1421, %v1504, %v1505
      %v1507 = vrot.slane %v1505, 2
      %v1508 = vrot.slane %v676, 7
      %v1509 = vsel %vm1421, %v1507, %v1508
      %v1510 = vrot.slane %v1508, 2
      %v1511 = vrot.slane %v514, 7
      %v1512 = vsel %vm1421, %v1510, %v1511
      %v1513 = vrot.slane %v1511, 2
      %v1514 = vrot.slane %v677, 7
      %v1515 = vsel %vm1421, %v1513, %v1514
      %v1516 = vrot.slane %v1514, 2
      %v1517 = vrot.slane %v678, 7
      %v1518 = vsel %vm1421, %v1516, %v1517
      %v1519 = vrot.slane %v1517, 2
      %v1520 = vrot.slane %v679, 7
      %v1521 = vsel %vm1421, %v1519, %v1520
      %v1522 = vrot.slane %v517, 7
      %v1523 = vrot.slane %v1522, 2
      %v1524 = vrot.slane %v680, 7
      %v1525 = vsel %vm1421, %v1523, %v1524
      %v1526 = vrot.slane %v1524, 2
      %v1527 = vrot.slane %v681, 7
      %v1528 = vsel %vm1421, %v1526, %v1527
      %v1529 = vrot.slane %v1527, 2
      %v1530 = vrot.slane %v682, 7
      %v1531 = vsel %vm1421, %v1529, %v1530
      %v1532 = vrot.slane %v1530, 2
      %v1533 = vrot.slane %v520, 7
      %v1534 = vsel %vm1421, %v1532, %v1533
      %v1535 = vrot.slane %v1533, 2
      %v1536 = vrot.slane %v683, 7
      %v1537 = vsel %vm1421, %v1535, %v1536
      %v1538 = vrot.slane %v1536, 2
      %v1539 = vrot.slane %v684, 7
      %v1540 = vsel %vm1421, %v1538, %v1539
      %v1541 = vrot.slane %v1539, 2
      %v1542 = vrot.slane %v685, 7
      %v1543 = vsel %vm1421, %v1541, %v1542
      %v1544 = vrot.slane %v1542, 2
      %v1545 = vrot.slane %v523, 7
      %v1546 = vsel %vm1421, %v1544, %v1545
      %v1547 = vrot.slane %v686, 7
      %v1548 = vrot.slane %v1547, 2
      %v1549 = vrot.slane %v687, 7
      %v1550 = vsel %vm1421, %v1548, %v1549
      %v1551 = vrot.slane %v1549, 2
      %v1552 = vrot.slane %v688, 7
      %v1553 = vsel %vm1421, %v1551, %v1552
      %v1554 = vrot.slane %v1552, 2
      %v1555 = vrot.slane %v526, 7
      %v1556 = vsel %vm1421, %v1554, %v1555
      %v1557 = vrot.slane %v1555, 2
      %v1558 = vrot.slane %v689, 7
      %v1559 = vsel %vm1421, %v1557, %v1558
      %v1560 = vrot.slane %v1558, 2
      %v1561 = vrot.slane %v690, 7
      %v1562 = vsel %vm1421, %v1560, %v1561
      %v1563 = vrot.slane %v1561, 2
      %v1564 = vrot.slane %v691, 7
      %v1565 = vsel %vm1421, %v1563, %v1564
      %v1566 = vrot.slane %v1564, 2
      %v1567 = vrot.slane %v529, 7
      %v1568 = vsel %vm1421, %v1566, %v1567
      %v1569 = vrot.slane %v1567, 2
      %v1570 = vrot.slane %v692, 7
      %v1571 = vsel %vm1421, %v1569, %v1570
      %v1572 = vrot.slane %v693, 7
      %v1573 = vrot.slane %v1572, 2
      %v1574 = vrot.slane %v694, 7
      %v1575 = vsel %vm1421, %v1573, %v1574
      %v1576 = vrot.slane %v1574, 2
      %v1577 = vrot.slane %v532, 7
      %v1578 = vsel %vm1421, %v1576, %v1577
      %v1579 = vrot.slane %v1577, 2
      %v1580 = vrot.slane %v695, 7
      %v1581 = vsel %vm1421, %v1579, %v1580
      %v1582 = vrot.slane %v1580, 2
      %v1583 = vrot.slane %v696, 7
      %v1584 = vsel %vm1421, %v1582, %v1583
      %v1585 = vrot.slane %v1583, 2
      %v1586 = vrot.slane %v697, 7
      %v1587 = vsel %vm1421, %v1585, %v1586
      %v1588 = vrot.slane %v1586, 2
      %v1589 = vrot.slane %v535, 7
      %v1590 = vsel %vm1421, %v1588, %v1589
      %v1591 = vrot.slane %v1589, 2
      %v1592 = vrot.slane %v698, 7
      %v1593 = vsel %vm1421, %v1591, %v1592
      %v1594 = vrot.slane %v1592, 2
      %v1595 = vrot.slane %v699, 7
      %v1596 = vsel %vm1421, %v1594, %v1595
      %v1597 = vrot.slane %v700, 7
      %v1598 = vrot.slane %v1597, 2
      %v1599 = vrot.slane %v538, 7
      %v1600 = vsel %vm1421, %v1598, %v1599
      %v1601 = vrot.slane %v1599, 2
      %v1602 = vrot.slane %v701, 7
      %v1603 = vsel %vm1421, %v1601, %v1602
      %v1604 = vrot.slane %v1602, 2
      %v1605 = vrot.slane %v702, 7
      %v1606 = vsel %vm1421, %v1604, %v1605
      %v1607 = vrot.slane %v1605, 2
      %v1608 = vrot.slane %v703, 7
      %v1609 = vsel %vm1421, %v1607, %v1608
      %v1610 = vrot.slane %v1608, 2
      %v1611 = vrot.slane %v541, 7
      %v1612 = vsel %vm1421, %v1610, %v1611
      %v1613 = vrot.slane %v1611, 2
      %v1614 = vrot.slane %v704, 7
      %v1615 = vsel %vm1421, %v1613, %v1614
      %v1616 = vrot.slane %v1614, 2
      %v1617 = vrot.slane %v705, 7
      %v1618 = vsel %vm1421, %v1616, %v1617
      %v1619 = vrot.slane %v1617, 2
      %v1620 = vrot.slane %v706, 7
      %v1621 = vsel %vm1421, %v1619, %v1620
      %v1622 = vrot.slane %v544, 7
      %v1623 = vrot.slane %v1622, 2
      %v1624 = vrot.slane %v707, 7
      %v1625 = vsel %vm1421, %v1623, %v1624
      %v1626 = vrot.slane %v1624, 2
      %v1627 = vrot.slane %v708, 7
      %v1628 = vsel %vm1421, %v1626, %v1627
      %v1629 = vrot.slane %v1627, 2
      %v1630 = vrot.slane %v709, 7
      %v1631 = vsel %vm1421, %v1629, %v1630
      %v1632 = vrot.slane %v1630, 2
      %v1633 = vrot.slane %v547, 7
      %v1634 = vsel %vm1421, %v1632, %v1633
      %v1635 = vrot.slane %v1633, 2
      %v1636 = vrot.slane %v710, 7
      %v1637 = vsel %vm1421, %v1635, %v1636
      %v1638 = vrot.slane %v1636, 2
      %v1639 = vrot.slane %v711, 7
      %v1640 = vsel %vm1421, %v1638, %v1639
      %v1641 = vrot.slane %v1639, 2
      %v1642 = vrot.slane %v712, 7
      %v1643 = vsel %vm1421, %v1641, %v1642
      %v1644 = vrot.slane %v1642, 2
      %v1645 = vrot.slane %v550, 7
      %v1646 = vsel %vm1421, %v1644, %v1645
      %v1647 = vrot.slane %v713, 7
      %v1648 = vrot.slane %v1647, 2
      %v1649 = vrot.slane %v714, 7
      %v1650 = vsel %vm1421, %v1648, %v1649
      %v1651 = vrot.slane %v1649, 2
      %v1652 = vrot.slane %v715, 7
      %v1653 = vsel %vm1421, %v1651, %v1652
      %v1654 = vrot.slane %v1652, 2
      %v1655 = vrot.slane %v553, 7
      %v1656 = vsel %vm1421, %v1654, %v1655
      %v1657 = vrot.slane %v1655, 2
      %v1658 = vrot.slane %v716, 7
      %v1659 = vsel %vm1421, %v1657, %v1658
      %v1660 = vrot.slane %v1658, 2
      %v1661 = vrot.slane %v717, 7
      %v1662 = vsel %vm1421, %v1660, %v1661
      %v1663 = vrot.slane %v1661, 2
      %v1664 = vrot.slane %v718, 7
      %v1665 = vsel %vm1421, %v1663, %v1664
      %v1666 = vrot.slane %v1664, 2
      %v1667 = vrot.slane %v556, 7
      %v1668 = vsel %vm1421, %v1666, %v1667
      %v1669 = vrot.slane %v1667, 2
      %v1670 = vrot.slane %v719, 7
      %v1671 = vsel %vm1421, %v1669, %v1670
      %v1672 = vrot.slane %v720, 7
      %v1673 = vrot.slane %v1672, 2
      %v1674 = vrot.slane %v721, 7
      %v1675 = vsel %vm1421, %v1673, %v1674
      %v1676 = vrot.slane %v1674, 2
      %v1677 = vrot.slane %v559, 7
      %v1678 = vsel %vm1421, %v1676, %v1677
      %v1679 = vrot.slane %v1677, 2
      %v1680 = vrot.slane %v722, 7
      %v1681 = vsel %vm1421, %v1679, %v1680
      %v1682 = vrot.slane %v1680, 2
      %v1683 = vrot.slane %v723, 7
      %v1684 = vsel %vm1421, %v1682, %v1683
      %v1685 = vrot.slane %v1683, 2
      %v1686 = vrot.slane %v724, 7
      %v1687 = vsel %vm1421, %v1685, %v1686
      %v1688 = vrot.slane %v1686, 2
      %v1689 = vrot.slane %v562, 7
      %v1690 = vsel %vm1421, %v1688, %v1689
      %v1691 = vrot.slane %v1689, 2
      %v1692 = vrot.slane %v725, 7
      %v1693 = vsel %vm1421, %v1691, %v1692
      %v1694 = vrot.slane %v1692, 2
      %v1695 = vrot.slane %v726, 7
      %v1696 = vsel %vm1421, %v1694, %v1695
      %v1697 = vrot.slane %v727, 7
      %v1698 = vrot.slane %v1697, 2
      %v1699 = vrot.slane %v565, 7
      %v1700 = vsel %vm1421, %v1698, %v1699
      %v1701 = vrot.slane %v1699, 2
      %v1702 = vrot.slane %v728, 7
      %v1703 = vsel %vm1421, %v1701, %v1702
      %v1704 = vrot.slane %v1702, 2
      %v1705 = vrot.slane %v729, 7
      %v1706 = vsel %vm1421, %v1704, %v1705
      %v1707 = vrot.slane %v1705, 2
      %v1708 = vrot.slane %v730, 7
      %v1709 = vsel %vm1421, %v1707, %v1708
      %v1710 = vrot.slane %v1708, 2
      %v1711 = vrot.slane %v568, 7
      %v1712 = vsel %vm1421, %v1710, %v1711
      %v1713 = vrot.slane %v1711, 2
      %v1714 = vrot.slane %v731, 7
      %v1715 = vsel %vm1421, %v1713, %v1714
      %v1716 = vrot.slane %v1714, 2
      %v1717 = vrot.slane %v732, 7
      %v1718 = vsel %vm1421, %v1716, %v1717
      %v1719 = vrot.slane %v1717, 2
      %v1720 = vrot.slane %v733, 7
      %v1721 = vsel %vm1421, %v1719, %v1720
      %v1722 = vrot.slane %v571, 7
      %v1723 = vrot.slane %v1722, 2
      %v1724 = vrot.slane %v734, 7
      %v1725 = vsel %vm1421, %v1723, %v1724
      %v1726 = vrot.slane %v1724, 2
      %v1727 = vrot.slane %v735, 7
      %v1728 = vsel %vm1421, %v1726, %v1727
      %v1729 = vrot.slane %v1727, 2
      %v1730 = vrot.slane %v736, 7
      %v1731 = vsel %vm1421, %v1729, %v1730
      %v1732 = vrot.slane %v1730, 2
      %v1733 = vrot.slane %v574, 7
      %v1734 = vsel %vm1421, %v1732, %v1733
      %v1735 = vrot.slane %v1733, 2
      %v1736 = vrot.slane %v737, 7
      %v1737 = vsel %vm1421, %v1735, %v1736
      %v1738 = vrot.slane %v1736, 2
      %v1739 = vrot.slane %v738, 7
      %v1740 = vsel %vm1421, %v1738, %v1739
      %v1741 = vrot.slane %v1739, 2
      %v1742 = vrot.slane %v739, 7
      %v1743 = vsel %vm1421, %v1741, %v1742
      %v1744 = vrot.slane %v1742, 2
      %v1745 = vrot.slane %v577, 7
      %v1746 = vsel %vm1421, %v1744, %v1745
      %v1747 = vrot.slane %v740, 7
      %v1748 = vrot.slane %v1747, 2
      %v1749 = vrot.slane %v741, 7
      %v1750 = vsel %vm1421, %v1748, %v1749
      %v1751 = vrot.slane %v1749, 2
      %v1752 = vrot.slane %v742, 7
      %v1753 = vsel %vm1421, %v1751, %v1752
      %v1754 = vrot.slane %v1752, 2
      %v1755 = vrot.slane %v580, 7
      %v1756 = vsel %vm1421, %v1754, %v1755
      %v1757 = vrot.slane %v1755, 2
      %v1758 = vrot.slane %v743, 7
      %v1759 = vsel %vm1421, %v1757, %v1758
      %v1760 = vrot.slane %v1758, 2
      %v1761 = vrot.slane %v744, 7
      %v1762 = vsel %vm1421, %v1760, %v1761
      %v1763 = vrot.slane %v1761, 2
      %v1764 = vrot.slane %v745, 7
      %v1765 = vsel %vm1421, %v1763, %v1764
      %v1766 = vrot.slane %v1764, 2
      %v1767 = vrot.slane %v583, 7
      %v1768 = vsel %vm1421, %v1766, %v1767
      %v1769 = vrot.slane %v1767, 2
      %v1770 = vrot.slane %v746, 7
      %v1771 = vsel %vm1421, %v1769, %v1770
      %v1772 = vrot.slane %v747, 7
      %v1773 = vrot.slane %v1772, 2
      %v1774 = vrot.slane %v748, 7
      %v1775 = vsel %vm1421, %v1773, %v1774
      %v1776 = vrot.slane %v1774, 2
      %v1777 = vrot.slane %v586, 7
      %v1778 = vsel %vm1421, %v1776, %v1777
      %v1779 = vrot.slane %v1777, 2
      %v1780 = vrot.slane %v749, 7
      %v1781 = vsel %vm1421, %v1779, %v1780
      %v1782 = vrot.slane %v1780, 2
      %v1783 = vrot.slane %v750, 7
      %v1784 = vsel %vm1421, %v1782, %v1783
      %v1785 = vrot.slane %v1783, 2
      %v1786 = vrot.slane %v751, 7
      %v1787 = vsel %vm1421, %v1785, %v1786
      %v1788 = vrot.slane %v1786, 2
      %v1789 = vrot.slane %v589, 7
      %v1790 = vsel %vm1421, %v1788, %v1789
      %v1791 = vrot.slane %v1789, 2
      %v1792 = vrot.slane %v752, 7
      %v1793 = vsel %vm1421, %v1791, %v1792
      %v1794 = vrot.slane %v1792, 2
      %v1795 = vrot.slane %v753, 7
      %v1796 = vsel %vm1421, %v1794, %v1795
      %v1797 = vrot.slane %v754, 7
      %v1798 = vrot.slane %v1797, 2
      %v1799 = vrot.slane %v592, 7
      %v1800 = vsel %vm1421, %v1798, %v1799
      %v1801 = vrot.slane %v1799, 2
      %v1802 = vrot.slane %v755, 7
      %v1803 = vsel %vm1421, %v1801, %v1802
      %v1804 = vrot.slane %v1802, 2
      %v1805 = vrot.slane %v756, 7
      %v1806 = vsel %vm1421, %v1804, %v1805
      %v1807 = vrot.slane %v1805, 2
      %v1808 = vrot.slane %v757, 7
      %v1809 = vsel %vm1421, %v1807, %v1808
      %v1810 = vrot.slane %v1808, 2
      %v1811 = vrot.slane %v595, 7
      %v1812 = vsel %vm1421, %v1810, %v1811
      %v1813 = vrot.slane %v1811, 2
      %v1814 = vrot.slane %v758, 7
      %v1815 = vsel %vm1421, %v1813, %v1814
      %v1816 = vrot.slane %v1814, 2
      %v1817 = vrot.slane %v759, 7
      %v1818 = vsel %vm1421, %v1816, %v1817
      %v1819 = vrot.slane %v1817, 2
      %v1820 = vrot.slane %v760, 7
      %v1821 = vsel %vm1421, %v1819, %v1820
      %1822 = vst [vmem:[#allocation1] ss:$4 sm:$0xff] %v1425
      %s1823 = scalar_lea.vmem [#allocation1], 1
      %1824 = vst [vmem:[%s1823] ss:$4 sm:$0xff] %v1428
      %s1825 = scalar_lea.vmem [#allocation1], 2
      %1826 = vst [vmem:[%s1825] ss:$4 sm:$0xff] %v1431
      %s1827 = scalar_lea.vmem [#allocation1], 3
      %1828 = vst [vmem:[%s1827] ss:$4 sm:$0xff] %v1434
      %s1829 = scalar_lea.vmem [#allocation1], 32
      %1830 = vst [vmem:[%s1829] ss:$4 sm:$0xff] %v1437
      %s1831 = scalar_lea.vmem [#allocation1], 33
      %1832 = vst [vmem:[%s1831] ss:$4 sm:$0xff] %v1440
      %s1833 = scalar_lea.vmem [#allocation1], 34
      %1834 = vst [vmem:[%s1833] ss:$4 sm:$0xff] %v1443
      %s1835 = scalar_lea.vmem [#allocation1], 35
      %1836 = vst [vmem:[%s1835] ss:$4 sm:$0xff] %v1446
      %v1837 = vld.sshfl [vmem:[#allocation1] sm:$0xff pattern:$0x73625140]
      %v1838 = vld.sshfl [vmem:[#allocation1 + $0x20] sm:$0xff pattern:$0x73625140]
      %1839 = vst [vmem:[#allocation1] ss:$4 sm:$0xff] %v1450
      %1840 = vst [vmem:[%s1823] ss:$4 sm:$0xff] %v1453
      %1841 = vst [vmem:[%s1825] ss:$4 sm:$0xff] %v1456
      %1842 = vst [vmem:[%s1827] ss:$4 sm:$0xff] %v1459
      %1843 = vst [vmem:[%s1829] ss:$4 sm:$0xff] %v1462
      %1844 = vst [vmem:[%s1831] ss:$4 sm:$0xff] %v1465
      %1845 = vst [vmem:[%s1833] ss:$4 sm:$0xff] %v1468
      %1846 = vst [vmem:[%s1835] ss:$4 sm:$0xff] %v1471
      %v1847 = vld.sshfl [vmem:[#allocation1] sm:$0xff pattern:$0x73625140]
      %v1848 = vld.sshfl [vmem:[#allocation1 + $0x20] sm:$0xff pattern:$0x73625140]
      %1849 = vst [vmem:[#allocation1] ss:$4 sm:$0xff] %v1475
      %1850 = vst [vmem:[%s1823] ss:$4 sm:$0xff] %v1478
      %1851 = vst [vmem:[%s1825] ss:$4 sm:$0xff] %v1481
      %1852 = vst [vmem:[%s1827] ss:$4 sm:$0xff] %v1484
      %1853 = vst [vmem:[%s1829] ss:$4 sm:$0xff] %v1487
      %1854 = vst [vmem:[%s1831] ss:$4 sm:$0xff] %v1490
      %1855 = vst [vmem:[%s1833] ss:$4 sm:$0xff] %v1493
      %1856 = vst [vmem:[%s1835] ss:$4 sm:$0xff] %v1496
      %v1857 = vld.sshfl [vmem:[#allocation1] sm:$0xff pattern:$0x73625140]
      %v1858 = vld.sshfl [vmem:[#allocation1 + $0x20] sm:$0xff pattern:$0x73625140]
      %1859 = vst [vmem:[#allocation1] ss:$4 sm:$0xff] %v1500
      %1860 = vst [vmem:[%s1823] ss:$4 sm:$0xff] %v1503
      %1861 = vst [vmem:[%s1825] ss:$4 sm:$0xff] %v1506
      %1862 = vst [vmem:[%s1827] ss:$4 sm:$0xff] %v1509
      %1863 = vst [vmem:[%s1829] ss:$4 sm:$0xff] %v1512
      %1864 = vst [vmem:[%s1831] ss:$4 sm:$0xff] %v1515
      %1865 = vst [vmem:[%s1833] ss:$4 sm:$0xff] %v1518
      %1866 = vst [vmem:[%s1835] ss:$4 sm:$0xff] %v1521
      %v1867 = vld.sshfl [vmem:[#allocation1] sm:$0xff pattern:$0x73625140]
      %v1868 = vld.sshfl [vmem:[#allocation1 + $0x20] sm:$0xff pattern:$0x73625140]
      %1869 = vst [vmem:[#allocation1] ss:$4 sm:$0xff] %v1525
      %1870 = vst [vmem:[%s1823] ss:$4 sm:$0xff] %v1528
      %1871 = vst [vmem:[%s1825] ss:$4 sm:$0xff] %v1531
      %1872 = vst [vmem:[%s1827] ss:$4 sm:$0xff] %v1534
      %1873 = vst [vmem:[%s1829] ss:$4 sm:$0xff] %v1537
      %1874 = vst [vmem:[%s1831] ss:$4 sm:$0xff] %v1540
      %1875 = vst [vmem:[%s1833] ss:$4 sm:$0xff] %v1543
      %1876 = vst [vmem:[%s1835] ss:$4 sm:$0xff] %v1546
      %v1877 = vld.sshfl [vmem:[#allocation1] sm:$0xff pattern:$0x73625140]
      %v1878 = vld.sshfl [vmem:[#allocation1 + $0x20] sm:$0xff pattern:$0x73625140]
      %1879 = vst [vmem:[#allocation1] ss:$4 sm:$0xff] %v1550
      %1880 = vst [vmem:[%s1823] ss:$4 sm:$0xff] %v1553
      %1881 = vst [vmem:[%s1825] ss:$4 sm:$0xff] %v1556
      %1882 = vst [vmem:[%s1827] ss:$4 sm:$0xff] %v1559
      %1883 = vst [vmem:[%s1829] ss:$4 sm:$0xff] %v1562
      %1884 = vst [vmem:[%s1831] ss:$4 sm:$0xff] %v1565
      %1885 = vst [vmem:[%s1833] ss:$4 sm:$0xff] %v1568
      %1886 = vst [vmem:[%s1835] ss:$4 sm:$0xff] %v1571
      %v1887 = vld.sshfl [vmem:[#allocation1] sm:$0xff pattern:$0x73625140]
      %v1888 = vld.sshfl [vmem:[#allocation1 + $0x20] sm:$0xff pattern:$0x73625140]
      %1889 = vst [vmem:[#allocation1] ss:$4 sm:$0xff] %v1575
      %1890 = vst [vmem:[%s1823] ss:$4 sm:$0xff] %v1578
      %1891 = vst [vmem:[%s1825] ss:$4 sm:$0xff] %v1581
      %1892 = vst [vmem:[%s1827] ss:$4 sm:$0xff] %v1584
      %1893 = vst [vmem:[%s1829] ss:$4 sm:$0xff] %v1587
      %1894 = vst [vmem:[%s1831] ss:$4 sm:$0xff] %v1590
      %1895 = vst [vmem:[%s1833] ss:$4 sm:$0xff] %v1593
      %1896 = vst [vmem:[%s1835] ss:$4 sm:$0xff] %v1596
      %v1897 = vld.sshfl [vmem:[#allocation1] sm:$0xff pattern:$0x73625140]
      %v1898 = vld.sshfl [vmem:[#allocation1 + $0x20] sm:$0xff pattern:$0x73625140]
      %1899 = vst [vmem:[#allocation1] ss:$4 sm:$0xff] %v1600
      %1900 = vst [vmem:[%s1823] ss:$4 sm:$0xff] %v1603
      %1901 = vst [vmem:[%s1825] ss:$4 sm:$0xff] %v1606
      %1902 = vst [vmem:[%s1827] ss:$4 sm:$0xff] %v1609
      %1903 = vst [vmem:[%s1829] ss:$4 sm:$0xff] %v1612
      %1904 = vst [vmem:[%s1831] ss:$4 sm:$0xff] %v1615
      %1905 = vst [vmem:[%s1833] ss:$4 sm:$0xff] %v1618
      %1906 = vst [vmem:[%s1835] ss:$4 sm:$0xff] %v1621
      %v1907 = vld.sshfl [vmem:[#allocation1] sm:$0xff pattern:$0x73625140]
      %v1908 = vld.sshfl [vmem:[#allocation1 + $0x20] sm:$0xff pattern:$0x73625140]
      %1909 = vst [vmem:[#allocation1] ss:$4 sm:$0xff] %v1625
      %1910 = vst [vmem:[%s1823] ss:$4 sm:$0xff] %v1628
      %1911 = vst [vmem:[%s1825] ss:$4 sm:$0xff] %v1631
      %1912 = vst [vmem:[%s1827] ss:$4 sm:$0xff] %v1634
      %1913 = vst [vmem:[%s1829] ss:$4 sm:$0xff] %v1637
      %1914 = vst [vmem:[%s1831] ss:$4 sm:$0xff] %v1640
      %1915 = vst [vmem:[%s1833] ss:$4 sm:$0xff] %v1643
      %1916 = vst [vmem:[%s1835] ss:$4 sm:$0xff] %v1646
      %v1917 = vld.sshfl [vmem:[#allocation1] sm:$0xff pattern:$0x73625140]
      %v1918 = vld.sshfl [vmem:[#allocation1 + $0x20] sm:$0xff pattern:$0x73625140]
      %1919 = vst [vmem:[#allocation1] ss:$4 sm:$0xff] %v1650
      %1920 = vst [vmem:[%s1823] ss:$4 sm:$0xff] %v1653
      %1921 = vst [vmem:[%s1825] ss:$4 sm:$0xff] %v1656
      %1922 = vst [vmem:[%s1827] ss:$4 sm:$0xff] %v1659
      %1923 = vst [vmem:[%s1829] ss:$4 sm:$0xff] %v1662
      %1924 = vst [vmem:[%s1831] ss:$4 sm:$0xff] %v1665
      %1925 = vst [vmem:[%s1833] ss:$4 sm:$0xff] %v1668
      %1926 = vst [vmem:[%s1835] ss:$4 sm:$0xff] %v1671
      %v1927 = vld.sshfl [vmem:[#allocation1] sm:$0xff pattern:$0x73625140]
      %v1928 = vld.sshfl [vmem:[#allocation1 + $0x20] sm:$0xff pattern:$0x73625140]
      %1929 = vst [vmem:[#allocation1] ss:$4 sm:$0xff] %v1675
      %1930 = vst [vmem:[%s1823] ss:$4 sm:$0xff] %v1678
      %1931 = vst [vmem:[%s1825] ss:$4 sm:$0xff] %v1681
      %1932 = vst [vmem:[%s1827] ss:$4 sm:$0xff] %v1684
      %1933 = vst [vmem:[%s1829] ss:$4 sm:$0xff] %v1687
      %1934 = vst [vmem:[%s1831] ss:$4 sm:$0xff] %v1690
      %1935 = vst [vmem:[%s1833] ss:$4 sm:$0xff] %v1693
      %1936 = vst [vmem:[%s1835] ss:$4 sm:$0xff] %v1696
      %v1937 = vld.sshfl [vmem:[#allocation1] sm:$0xff pattern:$0x73625140]
      %v1938 = vld.sshfl [vmem:[#allocation1 + $0x20] sm:$0xff pattern:$0x73625140]
      %1939 = vst [vmem:[#allocation1] ss:$4 sm:$0xff] %v1700
      %1940 = vst [vmem:[%s1823] ss:$4 sm:$0xff] %v1703
      %1941 = vst [vmem:[%s1825] ss:$4 sm:$0xff] %v1706
      %1942 = vst [vmem:[%s1827] ss:$4 sm:$0xff] %v1709
      %1943 = vst [vmem:[%s1829] ss:$4 sm:$0xff] %v1712
      %1944 = vst [vmem:[%s1831] ss:$4 sm:$0xff] %v1715
      %1945 = vst [vmem:[%s1833] ss:$4 sm:$0xff] %v1718
      %1946 = vst [vmem:[%s1835] ss:$4 sm:$0xff] %v1721
      %v1947 = vld.sshfl [vmem:[#allocation1] sm:$0xff pattern:$0x73625140]
      %v1948 = vld.sshfl [vmem:[#allocation1 + $0x20] sm:$0xff pattern:$0x73625140]
      %1949 = vst [vmem:[#allocation1] ss:$4 sm:$0xff] %v1725
      %1950 = vst [vmem:[%s1823] ss:$4 sm:$0xff] %v1728
      %1951 = vst [vmem:[%s1825] ss:$4 sm:$0xff] %v1731
      %1952 = vst [vmem:[%s1827] ss:$4 sm:$0xff] %v1734
      %1953 = vst [vmem:[%s1829] ss:$4 sm:$0xff] %v1737
      %1954 = vst [vmem:[%s1831] ss:$4 sm:$0xff] %v1740
      %1955 = vst [vmem:[%s1833] ss:$4 sm:$0xff] %v1743
      %1956 = vst [vmem:[%s1835] ss:$4 sm:$0xff] %v1746
      %v1957 = vld.sshfl [vmem:[#allocation1] sm:$0xff pattern:$0x73625140]
      %v1958 = vld.sshfl [vmem:[#allocation1 + $0x20] sm:$0xff pattern:$0x73625140]
      %1959 = vst [vmem:[#allocation1] ss:$4 sm:$0xff] %v1750
      %1960 = vst [vmem:[%s1823] ss:$4 sm:$0xff] %v1753
      %1961 = vst [vmem:[%s1825] ss:$4 sm:$0xff] %v1756
      %1962 = vst [vmem:[%s1827] ss:$4 sm:$0xff] %v1759
      %1963 = vst [vmem:[%s1829] ss:$4 sm:$0xff] %v1762
      %1964 = vst [vmem:[%s1831] ss:$4 sm:$0xff] %v1765
      %1965 = vst [vmem:[%s1833] ss:$4 sm:$0xff] %v1768
      %1966 = vst [vmem:[%s1835] ss:$4 sm:$0xff] %v1771
      %v1967 = vld.sshfl [vmem:[#allocation1] sm:$0xff pattern:$0x73625140]
      %v1968 = vld.sshfl [vmem:[#allocation1 + $0x20] sm:$0xff pattern:$0x73625140]
      %1969 = vst [vmem:[#allocation1] ss:$4 sm:$0xff] %v1775
      %1970 = vst [vmem:[%s1823] ss:$4 sm:$0xff] %v1778
      %1971 = vst [vmem:[%s1825] ss:$4 sm:$0xff] %v1781
      %1972 = vst [vmem:[%s1827] ss:$4 sm:$0xff] %v1784
      %1973 = vst [vmem:[%s1829] ss:$4 sm:$0xff] %v1787
      %1974 = vst [vmem:[%s1831] ss:$4 sm:$0xff] %v1790
      %1975 = vst [vmem:[%s1833] ss:$4 sm:$0xff] %v1793
      %1976 = vst [vmem:[%s1835] ss:$4 sm:$0xff] %v1796
      %v1977 = vld.sshfl [vmem:[#allocation1] sm:$0xff pattern:$0x73625140]
      %v1978 = vld.sshfl [vmem:[#allocation1 + $0x20] sm:$0xff pattern:$0x73625140]
      %1979 = vst [vmem:[#allocation1] ss:$4 sm:$0xff] %v1800
      %1980 = vst [vmem:[%s1823] ss:$4 sm:$0xff] %v1803
      %1981 = vst [vmem:[%s1825] ss:$4 sm:$0xff] %v1806
      %1982 = vst [vmem:[%s1827] ss:$4 sm:$0xff] %v1809
      %1983 = vst [vmem:[%s1829] ss:$4 sm:$0xff] %v1812
      %1984 = vst [vmem:[%s1831] ss:$4 sm:$0xff] %v1815
      %1985 = vst [vmem:[%s1833] ss:$4 sm:$0xff] %v1818
      %1986 = vst [vmem:[%s1835] ss:$4 sm:$0xff] %v1821
      %v1987 = vld.sshfl [vmem:[#allocation1] sm:$0xff pattern:$0x73625140]
      %v1988 = vld.sshfl [vmem:[#allocation1 + $0x20] sm:$0xff pattern:$0x73625140]
      %1989 = vrot.lane.b32.xlu0 %v1837, 24
      %v1990 = vpop.permute.xlu0 %1989
      %1991 = vrot.lane.b32.xlu0 %v1838, 24
      %v1992 = vpop.permute.xlu0 %1991
      %1993 = vrot.lane.b32.xlu0 %v1847, 24
      %v1994 = vpop.permute.xlu0 %1993
      %1995 = vrot.lane.b32.xlu0 %v1848, 24
      %v1996 = vpop.permute.xlu0 %1995
      %1997 = vrot.lane.b32.xlu0 %v1857, 24
      %v1998 = vpop.permute.xlu0 %1997
      %1999 = vrot.lane.b32.xlu0 %v1858, 24
      %v2000 = vpop.permute.xlu0 %1999
      %2001 = vrot.lane.b32.xlu0 %v1867, 24
      %v2002 = vpop.permute.xlu0 %2001
      %2003 = vrot.lane.b32.xlu0 %v1868, 24
      %v2004 = vpop.permute.xlu0 %2003
      %2005 = vrot.lane.b32.xlu0 %v1877, 24
      %v2006 = vpop.permute.xlu0 %2005
      %2007 = vrot.lane.b32.xlu0 %v1878, 24
      %v2008 = vpop.permute.xlu0 %2007
      %2009 = vrot.lane.b32.xlu0 %v1887, 24
      %v2010 = vpop.permute.xlu0 %2009
      %2011 = vrot.lane.b32.xlu0 %v1888, 24
      %v2012 = vpop.permute.xlu0 %2011
      %2013 = vrot.lane.b32.xlu0 %v1897, 24
      %v2014 = vpop.permute.xlu0 %2013
      %2015 = vrot.lane.b32.xlu0 %v1898, 24
      %v2016 = vpop.permute.xlu0 %2015
      %2017 = vrot.lane.b32.xlu0 %v1907, 24
      %v2018 = vpop.permute.xlu0 %2017
      %2019 = vrot.lane.b32.xlu0 %v1908, 24
      %v2020 = vpop.permute.xlu0 %2019
      %2021 = vrot.lane.b32.xlu0 %v1917, 24
      %v2022 = vpop.permute.xlu0 %2021
      %2023 = vrot.lane.b32.xlu0 %v1918, 24
      %v2024 = vpop.permute.xlu0 %2023
      %2025 = vrot.lane.b32.xlu0 %v1927, 24
      %v2026 = vpop.permute.xlu0 %2025
      %2027 = vrot.lane.b32.xlu0 %v1928, 24
      %v2028 = vpop.permute.xlu0 %2027
      %2029 = vrot.lane.b32.xlu0 %v1937, 24
      %v2030 = vpop.permute.xlu0 %2029
      %2031 = vrot.lane.b32.xlu0 %v1938, 24
      %v2032 = vpop.permute.xlu0 %2031
      %2033 = vrot.lane.b32.xlu0 %v1947, 24
      %v2034 = vpop.permute.xlu0 %2033
      %2035 = vrot.lane.b32.xlu0 %v1948, 24
      %v2036 = vpop.permute.xlu0 %2035
      %2037 = vrot.lane.b32.xlu0 %v1957, 24
      %v2038 = vpop.permute.xlu0 %2037
      %2039 = vrot.lane.b32.xlu0 %v1958, 24
      %v2040 = vpop.permute.xlu0 %2039
      %2041 = vrot.lane.b32.xlu0 %v1967, 24
      %v2042 = vpop.permute.xlu0 %2041
      %2043 = vrot.lane.b32.xlu0 %v1968, 24
      %v2044 = vpop.permute.xlu0 %2043
      %2045 = vrot.lane.b32.xlu0 %v1977, 24
      %v2046 = vpop.permute.xlu0 %2045
      %2047 = vrot.lane.b32.xlu0 %v1978, 24
      %v2048 = vpop.permute.xlu0 %2047
      %2049 = vrot.lane.b32.xlu0 %v1987, 24
      %v2050 = vpop.permute.xlu0 %2049
      %2051 = vrot.lane.b32.xlu0 %v1988, 24
      %v2052 = vpop.permute.xlu0 %2051
      %vm2085 = vcmask 261312
      %2086 = vst.msk [vmem:[#allocation2] sm:$0xff] %vm2085, %v1990
      %2087 = vst.msk [vmem:[#allocation2 + $0x10] sm:$0xff] %vm2085, %v1992
      %2088 = vst.msk [vmem:[#allocation2 + $0x20] sm:$0xff] %vm2085, %v1994
      %2089 = vst.msk [vmem:[#allocation2 + $0x30] sm:$0xff] %vm2085, %v1996
      %2090 = vst.msk [vmem:[#allocation2 + $0x40] sm:$0xff] %vm2085, %v1998
      %2091 = vst.msk [vmem:[#allocation2 + $0x50] sm:$0xff] %vm2085, %v2000
      %2092 = vst.msk [vmem:[#allocation2 + $0x60] sm:$0xff] %vm2085, %v2002
      %2093 = vst.msk [vmem:[#allocation2 + $0x70] sm:$0xff] %vm2085, %v2004
      %2094 = vst.msk [vmem:[#allocation2 + $0x80] sm:$0xff] %vm2085, %v2006
      %2095 = vst.msk [vmem:[#allocation2 + $0x90] sm:$0xff] %vm2085, %v2008
      %2096 = vst.msk [vmem:[#allocation2 + $0xa0] sm:$0xff] %vm2085, %v2010
      %2097 = vst.msk [vmem:[#allocation2 + $0xb0] sm:$0xff] %vm2085, %v2012
      %2098 = vst.msk [vmem:[#allocation2 + $0xc0] sm:$0xff] %vm2085, %v2014
      %2099 = vst.msk [vmem:[#allocation2 + $0xd0] sm:$0xff] %vm2085, %v2016
      %2100 = vst.msk [vmem:[#allocation2 + $0xe0] sm:$0xff] %vm2085, %v2018
      %2101 = vst.msk [vmem:[#allocation2 + $0xf0] sm:$0xff] %vm2085, %v2020
      %2102 = vst.msk [vmem:[#allocation2 + $0x100] sm:$0xff] %vm2085, %v2022
      %2103 = vst.msk [vmem:[#allocation2 + $0x110] sm:$0xff] %vm2085, %v2024
      %2104 = vst.msk [vmem:[#allocation2 + $0x120] sm:$0xff] %vm2085, %v2026
      %2105 = vst.msk [vmem:[#allocation2 + $0x130] sm:$0xff] %vm2085, %v2028
      %2106 = vst.msk [vmem:[#allocation2 + $0x140] sm:$0xff] %vm2085, %v2030
      %2107 = vst.msk [vmem:[#allocation2 + $0x150] sm:$0xff] %vm2085, %v2032
      %2108 = vst.msk [vmem:[#allocation2 + $0x160] sm:$0xff] %vm2085, %v2034
      %2109 = vst.msk [vmem:[#allocation2 + $0x170] sm:$0xff] %vm2085, %v2036
      %2110 = vst.msk [vmem:[#allocation2 + $0x180] sm:$0xff] %vm2085, %v2038
      %2111 = vst.msk [vmem:[#allocation2 + $0x190] sm:$0xff] %vm2085, %v2040
      %2112 = vst.msk [vmem:[#allocation2 + $0x1a0] sm:$0xff] %vm2085, %v2042
      %2113 = vst.msk [vmem:[#allocation2 + $0x1b0] sm:$0xff] %vm2085, %v2044
      %2114 = vst.msk [vmem:[#allocation2 + $0x1c0] sm:$0xff] %vm2085, %v2046
      %2115 = vst.msk [vmem:[#allocation2 + $0x1d0] sm:$0xff] %vm2085, %v2048
      %2116 = vst.msk [vmem:[#allocation2 + $0x1e0] sm:$0xff] %vm2085, %v2050
      %2117 = vst.msk [vmem:[#allocation2 + $0x1f0] sm:$0xff] %vm2085, %v2052
      %vm2118 = vcmask 1045504
      %v2119 = vrot.slane %v774, 2
      %v2120 = vrot.slane %v775, 2
      %v2121 = vsel %vm2118, %v2119, %v2120
      %v2122 = vrot.slane %v776, 2
      %v2123 = vsel %vm2118, %v2120, %v2122
      %v2124 = vrot.slane %v777, 2
      %v2125 = vrot.slane %v778, 2
      %v2126 = vsel %vm2118, %v2124, %v2125
      %v2127 = vrot.slane %v779, 2
      %v2128 = vsel %vm2118, %v2125, %v2127
      %v2129 = vrot.slane %v780, 2
      %v2130 = vrot.slane %v781, 2
      %v2131 = vsel %vm2118, %v2129, %v2130
      %v2132 = vrot.slane %v782, 2
      %v2133 = vsel %vm2118, %v2130, %v2132
      %v2134 = vrot.slane %v783, 2
      %v2135 = vrot.slane %v784, 2
      %v2136 = vsel %vm2118, %v2134, %v2135
      %v2137 = vrot.slane %v785, 2
      %v2138 = vsel %vm2118, %v2135, %v2137
      %v2139 = vrot.slane %v786, 2
      %v2140 = vrot.slane %v787, 2
      %v2141 = vsel %vm2118, %v2139, %v2140
      %v2142 = vrot.slane %v788, 2
      %v2143 = vsel %vm2118, %v2140, %v2142
      %v2144 = vrot.slane %v789, 2
      %v2145 = vrot.slane %v790, 2
      %v2146 = vsel %vm2118, %v2144, %v2145
      %v2147 = vrot.slane %v791, 2
      %v2148 = vsel %vm2118, %v2145, %v2147
      %v2149 = vrot.slane %v792, 2
      %v2150 = vrot.slane %v793, 2
      %v2151 = vsel %vm2118, %v2149, %v2150
      %v2152 = vrot.slane %v794, 2
      %v2153 = vsel %vm2118, %v2150, %v2152
      %v2154 = vrot.slane %v795, 2
      %v2155 = vrot.slane %v796, 2
      %v2156 = vsel %vm2118, %v2154, %v2155
      %v2157 = vrot.slane %v797, 2
      %v2158 = vsel %vm2118, %v2155, %v2157
      %v2159 = vrot.slane %v798, 2
      %v2160 = vrot.slane %v799, 2
      %v2161 = vsel %vm2118, %v2159, %v2160
      %v2162 = vrot.slane %v800, 2
      %v2163 = vsel %vm2118, %v2160, %v2162
      %v2164 = vrot.slane %v801, 2
      %v2165 = vrot.slane %v802, 2
      %v2166 = vsel %vm2118, %v2164, %v2165
      %v2167 = vrot.slane %v803, 2
      %v2168 = vsel %vm2118, %v2165, %v2167
      %v2169 = vrot.slane %v804, 2
      %v2170 = vrot.slane %v805, 2
      %v2171 = vsel %vm2118, %v2169, %v2170
      %v2172 = vrot.slane %v806, 2
      %v2173 = vsel %vm2118, %v2170, %v2172
      %v2174 = vrot.slane %v807, 2
      %v2175 = vrot.slane %v808, 2
      %v2176 = vsel %vm2118, %v2174, %v2175
      %v2177 = vrot.slane %v809, 2
      %v2178 = vsel %vm2118, %v2175, %v2177
      %v2179 = vrot.slane %v810, 2
      %v2180 = vrot.slane %v811, 2
      %v2181 = vsel %vm2118, %v2179, %v2180
      %v2182 = vrot.slane %v812, 2
      %v2183 = vsel %vm2118, %v2180, %v2182
      %v2184 = vrot.slane %v813, 2
      %v2185 = vrot.slane %v814, 2
      %v2186 = vsel %vm2118, %v2184, %v2185
      %v2187 = vrot.slane %v815, 2
      %v2188 = vsel %vm2118, %v2185, %v2187
      %v2189 = vrot.slane %v816, 2
      %v2190 = vrot.slane %v817, 2
      %v2191 = vsel %vm2118, %v2189, %v2190
      %v2192 = vrot.slane %v818, 2
      %v2193 = vsel %vm2118, %v2190, %v2192
      %v2194 = vrot.slane %v819, 2
      %v2195 = vrot.slane %v820, 2
      %v2196 = vsel %vm2118, %v2194, %v2195
      %v2197 = vrot.slane %v821, 2
      %v2198 = vsel %vm2118, %v2195, %v2197
      %2199 = vrot.lane.b32.xlu0 %v2121, 32
      %v2200 = vpop.permute.xlu0 %2199
      %2201 = vrot.lane.b32.xlu0 %v2123, 32
      %v2202 = vpop.permute.xlu0 %2201
      %2203 = vrot.lane.b32.xlu0 %v2126, 32
      %v2204 = vpop.permute.xlu0 %2203
      %2205 = vrot.lane.b32.xlu0 %v2128, 32
      %v2206 = vpop.permute.xlu0 %2205
      %2207 = vrot.lane.b32.xlu0 %v2131, 32
      %v2208 = vpop.permute.xlu0 %2207
      %2209 = vrot.lane.b32.xlu0 %v2133, 32
      %v2210 = vpop.permute.xlu0 %2209
      %2211 = vrot.lane.b32.xlu0 %v2136, 32
      %v2212 = vpop.permute.xlu0 %2211
      %2213 = vrot.lane.b32.xlu0 %v2138, 32
      %v2214 = vpop.permute.xlu0 %2213
      %2215 = vrot.lane.b32.xlu0 %v2141, 32
      %v2216 = vpop.permute.xlu0 %2215
      %2217 = vrot.lane.b32.xlu0 %v2143, 32
      %v2218 = vpop.permute.xlu0 %2217
      %2219 = vrot.lane.b32.xlu0 %v2146, 32
      %v2220 = vpop.permute.xlu0 %2219
      %2221 = vrot.lane.b32.xlu0 %v2148, 32
      %v2222 = vpop.permute.xlu0 %2221
      %2223 = vrot.lane.b32.xlu0 %v2151, 32
      %v2224 = vpop.permute.xlu0 %2223
      %2225 = vrot.lane.b32.xlu0 %v2153, 32
      %v2226 = vpop.permute.xlu0 %2225
      %2227 = vrot.lane.b32.xlu0 %v2156, 32
      %v2228 = vpop.permute.xlu0 %2227
      %2229 = vrot.lane.b32.xlu0 %v2158, 32
      %v2230 = vpop.permute.xlu0 %2229
      %2231 = vrot.lane.b32.xlu0 %v2161, 32
      %v2232 = vpop.permute.xlu0 %2231
      %2233 = vrot.lane.b32.xlu0 %v2163, 32
      %v2234 = vpop.permute.xlu0 %2233
      %2235 = vrot.lane.b32.xlu0 %v2166, 32
      %v2236 = vpop.permute.xlu0 %2235
      %2237 = vrot.lane.b32.xlu0 %v2168, 32
      %v2238 = vpop.permute.xlu0 %2237
      %2239 = vrot.lane.b32.xlu0 %v2171, 32
      %v2240 = vpop.permute.xlu0 %2239
      %2241 = vrot.lane.b32.xlu0 %v2173, 32
      %v2242 = vpop.permute.xlu0 %2241
      %2243 = vrot.lane.b32.xlu0 %v2176, 32
      %v2244 = vpop.permute.xlu0 %2243
      %2245 = vrot.lane.b32.xlu0 %v2178, 32
      %v2246 = vpop.permute.xlu0 %2245
      %2247 = vrot.lane.b32.xlu0 %v2181, 32
      %v2248 = vpop.permute.xlu0 %2247
      %2249 = vrot.lane.b32.xlu0 %v2183, 32
      %v2250 = vpop.permute.xlu0 %2249
      %2251 = vrot.lane.b32.xlu0 %v2186, 32
      %v2252 = vpop.permute.xlu0 %2251
      %2253 = vrot.lane.b32.xlu0 %v2188, 32
      %v2254 = vpop.permute.xlu0 %2253
      %2255 = vrot.lane.b32.xlu0 %v2191, 32
      %v2256 = vpop.permute.xlu0 %2255
      %2257 = vrot.lane.b32.xlu0 %v2193, 32
      %v2258 = vpop.permute.xlu0 %2257
      %2259 = vrot.lane.b32.xlu0 %v2196, 32
      %v2260 = vpop.permute.xlu0 %2259
      %2261 = vrot.lane.b32.xlu0 %v2198, 32
      %v2262 = vpop.permute.xlu0 %2261
      %vm2295 = vcmask 326912
      %2296 = vst.msk [vmem:[#allocation2] sm:$0xff] %vm2295, %v2200
      %2297 = vst.msk [vmem:[#allocation2 + $0x10] sm:$0xff] %vm2295, %v2202
      %2298 = vst.msk [vmem:[#allocation2 + $0x20] sm:$0xff] %vm2295, %v2204
      %2299 = vst.msk [vmem:[#allocation2 + $0x30] sm:$0xff] %vm2295, %v2206
      %2300 = vst.msk [vmem:[#allocation2 + $0x40] sm:$0xff] %vm2295, %v2208
      %2301 = vst.msk [vmem:[#allocation2 + $0x50] sm:$0xff] %vm2295, %v2210
      %2302 = vst.msk [vmem:[#allocation2 + $0x60] sm:$0xff] %vm2295, %v2212
      %2303 = vst.msk [vmem:[#allocation2 + $0x70] sm:$0xff] %vm2295, %v2214
      %2304 = vst.msk [vmem:[#allocation2 + $0x80] sm:$0xff] %vm2295, %v2216
      %2305 = vst.msk [vmem:[#allocation2 + $0x90] sm:$0xff] %vm2295, %v2218
      %2306 = vst.msk [vmem:[#allocation2 + $0xa0] sm:$0xff] %vm2295, %v2220
      %2307 = vst.msk [vmem:[#allocation2 + $0xb0] sm:$0xff] %vm2295, %v2222
      %2308 = vst.msk [vmem:[#allocation2 + $0xc0] sm:$0xff] %vm2295, %v2224
      %2309 = vst.msk [vmem:[#allocation2 + $0xd0] sm:$0xff] %vm2295, %v2226
      %2310 = vst.msk [vmem:[#allocation2 + $0xe0] sm:$0xff] %vm2295, %v2228
      %2311 = vst.msk [vmem:[#allocation2 + $0xf0] sm:$0xff] %vm2295, %v2230
      %2312 = vst.msk [vmem:[#allocation2 + $0x100] sm:$0xff] %vm2295, %v2232
      %2313 = vst.msk [vmem:[#allocation2 + $0x110] sm:$0xff] %vm2295, %v2234
      %2314 = vst.msk [vmem:[#allocation2 + $0x120] sm:$0xff] %vm2295, %v2236
      %2315 = vst.msk [vmem:[#allocation2 + $0x130] sm:$0xff] %vm2295, %v2238
      %2316 = vst.msk [vmem:[#allocation2 + $0x140] sm:$0xff] %vm2295, %v2240
      %2317 = vst.msk [vmem:[#allocation2 + $0x150] sm:$0xff] %vm2295, %v2242
      %2318 = vst.msk [vmem:[#allocation2 + $0x160] sm:$0xff] %vm2295, %v2244
      %2319 = vst.msk [vmem:[#allocation2 + $0x170] sm:$0xff] %vm2295, %v2246
      %2320 = vst.msk [vmem:[#allocation2 + $0x180] sm:$0xff] %vm2295, %v2248
      %2321 = vst.msk [vmem:[#allocation2 + $0x190] sm:$0xff] %vm2295, %v2250
      %2322 = vst.msk [vmem:[#allocation2 + $0x1a0] sm:$0xff] %vm2295, %v2252
      %2323 = vst.msk [vmem:[#allocation2 + $0x1b0] sm:$0xff] %vm2295, %v2254
      %2324 = vst.msk [vmem:[#allocation2 + $0x1c0] sm:$0xff] %vm2295, %v2256
      %2325 = vst.msk [vmem:[#allocation2 + $0x1d0] sm:$0xff] %vm2295, %v2258
      %2326 = vst.msk [vmem:[#allocation2 + $0x1e0] sm:$0xff] %vm2295, %v2260
      %2327 = vst.msk [vmem:[#allocation2 + $0x1f0] sm:$0xff] %vm2295, %v2262
      %2328 = vst [vmem:[#allocation1] ss:$4 sm:$0xff] %v653
      %s2329 = scalar_lea.vmem [#allocation1], 1
      %2330 = vst [vmem:[%s2329] ss:$4 sm:$0xff] %v654
      %s2331 = scalar_lea.vmem [#allocation1], 2
      %2332 = vst [vmem:[%s2331] ss:$4 sm:$0xff] %v655
      %s2333 = scalar_lea.vmem [#allocation1], 3
      %2334 = vst [vmem:[%s2333] ss:$4 sm:$0xff] %v493
      %s2335 = scalar_lea.vmem [#allocation1], 32
      %2336 = vst [vmem:[%s2335] ss:$4 sm:$0xff] %v656
      %s2337 = scalar_lea.vmem [#allocation1], 33
      %2338 = vst [vmem:[%s2337] ss:$4 sm:$0xff] %v657
      %s2339 = scalar_lea.vmem [#allocation1], 34
      %2340 = vst [vmem:[%s2339] ss:$4 sm:$0xff] %v658
      %s2341 = scalar_lea.vmem [#allocation1], 35
      %2342 = vst [vmem:[%s2341] ss:$4 sm:$0xff] %v496
      %v2343 = vld.sshfl [vmem:[#allocation1] sm:$0xff pattern:$0x73625140]
      %v2344 = vld.sshfl [vmem:[#allocation1 + $0x20] sm:$0xff pattern:$0x73625140]
      %2345 = vst [vmem:[#allocation1] ss:$4 sm:$0xff] %v660
      %2346 = vst [vmem:[%s2329] ss:$4 sm:$0xff] %v661
      %2347 = vst [vmem:[%s2331] ss:$4 sm:$0xff] %v499
      %2348 = vst [vmem:[%s2333] ss:$4 sm:$0xff] %v662
      %2349 = vst [vmem:[%s2335] ss:$4 sm:$0xff] %v663
      %2350 = vst [vmem:[%s2337] ss:$4 sm:$0xff] %v664
      %2351 = vst [vmem:[%s2339] ss:$4 sm:$0xff] %v502
      %2352 = vst [vmem:[%s2341] ss:$4 sm:$0xff] %v665
      %v2353 = vld.sshfl [vmem:[#allocation1] sm:$0xff pattern:$0x73625140]
      %v2354 = vld.sshfl [vmem:[#allocation1 + $0x20] sm:$0xff pattern:$0x73625140]
      %2355 = vst [vmem:[#allocation1] ss:$4 sm:$0xff] %v667
      %2356 = vst [vmem:[%s2329] ss:$4 sm:$0xff] %v505
      %2357 = vst [vmem:[%s2331] ss:$4 sm:$0xff] %v668
      %2358 = vst [vmem:[%s2333] ss:$4 sm:$0xff] %v669
      %2359 = vst [vmem:[%s2335] ss:$4 sm:$0xff] %v670
      %2360 = vst [vmem:[%s2337] ss:$4 sm:$0xff] %v508
      %2361 = vst [vmem:[%s2339] ss:$4 sm:$0xff] %v671
      %2362 = vst [vmem:[%s2341] ss:$4 sm:$0xff] %v672
      %v2363 = vld.sshfl [vmem:[#allocation1] sm:$0xff pattern:$0x73625140]
      %v2364 = vld.sshfl [vmem:[#allocation1 + $0x20] sm:$0xff pattern:$0x73625140]
      %2365 = vst [vmem:[#allocation1] ss:$4 sm:$0xff] %v511
      %2366 = vst [vmem:[%s2329] ss:$4 sm:$0xff] %v674
      %2367 = vst [vmem:[%s2331] ss:$4 sm:$0xff] %v675
      %2368 = vst [vmem:[%s2333] ss:$4 sm:$0xff] %v676
      %2369 = vst [vmem:[%s2335] ss:$4 sm:$0xff] %v514
      %2370 = vst [vmem:[%s2337] ss:$4 sm:$0xff] %v677
      %2371 = vst [vmem:[%s2339] ss:$4 sm:$0xff] %v678
      %2372 = vst [vmem:[%s2341] ss:$4 sm:$0xff] %v679
      %v2373 = vld.sshfl [vmem:[#allocation1] sm:$0xff pattern:$0x73625140]
      %v2374 = vld.sshfl [vmem:[#allocation1 + $0x20] sm:$0xff pattern:$0x73625140]
      %2375 = vst [vmem:[#allocation1] ss:$4 sm:$0xff] %v680
      %2376 = vst [vmem:[%s2329] ss:$4 sm:$0xff] %v681
      %2377 = vst [vmem:[%s2331] ss:$4 sm:$0xff] %v682
      %2378 = vst [vmem:[%s2333] ss:$4 sm:$0xff] %v520
      %2379 = vst [vmem:[%s2335] ss:$4 sm:$0xff] %v683
      %2380 = vst [vmem:[%s2337] ss:$4 sm:$0xff] %v684
      %2381 = vst [vmem:[%s2339] ss:$4 sm:$0xff] %v685
      %2382 = vst [vmem:[%s2341] ss:$4 sm:$0xff] %v523
      %v2383 = vld.sshfl [vmem:[#allocation1] sm:$0xff pattern:$0x73625140]
      %v2384 = vld.sshfl [vmem:[#allocation1 + $0x20] sm:$0xff pattern:$0x73625140]
      %2385 = vst [vmem:[#allocation1] ss:$4 sm:$0xff] %v687
      %2386 = vst [vmem:[%s2329] ss:$4 sm:$0xff] %v688
      %2387 = vst [vmem:[%s2331] ss:$4 sm:$0xff] %v526
      %2388 = vst [vmem:[%s2333] ss:$4 sm:$0xff] %v689
      %2389 = vst [vmem:[%s2335] ss:$4 sm:$0xff] %v690
      %2390 = vst [vmem:[%s2337] ss:$4 sm:$0xff] %v691
      %2391 = vst [vmem:[%s2339] ss:$4 sm:$0xff] %v529
      %2392 = vst [vmem:[%s2341] ss:$4 sm:$0xff] %v692
      %v2393 = vld.sshfl [vmem:[#allocation1] sm:$0xff pattern:$0x73625140]
      %v2394 = vld.sshfl [vmem:[#allocation1 + $0x20] sm:$0xff pattern:$0x73625140]
      %2395 = vst [vmem:[#allocation1] ss:$4 sm:$0xff] %v694
      %2396 = vst [vmem:[%s2329] ss:$4 sm:$0xff] %v532
      %2397 = vst [vmem:[%s2331] ss:$4 sm:$0xff] %v695
      %2398 = vst [vmem:[%s2333] ss:$4 sm:$0xff] %v696
      %2399 = vst [vmem:[%s2335] ss:$4 sm:$0xff] %v697
      %2400 = vst [vmem:[%s2337] ss:$4 sm:$0xff] %v535
      %2401 = vst [vmem:[%s2339] ss:$4 sm:$0xff] %v698
      %2402 = vst [vmem:[%s2341] ss:$4 sm:$0xff] %v699
      %v2403 = vld.sshfl [vmem:[#allocation1] sm:$0xff pattern:$0x73625140]
      %v2404 = vld.sshfl [vmem:[#allocation1 + $0x20] sm:$0xff pattern:$0x73625140]
      %2405 = vst [vmem:[#allocation1] ss:$4 sm:$0xff] %v538
      %2406 = vst [vmem:[%s2329] ss:$4 sm:$0xff] %v701
      %2407 = vst [vmem:[%s2331] ss:$4 sm:$0xff] %v702
      %2408 = vst [vmem:[%s2333] ss:$4 sm:$0xff] %v703
      %2409 = vst [vmem:[%s2335] ss:$4 sm:$0xff] %v541
      %2410 = vst [vmem:[%s2337] ss:$4 sm:$0xff] %v704
      %2411 = vst [vmem:[%s2339] ss:$4 sm:$0xff] %v705
      %2412 = vst [vmem:[%s2341] ss:$4 sm:$0xff] %v706
      %v2413 = vld.sshfl [vmem:[#allocation1] sm:$0xff pattern:$0x73625140]
      %v2414 = vld.sshfl [vmem:[#allocation1 + $0x20] sm:$0xff pattern:$0x73625140]
      %2415 = vst [vmem:[#allocation1] ss:$4 sm:$0xff] %v707
      %2416 = vst [vmem:[%s2329] ss:$4 sm:$0xff] %v708
      %2417 = vst [vmem:[%s2331] ss:$4 sm:$0xff] %v709
      %2418 = vst [vmem:[%s2333] ss:$4 sm:$0xff] %v547
      %2419 = vst [vmem:[%s2335] ss:$4 sm:$0xff] %v710
      %2420 = vst [vmem:[%s2337] ss:$4 sm:$0xff] %v711
      %2421 = vst [vmem:[%s2339] ss:$4 sm:$0xff] %v712
      %2422 = vst [vmem:[%s2341] ss:$4 sm:$0xff] %v550
      %v2423 = vld.sshfl [vmem:[#allocation1] sm:$0xff pattern:$0x73625140]
      %v2424 = vld.sshfl [vmem:[#allocation1 + $0x20] sm:$0xff pattern:$0x73625140]
      %2425 = vst [vmem:[#allocation1] ss:$4 sm:$0xff] %v714
      %2426 = vst [vmem:[%s2329] ss:$4 sm:$0xff] %v715
      %2427 = vst [vmem:[%s2331] ss:$4 sm:$0xff] %v553
      %2428 = vst [vmem:[%s2333] ss:$4 sm:$0xff] %v716
      %2429 = vst [vmem:[%s2335] ss:$4 sm:$0xff] %v717
      %2430 = vst [vmem:[%s2337] ss:$4 sm:$0xff] %v718
      %2431 = vst [vmem:[%s2339] ss:$4 sm:$0xff] %v556
      %2432 = vst [vmem:[%s2341] ss:$4 sm:$0xff] %v719
      %v2433 = vld.sshfl [vmem:[#allocation1] sm:$0xff pattern:$0x73625140]
      %v2434 = vld.sshfl [vmem:[#allocation1 + $0x20] sm:$0xff pattern:$0x73625140]
      %2435 = vst [vmem:[#allocation1] ss:$4 sm:$0xff] %v721
      %2436 = vst [vmem:[%s2329] ss:$4 sm:$0xff] %v559
      %2437 = vst [vmem:[%s2331] ss:$4 sm:$0xff] %v722
      %2438 = vst [vmem:[%s2333] ss:$4 sm:$0xff] %v723
      %2439 = vst [vmem:[%s2335] ss:$4 sm:$0xff] %v724
      %2440 = vst [vmem:[%s2337] ss:$4 sm:$0xff] %v562
      %2441 = vst [vmem:[%s2339] ss:$4 sm:$0xff] %v725
      %2442 = vst [vmem:[%s2341] ss:$4 sm:$0xff] %v726
      %v2443 = vld.sshfl [vmem:[#allocation1] sm:$0xff pattern:$0x73625140]
      %v2444 = vld.sshfl [vmem:[#allocation1 + $0x20] sm:$0xff pattern:$0x73625140]
      %2445 = vst [vmem:[#allocation1] ss:$4 sm:$0xff] %v565
      %2446 = vst [vmem:[%s2329] ss:$4 sm:$0xff] %v728
      %2447 = vst [vmem:[%s2331] ss:$4 sm:$0xff] %v729
      %2448 = vst [vmem:[%s2333] ss:$4 sm:$0xff] %v730
      %2449 = vst [vmem:[%s2335] ss:$4 sm:$0xff] %v568
      %2450 = vst [vmem:[%s2337] ss:$4 sm:$0xff] %v731
      %2451 = vst [vmem:[%s2339] ss:$4 sm:$0xff] %v732
      %2452 = vst [vmem:[%s2341] ss:$4 sm:$0xff] %v733
      %v2453 = vld.sshfl [vmem:[#allocation1] sm:$0xff pattern:$0x73625140]
      %v2454 = vld.sshfl [vmem:[#allocation1 + $0x20] sm:$0xff pattern:$0x73625140]
      %2455 = vst [vmem:[#allocation1] ss:$4 sm:$0xff] %v734
      %2456 = vst [vmem:[%s2329] ss:$4 sm:$0xff] %v735
      %2457 = vst [vmem:[%s2331] ss:$4 sm:$0xff] %v736
      %2458 = vst [vmem:[%s2333] ss:$4 sm:$0xff] %v574
      %2459 = vst [vmem:[%s2335] ss:$4 sm:$0xff] %v737
      %2460 = vst [vmem:[%s2337] ss:$4 sm:$0xff] %v738
      %2461 = vst [vmem:[%s2339] ss:$4 sm:$0xff] %v739
      %2462 = vst [vmem:[%s2341] ss:$4 sm:$0xff] %v577
      %v2463 = vld.sshfl [vmem:[#allocation1] sm:$0xff pattern:$0x73625140]
      %v2464 = vld.sshfl [vmem:[#allocation1 + $0x20] sm:$0xff pattern:$0x73625140]
      %2465 = vst [vmem:[#allocation1] ss:$4 sm:$0xff] %v741
      %2466 = vst [vmem:[%s2329] ss:$4 sm:$0xff] %v742
      %2467 = vst [vmem:[%s2331] ss:$4 sm:$0xff] %v580
      %2468 = vst [vmem:[%s2333] ss:$4 sm:$0xff] %v743
      %2469 = vst [vmem:[%s2335] ss:$4 sm:$0xff] %v744
      %2470 = vst [vmem:[%s2337] ss:$4 sm:$0xff] %v745
      %2471 = vst [vmem:[%s2339] ss:$4 sm:$0xff] %v583
      %2472 = vst [vmem:[%s2341] ss:$4 sm:$0xff] %v746
      %v2473 = vld.sshfl [vmem:[#allocation1] sm:$0xff pattern:$0x73625140]
      %v2474 = vld.sshfl [vmem:[#allocation1 + $0x20] sm:$0xff pattern:$0x73625140]
      %2475 = vst [vmem:[#allocation1] ss:$4 sm:$0xff] %v748
      %2476 = vst [vmem:[%s2329] ss:$4 sm:$0xff] %v586
      %2477 = vst [vmem:[%s2331] ss:$4 sm:$0xff] %v749
      %2478 = vst [vmem:[%s2333] ss:$4 sm:$0xff] %v750
      %2479 = vst [vmem:[%s2335] ss:$4 sm:$0xff] %v751
      %2480 = vst [vmem:[%s2337] ss:$4 sm:$0xff] %v589
      %2481 = vst [vmem:[%s2339] ss:$4 sm:$0xff] %v752
      %2482 = vst [vmem:[%s2341] ss:$4 sm:$0xff] %v753
      %v2483 = vld.sshfl [vmem:[#allocation1] sm:$0xff pattern:$0x73625140]
      %v2484 = vld.sshfl [vmem:[#allocation1 + $0x20] sm:$0xff pattern:$0x73625140]
      %2485 = vst [vmem:[#allocation1] ss:$4 sm:$0xff] %v592
      %2486 = vst [vmem:[%s2329] ss:$4 sm:$0xff] %v755
      %2487 = vst [vmem:[%s2331] ss:$4 sm:$0xff] %v756
      %2488 = vst [vmem:[%s2333] ss:$4 sm:$0xff] %v757
      %2489 = vst [vmem:[%s2335] ss:$4 sm:$0xff] %v595
      %2490 = vst [vmem:[%s2337] ss:$4 sm:$0xff] %v758
      %2491 = vst [vmem:[%s2339] ss:$4 sm:$0xff] %v759
      %2492 = vst [vmem:[%s2341] ss:$4 sm:$0xff] %v760
      %v2493 = vld.sshfl [vmem:[#allocation1] sm:$0xff pattern:$0x73625140]
      %v2494 = vld.sshfl [vmem:[#allocation1 + $0x20] sm:$0xff pattern:$0x73625140]
      %2495 = vrot.lane.b32.xlu0 %v2343, 40
      %v2496 = vpop.permute.xlu0 %2495
      %2497 = vrot.lane.b32.xlu0 %v2344, 40
      %v2498 = vpop.permute.xlu0 %2497
      %2499 = vrot.lane.b32.xlu0 %v2353, 40
      %v2500 = vpop.permute.xlu0 %2499
      %2501 = vrot.lane.b32.xlu0 %v2354, 40
      %v2502 = vpop.permute.xlu0 %2501
      %2503 = vrot.lane.b32.xlu0 %v2363, 40
      %v2504 = vpop.permute.xlu0 %2503
      %2505 = vrot.lane.b32.xlu0 %v2364, 40
      %v2506 = vpop.permute.xlu0 %2505
      %2507 = vrot.lane.b32.xlu0 %v2373, 40
      %v2508 = vpop.permute.xlu0 %2507
      %2509 = vrot.lane.b32.xlu0 %v2374, 40
      %v2510 = vpop.permute.xlu0 %2509
      %2511 = vrot.lane.b32.xlu0 %v2383, 40
      %v2512 = vpop.permute.xlu0 %2511
      %2513 = vrot.lane.b32.xlu0 %v2384, 40
      %v2514 = vpop.permute.xlu0 %2513
      %2515 = vrot.lane.b32.xlu0 %v2393, 40
      %v2516 = vpop.permute.xlu0 %2515
      %2517 = vrot.lane.b32.xlu0 %v2394, 40
      %v2518 = vpop.permute.xlu0 %2517
      %2519 = vrot.lane.b32.xlu0 %v2403, 40
      %v2520 = vpop.permute.xlu0 %2519
      %2521 = vrot.lane.b32.xlu0 %v2404, 40
      %v2522 = vpop.permute.xlu0 %2521
      %2523 = vrot.lane.b32.xlu0 %v2413, 40
      %v2524 = vpop.permute.xlu0 %2523
      %2525 = vrot.lane.b32.xlu0 %v2414, 40
      %v2526 = vpop.permute.xlu0 %2525
      %2527 = vrot.lane.b32.xlu0 %v2423, 40
      %v2528 = vpop.permute.xlu0 %2527
      %2529 = vrot.lane.b32.xlu0 %v2424, 40
      %v2530 = vpop.permute.xlu0 %2529
      %2531 = vrot.lane.b32.xlu0 %v2433, 40
      %v2532 = vpop.permute.xlu0 %2531
      %2533 = vrot.lane.b32.xlu0 %v2434, 40
      %v2534 = vpop.permute.xlu0 %2533
      %2535 = vrot.lane.b32.xlu0 %v2443, 40
      %v2536 = vpop.permute.xlu0 %2535
      %2537 = vrot.lane.b32.xlu0 %v2444, 40
      %v2538 = vpop.permute.xlu0 %2537
      %2539 = vrot.lane.b32.xlu0 %v2453, 40
      %v2540 = vpop.permute.xlu0 %2539
      %2541 = vrot.lane.b32.xlu0 %v2454, 40
      %v2542 = vpop.permute.xlu0 %2541
      %2543 = vrot.lane.b32.xlu0 %v2463, 40
      %v2544 = vpop.permute.xlu0 %2543
      %2545 = vrot.lane.b32.xlu0 %v2464, 40
      %v2546 = vpop.permute.xlu0 %2545
      %2547 = vrot.lane.b32.xlu0 %v2473, 40
      %v2548 = vpop.permute.xlu0 %2547
      %2549 = vrot.lane.b32.xlu0 %v2474, 40
      %v2550 = vpop.permute.xlu0 %2549
      %2551 = vrot.lane.b32.xlu0 %v2483, 40
      %v2552 = vpop.permute.xlu0 %2551
      %2553 = vrot.lane.b32.xlu0 %v2484, 40
      %v2554 = vpop.permute.xlu0 %2553
      %2555 = vrot.lane.b32.xlu0 %v2493, 40
      %v2556 = vpop.permute.xlu0 %2555
      %2557 = vrot.lane.b32.xlu0 %v2494, 40
      %v2558 = vpop.permute.xlu0 %2557
      %vm2591 = vcmask 392512
      %2592 = vst.msk [vmem:[#allocation2] sm:$0xff] %vm2591, %v2496
      %2593 = vst.msk [vmem:[#allocation2 + $0x10] sm:$0xff] %vm2591, %v2498
      %2594 = vst.msk [vmem:[#allocation2 + $0x20] sm:$0xff] %vm2591, %v2500
      %2595 = vst.msk [vmem:[#allocation2 + $0x30] sm:$0xff] %vm2591, %v2502
      %2596 = vst.msk [vmem:[#allocation2 + $0x40] sm:$0xff] %vm2591, %v2504
      %2597 = vst.msk [vmem:[#allocation2 + $0x50] sm:$0xff] %vm2591, %v2506
      %2598 = vst.msk [vmem:[#allocation2 + $0x60] sm:$0xff] %vm2591, %v2508
      %2599 = vst.msk [vmem:[#allocation2 + $0x70] sm:$0xff] %vm2591, %v2510
      %2600 = vst.msk [vmem:[#allocation2 + $0x80] sm:$0xff] %vm2591, %v2512
      %2601 = vst.msk [vmem:[#allocation2 + $0x90] sm:$0xff] %vm2591, %v2514
      %2602 = vst.msk [vmem:[#allocation2 + $0xa0] sm:$0xff] %vm2591, %v2516
      %2603 = vst.msk [vmem:[#allocation2 + $0xb0] sm:$0xff] %vm2591, %v2518
      %2604 = vst.msk [vmem:[#allocation2 + $0xc0] sm:$0xff] %vm2591, %v2520
      %2605 = vst.msk [vmem:[#allocation2 + $0xd0] sm:$0xff] %vm2591, %v2522
      %2606 = vst.msk [vmem:[#allocation2 + $0xe0] sm:$0xff] %vm2591, %v2524
      %2607 = vst.msk [vmem:[#allocation2 + $0xf0] sm:$0xff] %vm2591, %v2526
      %2608 = vst.msk [vmem:[#allocation2 + $0x100] sm:$0xff] %vm2591, %v2528
      %2609 = vst.msk [vmem:[#allocation2 + $0x110] sm:$0xff] %vm2591, %v2530
      %2610 = vst.msk [vmem:[#allocation2 + $0x120] sm:$0xff] %vm2591, %v2532
      %2611 = vst.msk [vmem:[#allocation2 + $0x130] sm:$0xff] %vm2591, %v2534
      %2612 = vst.msk [vmem:[#allocation2 + $0x140] sm:$0xff] %vm2591, %v2536
      %2613 = vst.msk [vmem:[#allocation2 + $0x150] sm:$0xff] %vm2591, %v2538
      %2614 = vst.msk [vmem:[#allocation2 + $0x160] sm:$0xff] %vm2591, %v2540
      %2615 = vst.msk [vmem:[#allocation2 + $0x170] sm:$0xff] %vm2591, %v2542
      %2616 = vst.msk [vmem:[#allocation2 + $0x180] sm:$0xff] %vm2591, %v2544
      %2617 = vst.msk [vmem:[#allocation2 + $0x190] sm:$0xff] %vm2591, %v2546
      %2618 = vst.msk [vmem:[#allocation2 + $0x1a0] sm:$0xff] %vm2591, %v2548
      %2619 = vst.msk [vmem:[#allocation2 + $0x1b0] sm:$0xff] %vm2591, %v2550
      %2620 = vst.msk [vmem:[#allocation2 + $0x1c0] sm:$0xff] %vm2591, %v2552
      %2621 = vst.msk [vmem:[#allocation2 + $0x1d0] sm:$0xff] %vm2591, %v2554
      %2622 = vst.msk [vmem:[#allocation2 + $0x1e0] sm:$0xff] %vm2591, %v2556
      %2623 = vst.msk [vmem:[#allocation2 + $0x1f0] sm:$0xff] %vm2591, %v2558
      %2626 = vrot.lane.b32.xlu0 %v777, 48
      %v2627 = vpop.permute.xlu0 %2626
      %2628 = vrot.lane.b32.xlu0 %v778, 48
      %v2629 = vpop.permute.xlu0 %2628
      %2630 = vrot.lane.b32.xlu0 %v780, 48
      %v2631 = vpop.permute.xlu0 %2630
      %2632 = vrot.lane.b32.xlu0 %v781, 48
      %v2633 = vpop.permute.xlu0 %2632
      %2634 = vrot.lane.b32.xlu0 %v783, 48
      %v2635 = vpop.permute.xlu0 %2634
      %2636 = vrot.lane.b32.xlu0 %v784, 48
      %v2637 = vpop.permute.xlu0 %2636
      %2638 = vrot.lane.b32.xlu0 %v786, 48
      %v2639 = vpop.permute.xlu0 %2638
      %2640 = vrot.lane.b32.xlu0 %v787, 48
      %v2641 = vpop.permute.xlu0 %2640
      %2642 = vrot.lane.b32.xlu0 %v789, 48
      %v2643 = vpop.permute.xlu0 %2642
      %2644 = vrot.lane.b32.xlu0 %v790, 48
      %v2645 = vpop.permute.xlu0 %2644
      %2646 = vrot.lane.b32.xlu0 %v792, 48
      %v2647 = vpop.permute.xlu0 %2646
      %2648 = vrot.lane.b32.xlu0 %v793, 48
      %v2649 = vpop.permute.xlu0 %2648
      %2650 = vrot.lane.b32.xlu0 %v795, 48
      %v2651 = vpop.permute.xlu0 %2650
      %2652 = vrot.lane.b32.xlu0 %v796, 48
      %v2653 = vpop.permute.xlu0 %2652
      %2654 = vrot.lane.b32.xlu0 %v798, 48
      %v2655 = vpop.permute.xlu0 %2654
      %2656 = vrot.lane.b32.xlu0 %v799, 48
      %v2657 = vpop.permute.xlu0 %2656
      %2658 = vrot.lane.b32.xlu0 %v801, 48
      %v2659 = vpop.permute.xlu0 %2658
      %2660 = vrot.lane.b32.xlu0 %v802, 48
      %v2661 = vpop.permute.xlu0 %2660
      %2662 = vrot.lane.b32.xlu0 %v804, 48
      %v2663 = vpop.permute.xlu0 %2662
      %2664 = vrot.lane.b32.xlu0 %v805, 48
      %v2665 = vpop.permute.xlu0 %2664
      %2666 = vrot.lane.b32.xlu0 %v807, 48
      %v2667 = vpop.permute.xlu0 %2666
      %2668 = vrot.lane.b32.xlu0 %v808, 48
      %v2669 = vpop.permute.xlu0 %2668
      %2670 = vrot.lane.b32.xlu0 %v810, 48
      %v2671 = vpop.permute.xlu0 %2670
      %2672 = vrot.lane.b32.xlu0 %v811, 48
      %v2673 = vpop.permute.xlu0 %2672
      %2674 = vrot.lane.b32.xlu0 %v813, 48
      %v2675 = vpop.permute.xlu0 %2674
      %2676 = vrot.lane.b32.xlu0 %v814, 48
      %v2677 = vpop.permute.xlu0 %2676
      %2678 = vrot.lane.b32.xlu0 %v816, 48
      %v2679 = vpop.permute.xlu0 %2678
      %2680 = vrot.lane.b32.xlu0 %v817, 48
      %v2681 = vpop.permute.xlu0 %2680
      %2682 = vrot.lane.b32.xlu0 %v819, 48
      %v2683 = vpop.permute.xlu0 %2682
      %2684 = vrot.lane.b32.xlu0 %v820, 48
      %v2685 = vpop.permute.xlu0 %2684
      %2686 = vrot.lane.b32.xlu0 %v822, 48
      %v2687 = vpop.permute.xlu0 %2686
      %2688 = vrot.lane.b32.xlu0 %v823, 48
      %v2689 = vpop.permute.xlu0 %2688
      %vm2722 = vcmask 458112
      %2723 = vst.msk [vmem:[#allocation2] sm:$0xff] %vm2722, %v2627
      %2724 = vst.msk [vmem:[#allocation2 + $0x10] sm:$0xff] %vm2722, %v2629
      %2725 = vst.msk [vmem:[#allocation2 + $0x20] sm:$0xff] %vm2722, %v2631
      %2726 = vst.msk [vmem:[#allocation2 + $0x30] sm:$0xff] %vm2722, %v2633
      %2727 = vst.msk [vmem:[#allocation2 + $0x40] sm:$0xff] %vm2722, %v2635
      %2728 = vst.msk [vmem:[#allocation2 + $0x50] sm:$0xff] %vm2722, %v2637
      %2729 = vst.msk [vmem:[#allocation2 + $0x60] sm:$0xff] %vm2722, %v2639
      %2730 = vst.msk [vmem:[#allocation2 + $0x70] sm:$0xff] %vm2722, %v2641
      %2731 = vst.msk [vmem:[#allocation2 + $0x80] sm:$0xff] %vm2722, %v2643
      %2732 = vst.msk [vmem:[#allocation2 + $0x90] sm:$0xff] %vm2722, %v2645
      %2733 = vst.msk [vmem:[#allocation2 + $0xa0] sm:$0xff] %vm2722, %v2647
      %2734 = vst.msk [vmem:[#allocation2 + $0xb0] sm:$0xff] %vm2722, %v2649
      %2735 = vst.msk [vmem:[#allocation2 + $0xc0] sm:$0xff] %vm2722, %v2651
      %2736 = vst.msk [vmem:[#allocation2 + $0xd0] sm:$0xff] %vm2722, %v2653
      %2737 = vst.msk [vmem:[#allocation2 + $0xe0] sm:$0xff] %vm2722, %v2655
      %2738 = vst.msk [vmem:[#allocation2 + $0xf0] sm:$0xff] %vm2722, %v2657
      %2739 = vst.msk [vmem:[#allocation2 + $0x100] sm:$0xff] %vm2722, %v2659
      %2740 = vst.msk [vmem:[#allocation2 + $0x110] sm:$0xff] %vm2722, %v2661
      %2741 = vst.msk [vmem:[#allocation2 + $0x120] sm:$0xff] %vm2722, %v2663
      %2742 = vst.msk [vmem:[#allocation2 + $0x130] sm:$0xff] %vm2722, %v2665
      %2743 = vst.msk [vmem:[#allocation2 + $0x140] sm:$0xff] %vm2722, %v2667
      %2744 = vst.msk [vmem:[#allocation2 + $0x150] sm:$0xff] %vm2722, %v2669
      %2745 = vst.msk [vmem:[#allocation2 + $0x160] sm:$0xff] %vm2722, %v2671
      %2746 = vst.msk [vmem:[#allocation2 + $0x170] sm:$0xff] %vm2722, %v2673
      %2747 = vst.msk [vmem:[#allocation2 + $0x180] sm:$0xff] %vm2722, %v2675
      %2748 = vst.msk [vmem:[#allocation2 + $0x190] sm:$0xff] %vm2722, %v2677
      %2749 = vst.msk [vmem:[#allocation2 + $0x1a0] sm:$0xff] %vm2722, %v2679
      %2750 = vst.msk [vmem:[#allocation2 + $0x1b0] sm:$0xff] %vm2722, %v2681
      %2751 = vst.msk [vmem:[#allocation2 + $0x1c0] sm:$0xff] %vm2722, %v2683
      %2752 = vst.msk [vmem:[#allocation2 + $0x1d0] sm:$0xff] %vm2722, %v2685
      %2753 = vst.msk [vmem:[#allocation2 + $0x1e0] sm:$0xff] %vm2722, %v2687
      %2754 = vst.msk [vmem:[#allocation2 + $0x1f0] sm:$0xff] %vm2722, %v2689
      %2755 = vst [vmem:[#allocation1] ss:$4 sm:$0xff] %v659
      %s2756 = scalar_lea.vmem [#allocation1], 1
      %2757 = vst [vmem:[%s2756] ss:$4 sm:$0xff] %v660
      %s2758 = scalar_lea.vmem [#allocation1], 2
      %2759 = vst [vmem:[%s2758] ss:$4 sm:$0xff] %v661
      %s2760 = scalar_lea.vmem [#allocation1], 3
      %2761 = vst [vmem:[%s2760] ss:$4 sm:$0xff] %v499
      %s2762 = scalar_lea.vmem [#allocation1], 32
      %2763 = vst [vmem:[%s2762] ss:$4 sm:$0xff] %v662
      %s2764 = scalar_lea.vmem [#allocation1], 33
      %2765 = vst [vmem:[%s2764] ss:$4 sm:$0xff] %v663
      %s2766 = scalar_lea.vmem [#allocation1], 34
      %2767 = vst [vmem:[%s2766] ss:$4 sm:$0xff] %v664
      %s2768 = scalar_lea.vmem [#allocation1], 35
      %2769 = vst [vmem:[%s2768] ss:$4 sm:$0xff] %v502
      %v2770 = vld.sshfl [vmem:[#allocation1] sm:$0xff pattern:$0x73625140]
      %v2771 = vld.sshfl [vmem:[#allocation1 + $0x20] sm:$0xff pattern:$0x73625140]
      %2772 = vst [vmem:[#allocation1] ss:$4 sm:$0xff] %v666
      %2773 = vst [vmem:[%s2756] ss:$4 sm:$0xff] %v667
      %2774 = vst [vmem:[%s2758] ss:$4 sm:$0xff] %v505
      %2775 = vst [vmem:[%s2760] ss:$4 sm:$0xff] %v668
      %2776 = vst [vmem:[%s2762] ss:$4 sm:$0xff] %v669
      %2777 = vst [vmem:[%s2764] ss:$4 sm:$0xff] %v670
      %2778 = vst [vmem:[%s2766] ss:$4 sm:$0xff] %v508
      %2779 = vst [vmem:[%s2768] ss:$4 sm:$0xff] %v671
      %v2780 = vld.sshfl [vmem:[#allocation1] sm:$0xff pattern:$0x73625140]
      %v2781 = vld.sshfl [vmem:[#allocation1 + $0x20] sm:$0xff pattern:$0x73625140]
      %2782 = vst [vmem:[#allocation1] ss:$4 sm:$0xff] %v673
      %2783 = vst [vmem:[%s2756] ss:$4 sm:$0xff] %v511
      %2784 = vst [vmem:[%s2758] ss:$4 sm:$0xff] %v674
      %2785 = vst [vmem:[%s2760] ss:$4 sm:$0xff] %v675
      %2786 = vst [vmem:[%s2762] ss:$4 sm:$0xff] %v676
      %2787 = vst [vmem:[%s2764] ss:$4 sm:$0xff] %v514
      %2788 = vst [vmem:[%s2766] ss:$4 sm:$0xff] %v677
      %2789 = vst [vmem:[%s2768] ss:$4 sm:$0xff] %v678
      %v2790 = vld.sshfl [vmem:[#allocation1] sm:$0xff pattern:$0x73625140]
      %v2791 = vld.sshfl [vmem:[#allocation1 + $0x20] sm:$0xff pattern:$0x73625140]
      %2792 = vst [vmem:[#allocation1] ss:$4 sm:$0xff] %v517
      %2793 = vst [vmem:[%s2756] ss:$4 sm:$0xff] %v680
      %2794 = vst [vmem:[%s2758] ss:$4 sm:$0xff] %v681
      %2795 = vst [vmem:[%s2760] ss:$4 sm:$0xff] %v682
      %2796 = vst [vmem:[%s2762] ss:$4 sm:$0xff] %v520
      %2797 = vst [vmem:[%s2764] ss:$4 sm:$0xff] %v683
      %2798 = vst [vmem:[%s2766] ss:$4 sm:$0xff] %v684
      %2799 = vst [vmem:[%s2768] ss:$4 sm:$0xff] %v685
      %v2800 = vld.sshfl [vmem:[#allocation1] sm:$0xff pattern:$0x73625140]
      %v2801 = vld.sshfl [vmem:[#allocation1 + $0x20] sm:$0xff pattern:$0x73625140]
      %2802 = vst [vmem:[#allocation1] ss:$4 sm:$0xff] %v686
      %2803 = vst [vmem:[%s2756] ss:$4 sm:$0xff] %v687
      %2804 = vst [vmem:[%s2758] ss:$4 sm:$0xff] %v688
      %2805 = vst [vmem:[%s2760] ss:$4 sm:$0xff] %v526
      %2806 = vst [vmem:[%s2762] ss:$4 sm:$0xff] %v689
      %2807 = vst [vmem:[%s2764] ss:$4 sm:$0xff] %v690
      %2808 = vst [vmem:[%s2766] ss:$4 sm:$0xff] %v691
      %2809 = vst [vmem:[%s2768] ss:$4 sm:$0xff] %v529
      %v2810 = vld.sshfl [vmem:[#allocation1] sm:$0xff pattern:$0x73625140]
      %v2811 = vld.sshfl [vmem:[#allocation1 + $0x20] sm:$0xff pattern:$0x73625140]
      %2812 = vst [vmem:[#allocation1] ss:$4 sm:$0xff] %v693
      %2813 = vst [vmem:[%s2756] ss:$4 sm:$0xff] %v694
      %2814 = vst [vmem:[%s2758] ss:$4 sm:$0xff] %v532
      %2815 = vst [vmem:[%s2760] ss:$4 sm:$0xff] %v695
      %2816 = vst [vmem:[%s2762] ss:$4 sm:$0xff] %v696
      %2817 = vst [vmem:[%s2764] ss:$4 sm:$0xff] %v697
      %2818 = vst [vmem:[%s2766] ss:$4 sm:$0xff] %v535
      %2819 = vst [vmem:[%s2768] ss:$4 sm:$0xff] %v698
      %v2820 = vld.sshfl [vmem:[#allocation1] sm:$0xff pattern:$0x73625140]
      %v2821 = vld.sshfl [vmem:[#allocation1 + $0x20] sm:$0xff pattern:$0x73625140]
      %2822 = vst [vmem:[#allocation1] ss:$4 sm:$0xff] %v700
      %2823 = vst [vmem:[%s2756] ss:$4 sm:$0xff] %v538
      %2824 = vst [vmem:[%s2758] ss:$4 sm:$0xff] %v701
      %2825 = vst [vmem:[%s2760] ss:$4 sm:$0xff] %v702
      %2826 = vst [vmem:[%s2762] ss:$4 sm:$0xff] %v703
      %2827 = vst [vmem:[%s2764] ss:$4 sm:$0xff] %v541
      %2828 = vst [vmem:[%s2766] ss:$4 sm:$0xff] %v704
      %2829 = vst [vmem:[%s2768] ss:$4 sm:$0xff] %v705
      %v2830 = vld.sshfl [vmem:[#allocation1] sm:$0xff pattern:$0x73625140]
      %v2831 = vld.sshfl [vmem:[#allocation1 + $0x20] sm:$0xff pattern:$0x73625140]
      %2832 = vst [vmem:[#allocation1] ss:$4 sm:$0xff] %v544
      %2833 = vst [vmem:[%s2756] ss:$4 sm:$0xff] %v707
      %2834 = vst [vmem:[%s2758] ss:$4 sm:$0xff] %v708
      %2835 = vst [vmem:[%s2760] ss:$4 sm:$0xff] %v709
      %2836 = vst [vmem:[%s2762] ss:$4 sm:$0xff] %v547
      %2837 = vst [vmem:[%s2764] ss:$4 sm:$0xff] %v710
      %2838 = vst [vmem:[%s2766] ss:$4 sm:$0xff] %v711
      %2839 = vst [vmem:[%s2768] ss:$4 sm:$0xff] %v712
      %v2840 = vld.sshfl [vmem:[#allocation1] sm:$0xff pattern:$0x73625140]
      %v2841 = vld.sshfl [vmem:[#allocation1 + $0x20] sm:$0xff pattern:$0x73625140]
      %2842 = vst [vmem:[#allocation1] ss:$4 sm:$0xff] %v713
      %2843 = vst [vmem:[%s2756] ss:$4 sm:$0xff] %v714
      %2844 = vst [vmem:[%s2758] ss:$4 sm:$0xff] %v715
      %2845 = vst [vmem:[%s2760] ss:$4 sm:$0xff] %v553
      %2846 = vst [vmem:[%s2762] ss:$4 sm:$0xff] %v716
      %2847 = vst [vmem:[%s2764] ss:$4 sm:$0xff] %v717
      %2848 = vst [vmem:[%s2766] ss:$4 sm:$0xff] %v718
      %2849 = vst [vmem:[%s2768] ss:$4 sm:$0xff] %v556
      %v2850 = vld.sshfl [vmem:[#allocation1] sm:$0xff pattern:$0x73625140]
      %v2851 = vld.sshfl [vmem:[#allocation1 + $0x20] sm:$0xff pattern:$0x73625140]
      %2852 = vst [vmem:[#allocation1] ss:$4 sm:$0xff] %v720
      %2853 = vst [vmem:[%s2756] ss:$4 sm:$0xff] %v721
      %2854 = vst [vmem:[%s2758] ss:$4 sm:$0xff] %v559
      %2855 = vst [vmem:[%s2760] ss:$4 sm:$0xff] %v722
      %2856 = vst [vmem:[%s2762] ss:$4 sm:$0xff] %v723
      %2857 = vst [vmem:[%s2764] ss:$4 sm:$0xff] %v724
      %2858 = vst [vmem:[%s2766] ss:$4 sm:$0xff] %v562
      %2859 = vst [vmem:[%s2768] ss:$4 sm:$0xff] %v725
      %v2860 = vld.sshfl [vmem:[#allocation1] sm:$0xff pattern:$0x73625140]
      %v2861 = vld.sshfl [vmem:[#allocation1 + $0x20] sm:$0xff pattern:$0x73625140]
      %2862 = vst [vmem:[#allocation1] ss:$4 sm:$0xff] %v727
      %2863 = vst [vmem:[%s2756] ss:$4 sm:$0xff] %v565
      %2864 = vst [vmem:[%s2758] ss:$4 sm:$0xff] %v728
      %2865 = vst [vmem:[%s2760] ss:$4 sm:$0xff] %v729
      %2866 = vst [vmem:[%s2762] ss:$4 sm:$0xff] %v730
      %2867 = vst [vmem:[%s2764] ss:$4 sm:$0xff] %v568
      %2868 = vst [vmem:[%s2766] ss:$4 sm:$0xff] %v731
      %2869 = vst [vmem:[%s2768] ss:$4 sm:$0xff] %v732
      %v2870 = vld.sshfl [vmem:[#allocation1] sm:$0xff pattern:$0x73625140]
      %v2871 = vld.sshfl [vmem:[#allocation1 + $0x20] sm:$0xff pattern:$0x73625140]
      %2872 = vst [vmem:[#allocation1] ss:$4 sm:$0xff] %v571
      %2873 = vst [vmem:[%s2756] ss:$4 sm:$0xff] %v734
      %2874 = vst [vmem:[%s2758] ss:$4 sm:$0xff] %v735
      %2875 = vst [vmem:[%s2760] ss:$4 sm:$0xff] %v736
      %2876 = vst [vmem:[%s2762] ss:$4 sm:$0xff] %v574
      %2877 = vst [vmem:[%s2764] ss:$4 sm:$0xff] %v737
      %2878 = vst [vmem:[%s2766] ss:$4 sm:$0xff] %v738
      %2879 = vst [vmem:[%s2768] ss:$4 sm:$0xff] %v739
      %v2880 = vld.sshfl [vmem:[#allocation1] sm:$0xff pattern:$0x73625140]
      %v2881 = vld.sshfl [vmem:[#allocation1 + $0x20] sm:$0xff pattern:$0x73625140]
      %2882 = vst [vmem:[#allocation1] ss:$4 sm:$0xff] %v740
      %2883 = vst [vmem:[%s2756] ss:$4 sm:$0xff] %v741
      %2884 = vst [vmem:[%s2758] ss:$4 sm:$0xff] %v742
      %2885 = vst [vmem:[%s2760] ss:$4 sm:$0xff] %v580
      %2886 = vst [vmem:[%s2762] ss:$4 sm:$0xff] %v743
      %2887 = vst [vmem:[%s2764] ss:$4 sm:$0xff] %v744
      %2888 = vst [vmem:[%s2766] ss:$4 sm:$0xff] %v745
      %2889 = vst [vmem:[%s2768] ss:$4 sm:$0xff] %v583
      %v2890 = vld.sshfl [vmem:[#allocation1] sm:$0xff pattern:$0x73625140]
      %v2891 = vld.sshfl [vmem:[#allocation1 + $0x20] sm:$0xff pattern:$0x73625140]
      %2892 = vst [vmem:[#allocation1] ss:$4 sm:$0xff] %v747
      %2893 = vst [vmem:[%s2756] ss:$4 sm:$0xff] %v748
      %2894 = vst [vmem:[%s2758] ss:$4 sm:$0xff] %v586
      %2895 = vst [vmem:[%s2760] ss:$4 sm:$0xff] %v749
      %2896 = vst [vmem:[%s2762] ss:$4 sm:$0xff] %v750
      %2897 = vst [vmem:[%s2764] ss:$4 sm:$0xff] %v751
      %2898 = vst [vmem:[%s2766] ss:$4 sm:$0xff] %v589
      %2899 = vst [vmem:[%s2768] ss:$4 sm:$0xff] %v752
      %v2900 = vld.sshfl [vmem:[#allocation1] sm:$0xff pattern:$0x73625140]
      %v2901 = vld.sshfl [vmem:[#allocation1 + $0x20] sm:$0xff pattern:$0x73625140]
      %2902 = vst [vmem:[#allocation1] ss:$4 sm:$0xff] %v754
      %2903 = vst [vmem:[%s2756] ss:$4 sm:$0xff] %v592
      %2904 = vst [vmem:[%s2758] ss:$4 sm:$0xff] %v755
      %2905 = vst [vmem:[%s2760] ss:$4 sm:$0xff] %v756
      %2906 = vst [vmem:[%s2762] ss:$4 sm:$0xff] %v757
      %2907 = vst [vmem:[%s2764] ss:$4 sm:$0xff] %v595
      %2908 = vst [vmem:[%s2766] ss:$4 sm:$0xff] %v758
      %2909 = vst [vmem:[%s2768] ss:$4 sm:$0xff] %v759
      %v2910 = vld.sshfl [vmem:[#allocation1] sm:$0xff pattern:$0x73625140]
      %v2911 = vld.sshfl [vmem:[#allocation1 + $0x20] sm:$0xff pattern:$0x73625140]
      %2912 = vst [vmem:[#allocation1] ss:$4 sm:$0xff] %v598
      %2913 = vst [vmem:[%s2756] ss:$4 sm:$0xff] %v761
      %2914 = vst [vmem:[%s2758] ss:$4 sm:$0xff] %v762
      %2915 = vst [vmem:[%s2760] ss:$4 sm:$0xff] %v763
      %2916 = vst [vmem:[%s2762] ss:$4 sm:$0xff] %v601
      %2917 = vst [vmem:[%s2764] ss:$4 sm:$0xff] %v764
      %2918 = vst [vmem:[%s2766] ss:$4 sm:$0xff] %v765
      %2919 = vst [vmem:[%s2768] ss:$4 sm:$0xff] %v766
      %v2920 = vld.sshfl [vmem:[#allocation1] sm:$0xff pattern:$0x73625140]
      %v2921 = vld.sshfl [vmem:[#allocation1 + $0x20] sm:$0xff pattern:$0x73625140]
      %2922 = vrot.lane.b32.xlu0 %v2770, 56
      %v2923 = vpop.permute.xlu0 %2922
      %2924 = vrot.lane.b32.xlu0 %v2771, 56
      %v2925 = vpop.permute.xlu0 %2924
      %2926 = vrot.lane.b32.xlu0 %v2780, 56
      %v2927 = vpop.permute.xlu0 %2926
      %2928 = vrot.lane.b32.xlu0 %v2781, 56
      %v2929 = vpop.permute.xlu0 %2928
      %2930 = vrot.lane.b32.xlu0 %v2790, 56
      %v2931 = vpop.permute.xlu0 %2930
      %2932 = vrot.lane.b32.xlu0 %v2791, 56
      %v2933 = vpop.permute.xlu0 %2932
      %2934 = vrot.lane.b32.xlu0 %v2800, 56
      %v2935 = vpop.permute.xlu0 %2934
      %2936 = vrot.lane.b32.xlu0 %v2801, 56
      %v2937 = vpop.permute.xlu0 %2936
      %2938 = vrot.lane.b32.xlu0 %v2810, 56
      %v2939 = vpop.permute.xlu0 %2938
      %2940 = vrot.lane.b32.xlu0 %v2811, 56
      %v2941 = vpop.permute.xlu0 %2940
      %2942 = vrot.lane.b32.xlu0 %v2820, 56
      %v2943 = vpop.permute.xlu0 %2942
      %2944 = vrot.lane.b32.xlu0 %v2821, 56
      %v2945 = vpop.permute.xlu0 %2944
      %2946 = vrot.lane.b32.xlu0 %v2830, 56
      %v2947 = vpop.permute.xlu0 %2946
      %2948 = vrot.lane.b32.xlu0 %v2831, 56
      %v2949 = vpop.permute.xlu0 %2948
      %2950 = vrot.lane.b32.xlu0 %v2840, 56
      %v2951 = vpop.permute.xlu0 %2950
      %2952 = vrot.lane.b32.xlu0 %v2841, 56
      %v2953 = vpop.permute.xlu0 %2952
      %2954 = vrot.lane.b32.xlu0 %v2850, 56
      %v2955 = vpop.permute.xlu0 %2954
      %2956 = vrot.lane.b32.xlu0 %v2851, 56
      %v2957 = vpop.permute.xlu0 %2956
      %2958 = vrot.lane.b32.xlu0 %v2860, 56
      %v2959 = vpop.permute.xlu0 %2958
      %2960 = vrot.lane.b32.xlu0 %v2861, 56
      %v2961 = vpop.permute.xlu0 %2960
      %2962 = vrot.lane.b32.xlu0 %v2870, 56
      %v2963 = vpop.permute.xlu0 %2962
      %2964 = vrot.lane.b32.xlu0 %v2871, 56
      %v2965 = vpop.permute.xlu0 %2964
      %2966 = vrot.lane.b32.xlu0 %v2880, 56
      %v2967 = vpop.permute.xlu0 %2966
      %2968 = vrot.lane.b32.xlu0 %v2881, 56
      %v2969 = vpop.permute.xlu0 %2968
      %2970 = vrot.lane.b32.xlu0 %v2890, 56
      %v2971 = vpop.permute.xlu0 %2970
      %2972 = vrot.lane.b32.xlu0 %v2891, 56
      %v2973 = vpop.permute.xlu0 %2972
      %2974 = vrot.lane.b32.xlu0 %v2900, 56
      %v2975 = vpop.permute.xlu0 %2974
      %2976 = vrot.lane.b32.xlu0 %v2901, 56
      %v2977 = vpop.permute.xlu0 %2976
      %2978 = vrot.lane.b32.xlu0 %v2910, 56
      %v2979 = vpop.permute.xlu0 %2978
      %2980 = vrot.lane.b32.xlu0 %v2911, 56
      %v2981 = vpop.permute.xlu0 %2980
      %2982 = vrot.lane.b32.xlu0 %v2920, 56
      %v2983 = vpop.permute.xlu0 %2982
      %2984 = vrot.lane.b32.xlu0 %v2921, 56
      %v2985 = vpop.permute.xlu0 %2984
      %vm3018 = vcmask 523712
      %3019 = vst.msk [vmem:[#allocation2] sm:$0xff] %vm3018, %v2923
      %3020 = vst.msk [vmem:[#allocation2 + $0x10] sm:$0xff] %vm3018, %v2925
      %3021 = vst.msk [vmem:[#allocation2 + $0x20] sm:$0xff] %vm3018, %v2927
      %3022 = vst.msk [vmem:[#allocation2 + $0x30] sm:$0xff] %vm3018, %v2929
      %3023 = vst.msk [vmem:[#allocation2 + $0x40] sm:$0xff] %vm3018, %v2931
      %3024 = vst.msk [vmem:[#allocation2 + $0x50] sm:$0xff] %vm3018, %v2933
      %3025 = vst.msk [vmem:[#allocation2 + $0x60] sm:$0xff] %vm3018, %v2935
      %3026 = vst.msk [vmem:[#allocation2 + $0x70] sm:$0xff] %vm3018, %v2937
      %3027 = vst.msk [vmem:[#allocation2 + $0x80] sm:$0xff] %vm3018, %v2939
      %3028 = vst.msk [vmem:[#allocation2 + $0x90] sm:$0xff] %vm3018, %v2941
      %3029 = vst.msk [vmem:[#allocation2 + $0xa0] sm:$0xff] %vm3018, %v2943
      %3030 = vst.msk [vmem:[#allocation2 + $0xb0] sm:$0xff] %vm3018, %v2945
      %3031 = vst.msk [vmem:[#allocation2 + $0xc0] sm:$0xff] %vm3018, %v2947
      %3032 = vst.msk [vmem:[#allocation2 + $0xd0] sm:$0xff] %vm3018, %v2949
      %3033 = vst.msk [vmem:[#allocation2 + $0xe0] sm:$0xff] %vm3018, %v2951
      %3034 = vst.msk [vmem:[#allocation2 + $0xf0] sm:$0xff] %vm3018, %v2953
      %3035 = vst.msk [vmem:[#allocation2 + $0x100] sm:$0xff] %vm3018, %v2955
      %3036 = vst.msk [vmem:[#allocation2 + $0x110] sm:$0xff] %vm3018, %v2957
      %3037 = vst.msk [vmem:[#allocation2 + $0x120] sm:$0xff] %vm3018, %v2959
      %3038 = vst.msk [vmem:[#allocation2 + $0x130] sm:$0xff] %vm3018, %v2961
      %3039 = vst.msk [vmem:[#allocation2 + $0x140] sm:$0xff] %vm3018, %v2963
      %3040 = vst.msk [vmem:[#allocation2 + $0x150] sm:$0xff] %vm3018, %v2965
      %3041 = vst.msk [vmem:[#allocation2 + $0x160] sm:$0xff] %vm3018, %v2967
      %3042 = vst.msk [vmem:[#allocation2 + $0x170] sm:$0xff] %vm3018, %v2969
      %3043 = vst.msk [vmem:[#allocation2 + $0x180] sm:$0xff] %vm3018, %v2971
      %3044 = vst.msk [vmem:[#allocation2 + $0x190] sm:$0xff] %vm3018, %v2973
      %3045 = vst.msk [vmem:[#allocation2 + $0x1a0] sm:$0xff] %vm3018, %v2975
      %3046 = vst.msk [vmem:[#allocation2 + $0x1b0] sm:$0xff] %vm3018, %v2977
      %3047 = vst.msk [vmem:[#allocation2 + $0x1c0] sm:$0xff] %vm3018, %v2979
      %3048 = vst.msk [vmem:[#allocation2 + $0x1d0] sm:$0xff] %vm3018, %v2981
      %3049 = vst.msk [vmem:[#allocation2 + $0x1e0] sm:$0xff] %vm3018, %v2983
      %3050 = vst.msk [vmem:[#allocation2 + $0x1f0] sm:$0xff] %vm3018, %v2985
      %v3052 = vrot.slane %v822, 1
      %v3053 = vrot.slane %v823, 1
      %v3054 = vsel %vm1205, %v3052, %v3053
      %v3055 = vrot.slane %v824, 1
      %v3056 = vsel %vm1205, %v3053, %v3055
      %3057 = vrot.lane.b32.xlu0 %v1213, 64
      %v3058 = vpop.permute.xlu0 %3057
      %3059 = vrot.lane.b32.xlu0 %v1215, 64
      %v3060 = vpop.permute.xlu0 %3059
      %3061 = vrot.lane.b32.xlu0 %v1218, 64
      %v3062 = vpop.permute.xlu0 %3061
      %3063 = vrot.lane.b32.xlu0 %v1220, 64
      %v3064 = vpop.permute.xlu0 %3063
      %3065 = vrot.lane.b32.xlu0 %v1223, 64
      %v3066 = vpop.permute.xlu0 %3065
      %3067 = vrot.lane.b32.xlu0 %v1225, 64
      %v3068 = vpop.permute.xlu0 %3067
      %3069 = vrot.lane.b32.xlu0 %v1228, 64
      %v3070 = vpop.permute.xlu0 %3069
      %3071 = vrot.lane.b32.xlu0 %v1230, 64
      %v3072 = vpop.permute.xlu0 %3071
      %3073 = vrot.lane.b32.xlu0 %v1233, 64
      %v3074 = vpop.permute.xlu0 %3073
      %3075 = vrot.lane.b32.xlu0 %v1235, 64
      %v3076 = vpop.permute.xlu0 %3075
      %3077 = vrot.lane.b32.xlu0 %v1238, 64
      %v3078 = vpop.permute.xlu0 %3077
      %3079 = vrot.lane.b32.xlu0 %v1240, 64
      %v3080 = vpop.permute.xlu0 %3079
      %3081 = vrot.lane.b32.xlu0 %v1243, 64
      %v3082 = vpop.permute.xlu0 %3081
      %3083 = vrot.lane.b32.xlu0 %v1245, 64
      %v3084 = vpop.permute.xlu0 %3083
      %3085 = vrot.lane.b32.xlu0 %v1248, 64
      %v3086 = vpop.permute.xlu0 %3085
      %3087 = vrot.lane.b32.xlu0 %v1250, 64
      %v3088 = vpop.permute.xlu0 %3087
      %3089 = vrot.lane.b32.xlu0 %v1253, 64
      %v3090 = vpop.permute.xlu0 %3089
      %3091 = vrot.lane.b32.xlu0 %v1255, 64
      %v3092 = vpop.permute.xlu0 %3091
      %3093 = vrot.lane.b32.xlu0 %v1258, 64
      %v3094 = vpop.permute.xlu0 %3093
      %3095 = vrot.lane.b32.xlu0 %v1260, 64
      %v3096 = vpop.permute.xlu0 %3095
      %3097 = vrot.lane.b32.xlu0 %v1263, 64
      %v3098 = vpop.permute.xlu0 %3097
      %3099 = vrot.lane.b32.xlu0 %v1265, 64
      %v3100 = vpop.permute.xlu0 %3099
      %3101 = vrot.lane.b32.xlu0 %v1268, 64
      %v3102 = vpop.permute.xlu0 %3101
      %3103 = vrot.lane.b32.xlu0 %v1270, 64
      %v3104 = vpop.permute.xlu0 %3103
      %3105 = vrot.lane.b32.xlu0 %v1273, 64
      %v3106 = vpop.permute.xlu0 %3105
      %3107 = vrot.lane.b32.xlu0 %v1275, 64
      %v3108 = vpop.permute.xlu0 %3107
      %3109 = vrot.lane.b32.xlu0 %v1278, 64
      %v3110 = vpop.permute.xlu0 %3109
      %3111 = vrot.lane.b32.xlu0 %v1280, 64
      %v3112 = vpop.permute.xlu0 %3111
      %3113 = vrot.lane.b32.xlu0 %v1283, 64
      %v3114 = vpop.permute.xlu0 %3113
      %3115 = vrot.lane.b32.xlu0 %v1285, 64
      %v3116 = vpop.permute.xlu0 %3115
      %3117 = vrot.lane.b32.xlu0 %v3054, 64
      %v3118 = vpop.permute.xlu0 %3117
      %3119 = vrot.lane.b32.xlu0 %v3056, 64
      %v3120 = vpop.permute.xlu0 %3119
      %vm3153 = vcmask 589312
      %3154 = vst.msk [vmem:[#allocation2] sm:$0xff] %vm3153, %v3058
      %3155 = vst.msk [vmem:[#allocation2 + $0x10] sm:$0xff] %vm3153, %v3060
      %3156 = vst.msk [vmem:[#allocation2 + $0x20] sm:$0xff] %vm3153, %v3062
      %3157 = vst.msk [vmem:[#allocation2 + $0x30] sm:$0xff] %vm3153, %v3064
      %3158 = vst.msk [vmem:[#allocation2 + $0x40] sm:$0xff] %vm3153, %v3066
      %3159 = vst.msk [vmem:[#allocation2 + $0x50] sm:$0xff] %vm3153, %v3068
      %3160 = vst.msk [vmem:[#allocation2 + $0x60] sm:$0xff] %vm3153, %v3070
      %3161 = vst.msk [vmem:[#allocation2 + $0x70] sm:$0xff] %vm3153, %v3072
      %3162 = vst.msk [vmem:[#allocation2 + $0x80] sm:$0xff] %vm3153, %v3074
      %3163 = vst.msk [vmem:[#allocation2 + $0x90] sm:$0xff] %vm3153, %v3076
      %3164 = vst.msk [vmem:[#allocation2 + $0xa0] sm:$0xff] %vm3153, %v3078
      %3165 = vst.msk [vmem:[#allocation2 + $0xb0] sm:$0xff] %vm3153, %v3080
      %3166 = vst.msk [vmem:[#allocation2 + $0xc0] sm:$0xff] %vm3153, %v3082
      %3167 = vst.msk [vmem:[#allocation2 + $0xd0] sm:$0xff] %vm3153, %v3084
      %3168 = vst.msk [vmem:[#allocation2 + $0xe0] sm:$0xff] %vm3153, %v3086
      %3169 = vst.msk [vmem:[#allocation2 + $0xf0] sm:$0xff] %vm3153, %v3088
      %3170 = vst.msk [vmem:[#allocation2 + $0x100] sm:$0xff] %vm3153, %v3090
      %3171 = vst.msk [vmem:[#allocation2 + $0x110] sm:$0xff] %vm3153, %v3092
      %3172 = vst.msk [vmem:[#allocation2 + $0x120] sm:$0xff] %vm3153, %v3094
      %3173 = vst.msk [vmem:[#allocation2 + $0x130] sm:$0xff] %vm3153, %v3096
      %3174 = vst.msk [vmem:[#allocation2 + $0x140] sm:$0xff] %vm3153, %v3098
      %3175 = vst.msk [vmem:[#allocation2 + $0x150] sm:$0xff] %vm3153, %v3100
      %3176 = vst.msk [vmem:[#allocation2 + $0x160] sm:$0xff] %vm3153, %v3102
      %3177 = vst.msk [vmem:[#allocation2 + $0x170] sm:$0xff] %vm3153, %v3104
      %3178 = vst.msk [vmem:[#allocation2 + $0x180] sm:$0xff] %vm3153, %v3106
      %3179 = vst.msk [vmem:[#allocation2 + $0x190] sm:$0xff] %vm3153, %v3108
      %3180 = vst.msk [vmem:[#allocation2 + $0x1a0] sm:$0xff] %vm3153, %v3110
      %3181 = vst.msk [vmem:[#allocation2 + $0x1b0] sm:$0xff] %vm3153, %v3112
      %3182 = vst.msk [vmem:[#allocation2 + $0x1c0] sm:$0xff] %vm3153, %v3114
      %3183 = vst.msk [vmem:[#allocation2 + $0x1d0] sm:$0xff] %vm3153, %v3116
      %3184 = vst.msk [vmem:[#allocation2 + $0x1e0] sm:$0xff] %vm3153, %v3118
      %3185 = vst.msk [vmem:[#allocation2 + $0x1f0] sm:$0xff] %vm3153, %v3120
      %v3186 = vrot.slane %v598, 7
      %v3187 = vrot.slane %v3186, 2
      %v3188 = vrot.slane %v761, 7
      %v3189 = vsel %vm1421, %v3187, %v3188
      %v3190 = vrot.slane %v3188, 2
      %v3191 = vrot.slane %v762, 7
      %v3192 = vsel %vm1421, %v3190, %v3191
      %v3193 = vrot.slane %v3191, 2
      %v3194 = vrot.slane %v763, 7
      %v3195 = vsel %vm1421, %v3193, %v3194
      %v3196 = vrot.slane %v3194, 2
      %v3197 = vrot.slane %v601, 7
      %v3198 = vsel %vm1421, %v3196, %v3197
      %v3199 = vrot.slane %v3197, 2
      %v3200 = vrot.slane %v764, 7
      %v3201 = vsel %vm1421, %v3199, %v3200
      %v3202 = vrot.slane %v3200, 2
      %v3203 = vrot.slane %v765, 7
      %v3204 = vsel %vm1421, %v3202, %v3203
      %v3205 = vrot.slane %v3203, 2
      %v3206 = vrot.slane %v766, 7
      %v3207 = vsel %vm1421, %v3205, %v3206
      %v3208 = vrot.slane %v3206, 2
      %v3209 = vrot.slane %v604, 7
      %v3210 = vsel %vm1421, %v3208, %v3209
      %3211 = vst [vmem:[#allocation1] ss:$4 sm:$0xff] %v1450
      %s3212 = scalar_lea.vmem [#allocation1], 1
      %3213 = vst [vmem:[%s3212] ss:$4 sm:$0xff] %v1453
      %s3214 = scalar_lea.vmem [#allocation1], 2
      %3215 = vst [vmem:[%s3214] ss:$4 sm:$0xff] %v1456
      %s3216 = scalar_lea.vmem [#allocation1], 3
      %3217 = vst [vmem:[%s3216] ss:$4 sm:$0xff] %v1459
      %s3218 = scalar_lea.vmem [#allocation1], 32
      %3219 = vst [vmem:[%s3218] ss:$4 sm:$0xff] %v1462
      %s3220 = scalar_lea.vmem [#allocation1], 33
      %3221 = vst [vmem:[%s3220] ss:$4 sm:$0xff] %v1465
      %s3222 = scalar_lea.vmem [#allocation1], 34
      %3223 = vst [vmem:[%s3222] ss:$4 sm:$0xff] %v1468
      %s3224 = scalar_lea.vmem [#allocation1], 35
      %3225 = vst [vmem:[%s3224] ss:$4 sm:$0xff] %v1471
      %v3226 = vld.sshfl [vmem:[#allocation1] sm:$0xff pattern:$0x73625140]
      %v3227 = vld.sshfl [vmem:[#allocation1 + $0x20] sm:$0xff pattern:$0x73625140]
      %3228 = vst [vmem:[#allocation1] ss:$4 sm:$0xff] %v1475
      %3229 = vst [vmem:[%s3212] ss:$4 sm:$0xff] %v1478
      %3230 = vst [vmem:[%s3214] ss:$4 sm:$0xff] %v1481
      %3231 = vst [vmem:[%s3216] ss:$4 sm:$0xff] %v1484
      %3232 = vst [vmem:[%s3218] ss:$4 sm:$0xff] %v1487
      %3233 = vst [vmem:[%s3220] ss:$4 sm:$0xff] %v1490
      %3234 = vst [vmem:[%s3222] ss:$4 sm:$0xff] %v1493
      %3235 = vst [vmem:[%s3224] ss:$4 sm:$0xff] %v1496
      %v3236 = vld.sshfl [vmem:[#allocation1] sm:$0xff pattern:$0x73625140]
      %v3237 = vld.sshfl [vmem:[#allocation1 + $0x20] sm:$0xff pattern:$0x73625140]
      %3238 = vst [vmem:[#allocation1] ss:$4 sm:$0xff] %v1500
      %3239 = vst [vmem:[%s3212] ss:$4 sm:$0xff] %v1503
      %3240 = vst [vmem:[%s3214] ss:$4 sm:$0xff] %v1506
      %3241 = vst [vmem:[%s3216] ss:$4 sm:$0xff] %v1509
      %3242 = vst [vmem:[%s3218] ss:$4 sm:$0xff] %v1512
      %3243 = vst [vmem:[%s3220] ss:$4 sm:$0xff] %v1515
      %3244 = vst [vmem:[%s3222] ss:$4 sm:$0xff] %v1518
      %3245 = vst [vmem:[%s3224] ss:$4 sm:$0xff] %v1521
      %v3246 = vld.sshfl [vmem:[#allocation1] sm:$0xff pattern:$0x73625140]
      %v3247 = vld.sshfl [vmem:[#allocation1 + $0x20] sm:$0xff pattern:$0x73625140]
      %3248 = vst [vmem:[#allocation1] ss:$4 sm:$0xff] %v1525
      %3249 = vst [vmem:[%s3212] ss:$4 sm:$0xff] %v1528
      %3250 = vst [vmem:[%s3214] ss:$4 sm:$0xff] %v1531
      %3251 = vst [vmem:[%s3216] ss:$4 sm:$0xff] %v1534
      %3252 = vst [vmem:[%s3218] ss:$4 sm:$0xff] %v1537
      %3253 = vst [vmem:[%s3220] ss:$4 sm:$0xff] %v1540
      %3254 = vst [vmem:[%s3222] ss:$4 sm:$0xff] %v1543
      %3255 = vst [vmem:[%s3224] ss:$4 sm:$0xff] %v1546
      %v3256 = vld.sshfl [vmem:[#allocation1] sm:$0xff pattern:$0x73625140]
      %v3257 = vld.sshfl [vmem:[#allocation1 + $0x20] sm:$0xff pattern:$0x73625140]
      %3258 = vst [vmem:[#allocation1] ss:$4 sm:$0xff] %v1550
      %3259 = vst [vmem:[%s3212] ss:$4 sm:$0xff] %v1553
      %3260 = vst [vmem:[%s3214] ss:$4 sm:$0xff] %v1556
      %3261 = vst [vmem:[%s3216] ss:$4 sm:$0xff] %v1559
      %3262 = vst [vmem:[%s3218] ss:$4 sm:$0xff] %v1562
      %3263 = vst [vmem:[%s3220] ss:$4 sm:$0xff] %v1565
      %3264 = vst [vmem:[%s3222] ss:$4 sm:$0xff] %v1568
      %3265 = vst [vmem:[%s3224] ss:$4 sm:$0xff] %v1571
      %v3266 = vld.sshfl [vmem:[#allocation1] sm:$0xff pattern:$0x73625140]
      %v3267 = vld.sshfl [vmem:[#allocation1 + $0x20] sm:$0xff pattern:$0x73625140]
      %3268 = vst [vmem:[#allocation1] ss:$4 sm:$0xff] %v1575
      %3269 = vst [vmem:[%s3212] ss:$4 sm:$0xff] %v1578
      %3270 = vst [vmem:[%s3214] ss:$4 sm:$0xff] %v1581
      %3271 = vst [vmem:[%s3216] ss:$4 sm:$0xff] %v1584
      %3272 = vst [vmem:[%s3218] ss:$4 sm:$0xff] %v1587
      %3273 = vst [vmem:[%s3220] ss:$4 sm:$0xff] %v1590
      %3274 = vst [vmem:[%s3222] ss:$4 sm:$0xff] %v1593
      %3275 = vst [vmem:[%s3224] ss:$4 sm:$0xff] %v1596
      %v3276 = vld.sshfl [vmem:[#allocation1] sm:$0xff pattern:$0x73625140]
      %v3277 = vld.sshfl [vmem:[#allocation1 + $0x20] sm:$0xff pattern:$0x73625140]
      %3278 = vst [vmem:[#allocation1] ss:$4 sm:$0xff] %v1600
      %3279 = vst [vmem:[%s3212] ss:$4 sm:$0xff] %v1603
      %3280 = vst [vmem:[%s3214] ss:$4 sm:$0xff] %v1606
      %3281 = vst [vmem:[%s3216] ss:$4 sm:$0xff] %v1609
      %3282 = vst [vmem:[%s3218] ss:$4 sm:$0xff] %v1612
      %3283 = vst [vmem:[%s3220] ss:$4 sm:$0xff] %v1615
      %3284 = vst [vmem:[%s3222] ss:$4 sm:$0xff] %v1618
      %3285 = vst [vmem:[%s3224] ss:$4 sm:$0xff] %v1621
      %v3286 = vld.sshfl [vmem:[#allocation1] sm:$0xff pattern:$0x73625140]
      %v3287 = vld.sshfl [vmem:[#allocation1 + $0x20] sm:$0xff pattern:$0x73625140]
      %3288 = vst [vmem:[#allocation1] ss:$4 sm:$0xff] %v1625
      %3289 = vst [vmem:[%s3212] ss:$4 sm:$0xff] %v1628
      %3290 = vst [vmem:[%s3214] ss:$4 sm:$0xff] %v1631
      %3291 = vst [vmem:[%s3216] ss:$4 sm:$0xff] %v1634
      %3292 = vst [vmem:[%s3218] ss:$4 sm:$0xff] %v1637
      %3293 = vst [vmem:[%s3220] ss:$4 sm:$0xff] %v1640
      %3294 = vst [vmem:[%s3222] ss:$4 sm:$0xff] %v1643
      %3295 = vst [vmem:[%s3224] ss:$4 sm:$0xff] %v1646
      %v3296 = vld.sshfl [vmem:[#allocation1] sm:$0xff pattern:$0x73625140]
      %v3297 = vld.sshfl [vmem:[#allocation1 + $0x20] sm:$0xff pattern:$0x73625140]
      %3298 = vst [vmem:[#allocation1] ss:$4 sm:$0xff] %v1650
      %3299 = vst [vmem:[%s3212] ss:$4 sm:$0xff] %v1653
      %3300 = vst [vmem:[%s3214] ss:$4 sm:$0xff] %v1656
      %3301 = vst [vmem:[%s3216] ss:$4 sm:$0xff] %v1659
      %3302 = vst [vmem:[%s3218] ss:$4 sm:$0xff] %v1662
      %3303 = vst [vmem:[%s3220] ss:$4 sm:$0xff] %v1665
      %3304 = vst [vmem:[%s3222] ss:$4 sm:$0xff] %v1668
      %3305 = vst [vmem:[%s3224] ss:$4 sm:$0xff] %v1671
      %v3306 = vld.sshfl [vmem:[#allocation1] sm:$0xff pattern:$0x73625140]
      %v3307 = vld.sshfl [vmem:[#allocation1 + $0x20] sm:$0xff pattern:$0x73625140]
      %3308 = vst [vmem:[#allocation1] ss:$4 sm:$0xff] %v1675
      %3309 = vst [vmem:[%s3212] ss:$4 sm:$0xff] %v1678
      %3310 = vst [vmem:[%s3214] ss:$4 sm:$0xff] %v1681
      %3311 = vst [vmem:[%s3216] ss:$4 sm:$0xff] %v1684
      %3312 = vst [vmem:[%s3218] ss:$4 sm:$0xff] %v1687
      %3313 = vst [vmem:[%s3220] ss:$4 sm:$0xff] %v1690
      %3314 = vst [vmem:[%s3222] ss:$4 sm:$0xff] %v1693
      %3315 = vst [vmem:[%s3224] ss:$4 sm:$0xff] %v1696
      %v3316 = vld.sshfl [vmem:[#allocation1] sm:$0xff pattern:$0x73625140]
      %v3317 = vld.sshfl [vmem:[#allocation1 + $0x20] sm:$0xff pattern:$0x73625140]
      %3318 = vst [vmem:[#allocation1] ss:$4 sm:$0xff] %v1700
      %3319 = vst [vmem:[%s3212] ss:$4 sm:$0xff] %v1703
      %3320 = vst [vmem:[%s3214] ss:$4 sm:$0xff] %v1706
      %3321 = vst [vmem:[%s3216] ss:$4 sm:$0xff] %v1709
      %3322 = vst [vmem:[%s3218] ss:$4 sm:$0xff] %v1712
      %3323 = vst [vmem:[%s3220] ss:$4 sm:$0xff] %v1715
      %3324 = vst [vmem:[%s3222] ss:$4 sm:$0xff] %v1718
      %3325 = vst [vmem:[%s3224] ss:$4 sm:$0xff] %v1721
      %v3326 = vld.sshfl [vmem:[#allocation1] sm:$0xff pattern:$0x73625140]
      %v3327 = vld.sshfl [vmem:[#allocation1 + $0x20] sm:$0xff pattern:$0x73625140]
      %3328 = vst [vmem:[#allocation1] ss:$4 sm:$0xff] %v1725
      %3329 = vst [vmem:[%s3212] ss:$4 sm:$0xff] %v1728
      %3330 = vst [vmem:[%s3214] ss:$4 sm:$0xff] %v1731
      %3331 = vst [vmem:[%s3216] ss:$4 sm:$0xff] %v1734
      %3332 = vst [vmem:[%s3218] ss:$4 sm:$0xff] %v1737
      %3333 = vst [vmem:[%s3220] ss:$4 sm:$0xff] %v1740
      %3334 = vst [vmem:[%s3222] ss:$4 sm:$0xff] %v1743
      %3335 = vst [vmem:[%s3224] ss:$4 sm:$0xff] %v1746
      %v3336 = vld.sshfl [vmem:[#allocation1] sm:$0xff pattern:$0x73625140]
      %v3337 = vld.sshfl [vmem:[#allocation1 + $0x20] sm:$0xff pattern:$0x73625140]
      %3338 = vst [vmem:[#allocation1] ss:$4 sm:$0xff] %v1750
      %3339 = vst [vmem:[%s3212] ss:$4 sm:$0xff] %v1753
      %3340 = vst [vmem:[%s3214] ss:$4 sm:$0xff] %v1756
      %3341 = vst [vmem:[%s3216] ss:$4 sm:$0xff] %v1759
      %3342 = vst [vmem:[%s3218] ss:$4 sm:$0xff] %v1762
      %3343 = vst [vmem:[%s3220] ss:$4 sm:$0xff] %v1765
      %3344 = vst [vmem:[%s3222] ss:$4 sm:$0xff] %v1768
      %3345 = vst [vmem:[%s3224] ss:$4 sm:$0xff] %v1771
      %v3346 = vld.sshfl [vmem:[#allocation1] sm:$0xff pattern:$0x73625140]
      %v3347 = vld.sshfl [vmem:[#allocation1 + $0x20] sm:$0xff pattern:$0x73625140]
      %3348 = vst [vmem:[#allocation1] ss:$4 sm:$0xff] %v1775
      %3349 = vst [vmem:[%s3212] ss:$4 sm:$0xff] %v1778
      %3350 = vst [vmem:[%s3214] ss:$4 sm:$0xff] %v1781
      %3351 = vst [vmem:[%s3216] ss:$4 sm:$0xff] %v1784
      %3352 = vst [vmem:[%s3218] ss:$4 sm:$0xff] %v1787
      %3353 = vst [vmem:[%s3220] ss:$4 sm:$0xff] %v1790
      %3354 = vst [vmem:[%s3222] ss:$4 sm:$0xff] %v1793
      %3355 = vst [vmem:[%s3224] ss:$4 sm:$0xff] %v1796
      %v3356 = vld.sshfl [vmem:[#allocation1] sm:$0xff pattern:$0x73625140]
      %v3357 = vld.sshfl [vmem:[#allocation1 + $0x20] sm:$0xff pattern:$0x73625140]
      %3358 = vst [vmem:[#allocation1] ss:$4 sm:$0xff] %v1800
      %3359 = vst [vmem:[%s3212] ss:$4 sm:$0xff] %v1803
      %3360 = vst [vmem:[%s3214] ss:$4 sm:$0xff] %v1806
      %3361 = vst [vmem:[%s3216] ss:$4 sm:$0xff] %v1809
      %3362 = vst [vmem:[%s3218] ss:$4 sm:$0xff] %v1812
      %3363 = vst [vmem:[%s3220] ss:$4 sm:$0xff] %v1815
      %3364 = vst [vmem:[%s3222] ss:$4 sm:$0xff] %v1818
      %3365 = vst [vmem:[%s3224] ss:$4 sm:$0xff] %v1821
      %v3366 = vld.sshfl [vmem:[#allocation1] sm:$0xff pattern:$0x73625140]
      %v3367 = vld.sshfl [vmem:[#allocation1 + $0x20] sm:$0xff pattern:$0x73625140]
      %3368 = vst [vmem:[#allocation1] ss:$4 sm:$0xff] %v3189
      %3369 = vst [vmem:[%s3212] ss:$4 sm:$0xff] %v3192
      %3370 = vst [vmem:[%s3214] ss:$4 sm:$0xff] %v3195
      %3371 = vst [vmem:[%s3216] ss:$4 sm:$0xff] %v3198
      %3372 = vst [vmem:[%s3218] ss:$4 sm:$0xff] %v3201
      %3373 = vst [vmem:[%s3220] ss:$4 sm:$0xff] %v3204
      %3374 = vst [vmem:[%s3222] ss:$4 sm:$0xff] %v3207
      %3375 = vst [vmem:[%s3224] ss:$4 sm:$0xff] %v3210
      %v3376 = vld.sshfl [vmem:[#allocation1] sm:$0xff pattern:$0x73625140]
      %v3377 = vld.sshfl [vmem:[#allocation1 + $0x20] sm:$0xff pattern:$0x73625140]
      %3378 = vrot.lane.b32.xlu0 %v3226, 72
      %v3379 = vpop.permute.xlu0 %3378
      %3380 = vrot.lane.b32.xlu0 %v3227, 72
      %v3381 = vpop.permute.xlu0 %3380
      %3382 = vrot.lane.b32.xlu0 %v3236, 72
      %v3383 = vpop.permute.xlu0 %3382
      %3384 = vrot.lane.b32.xlu0 %v3237, 72
      %v3385 = vpop.permute.xlu0 %3384
      %3386 = vrot.lane.b32.xlu0 %v3246, 72
      %v3387 = vpop.permute.xlu0 %3386
      %3388 = vrot.lane.b32.xlu0 %v3247, 72
      %v3389 = vpop.permute.xlu0 %3388
      %3390 = vrot.lane.b32.xlu0 %v3256, 72
      %v3391 = vpop.permute.xlu0 %3390
      %3392 = vrot.lane.b32.xlu0 %v3257, 72
      %v3393 = vpop.permute.xlu0 %3392
      %3394 = vrot.lane.b32.xlu0 %v3266, 72
      %v3395 = vpop.permute.xlu0 %3394
      %3396 = vrot.lane.b32.xlu0 %v3267, 72
      %v3397 = vpop.permute.xlu0 %3396
      %3398 = vrot.lane.b32.xlu0 %v3276, 72
      %v3399 = vpop.permute.xlu0 %3398
      %3400 = vrot.lane.b32.xlu0 %v3277, 72
      %v3401 = vpop.permute.xlu0 %3400
      %3402 = vrot.lane.b32.xlu0 %v3286, 72
      %v3403 = vpop.permute.xlu0 %3402
      %3404 = vrot.lane.b32.xlu0 %v3287, 72
      %v3405 = vpop.permute.xlu0 %3404
      %3406 = vrot.lane.b32.xlu0 %v3296, 72
      %v3407 = vpop.permute.xlu0 %3406
      %3408 = vrot.lane.b32.xlu0 %v3297, 72
      %v3409 = vpop.permute.xlu0 %3408
      %3410 = vrot.lane.b32.xlu0 %v3306, 72
      %v3411 = vpop.permute.xlu0 %3410
      %3412 = vrot.lane.b32.xlu0 %v3307, 72
      %v3413 = vpop.permute.xlu0 %3412
      %3414 = vrot.lane.b32.xlu0 %v3316, 72
      %v3415 = vpop.permute.xlu0 %3414
      %3416 = vrot.lane.b32.xlu0 %v3317, 72
      %v3417 = vpop.permute.xlu0 %3416
      %3418 = vrot.lane.b32.xlu0 %v3326, 72
      %v3419 = vpop.permute.xlu0 %3418
      %3420 = vrot.lane.b32.xlu0 %v3327, 72
      %v3421 = vpop.permute.xlu0 %3420
      %3422 = vrot.lane.b32.xlu0 %v3336, 72
      %v3423 = vpop.permute.xlu0 %3422
      %3424 = vrot.lane.b32.xlu0 %v3337, 72
      %v3425 = vpop.permute.xlu0 %3424
      %3426 = vrot.lane.b32.xlu0 %v3346, 72
      %v3427 = vpop.permute.xlu0 %3426
      %3428 = vrot.lane.b32.xlu0 %v3347, 72
      %v3429 = vpop.permute.xlu0 %3428
      %3430 = vrot.lane.b32.xlu0 %v3356, 72
      %v3431 = vpop.permute.xlu0 %3430
      %3432 = vrot.lane.b32.xlu0 %v3357, 72
      %v3433 = vpop.permute.xlu0 %3432
      %3434 = vrot.lane.b32.xlu0 %v3366, 72
      %v3435 = vpop.permute.xlu0 %3434
      %3436 = vrot.lane.b32.xlu0 %v3367, 72
      %v3437 = vpop.permute.xlu0 %3436
      %3438 = vrot.lane.b32.xlu0 %v3376, 72
      %v3439 = vpop.permute.xlu0 %3438
      %3440 = vrot.lane.b32.xlu0 %v3377, 72
      %v3441 = vpop.permute.xlu0 %3440
      %vm3474 = vcmask 654912
      %3475 = vst.msk [vmem:[#allocation2] sm:$0xff] %vm3474, %v3379
      %3476 = vst.msk [vmem:[#allocation2 + $0x10] sm:$0xff] %vm3474, %v3381
      %3477 = vst.msk [vmem:[#allocation2 + $0x20] sm:$0xff] %vm3474, %v3383
      %3478 = vst.msk [vmem:[#allocation2 + $0x30] sm:$0xff] %vm3474, %v3385
      %3479 = vst.msk [vmem:[#allocation2 + $0x40] sm:$0xff] %vm3474, %v3387
      %3480 = vst.msk [vmem:[#allocation2 + $0x50] sm:$0xff] %vm3474, %v3389
      %3481 = vst.msk [vmem:[#allocation2 + $0x60] sm:$0xff] %vm3474, %v3391
      %3482 = vst.msk [vmem:[#allocation2 + $0x70] sm:$0xff] %vm3474, %v3393
      %3483 = vst.msk [vmem:[#allocation2 + $0x80] sm:$0xff] %vm3474, %v3395
      %3484 = vst.msk [vmem:[#allocation2 + $0x90] sm:$0xff] %vm3474, %v3397
      %3485 = vst.msk [vmem:[#allocation2 + $0xa0] sm:$0xff] %vm3474, %v3399
      %3486 = vst.msk [vmem:[#allocation2 + $0xb0] sm:$0xff] %vm3474, %v3401
      %3487 = vst.msk [vmem:[#allocation2 + $0xc0] sm:$0xff] %vm3474, %v3403
      %3488 = vst.msk [vmem:[#allocation2 + $0xd0] sm:$0xff] %vm3474, %v3405
      %3489 = vst.msk [vmem:[#allocation2 + $0xe0] sm:$0xff] %vm3474, %v3407
      %3490 = vst.msk [vmem:[#allocation2 + $0xf0] sm:$0xff] %vm3474, %v3409
      %3491 = vst.msk [vmem:[#allocation2 + $0x100] sm:$0xff] %vm3474, %v3411
      %3492 = vst.msk [vmem:[#allocation2 + $0x110] sm:$0xff] %vm3474, %v3413
      %3493 = vst.msk [vmem:[#allocation2 + $0x120] sm:$0xff] %vm3474, %v3415
      %3494 = vst.msk [vmem:[#allocation2 + $0x130] sm:$0xff] %vm3474, %v3417
      %3495 = vst.msk [vmem:[#allocation2 + $0x140] sm:$0xff] %vm3474, %v3419
      %3496 = vst.msk [vmem:[#allocation2 + $0x150] sm:$0xff] %vm3474, %v3421
      %3497 = vst.msk [vmem:[#allocation2 + $0x160] sm:$0xff] %vm3474, %v3423
      %3498 = vst.msk [vmem:[#allocation2 + $0x170] sm:$0xff] %vm3474, %v3425
      %3499 = vst.msk [vmem:[#allocation2 + $0x180] sm:$0xff] %vm3474, %v3427
      %3500 = vst.msk [vmem:[#allocation2 + $0x190] sm:$0xff] %vm3474, %v3429
      %3501 = vst.msk [vmem:[#allocation2 + $0x1a0] sm:$0xff] %vm3474, %v3431
      %3502 = vst.msk [vmem:[#allocation2 + $0x1b0] sm:$0xff] %vm3474, %v3433
      %3503 = vst.msk [vmem:[#allocation2 + $0x1c0] sm:$0xff] %vm3474, %v3435
      %3504 = vst.msk [vmem:[#allocation2 + $0x1d0] sm:$0xff] %vm3474, %v3437
      %3505 = vst.msk [vmem:[#allocation2 + $0x1e0] sm:$0xff] %vm3474, %v3439
      %3506 = vst.msk [vmem:[#allocation2 + $0x1f0] sm:$0xff] %vm3474, %v3441
      %v3507 = vrot.slane %v822, 2
      %v3508 = vrot.slane %v823, 2
      %v3509 = vsel %vm2118, %v3507, %v3508
      %v3510 = vrot.slane %v824, 2
      %v3511 = vsel %vm2118, %v3508, %v3510
      %3512 = vrot.lane.b32.xlu0 %v2126, 80
      %v3513 = vpop.permute.xlu0 %3512
      %3514 = vrot.lane.b32.xlu0 %v2128, 80
      %v3515 = vpop.permute.xlu0 %3514
      %3516 = vrot.lane.b32.xlu0 %v2131, 80
      %v3517 = vpop.permute.xlu0 %3516
      %3518 = vrot.lane.b32.xlu0 %v2133, 80
      %v3519 = vpop.permute.xlu0 %3518
      %3520 = vrot.lane.b32.xlu0 %v2136, 80
      %v3521 = vpop.permute.xlu0 %3520
      %3522 = vrot.lane.b32.xlu0 %v2138, 80
      %v3523 = vpop.permute.xlu0 %3522
      %3524 = vrot.lane.b32.xlu0 %v2141, 80
      %v3525 = vpop.permute.xlu0 %3524
      %3526 = vrot.lane.b32.xlu0 %v2143, 80
      %v3527 = vpop.permute.xlu0 %3526
      %3528 = vrot.lane.b32.xlu0 %v2146, 80
      %v3529 = vpop.permute.xlu0 %3528
      %3530 = vrot.lane.b32.xlu0 %v2148, 80
      %v3531 = vpop.permute.xlu0 %3530
      %3532 = vrot.lane.b32.xlu0 %v2151, 80
      %v3533 = vpop.permute.xlu0 %3532
      %3534 = vrot.lane.b32.xlu0 %v2153, 80
      %v3535 = vpop.permute.xlu0 %3534
      %3536 = vrot.lane.b32.xlu0 %v2156, 80
      %v3537 = vpop.permute.xlu0 %3536
      %3538 = vrot.lane.b32.xlu0 %v2158, 80
      %v3539 = vpop.permute.xlu0 %3538
      %3540 = vrot.lane.b32.xlu0 %v2161, 80
      %v3541 = vpop.permute.xlu0 %3540
      %3542 = vrot.lane.b32.xlu0 %v2163, 80
      %v3543 = vpop.permute.xlu0 %3542
      %3544 = vrot.lane.b32.xlu0 %v2166, 80
      %v3545 = vpop.permute.xlu0 %3544
      %3546 = vrot.lane.b32.xlu0 %v2168, 80
      %v3547 = vpop.permute.xlu0 %3546
      %3548 = vrot.lane.b32.xlu0 %v2171, 80
      %v3549 = vpop.permute.xlu0 %3548
      %3550 = vrot.lane.b32.xlu0 %v2173, 80
      %v3551 = vpop.permute.xlu0 %3550
      %3552 = vrot.lane.b32.xlu0 %v2176, 80
      %v3553 = vpop.permute.xlu0 %3552
      %3554 = vrot.lane.b32.xlu0 %v2178, 80
      %v3555 = vpop.permute.xlu0 %3554
      %3556 = vrot.lane.b32.xlu0 %v2181, 80
      %v3557 = vpop.permute.xlu0 %3556
      %3558 = vrot.lane.b32.xlu0 %v2183, 80
      %v3559 = vpop.permute.xlu0 %3558
      %3560 = vrot.lane.b32.xlu0 %v2186, 80
      %v3561 = vpop.permute.xlu0 %3560
      %3562 = vrot.lane.b32.xlu0 %v2188, 80
      %v3563 = vpop.permute.xlu0 %3562
      %3564 = vrot.lane.b32.xlu0 %v2191, 80
      %v3565 = vpop.permute.xlu0 %3564
      %3566 = vrot.lane.b32.xlu0 %v2193, 80
      %v3567 = vpop.permute.xlu0 %3566
      %3568 = vrot.lane.b32.xlu0 %v2196, 80
      %v3569 = vpop.permute.xlu0 %3568
      %3570 = vrot.lane.b32.xlu0 %v2198, 80
      %v3571 = vpop.permute.xlu0 %3570
      %3572 = vrot.lane.b32.xlu0 %v3509, 80
      %v3573 = vpop.permute.xlu0 %3572
      %3574 = vrot.lane.b32.xlu0 %v3511, 80
      %v3575 = vpop.permute.xlu0 %3574
      %vm3608 = vcmask 720512
      %3609 = vst.msk [vmem:[#allocation2] sm:$0xff] %vm3608, %v3513
      %3610 = vst.msk [vmem:[#allocation2 + $0x10] sm:$0xff] %vm3608, %v3515
      %3611 = vst.msk [vmem:[#allocation2 + $0x20] sm:$0xff] %vm3608, %v3517
      %3612 = vst.msk [vmem:[#allocation2 + $0x30] sm:$0xff] %vm3608, %v3519
      %3613 = vst.msk [vmem:[#allocation2 + $0x40] sm:$0xff] %vm3608, %v3521
      %3614 = vst.msk [vmem:[#allocation2 + $0x50] sm:$0xff] %vm3608, %v3523
      %3615 = vst.msk [vmem:[#allocation2 + $0x60] sm:$0xff] %vm3608, %v3525
      %3616 = vst.msk [vmem:[#allocation2 + $0x70] sm:$0xff] %vm3608, %v3527
      %3617 = vst.msk [vmem:[#allocation2 + $0x80] sm:$0xff] %vm3608, %v3529
      %3618 = vst.msk [vmem:[#allocation2 + $0x90] sm:$0xff] %vm3608, %v3531
      %3619 = vst.msk [vmem:[#allocation2 + $0xa0] sm:$0xff] %vm3608, %v3533
      %3620 = vst.msk [vmem:[#allocation2 + $0xb0] sm:$0xff] %vm3608, %v3535
      %3621 = vst.msk [vmem:[#allocation2 + $0xc0] sm:$0xff] %vm3608, %v3537
      %3622 = vst.msk [vmem:[#allocation2 + $0xd0] sm:$0xff] %vm3608, %v3539
      %3623 = vst.msk [vmem:[#allocation2 + $0xe0] sm:$0xff] %vm3608, %v3541
      %3624 = vst.msk [vmem:[#allocation2 + $0xf0] sm:$0xff] %vm3608, %v3543
      %3625 = vst.msk [vmem:[#allocation2 + $0x100] sm:$0xff] %vm3608, %v3545
      %3626 = vst.msk [vmem:[#allocation2 + $0x110] sm:$0xff] %vm3608, %v3547
      %3627 = vst.msk [vmem:[#allocation2 + $0x120] sm:$0xff] %vm3608, %v3549
      %3628 = vst.msk [vmem:[#allocation2 + $0x130] sm:$0xff] %vm3608, %v3551
      %3629 = vst.msk [vmem:[#allocation2 + $0x140] sm:$0xff] %vm3608, %v3553
      %3630 = vst.msk [vmem:[#allocation2 + $0x150] sm:$0xff] %vm3608, %v3555
      %3631 = vst.msk [vmem:[#allocation2 + $0x160] sm:$0xff] %vm3608, %v3557
      %3632 = vst.msk [vmem:[#allocation2 + $0x170] sm:$0xff] %vm3608, %v3559
      %3633 = vst.msk [vmem:[#allocation2 + $0x180] sm:$0xff] %vm3608, %v3561
      %3634 = vst.msk [vmem:[#allocation2 + $0x190] sm:$0xff] %vm3608, %v3563
      %3635 = vst.msk [vmem:[#allocation2 + $0x1a0] sm:$0xff] %vm3608, %v3565
      %3636 = vst.msk [vmem:[#allocation2 + $0x1b0] sm:$0xff] %vm3608, %v3567
      %3637 = vst.msk [vmem:[#allocation2 + $0x1c0] sm:$0xff] %vm3608, %v3569
      %3638 = vst.msk [vmem:[#allocation2 + $0x1d0] sm:$0xff] %vm3608, %v3571
      %3639 = vst.msk [vmem:[#allocation2 + $0x1e0] sm:$0xff] %vm3608, %v3573
      %3640 = vst.msk [vmem:[#allocation2 + $0x1f0] sm:$0xff] %vm3608, %v3575
      %3641 = vst [vmem:[#allocation1] ss:$4 sm:$0xff] %v660
      %s3642 = scalar_lea.vmem [#allocation1], 1
      %3643 = vst [vmem:[%s3642] ss:$4 sm:$0xff] %v661
      %s3644 = scalar_lea.vmem [#allocation1], 2
      %3645 = vst [vmem:[%s3644] ss:$4 sm:$0xff] %v499
      %s3646 = scalar_lea.vmem [#allocation1], 3
      %3647 = vst [vmem:[%s3646] ss:$4 sm:$0xff] %v662
      %s3648 = scalar_lea.vmem [#allocation1], 32
      %3649 = vst [vmem:[%s3648] ss:$4 sm:$0xff] %v663
      %s3650 = scalar_lea.vmem [#allocation1], 33
      %3651 = vst [vmem:[%s3650] ss:$4 sm:$0xff] %v664
      %s3652 = scalar_lea.vmem [#allocation1], 34
      %3653 = vst [vmem:[%s3652] ss:$4 sm:$0xff] %v502
      %s3654 = scalar_lea.vmem [#allocation1], 35
      %3655 = vst [vmem:[%s3654] ss:$4 sm:$0xff] %v665
      %v3656 = vld.sshfl [vmem:[#allocation1] sm:$0xff pattern:$0x73625140]
      %v3657 = vld.sshfl [vmem:[#allocation1 + $0x20] sm:$0xff pattern:$0x73625140]
      %3658 = vst [vmem:[#allocation1] ss:$4 sm:$0xff] %v667
      %3659 = vst [vmem:[%s3642] ss:$4 sm:$0xff] %v505
      %3660 = vst [vmem:[%s3644] ss:$4 sm:$0xff] %v668
      %3661 = vst [vmem:[%s3646] ss:$4 sm:$0xff] %v669
      %3662 = vst [vmem:[%s3648] ss:$4 sm:$0xff] %v670
      %3663 = vst [vmem:[%s3650] ss:$4 sm:$0xff] %v508
      %3664 = vst [vmem:[%s3652] ss:$4 sm:$0xff] %v671
      %3665 = vst [vmem:[%s3654] ss:$4 sm:$0xff] %v672
      %v3666 = vld.sshfl [vmem:[#allocation1] sm:$0xff pattern:$0x73625140]
      %v3667 = vld.sshfl [vmem:[#allocation1 + $0x20] sm:$0xff pattern:$0x73625140]
      %3668 = vst [vmem:[#allocation1] ss:$4 sm:$0xff] %v511
      %3669 = vst [vmem:[%s3642] ss:$4 sm:$0xff] %v674
      %3670 = vst [vmem:[%s3644] ss:$4 sm:$0xff] %v675
      %3671 = vst [vmem:[%s3646] ss:$4 sm:$0xff] %v676
      %3672 = vst [vmem:[%s3648] ss:$4 sm:$0xff] %v514
      %3673 = vst [vmem:[%s3650] ss:$4 sm:$0xff] %v677
      %3674 = vst [vmem:[%s3652] ss:$4 sm:$0xff] %v678
      %3675 = vst [vmem:[%s3654] ss:$4 sm:$0xff] %v679
      %v3676 = vld.sshfl [vmem:[#allocation1] sm:$0xff pattern:$0x73625140]
      %v3677 = vld.sshfl [vmem:[#allocation1 + $0x20] sm:$0xff pattern:$0x73625140]
      %3678 = vst [vmem:[#allocation1] ss:$4 sm:$0xff] %v680
      %3679 = vst [vmem:[%s3642] ss:$4 sm:$0xff] %v681
      %3680 = vst [vmem:[%s3644] ss:$4 sm:$0xff] %v682
      %3681 = vst [vmem:[%s3646] ss:$4 sm:$0xff] %v520
      %3682 = vst [vmem:[%s3648] ss:$4 sm:$0xff] %v683
      %3683 = vst [vmem:[%s3650] ss:$4 sm:$0xff] %v684
      %3684 = vst [vmem:[%s3652] ss:$4 sm:$0xff] %v685
      %3685 = vst [vmem:[%s3654] ss:$4 sm:$0xff] %v523
      %v3686 = vld.sshfl [vmem:[#allocation1] sm:$0xff pattern:$0x73625140]
      %v3687 = vld.sshfl [vmem:[#allocation1 + $0x20] sm:$0xff pattern:$0x73625140]
      %3688 = vst [vmem:[#allocation1] ss:$4 sm:$0xff] %v687
      %3689 = vst [vmem:[%s3642] ss:$4 sm:$0xff] %v688
      %3690 = vst [vmem:[%s3644] ss:$4 sm:$0xff] %v526
      %3691 = vst [vmem:[%s3646] ss:$4 sm:$0xff] %v689
      %3692 = vst [vmem:[%s3648] ss:$4 sm:$0xff] %v690
      %3693 = vst [vmem:[%s3650] ss:$4 sm:$0xff] %v691
      %3694 = vst [vmem:[%s3652] ss:$4 sm:$0xff] %v529
      %3695 = vst [vmem:[%s3654] ss:$4 sm:$0xff] %v692
      %v3696 = vld.sshfl [vmem:[#allocation1] sm:$0xff pattern:$0x73625140]
      %v3697 = vld.sshfl [vmem:[#allocation1 + $0x20] sm:$0xff pattern:$0x73625140]
      %3698 = vst [vmem:[#allocation1] ss:$4 sm:$0xff] %v694
      %3699 = vst [vmem:[%s3642] ss:$4 sm:$0xff] %v532
      %3700 = vst [vmem:[%s3644] ss:$4 sm:$0xff] %v695
      %3701 = vst [vmem:[%s3646] ss:$4 sm:$0xff] %v696
      %3702 = vst [vmem:[%s3648] ss:$4 sm:$0xff] %v697
      %3703 = vst [vmem:[%s3650] ss:$4 sm:$0xff] %v535
      %3704 = vst [vmem:[%s3652] ss:$4 sm:$0xff] %v698
      %3705 = vst [vmem:[%s3654] ss:$4 sm:$0xff] %v699
      %v3706 = vld.sshfl [vmem:[#allocation1] sm:$0xff pattern:$0x73625140]
      %v3707 = vld.sshfl [vmem:[#allocation1 + $0x20] sm:$0xff pattern:$0x73625140]
      %3708 = vst [vmem:[#allocation1] ss:$4 sm:$0xff] %v538
      %3709 = vst [vmem:[%s3642] ss:$4 sm:$0xff] %v701
      %3710 = vst [vmem:[%s3644] ss:$4 sm:$0xff] %v702
      %3711 = vst [vmem:[%s3646] ss:$4 sm:$0xff] %v703
      %3712 = vst [vmem:[%s3648] ss:$4 sm:$0xff] %v541
      %3713 = vst [vmem:[%s3650] ss:$4 sm:$0xff] %v704
      %3714 = vst [vmem:[%s3652] ss:$4 sm:$0xff] %v705
      %3715 = vst [vmem:[%s3654] ss:$4 sm:$0xff] %v706
      %v3716 = vld.sshfl [vmem:[#allocation1] sm:$0xff pattern:$0x73625140]
      %v3717 = vld.sshfl [vmem:[#allocation1 + $0x20] sm:$0xff pattern:$0x73625140]
      %3718 = vst [vmem:[#allocation1] ss:$4 sm:$0xff] %v707
      %3719 = vst [vmem:[%s3642] ss:$4 sm:$0xff] %v708
      %3720 = vst [vmem:[%s3644] ss:$4 sm:$0xff] %v709
      %3721 = vst [vmem:[%s3646] ss:$4 sm:$0xff] %v547
      %3722 = vst [vmem:[%s3648] ss:$4 sm:$0xff] %v710
      %3723 = vst [vmem:[%s3650] ss:$4 sm:$0xff] %v711
      %3724 = vst [vmem:[%s3652] ss:$4 sm:$0xff] %v712
      %3725 = vst [vmem:[%s3654] ss:$4 sm:$0xff] %v550
      %v3726 = vld.sshfl [vmem:[#allocation1] sm:$0xff pattern:$0x73625140]
      %v3727 = vld.sshfl [vmem:[#allocation1 + $0x20] sm:$0xff pattern:$0x73625140]
      %3728 = vst [vmem:[#allocation1] ss:$4 sm:$0xff] %v714
      %3729 = vst [vmem:[%s3642] ss:$4 sm:$0xff] %v715
      %3730 = vst [vmem:[%s3644] ss:$4 sm:$0xff] %v553
      %3731 = vst [vmem:[%s3646] ss:$4 sm:$0xff] %v716
      %3732 = vst [vmem:[%s3648] ss:$4 sm:$0xff] %v717
      %3733 = vst [vmem:[%s3650] ss:$4 sm:$0xff] %v718
      %3734 = vst [vmem:[%s3652] ss:$4 sm:$0xff] %v556
      %3735 = vst [vmem:[%s3654] ss:$4 sm:$0xff] %v719
      %v3736 = vld.sshfl [vmem:[#allocation1] sm:$0xff pattern:$0x73625140]
      %v3737 = vld.sshfl [vmem:[#allocation1 + $0x20] sm:$0xff pattern:$0x73625140]
      %3738 = vst [vmem:[#allocation1] ss:$4 sm:$0xff] %v721
      %3739 = vst [vmem:[%s3642] ss:$4 sm:$0xff] %v559
      %3740 = vst [vmem:[%s3644] ss:$4 sm:$0xff] %v722
      %3741 = vst [vmem:[%s3646] ss:$4 sm:$0xff] %v723
      %3742 = vst [vmem:[%s3648] ss:$4 sm:$0xff] %v724
      %3743 = vst [vmem:[%s3650] ss:$4 sm:$0xff] %v562
      %3744 = vst [vmem:[%s3652] ss:$4 sm:$0xff] %v725
      %3745 = vst [vmem:[%s3654] ss:$4 sm:$0xff] %v726
      %v3746 = vld.sshfl [vmem:[#allocation1] sm:$0xff pattern:$0x73625140]
      %v3747 = vld.sshfl [vmem:[#allocation1 + $0x20] sm:$0xff pattern:$0x73625140]
      %3748 = vst [vmem:[#allocation1] ss:$4 sm:$0xff] %v565
      %3749 = vst [vmem:[%s3642] ss:$4 sm:$0xff] %v728
      %3750 = vst [vmem:[%s3644] ss:$4 sm:$0xff] %v729
      %3751 = vst [vmem:[%s3646] ss:$4 sm:$0xff] %v730
      %3752 = vst [vmem:[%s3648] ss:$4 sm:$0xff] %v568
      %3753 = vst [vmem:[%s3650] ss:$4 sm:$0xff] %v731
      %3754 = vst [vmem:[%s3652] ss:$4 sm:$0xff] %v732
      %3755 = vst [vmem:[%s3654] ss:$4 sm:$0xff] %v733
      %v3756 = vld.sshfl [vmem:[#allocation1] sm:$0xff pattern:$0x73625140]
      %v3757 = vld.sshfl [vmem:[#allocation1 + $0x20] sm:$0xff pattern:$0x73625140]
      %3758 = vst [vmem:[#allocation1] ss:$4 sm:$0xff] %v734
      %3759 = vst [vmem:[%s3642] ss:$4 sm:$0xff] %v735
      %3760 = vst [vmem:[%s3644] ss:$4 sm:$0xff] %v736
      %3761 = vst [vmem:[%s3646] ss:$4 sm:$0xff] %v574
      %3762 = vst [vmem:[%s3648] ss:$4 sm:$0xff] %v737
      %3763 = vst [vmem:[%s3650] ss:$4 sm:$0xff] %v738
      %3764 = vst [vmem:[%s3652] ss:$4 sm:$0xff] %v739
      %3765 = vst [vmem:[%s3654] ss:$4 sm:$0xff] %v577
      %v3766 = vld.sshfl [vmem:[#allocation1] sm:$0xff pattern:$0x73625140]
      %v3767 = vld.sshfl [vmem:[#allocation1 + $0x20] sm:$0xff pattern:$0x73625140]
      %3768 = vst [vmem:[#allocation1] ss:$4 sm:$0xff] %v741
      %3769 = vst [vmem:[%s3642] ss:$4 sm:$0xff] %v742
      %3770 = vst [vmem:[%s3644] ss:$4 sm:$0xff] %v580
      %3771 = vst [vmem:[%s3646] ss:$4 sm:$0xff] %v743
      %3772 = vst [vmem:[%s3648] ss:$4 sm:$0xff] %v744
      %3773 = vst [vmem:[%s3650] ss:$4 sm:$0xff] %v745
      %3774 = vst [vmem:[%s3652] ss:$4 sm:$0xff] %v583
      %3775 = vst [vmem:[%s3654] ss:$4 sm:$0xff] %v746
      %v3776 = vld.sshfl [vmem:[#allocation1] sm:$0xff pattern:$0x73625140]
      %v3777 = vld.sshfl [vmem:[#allocation1 + $0x20] sm:$0xff pattern:$0x73625140]
      %3778 = vst [vmem:[#allocation1] ss:$4 sm:$0xff] %v748
      %3779 = vst [vmem:[%s3642] ss:$4 sm:$0xff] %v586
      %3780 = vst [vmem:[%s3644] ss:$4 sm:$0xff] %v749
      %3781 = vst [vmem:[%s3646] ss:$4 sm:$0xff] %v750
      %3782 = vst [vmem:[%s3648] ss:$4 sm:$0xff] %v751
      %3783 = vst [vmem:[%s3650] ss:$4 sm:$0xff] %v589
      %3784 = vst [vmem:[%s3652] ss:$4 sm:$0xff] %v752
      %3785 = vst [vmem:[%s3654] ss:$4 sm:$0xff] %v753
      %v3786 = vld.sshfl [vmem:[#allocation1] sm:$0xff pattern:$0x73625140]
      %v3787 = vld.sshfl [vmem:[#allocation1 + $0x20] sm:$0xff pattern:$0x73625140]
      %3788 = vst [vmem:[#allocation1] ss:$4 sm:$0xff] %v592
      %3789 = vst [vmem:[%s3642] ss:$4 sm:$0xff] %v755
      %3790 = vst [vmem:[%s3644] ss:$4 sm:$0xff] %v756
      %3791 = vst [vmem:[%s3646] ss:$4 sm:$0xff] %v757
      %3792 = vst [vmem:[%s3648] ss:$4 sm:$0xff] %v595
      %3793 = vst [vmem:[%s3650] ss:$4 sm:$0xff] %v758
      %3794 = vst [vmem:[%s3652] ss:$4 sm:$0xff] %v759
      %3795 = vst [vmem:[%s3654] ss:$4 sm:$0xff] %v760
      %v3796 = vld.sshfl [vmem:[#allocation1] sm:$0xff pattern:$0x73625140]
      %v3797 = vld.sshfl [vmem:[#allocation1 + $0x20] sm:$0xff pattern:$0x73625140]
      %3798 = vst [vmem:[#allocation1] ss:$4 sm:$0xff] %v761
      %3799 = vst [vmem:[%s3642] ss:$4 sm:$0xff] %v762
      %3800 = vst [vmem:[%s3644] ss:$4 sm:$0xff] %v763
      %3801 = vst [vmem:[%s3646] ss:$4 sm:$0xff] %v601
      %3802 = vst [vmem:[%s3648] ss:$4 sm:$0xff] %v764
      %3803 = vst [vmem:[%s3650] ss:$4 sm:$0xff] %v765
      %3804 = vst [vmem:[%s3652] ss:$4 sm:$0xff] %v766
      %3805 = vst [vmem:[%s3654] ss:$4 sm:$0xff] %v604
      %v3806 = vld.sshfl [vmem:[#allocation1] sm:$0xff pattern:$0x73625140]
      %v3807 = vld.sshfl [vmem:[#allocation1 + $0x20] sm:$0xff pattern:$0x73625140]
      %3808 = vrot.lane.b32.xlu0 %v3656, 88
      %v3809 = vpop.permute.xlu0 %3808
      %3810 = vrot.lane.b32.xlu0 %v3657, 88
      %v3811 = vpop.permute.xlu0 %3810
      %3812 = vrot.lane.b32.xlu0 %v3666, 88
      %v3813 = vpop.permute.xlu0 %3812
      %3814 = vrot.lane.b32.xlu0 %v3667, 88
      %v3815 = vpop.permute.xlu0 %3814
      %3816 = vrot.lane.b32.xlu0 %v3676, 88
      %v3817 = vpop.permute.xlu0 %3816
      %3818 = vrot.lane.b32.xlu0 %v3677, 88
      %v3819 = vpop.permute.xlu0 %3818
      %3820 = vrot.lane.b32.xlu0 %v3686, 88
      %v3821 = vpop.permute.xlu0 %3820
      %3822 = vrot.lane.b32.xlu0 %v3687, 88
      %v3823 = vpop.permute.xlu0 %3822
      %3824 = vrot.lane.b32.xlu0 %v3696, 88
      %v3825 = vpop.permute.xlu0 %3824
      %3826 = vrot.lane.b32.xlu0 %v3697, 88
      %v3827 = vpop.permute.xlu0 %3826
      %3828 = vrot.lane.b32.xlu0 %v3706, 88
      %v3829 = vpop.permute.xlu0 %3828
      %3830 = vrot.lane.b32.xlu0 %v3707, 88
      %v3831 = vpop.permute.xlu0 %3830
      %3832 = vrot.lane.b32.xlu0 %v3716, 88
      %v3833 = vpop.permute.xlu0 %3832
      %3834 = vrot.lane.b32.xlu0 %v3717, 88
      %v3835 = vpop.permute.xlu0 %3834
      %3836 = vrot.lane.b32.xlu0 %v3726, 88
      %v3837 = vpop.permute.xlu0 %3836
      %3838 = vrot.lane.b32.xlu0 %v3727, 88
      %v3839 = vpop.permute.xlu0 %3838
      %3840 = vrot.lane.b32.xlu0 %v3736, 88
      %v3841 = vpop.permute.xlu0 %3840
      %3842 = vrot.lane.b32.xlu0 %v3737, 88
      %v3843 = vpop.permute.xlu0 %3842
      %3844 = vrot.lane.b32.xlu0 %v3746, 88
      %v3845 = vpop.permute.xlu0 %3844
      %3846 = vrot.lane.b32.xlu0 %v3747, 88
      %v3847 = vpop.permute.xlu0 %3846
      %3848 = vrot.lane.b32.xlu0 %v3756, 88
      %v3849 = vpop.permute.xlu0 %3848
      %3850 = vrot.lane.b32.xlu0 %v3757, 88
      %v3851 = vpop.permute.xlu0 %3850
      %3852 = vrot.lane.b32.xlu0 %v3766, 88
      %v3853 = vpop.permute.xlu0 %3852
      %3854 = vrot.lane.b32.xlu0 %v3767, 88
      %v3855 = vpop.permute.xlu0 %3854
      %3856 = vrot.lane.b32.xlu0 %v3776, 88
      %v3857 = vpop.permute.xlu0 %3856
      %3858 = vrot.lane.b32.xlu0 %v3777, 88
      %v3859 = vpop.permute.xlu0 %3858
      %3860 = vrot.lane.b32.xlu0 %v3786, 88
      %v3861 = vpop.permute.xlu0 %3860
      %3862 = vrot.lane.b32.xlu0 %v3787, 88
      %v3863 = vpop.permute.xlu0 %3862
      %3864 = vrot.lane.b32.xlu0 %v3796, 88
      %v3865 = vpop.permute.xlu0 %3864
      %3866 = vrot.lane.b32.xlu0 %v3797, 88
      %v3867 = vpop.permute.xlu0 %3866
      %3868 = vrot.lane.b32.xlu0 %v3806, 88
      %v3869 = vpop.permute.xlu0 %3868
      %3870 = vrot.lane.b32.xlu0 %v3807, 88
      %v3871 = vpop.permute.xlu0 %3870
      %vm3904 = vcmask 786112
      %3905 = vst.msk [vmem:[#allocation2] sm:$0xff] %vm3904, %v3809
      %3906 = vst.msk [vmem:[#allocation2 + $0x10] sm:$0xff] %vm3904, %v3811
      %3907 = vst.msk [vmem:[#allocation2 + $0x20] sm:$0xff] %vm3904, %v3813
      %3908 = vst.msk [vmem:[#allocation2 + $0x30] sm:$0xff] %vm3904, %v3815
      %3909 = vst.msk [vmem:[#allocation2 + $0x40] sm:$0xff] %vm3904, %v3817
      %3910 = vst.msk [vmem:[#allocation2 + $0x50] sm:$0xff] %vm3904, %v3819
      %3911 = vst.msk [vmem:[#allocation2 + $0x60] sm:$0xff] %vm3904, %v3821
      %3912 = vst.msk [vmem:[#allocation2 + $0x70] sm:$0xff] %vm3904, %v3823
      %3913 = vst.msk [vmem:[#allocation2 + $0x80] sm:$0xff] %vm3904, %v3825
      %3914 = vst.msk [vmem:[#allocation2 + $0x90] sm:$0xff] %vm3904, %v3827
      %3915 = vst.msk [vmem:[#allocation2 + $0xa0] sm:$0xff] %vm3904, %v3829
      %3916 = vst.msk [vmem:[#allocation2 + $0xb0] sm:$0xff] %vm3904, %v3831
      %3917 = vst.msk [vmem:[#allocation2 + $0xc0] sm:$0xff] %vm3904, %v3833
      %3918 = vst.msk [vmem:[#allocation2 + $0xd0] sm:$0xff] %vm3904, %v3835
      %3919 = vst.msk [vmem:[#allocation2 + $0xe0] sm:$0xff] %vm3904, %v3837
      %3920 = vst.msk [vmem:[#allocation2 + $0xf0] sm:$0xff] %vm3904, %v3839
      %3921 = vst.msk [vmem:[#allocation2 + $0x100] sm:$0xff] %vm3904, %v3841
      %3922 = vst.msk [vmem:[#allocation2 + $0x110] sm:$0xff] %vm3904, %v3843
      %3923 = vst.msk [vmem:[#allocation2 + $0x120] sm:$0xff] %vm3904, %v3845
      %3924 = vst.msk [vmem:[#allocation2 + $0x130] sm:$0xff] %vm3904, %v3847
      %3925 = vst.msk [vmem:[#allocation2 + $0x140] sm:$0xff] %vm3904, %v3849
      %3926 = vst.msk [vmem:[#allocation2 + $0x150] sm:$0xff] %vm3904, %v3851
      %3927 = vst.msk [vmem:[#allocation2 + $0x160] sm:$0xff] %vm3904, %v3853
      %3928 = vst.msk [vmem:[#allocation2 + $0x170] sm:$0xff] %vm3904, %v3855
      %3929 = vst.msk [vmem:[#allocation2 + $0x180] sm:$0xff] %vm3904, %v3857
      %3930 = vst.msk [vmem:[#allocation2 + $0x190] sm:$0xff] %vm3904, %v3859
      %3931 = vst.msk [vmem:[#allocation2 + $0x1a0] sm:$0xff] %vm3904, %v3861
      %3932 = vst.msk [vmem:[#allocation2 + $0x1b0] sm:$0xff] %vm3904, %v3863
      %3933 = vst.msk [vmem:[#allocation2 + $0x1c0] sm:$0xff] %vm3904, %v3865
      %3934 = vst.msk [vmem:[#allocation2 + $0x1d0] sm:$0xff] %vm3904, %v3867
      %3935 = vst.msk [vmem:[#allocation2 + $0x1e0] sm:$0xff] %vm3904, %v3869
      %3936 = vst.msk [vmem:[#allocation2 + $0x1f0] sm:$0xff] %vm3904, %v3871
      %3939 = vrot.lane.b32.xlu0 %v780, 96
      %v3940 = vpop.permute.xlu0 %3939
      %3941 = vrot.lane.b32.xlu0 %v781, 96
      %v3942 = vpop.permute.xlu0 %3941
      %3943 = vrot.lane.b32.xlu0 %v783, 96
      %v3944 = vpop.permute.xlu0 %3943
      %3945 = vrot.lane.b32.xlu0 %v784, 96
      %v3946 = vpop.permute.xlu0 %3945
      %3947 = vrot.lane.b32.xlu0 %v786, 96
      %v3948 = vpop.permute.xlu0 %3947
      %3949 = vrot.lane.b32.xlu0 %v787, 96
      %v3950 = vpop.permute.xlu0 %3949
      %3951 = vrot.lane.b32.xlu0 %v789, 96
      %v3952 = vpop.permute.xlu0 %3951
      %3953 = vrot.lane.b32.xlu0 %v790, 96
      %v3954 = vpop.permute.xlu0 %3953
      %3955 = vrot.lane.b32.xlu0 %v792, 96
      %v3956 = vpop.permute.xlu0 %3955
      %3957 = vrot.lane.b32.xlu0 %v793, 96
      %v3958 = vpop.permute.xlu0 %3957
      %3959 = vrot.lane.b32.xlu0 %v795, 96
      %v3960 = vpop.permute.xlu0 %3959
      %3961 = vrot.lane.b32.xlu0 %v796, 96
      %v3962 = vpop.permute.xlu0 %3961
      %3963 = vrot.lane.b32.xlu0 %v798, 96
      %v3964 = vpop.permute.xlu0 %3963
      %3965 = vrot.lane.b32.xlu0 %v799, 96
      %v3966 = vpop.permute.xlu0 %3965
      %3967 = vrot.lane.b32.xlu0 %v801, 96
      %v3968 = vpop.permute.xlu0 %3967
      %3969 = vrot.lane.b32.xlu0 %v802, 96
      %v3970 = vpop.permute.xlu0 %3969
      %3971 = vrot.lane.b32.xlu0 %v804, 96
      %v3972 = vpop.permute.xlu0 %3971
      %3973 = vrot.lane.b32.xlu0 %v805, 96
      %v3974 = vpop.permute.xlu0 %3973
      %3975 = vrot.lane.b32.xlu0 %v807, 96
      %v3976 = vpop.permute.xlu0 %3975
      %3977 = vrot.lane.b32.xlu0 %v808, 96
      %v3978 = vpop.permute.xlu0 %3977
      %3979 = vrot.lane.b32.xlu0 %v810, 96
      %v3980 = vpop.permute.xlu0 %3979
      %3981 = vrot.lane.b32.xlu0 %v811, 96
      %v3982 = vpop.permute.xlu0 %3981
      %3983 = vrot.lane.b32.xlu0 %v813, 96
      %v3984 = vpop.permute.xlu0 %3983
      %3985 = vrot.lane.b32.xlu0 %v814, 96
      %v3986 = vpop.permute.xlu0 %3985
      %3987 = vrot.lane.b32.xlu0 %v816, 96
      %v3988 = vpop.permute.xlu0 %3987
      %3989 = vrot.lane.b32.xlu0 %v817, 96
      %v3990 = vpop.permute.xlu0 %3989
      %3991 = vrot.lane.b32.xlu0 %v819, 96
      %v3992 = vpop.permute.xlu0 %3991
      %3993 = vrot.lane.b32.xlu0 %v820, 96
      %v3994 = vpop.permute.xlu0 %3993
      %3995 = vrot.lane.b32.xlu0 %v822, 96
      %v3996 = vpop.permute.xlu0 %3995
      %3997 = vrot.lane.b32.xlu0 %v823, 96
      %v3998 = vpop.permute.xlu0 %3997
      %3999 = vrot.lane.b32.xlu0 %v825, 96
      %v4000 = vpop.permute.xlu0 %3999
      %4001 = vrot.lane.b32.xlu0 %v826, 96
      %v4002 = vpop.permute.xlu0 %4001
      %vm4035 = vcmask 851712
      %4036 = vst.msk [vmem:[#allocation2] sm:$0xff] %vm4035, %v3940
      %4037 = vst.msk [vmem:[#allocation2 + $0x10] sm:$0xff] %vm4035, %v3942
      %4038 = vst.msk [vmem:[#allocation2 + $0x20] sm:$0xff] %vm4035, %v3944
      %4039 = vst.msk [vmem:[#allocation2 + $0x30] sm:$0xff] %vm4035, %v3946
      %4040 = vst.msk [vmem:[#allocation2 + $0x40] sm:$0xff] %vm4035, %v3948
      %4041 = vst.msk [vmem:[#allocation2 + $0x50] sm:$0xff] %vm4035, %v3950
      %4042 = vst.msk [vmem:[#allocation2 + $0x60] sm:$0xff] %vm4035, %v3952
      %4043 = vst.msk [vmem:[#allocation2 + $0x70] sm:$0xff] %vm4035, %v3954
      %4044 = vst.msk [vmem:[#allocation2 + $0x80] sm:$0xff] %vm4035, %v3956
      %4045 = vst.msk [vmem:[#allocation2 + $0x90] sm:$0xff] %vm4035, %v3958
      %4046 = vst.msk [vmem:[#allocation2 + $0xa0] sm:$0xff] %vm4035, %v3960
      %4047 = vst.msk [vmem:[#allocation2 + $0xb0] sm:$0xff] %vm4035, %v3962
      %4048 = vst.msk [vmem:[#allocation2 + $0xc0] sm:$0xff] %vm4035, %v3964
      %4049 = vst.msk [vmem:[#allocation2 + $0xd0] sm:$0xff] %vm4035, %v3966
      %4050 = vst.msk [vmem:[#allocation2 + $0xe0] sm:$0xff] %vm4035, %v3968
      %4051 = vst.msk [vmem:[#allocation2 + $0xf0] sm:$0xff] %vm4035, %v3970
      %4052 = vst.msk [vmem:[#allocation2 + $0x100] sm:$0xff] %vm4035, %v3972
      %4053 = vst.msk [vmem:[#allocation2 + $0x110] sm:$0xff] %vm4035, %v3974
      %4054 = vst.msk [vmem:[#allocation2 + $0x120] sm:$0xff] %vm4035, %v3976
      %4055 = vst.msk [vmem:[#allocation2 + $0x130] sm:$0xff] %vm4035, %v3978
      %4056 = vst.msk [vmem:[#allocation2 + $0x140] sm:$0xff] %vm4035, %v3980
      %4057 = vst.msk [vmem:[#allocation2 + $0x150] sm:$0xff] %vm4035, %v3982
      %4058 = vst.msk [vmem:[#allocation2 + $0x160] sm:$0xff] %vm4035, %v3984
      %4059 = vst.msk [vmem:[#allocation2 + $0x170] sm:$0xff] %vm4035, %v3986
      %4060 = vst.msk [vmem:[#allocation2 + $0x180] sm:$0xff] %vm4035, %v3988
      %4061 = vst.msk [vmem:[#allocation2 + $0x190] sm:$0xff] %vm4035, %v3990
      %4062 = vst.msk [vmem:[#allocation2 + $0x1a0] sm:$0xff] %vm4035, %v3992
      %4063 = vst.msk [vmem:[#allocation2 + $0x1b0] sm:$0xff] %vm4035, %v3994
      %4064 = vst.msk [vmem:[#allocation2 + $0x1c0] sm:$0xff] %vm4035, %v3996
      %4065 = vst.msk [vmem:[#allocation2 + $0x1d0] sm:$0xff] %vm4035, %v3998
      %4066 = vst.msk [vmem:[#allocation2 + $0x1e0] sm:$0xff] %vm4035, %v4000
      %4067 = vst.msk [vmem:[#allocation2 + $0x1f0] sm:$0xff] %vm4035, %v4002
      %4068 = vst [vmem:[#allocation1] ss:$4 sm:$0xff] %v666
      %s4069 = scalar_lea.vmem [#allocation1], 1
      %4070 = vst [vmem:[%s4069] ss:$4 sm:$0xff] %v667
      %s4071 = scalar_lea.vmem [#allocation1], 2
      %4072 = vst [vmem:[%s4071] ss:$4 sm:$0xff] %v505
      %s4073 = scalar_lea.vmem [#allocation1], 3
      %4074 = vst [vmem:[%s4073] ss:$4 sm:$0xff] %v668
      %s4075 = scalar_lea.vmem [#allocation1], 32
      %4076 = vst [vmem:[%s4075] ss:$4 sm:$0xff] %v669
      %s4077 = scalar_lea.vmem [#allocation1], 33
      %4078 = vst [vmem:[%s4077] ss:$4 sm:$0xff] %v670
      %s4079 = scalar_lea.vmem [#allocation1], 34
      %4080 = vst [vmem:[%s4079] ss:$4 sm:$0xff] %v508
      %s4081 = scalar_lea.vmem [#allocation1], 35
      %4082 = vst [vmem:[%s4081] ss:$4 sm:$0xff] %v671
      %v4083 = vld.sshfl [vmem:[#allocation1] sm:$0xff pattern:$0x73625140]
      %v4084 = vld.sshfl [vmem:[#allocation1 + $0x20] sm:$0xff pattern:$0x73625140]
      %4085 = vst [vmem:[#allocation1] ss:$4 sm:$0xff] %v673
      %4086 = vst [vmem:[%s4069] ss:$4 sm:$0xff] %v511
      %4087 = vst [vmem:[%s4071] ss:$4 sm:$0xff] %v674
      %4088 = vst [vmem:[%s4073] ss:$4 sm:$0xff] %v675
      %4089 = vst [vmem:[%s4075] ss:$4 sm:$0xff] %v676
      %4090 = vst [vmem:[%s4077] ss:$4 sm:$0xff] %v514
      %4091 = vst [vmem:[%s4079] ss:$4 sm:$0xff] %v677
      %4092 = vst [vmem:[%s4081] ss:$4 sm:$0xff] %v678
      %v4093 = vld.sshfl [vmem:[#allocation1] sm:$0xff pattern:$0x73625140]
      %v4094 = vld.sshfl [vmem:[#allocation1 + $0x20] sm:$0xff pattern:$0x73625140]
      %4095 = vst [vmem:[#allocation1] ss:$4 sm:$0xff] %v517
      %4096 = vst [vmem:[%s4069] ss:$4 sm:$0xff] %v680
      %4097 = vst [vmem:[%s4071] ss:$4 sm:$0xff] %v681
      %4098 = vst [vmem:[%s4073] ss:$4 sm:$0xff] %v682
      %4099 = vst [vmem:[%s4075] ss:$4 sm:$0xff] %v520
      %4100 = vst [vmem:[%s4077] ss:$4 sm:$0xff] %v683
      %4101 = vst [vmem:[%s4079] ss:$4 sm:$0xff] %v684
      %4102 = vst [vmem:[%s4081] ss:$4 sm:$0xff] %v685
      %v4103 = vld.sshfl [vmem:[#allocation1] sm:$0xff pattern:$0x73625140]
      %v4104 = vld.sshfl [vmem:[#allocation1 + $0x20] sm:$0xff pattern:$0x73625140]
      %4105 = vst [vmem:[#allocation1] ss:$4 sm:$0xff] %v686
      %4106 = vst [vmem:[%s4069] ss:$4 sm:$0xff] %v687
      %4107 = vst [vmem:[%s4071] ss:$4 sm:$0xff] %v688
      %4108 = vst [vmem:[%s4073] ss:$4 sm:$0xff] %v526
      %4109 = vst [vmem:[%s4075] ss:$4 sm:$0xff] %v689
      %4110 = vst [vmem:[%s4077] ss:$4 sm:$0xff] %v690
      %4111 = vst [vmem:[%s4079] ss:$4 sm:$0xff] %v691
      %4112 = vst [vmem:[%s4081] ss:$4 sm:$0xff] %v529
      %v4113 = vld.sshfl [vmem:[#allocation1] sm:$0xff pattern:$0x73625140]
      %v4114 = vld.sshfl [vmem:[#allocation1 + $0x20] sm:$0xff pattern:$0x73625140]
      %4115 = vst [vmem:[#allocation1] ss:$4 sm:$0xff] %v693
      %4116 = vst [vmem:[%s4069] ss:$4 sm:$0xff] %v694
      %4117 = vst [vmem:[%s4071] ss:$4 sm:$0xff] %v532
      %4118 = vst [vmem:[%s4073] ss:$4 sm:$0xff] %v695
      %4119 = vst [vmem:[%s4075] ss:$4 sm:$0xff] %v696
      %4120 = vst [vmem:[%s4077] ss:$4 sm:$0xff] %v697
      %4121 = vst [vmem:[%s4079] ss:$4 sm:$0xff] %v535
      %4122 = vst [vmem:[%s4081] ss:$4 sm:$0xff] %v698
      %v4123 = vld.sshfl [vmem:[#allocation1] sm:$0xff pattern:$0x73625140]
      %v4124 = vld.sshfl [vmem:[#allocation1 + $0x20] sm:$0xff pattern:$0x73625140]
      %4125 = vst [vmem:[#allocation1] ss:$4 sm:$0xff] %v700
      %4126 = vst [vmem:[%s4069] ss:$4 sm:$0xff] %v538
      %4127 = vst [vmem:[%s4071] ss:$4 sm:$0xff] %v701
      %4128 = vst [vmem:[%s4073] ss:$4 sm:$0xff] %v702
      %4129 = vst [vmem:[%s4075] ss:$4 sm:$0xff] %v703
      %4130 = vst [vmem:[%s4077] ss:$4 sm:$0xff] %v541
      %4131 = vst [vmem:[%s4079] ss:$4 sm:$0xff] %v704
      %4132 = vst [vmem:[%s4081] ss:$4 sm:$0xff] %v705
      %v4133 = vld.sshfl [vmem:[#allocation1] sm:$0xff pattern:$0x73625140]
      %v4134 = vld.sshfl [vmem:[#allocation1 + $0x20] sm:$0xff pattern:$0x73625140]
      %4135 = vst [vmem:[#allocation1] ss:$4 sm:$0xff] %v544
      %4136 = vst [vmem:[%s4069] ss:$4 sm:$0xff] %v707
      %4137 = vst [vmem:[%s4071] ss:$4 sm:$0xff] %v708
      %4138 = vst [vmem:[%s4073] ss:$4 sm:$0xff] %v709
      %4139 = vst [vmem:[%s4075] ss:$4 sm:$0xff] %v547
      %4140 = vst [vmem:[%s4077] ss:$4 sm:$0xff] %v710
      %4141 = vst [vmem:[%s4079] ss:$4 sm:$0xff] %v711
      %4142 = vst [vmem:[%s4081] ss:$4 sm:$0xff] %v712
      %v4143 = vld.sshfl [vmem:[#allocation1] sm:$0xff pattern:$0x73625140]
      %v4144 = vld.sshfl [vmem:[#allocation1 + $0x20] sm:$0xff pattern:$0x73625140]
      %4145 = vst [vmem:[#allocation1] ss:$4 sm:$0xff] %v713
      %4146 = vst [vmem:[%s4069] ss:$4 sm:$0xff] %v714
      %4147 = vst [vmem:[%s4071] ss:$4 sm:$0xff] %v715
      %4148 = vst [vmem:[%s4073] ss:$4 sm:$0xff] %v553
      %4149 = vst [vmem:[%s4075] ss:$4 sm:$0xff] %v716
      %4150 = vst [vmem:[%s4077] ss:$4 sm:$0xff] %v717
      %4151 = vst [vmem:[%s4079] ss:$4 sm:$0xff] %v718
      %4152 = vst [vmem:[%s4081] ss:$4 sm:$0xff] %v556
      %v4153 = vld.sshfl [vmem:[#allocation1] sm:$0xff pattern:$0x73625140]
      %v4154 = vld.sshfl [vmem:[#allocation1 + $0x20] sm:$0xff pattern:$0x73625140]
      %4155 = vst [vmem:[#allocation1] ss:$4 sm:$0xff] %v720
      %4156 = vst [vmem:[%s4069] ss:$4 sm:$0xff] %v721
      %4157 = vst [vmem:[%s4071] ss:$4 sm:$0xff] %v559
      %4158 = vst [vmem:[%s4073] ss:$4 sm:$0xff] %v722
      %4159 = vst [vmem:[%s4075] ss:$4 sm:$0xff] %v723
      %4160 = vst [vmem:[%s4077] ss:$4 sm:$0xff] %v724
      %4161 = vst [vmem:[%s4079] ss:$4 sm:$0xff] %v562
      %4162 = vst [vmem:[%s4081] ss:$4 sm:$0xff] %v725
      %v4163 = vld.sshfl [vmem:[#allocation1] sm:$0xff pattern:$0x73625140]
      %v4164 = vld.sshfl [vmem:[#allocation1 + $0x20] sm:$0xff pattern:$0x73625140]
      %4165 = vst [vmem:[#allocation1] ss:$4 sm:$0xff] %v727
      %4166 = vst [vmem:[%s4069] ss:$4 sm:$0xff] %v565
      %4167 = vst [vmem:[%s4071] ss:$4 sm:$0xff] %v728
      %4168 = vst [vmem:[%s4073] ss:$4 sm:$0xff] %v729
      %4169 = vst [vmem:[%s4075] ss:$4 sm:$0xff] %v730
      %4170 = vst [vmem:[%s4077] ss:$4 sm:$0xff] %v568
      %4171 = vst [vmem:[%s4079] ss:$4 sm:$0xff] %v731
      %4172 = vst [vmem:[%s4081] ss:$4 sm:$0xff] %v732
      %v4173 = vld.sshfl [vmem:[#allocation1] sm:$0xff pattern:$0x73625140]
      %v4174 = vld.sshfl [vmem:[#allocation1 + $0x20] sm:$0xff pattern:$0x73625140]
      %4175 = vst [vmem:[#allocation1] ss:$4 sm:$0xff] %v571
      %4176 = vst [vmem:[%s4069] ss:$4 sm:$0xff] %v734
      %4177 = vst [vmem:[%s4071] ss:$4 sm:$0xff] %v735
      %4178 = vst [vmem:[%s4073] ss:$4 sm:$0xff] %v736
      %4179 = vst [vmem:[%s4075] ss:$4 sm:$0xff] %v574
      %4180 = vst [vmem:[%s4077] ss:$4 sm:$0xff] %v737
      %4181 = vst [vmem:[%s4079] ss:$4 sm:$0xff] %v738
      %4182 = vst [vmem:[%s4081] ss:$4 sm:$0xff] %v739
      %v4183 = vld.sshfl [vmem:[#allocation1] sm:$0xff pattern:$0x73625140]
      %v4184 = vld.sshfl [vmem:[#allocation1 + $0x20] sm:$0xff pattern:$0x73625140]
      %4185 = vst [vmem:[#allocation1] ss:$4 sm:$0xff] %v740
      %4186 = vst [vmem:[%s4069] ss:$4 sm:$0xff] %v741
      %4187 = vst [vmem:[%s4071] ss:$4 sm:$0xff] %v742
      %4188 = vst [vmem:[%s4073] ss:$4 sm:$0xff] %v580
      %4189 = vst [vmem:[%s4075] ss:$4 sm:$0xff] %v743
      %4190 = vst [vmem:[%s4077] ss:$4 sm:$0xff] %v744
      %4191 = vst [vmem:[%s4079] ss:$4 sm:$0xff] %v745
      %4192 = vst [vmem:[%s4081] ss:$4 sm:$0xff] %v583
      %v4193 = vld.sshfl [vmem:[#allocation1] sm:$0xff pattern:$0x73625140]
      %v4194 = vld.sshfl [vmem:[#allocation1 + $0x20] sm:$0xff pattern:$0x73625140]
      %4195 = vst [vmem:[#allocation1] ss:$4 sm:$0xff] %v747
      %4196 = vst [vmem:[%s4069] ss:$4 sm:$0xff] %v748
      %4197 = vst [vmem:[%s4071] ss:$4 sm:$0xff] %v586
      %4198 = vst [vmem:[%s4073] ss:$4 sm:$0xff] %v749
      %4199 = vst [vmem:[%s4075] ss:$4 sm:$0xff] %v750
      %4200 = vst [vmem:[%s4077] ss:$4 sm:$0xff] %v751
      %4201 = vst [vmem:[%s4079] ss:$4 sm:$0xff] %v589
      %4202 = vst [vmem:[%s4081] ss:$4 sm:$0xff] %v752
      %v4203 = vld.sshfl [vmem:[#allocation1] sm:$0xff pattern:$0x73625140]
      %v4204 = vld.sshfl [vmem:[#allocation1 + $0x20] sm:$0xff pattern:$0x73625140]
      %4205 = vst [vmem:[#allocation1] ss:$4 sm:$0xff] %v754
      %4206 = vst [vmem:[%s4069] ss:$4 sm:$0xff] %v592
      %4207 = vst [vmem:[%s4071] ss:$4 sm:$0xff] %v755
      %4208 = vst [vmem:[%s4073] ss:$4 sm:$0xff] %v756
      %4209 = vst [vmem:[%s4075] ss:$4 sm:$0xff] %v757
      %4210 = vst [vmem:[%s4077] ss:$4 sm:$0xff] %v595
      %4211 = vst [vmem:[%s4079] ss:$4 sm:$0xff] %v758
      %4212 = vst [vmem:[%s4081] ss:$4 sm:$0xff] %v759
      %v4213 = vld.sshfl [vmem:[#allocation1] sm:$0xff pattern:$0x73625140]
      %v4214 = vld.sshfl [vmem:[#allocation1 + $0x20] sm:$0xff pattern:$0x73625140]
      %4215 = vst [vmem:[#allocation1] ss:$4 sm:$0xff] %v598
      %4216 = vst [vmem:[%s4069] ss:$4 sm:$0xff] %v761
      %4217 = vst [vmem:[%s4071] ss:$4 sm:$0xff] %v762
      %4218 = vst [vmem:[%s4073] ss:$4 sm:$0xff] %v763
      %4219 = vst [vmem:[%s4075] ss:$4 sm:$0xff] %v601
      %4220 = vst [vmem:[%s4077] ss:$4 sm:$0xff] %v764
      %4221 = vst [vmem:[%s4079] ss:$4 sm:$0xff] %v765
      %4222 = vst [vmem:[%s4081] ss:$4 sm:$0xff] %v766
      %v4223 = vld.sshfl [vmem:[#allocation1] sm:$0xff pattern:$0x73625140]
      %v4224 = vld.sshfl [vmem:[#allocation1 + $0x20] sm:$0xff pattern:$0x73625140]
      %4225 = vst [vmem:[#allocation1] ss:$4 sm:$0xff] %v767
      %4226 = vst [vmem:[%s4069] ss:$4 sm:$0xff] %v768
      %4227 = vst [vmem:[%s4071] ss:$4 sm:$0xff] %v769
      %4228 = vst [vmem:[%s4073] ss:$4 sm:$0xff] %v607
      %4229 = vst [vmem:[%s4075] ss:$4 sm:$0xff] %v770
      %4230 = vst [vmem:[%s4077] ss:$4 sm:$0xff] %v771
      %4231 = vst [vmem:[%s4079] ss:$4 sm:$0xff] %v772
      %4232 = vst [vmem:[%s4081] ss:$4 sm:$0xff] %v610
      %v4233 = vld.sshfl [vmem:[#allocation1] sm:$0xff pattern:$0x73625140]
      %v4234 = vld.sshfl [vmem:[#allocation1 + $0x20] sm:$0xff pattern:$0x73625140]
      %4235 = vrot.lane.b32.xlu0 %v4083, 104
      %v4236 = vpop.permute.xlu0 %4235
      %4237 = vrot.lane.b32.xlu0 %v4084, 104
      %v4238 = vpop.permute.xlu0 %4237
      %4239 = vrot.lane.b32.xlu0 %v4093, 104
      %v4240 = vpop.permute.xlu0 %4239
      %4241 = vrot.lane.b32.xlu0 %v4094, 104
      %v4242 = vpop.permute.xlu0 %4241
      %4243 = vrot.lane.b32.xlu0 %v4103, 104
      %v4244 = vpop.permute.xlu0 %4243
      %4245 = vrot.lane.b32.xlu0 %v4104, 104
      %v4246 = vpop.permute.xlu0 %4245
      %4247 = vrot.lane.b32.xlu0 %v4113, 104
      %v4248 = vpop.permute.xlu0 %4247
      %4249 = vrot.lane.b32.xlu0 %v4114, 104
      %v4250 = vpop.permute.xlu0 %4249
      %4251 = vrot.lane.b32.xlu0 %v4123, 104
      %v4252 = vpop.permute.xlu0 %4251
      %4253 = vrot.lane.b32.xlu0 %v4124, 104
      %v4254 = vpop.permute.xlu0 %4253
      %4255 = vrot.lane.b32.xlu0 %v4133, 104
      %v4256 = vpop.permute.xlu0 %4255
      %4257 = vrot.lane.b32.xlu0 %v4134, 104
      %v4258 = vpop.permute.xlu0 %4257
      %4259 = vrot.lane.b32.xlu0 %v4143, 104
      %v4260 = vpop.permute.xlu0 %4259
      %4261 = vrot.lane.b32.xlu0 %v4144, 104
      %v4262 = vpop.permute.xlu0 %4261
      %4263 = vrot.lane.b32.xlu0 %v4153, 104
      %v4264 = vpop.permute.xlu0 %4263
      %4265 = vrot.lane.b32.xlu0 %v4154, 104
      %v4266 = vpop.permute.xlu0 %4265
      %4267 = vrot.lane.b32.xlu0 %v4163, 104
      %v4268 = vpop.permute.xlu0 %4267
      %4269 = vrot.lane.b32.xlu0 %v4164, 104
      %v4270 = vpop.permute.xlu0 %4269
      %4271 = vrot.lane.b32.xlu0 %v4173, 104
      %v4272 = vpop.permute.xlu0 %4271
      %4273 = vrot.lane.b32.xlu0 %v4174, 104
      %v4274 = vpop.permute.xlu0 %4273
      %4275 = vrot.lane.b32.xlu0 %v4183, 104
      %v4276 = vpop.permute.xlu0 %4275
      %4277 = vrot.lane.b32.xlu0 %v4184, 104
      %v4278 = vpop.permute.xlu0 %4277
      %4279 = vrot.lane.b32.xlu0 %v4193, 104
      %v4280 = vpop.permute.xlu0 %4279
      %4281 = vrot.lane.b32.xlu0 %v4194, 104
      %v4282 = vpop.permute.xlu0 %4281
      %4283 = vrot.lane.b32.xlu0 %v4203, 104
      %v4284 = vpop.permute.xlu0 %4283
      %4285 = vrot.lane.b32.xlu0 %v4204, 104
      %v4286 = vpop.permute.xlu0 %4285
      %4287 = vrot.lane.b32.xlu0 %v4213, 104
      %v4288 = vpop.permute.xlu0 %4287
      %4289 = vrot.lane.b32.xlu0 %v4214, 104
      %v4290 = vpop.permute.xlu0 %4289
      %4291 = vrot.lane.b32.xlu0 %v4223, 104
      %v4292 = vpop.permute.xlu0 %4291
      %4293 = vrot.lane.b32.xlu0 %v4224, 104
      %v4294 = vpop.permute.xlu0 %4293
      %4295 = vrot.lane.b32.xlu0 %v4233, 104
      %v4296 = vpop.permute.xlu0 %4295
      %4297 = vrot.lane.b32.xlu0 %v4234, 104
      %v4298 = vpop.permute.xlu0 %4297
      %vm4331 = vcmask 917312
      %4332 = vst.msk [vmem:[#allocation2] sm:$0xff] %vm4331, %v4236
      %4333 = vst.msk [vmem:[#allocation2 + $0x10] sm:$0xff] %vm4331, %v4238
      %4334 = vst.msk [vmem:[#allocation2 + $0x20] sm:$0xff] %vm4331, %v4240
      %4335 = vst.msk [vmem:[#allocation2 + $0x30] sm:$0xff] %vm4331, %v4242
      %4336 = vst.msk [vmem:[#allocation2 + $0x40] sm:$0xff] %vm4331, %v4244
      %4337 = vst.msk [vmem:[#allocation2 + $0x50] sm:$0xff] %vm4331, %v4246
      %4338 = vst.msk [vmem:[#allocation2 + $0x60] sm:$0xff] %vm4331, %v4248
      %4339 = vst.msk [vmem:[#allocation2 + $0x70] sm:$0xff] %vm4331, %v4250
      %4340 = vst.msk [vmem:[#allocation2 + $0x80] sm:$0xff] %vm4331, %v4252
      %4341 = vst.msk [vmem:[#allocation2 + $0x90] sm:$0xff] %vm4331, %v4254
      %4342 = vst.msk [vmem:[#allocation2 + $0xa0] sm:$0xff] %vm4331, %v4256
      %4343 = vst.msk [vmem:[#allocation2 + $0xb0] sm:$0xff] %vm4331, %v4258
      %4344 = vst.msk [vmem:[#allocation2 + $0xc0] sm:$0xff] %vm4331, %v4260
      %4345 = vst.msk [vmem:[#allocation2 + $0xd0] sm:$0xff] %vm4331, %v4262
      %4346 = vst.msk [vmem:[#allocation2 + $0xe0] sm:$0xff] %vm4331, %v4264
      %4347 = vst.msk [vmem:[#allocation2 + $0xf0] sm:$0xff] %vm4331, %v4266
      %4348 = vst.msk [vmem:[#allocation2 + $0x100] sm:$0xff] %vm4331, %v4268
      %4349 = vst.msk [vmem:[#allocation2 + $0x110] sm:$0xff] %vm4331, %v4270
      %4350 = vst.msk [vmem:[#allocation2 + $0x120] sm:$0xff] %vm4331, %v4272
      %4351 = vst.msk [vmem:[#allocation2 + $0x130] sm:$0xff] %vm4331, %v4274
      %4352 = vst.msk [vmem:[#allocation2 + $0x140] sm:$0xff] %vm4331, %v4276
      %4353 = vst.msk [vmem:[#allocation2 + $0x150] sm:$0xff] %vm4331, %v4278
      %4354 = vst.msk [vmem:[#allocation2 + $0x160] sm:$0xff] %vm4331, %v4280
      %4355 = vst.msk [vmem:[#allocation2 + $0x170] sm:$0xff] %vm4331, %v4282
      %4356 = vst.msk [vmem:[#allocation2 + $0x180] sm:$0xff] %vm4331, %v4284
      %4357 = vst.msk [vmem:[#allocation2 + $0x190] sm:$0xff] %vm4331, %v4286
      %4358 = vst.msk [vmem:[#allocation2 + $0x1a0] sm:$0xff] %vm4331, %v4288
      %4359 = vst.msk [vmem:[#allocation2 + $0x1b0] sm:$0xff] %vm4331, %v4290
      %4360 = vst.msk [vmem:[#allocation2 + $0x1c0] sm:$0xff] %vm4331, %v4292
      %4361 = vst.msk [vmem:[#allocation2 + $0x1d0] sm:$0xff] %vm4331, %v4294
      %4362 = vst.msk [vmem:[#allocation2 + $0x1e0] sm:$0xff] %vm4331, %v4296
      %4363 = vst.msk [vmem:[#allocation2 + $0x1f0] sm:$0xff] %vm4331, %v4298
      %v4365 = vrot.slane %v825, 1
      %v4366 = vrot.slane %v826, 1
      %v4367 = vsel %vm1205, %v4365, %v4366
      %v4368 = vrot.slane %v827, 1
      %v4369 = vsel %vm1205, %v4366, %v4368
      %4370 = vrot.lane.b32.xlu0 %v1218, 112
      %v4371 = vpop.permute.xlu0 %4370
      %4372 = vrot.lane.b32.xlu0 %v1220, 112
      %v4373 = vpop.permute.xlu0 %4372
      %4374 = vrot.lane.b32.xlu0 %v1223, 112
      %v4375 = vpop.permute.xlu0 %4374
      %4376 = vrot.lane.b32.xlu0 %v1225, 112
      %v4377 = vpop.permute.xlu0 %4376
      %4378 = vrot.lane.b32.xlu0 %v1228, 112
      %v4379 = vpop.permute.xlu0 %4378
      %4380 = vrot.lane.b32.xlu0 %v1230, 112
      %v4381 = vpop.permute.xlu0 %4380
      %4382 = vrot.lane.b32.xlu0 %v1233, 112
      %v4383 = vpop.permute.xlu0 %4382
      %4384 = vrot.lane.b32.xlu0 %v1235, 112
      %v4385 = vpop.permute.xlu0 %4384
      %4386 = vrot.lane.b32.xlu0 %v1238, 112
      %v4387 = vpop.permute.xlu0 %4386
      %4388 = vrot.lane.b32.xlu0 %v1240, 112
      %v4389 = vpop.permute.xlu0 %4388
      %4390 = vrot.lane.b32.xlu0 %v1243, 112
      %v4391 = vpop.permute.xlu0 %4390
      %4392 = vrot.lane.b32.xlu0 %v1245, 112
      %v4393 = vpop.permute.xlu0 %4392
      %4394 = vrot.lane.b32.xlu0 %v1248, 112
      %v4395 = vpop.permute.xlu0 %4394
      %4396 = vrot.lane.b32.xlu0 %v1250, 112
      %v4397 = vpop.permute.xlu0 %4396
      %4398 = vrot.lane.b32.xlu0 %v1253, 112
      %v4399 = vpop.permute.xlu0 %4398
      %4400 = vrot.lane.b32.xlu0 %v1255, 112
      %v4401 = vpop.permute.xlu0 %4400
      %4402 = vrot.lane.b32.xlu0 %v1258, 112
      %v4403 = vpop.permute.xlu0 %4402
      %4404 = vrot.lane.b32.xlu0 %v1260, 112
      %v4405 = vpop.permute.xlu0 %4404
      %4406 = vrot.lane.b32.xlu0 %v1263, 112
      %v4407 = vpop.permute.xlu0 %4406
      %4408 = vrot.lane.b32.xlu0 %v1265, 112
      %v4409 = vpop.permute.xlu0 %4408
      %4410 = vrot.lane.b32.xlu0 %v1268, 112
      %v4411 = vpop.permute.xlu0 %4410
      %4412 = vrot.lane.b32.xlu0 %v1270, 112
      %v4413 = vpop.permute.xlu0 %4412
      %4414 = vrot.lane.b32.xlu0 %v1273, 112
      %v4415 = vpop.permute.xlu0 %4414
      %4416 = vrot.lane.b32.xlu0 %v1275, 112
      %v4417 = vpop.permute.xlu0 %4416
      %4418 = vrot.lane.b32.xlu0 %v1278, 112
      %v4419 = vpop.permute.xlu0 %4418
      %4420 = vrot.lane.b32.xlu0 %v1280, 112
      %v4421 = vpop.permute.xlu0 %4420
      %4422 = vrot.lane.b32.xlu0 %v1283, 112
      %v4423 = vpop.permute.xlu0 %4422
      %4424 = vrot.lane.b32.xlu0 %v1285, 112
      %v4425 = vpop.permute.xlu0 %4424
      %4426 = vrot.lane.b32.xlu0 %v3054, 112
      %v4427 = vpop.permute.xlu0 %4426
      %4428 = vrot.lane.b32.xlu0 %v3056, 112
      %v4429 = vpop.permute.xlu0 %4428
      %4430 = vrot.lane.b32.xlu0 %v4367, 112
      %v4431 = vpop.permute.xlu0 %4430
      %4432 = vrot.lane.b32.xlu0 %v4369, 112
      %v4433 = vpop.permute.xlu0 %4432
      %vm4466 = vcmask 982912
      %4467 = vst.msk [vmem:[#allocation2] sm:$0xff] %vm4466, %v4371
      %4468 = vst.msk [vmem:[#allocation2 + $0x10] sm:$0xff] %vm4466, %v4373
      %4469 = vst.msk [vmem:[#allocation2 + $0x20] sm:$0xff] %vm4466, %v4375
      %4470 = vst.msk [vmem:[#allocation2 + $0x30] sm:$0xff] %vm4466, %v4377
      %4471 = vst.msk [vmem:[#allocation2 + $0x40] sm:$0xff] %vm4466, %v4379
      %4472 = vst.msk [vmem:[#allocation2 + $0x50] sm:$0xff] %vm4466, %v4381
      %4473 = vst.msk [vmem:[#allocation2 + $0x60] sm:$0xff] %vm4466, %v4383
      %4474 = vst.msk [vmem:[#allocation2 + $0x70] sm:$0xff] %vm4466, %v4385
      %4475 = vst.msk [vmem:[#allocation2 + $0x80] sm:$0xff] %vm4466, %v4387
      %4476 = vst.msk [vmem:[#allocation2 + $0x90] sm:$0xff] %vm4466, %v4389
      %4477 = vst.msk [vmem:[#allocation2 + $0xa0] sm:$0xff] %vm4466, %v4391
      %4478 = vst.msk [vmem:[#allocation2 + $0xb0] sm:$0xff] %vm4466, %v4393
      %4479 = vst.msk [vmem:[#allocation2 + $0xc0] sm:$0xff] %vm4466, %v4395
      %4480 = vst.msk [vmem:[#allocation2 + $0xd0] sm:$0xff] %vm4466, %v4397
      %4481 = vst.msk [vmem:[#allocation2 + $0xe0] sm:$0xff] %vm4466, %v4399
      %4482 = vst.msk [vmem:[#allocation2 + $0xf0] sm:$0xff] %vm4466, %v4401
      %4483 = vst.msk [vmem:[#allocation2 + $0x100] sm:$0xff] %vm4466, %v4403
      %4484 = vst.msk [vmem:[#allocation2 + $0x110] sm:$0xff] %vm4466, %v4405
      %4485 = vst.msk [vmem:[#allocation2 + $0x120] sm:$0xff] %vm4466, %v4407
      %4486 = vst.msk [vmem:[#allocation2 + $0x130] sm:$0xff] %vm4466, %v4409
      %4487 = vst.msk [vmem:[#allocation2 + $0x140] sm:$0xff] %vm4466, %v4411
      %4488 = vst.msk [vmem:[#allocation2 + $0x150] sm:$0xff] %vm4466, %v4413
      %4489 = vst.msk [vmem:[#allocation2 + $0x160] sm:$0xff] %vm4466, %v4415
      %4490 = vst.msk [vmem:[#allocation2 + $0x170] sm:$0xff] %vm4466, %v4417
      %4491 = vst.msk [vmem:[#allocation2 + $0x180] sm:$0xff] %vm4466, %v4419
      %4492 = vst.msk [vmem:[#allocation2 + $0x190] sm:$0xff] %vm4466, %v4421
      %4493 = vst.msk [vmem:[#allocation2 + $0x1a0] sm:$0xff] %vm4466, %v4423
      %4494 = vst.msk [vmem:[#allocation2 + $0x1b0] sm:$0xff] %vm4466, %v4425
      %4495 = vst.msk [vmem:[#allocation2 + $0x1c0] sm:$0xff] %vm4466, %v4427
      %4496 = vst.msk [vmem:[#allocation2 + $0x1d0] sm:$0xff] %vm4466, %v4429
      %4497 = vst.msk [vmem:[#allocation2 + $0x1e0] sm:$0xff] %vm4466, %v4431
      %4498 = vst.msk [vmem:[#allocation2 + $0x1f0] sm:$0xff] %vm4466, %v4433
      %v4499 = vrot.slane %v767, 7
      %v4500 = vrot.slane %v4499, 2
      %v4501 = vrot.slane %v768, 7
      %v4502 = vsel %vm1421, %v4500, %v4501
      %v4503 = vrot.slane %v4501, 2
      %v4504 = vrot.slane %v769, 7
      %v4505 = vsel %vm1421, %v4503, %v4504
      %v4506 = vrot.slane %v4504, 2
      %v4507 = vrot.slane %v607, 7
      %v4508 = vsel %vm1421, %v4506, %v4507
      %v4509 = vrot.slane %v4507, 2
      %v4510 = vrot.slane %v770, 7
      %v4511 = vsel %vm1421, %v4509, %v4510
      %v4512 = vrot.slane %v4510, 2
      %v4513 = vrot.slane %v771, 7
      %v4514 = vsel %vm1421, %v4512, %v4513
      %v4515 = vrot.slane %v4513, 2
      %v4516 = vrot.slane %v772, 7
      %v4517 = vsel %vm1421, %v4515, %v4516
      %v4518 = vrot.slane %v4516, 2
      %v4519 = vrot.slane %v610, 7
      %v4520 = vsel %vm1421, %v4518, %v4519
      %v4521 = vrot.slane %v4519, 2
      %v4522 = vrot.slane %v773, 7
      %v4523 = vsel %vm1421, %v4521, %v4522
      %4524 = vst [vmem:[#allocation1] ss:$4 sm:$0xff] %v1475
      %s4525 = scalar_lea.vmem [#allocation1], 1
      %4526 = vst [vmem:[%s4525] ss:$4 sm:$0xff] %v1478
      %s4527 = scalar_lea.vmem [#allocation1], 2
      %4528 = vst [vmem:[%s4527] ss:$4 sm:$0xff] %v1481
      %s4529 = scalar_lea.vmem [#allocation1], 3
      %4530 = vst [vmem:[%s4529] ss:$4 sm:$0xff] %v1484
      %s4531 = scalar_lea.vmem [#allocation1], 32
      %4532 = vst [vmem:[%s4531] ss:$4 sm:$0xff] %v1487
      %s4533 = scalar_lea.vmem [#allocation1], 33
      %4534 = vst [vmem:[%s4533] ss:$4 sm:$0xff] %v1490
      %s4535 = scalar_lea.vmem [#allocation1], 34
      %4536 = vst [vmem:[%s4535] ss:$4 sm:$0xff] %v1493
      %s4537 = scalar_lea.vmem [#allocation1], 35
      %4538 = vst [vmem:[%s4537] ss:$4 sm:$0xff] %v1496
      %v4539 = vld.sshfl [vmem:[#allocation1] sm:$0xff pattern:$0x73625140]
      %v4540 = vld.sshfl [vmem:[#allocation1 + $0x20] sm:$0xff pattern:$0x73625140]
      %4541 = vst [vmem:[#allocation1] ss:$4 sm:$0xff] %v1500
      %4542 = vst [vmem:[%s4525] ss:$4 sm:$0xff] %v1503
      %4543 = vst [vmem:[%s4527] ss:$4 sm:$0xff] %v1506
      %4544 = vst [vmem:[%s4529] ss:$4 sm:$0xff] %v1509
      %4545 = vst [vmem:[%s4531] ss:$4 sm:$0xff] %v1512
      %4546 = vst [vmem:[%s4533] ss:$4 sm:$0xff] %v1515
      %4547 = vst [vmem:[%s4535] ss:$4 sm:$0xff] %v1518
      %4548 = vst [vmem:[%s4537] ss:$4 sm:$0xff] %v1521
      %v4549 = vld.sshfl [vmem:[#allocation1] sm:$0xff pattern:$0x73625140]
      %v4550 = vld.sshfl [vmem:[#allocation1 + $0x20] sm:$0xff pattern:$0x73625140]
      %4551 = vst [vmem:[#allocation1] ss:$4 sm:$0xff] %v1525
      %4552 = vst [vmem:[%s4525] ss:$4 sm:$0xff] %v1528
      %4553 = vst [vmem:[%s4527] ss:$4 sm:$0xff] %v1531
      %4554 = vst [vmem:[%s4529] ss:$4 sm:$0xff] %v1534
      %4555 = vst [vmem:[%s4531] ss:$4 sm:$0xff] %v1537
      %4556 = vst [vmem:[%s4533] ss:$4 sm:$0xff] %v1540
      %4557 = vst [vmem:[%s4535] ss:$4 sm:$0xff] %v1543
      %4558 = vst [vmem:[%s4537] ss:$4 sm:$0xff] %v1546
      %v4559 = vld.sshfl [vmem:[#allocation1] sm:$0xff pattern:$0x73625140]
      %v4560 = vld.sshfl [vmem:[#allocation1 + $0x20] sm:$0xff pattern:$0x73625140]
      %4561 = vst [vmem:[#allocation1] ss:$4 sm:$0xff] %v1550
      %4562 = vst [vmem:[%s4525] ss:$4 sm:$0xff] %v1553
      %4563 = vst [vmem:[%s4527] ss:$4 sm:$0xff] %v1556
      %4564 = vst [vmem:[%s4529] ss:$4 sm:$0xff] %v1559
      %4565 = vst [vmem:[%s4531] ss:$4 sm:$0xff] %v1562
      %4566 = vst [vmem:[%s4533] ss:$4 sm:$0xff] %v1565
      %4567 = vst [vmem:[%s4535] ss:$4 sm:$0xff] %v1568
      %4568 = vst [vmem:[%s4537] ss:$4 sm:$0xff] %v1571
      %v4569 = vld.sshfl [vmem:[#allocation1] sm:$0xff pattern:$0x73625140]
      %v4570 = vld.sshfl [vmem:[#allocation1 + $0x20] sm:$0xff pattern:$0x73625140]
      %4571 = vst [vmem:[#allocation1] ss:$4 sm:$0xff] %v1575
      %4572 = vst [vmem:[%s4525] ss:$4 sm:$0xff] %v1578
      %4573 = vst [vmem:[%s4527] ss:$4 sm:$0xff] %v1581
      %4574 = vst [vmem:[%s4529] ss:$4 sm:$0xff] %v1584
      %4575 = vst [vmem:[%s4531] ss:$4 sm:$0xff] %v1587
      %4576 = vst [vmem:[%s4533] ss:$4 sm:$0xff] %v1590
      %4577 = vst [vmem:[%s4535] ss:$4 sm:$0xff] %v1593
      %4578 = vst [vmem:[%s4537] ss:$4 sm:$0xff] %v1596
      %v4579 = vld.sshfl [vmem:[#allocation1] sm:$0xff pattern:$0x73625140]
      %v4580 = vld.sshfl [vmem:[#allocation1 + $0x20] sm:$0xff pattern:$0x73625140]
      %4581 = vst [vmem:[#allocation1] ss:$4 sm:$0xff] %v1600
      %4582 = vst [vmem:[%s4525] ss:$4 sm:$0xff] %v1603
      %4583 = vst [vmem:[%s4527] ss:$4 sm:$0xff] %v1606
      %4584 = vst [vmem:[%s4529] ss:$4 sm:$0xff] %v1609
      %4585 = vst [vmem:[%s4531] ss:$4 sm:$0xff] %v1612
      %4586 = vst [vmem:[%s4533] ss:$4 sm:$0xff] %v1615
      %4587 = vst [vmem:[%s4535] ss:$4 sm:$0xff] %v1618
      %4588 = vst [vmem:[%s4537] ss:$4 sm:$0xff] %v1621
      %v4589 = vld.sshfl [vmem:[#allocation1] sm:$0xff pattern:$0x73625140]
      %v4590 = vld.sshfl [vmem:[#allocation1 + $0x20] sm:$0xff pattern:$0x73625140]
      %4591 = vst [vmem:[#allocation1] ss:$4 sm:$0xff] %v1625
      %4592 = vst [vmem:[%s4525] ss:$4 sm:$0xff] %v1628
      %4593 = vst [vmem:[%s4527] ss:$4 sm:$0xff] %v1631
      %4594 = vst [vmem:[%s4529] ss:$4 sm:$0xff] %v1634
      %4595 = vst [vmem:[%s4531] ss:$4 sm:$0xff] %v1637
      %4596 = vst [vmem:[%s4533] ss:$4 sm:$0xff] %v1640
      %4597 = vst [vmem:[%s4535] ss:$4 sm:$0xff] %v1643
      %4598 = vst [vmem:[%s4537] ss:$4 sm:$0xff] %v1646
      %v4599 = vld.sshfl [vmem:[#allocation1] sm:$0xff pattern:$0x73625140]
      %v4600 = vld.sshfl [vmem:[#allocation1 + $0x20] sm:$0xff pattern:$0x73625140]
      %4601 = vst [vmem:[#allocation1] ss:$4 sm:$0xff] %v1650
      %4602 = vst [vmem:[%s4525] ss:$4 sm:$0xff] %v1653
      %4603 = vst [vmem:[%s4527] ss:$4 sm:$0xff] %v1656
      %4604 = vst [vmem:[%s4529] ss:$4 sm:$0xff] %v1659
      %4605 = vst [vmem:[%s4531] ss:$4 sm:$0xff] %v1662
      %4606 = vst [vmem:[%s4533] ss:$4 sm:$0xff] %v1665
      %4607 = vst [vmem:[%s4535] ss:$4 sm:$0xff] %v1668
      %4608 = vst [vmem:[%s4537] ss:$4 sm:$0xff] %v1671
      %v4609 = vld.sshfl [vmem:[#allocation1] sm:$0xff pattern:$0x73625140]
      %v4610 = vld.sshfl [vmem:[#allocation1 + $0x20] sm:$0xff pattern:$0x73625140]
      %4611 = vst [vmem:[#allocation1] ss:$4 sm:$0xff] %v1675
      %4612 = vst [vmem:[%s4525] ss:$4 sm:$0xff] %v1678
      %4613 = vst [vmem:[%s4527] ss:$4 sm:$0xff] %v1681
      %4614 = vst [vmem:[%s4529] ss:$4 sm:$0xff] %v1684
      %4615 = vst [vmem:[%s4531] ss:$4 sm:$0xff] %v1687
      %4616 = vst [vmem:[%s4533] ss:$4 sm:$0xff] %v1690
      %4617 = vst [vmem:[%s4535] ss:$4 sm:$0xff] %v1693
      %4618 = vst [vmem:[%s4537] ss:$4 sm:$0xff] %v1696
      %v4619 = vld.sshfl [vmem:[#allocation1] sm:$0xff pattern:$0x73625140]
      %v4620 = vld.sshfl [vmem:[#allocation1 + $0x20] sm:$0xff pattern:$0x73625140]
      %4621 = vst [vmem:[#allocation1] ss:$4 sm:$0xff] %v1700
      %4622 = vst [vmem:[%s4525] ss:$4 sm:$0xff] %v1703
      %4623 = vst [vmem:[%s4527] ss:$4 sm:$0xff] %v1706
      %4624 = vst [vmem:[%s4529] ss:$4 sm:$0xff] %v1709
      %4625 = vst [vmem:[%s4531] ss:$4 sm:$0xff] %v1712
      %4626 = vst [vmem:[%s4533] ss:$4 sm:$0xff] %v1715
      %4627 = vst [vmem:[%s4535] ss:$4 sm:$0xff] %v1718
      %4628 = vst [vmem:[%s4537] ss:$4 sm:$0xff] %v1721
      %v4629 = vld.sshfl [vmem:[#allocation1] sm:$0xff pattern:$0x73625140]
      %v4630 = vld.sshfl [vmem:[#allocation1 + $0x20] sm:$0xff pattern:$0x73625140]
      %4631 = vst [vmem:[#allocation1] ss:$4 sm:$0xff] %v1725
      %4632 = vst [vmem:[%s4525] ss:$4 sm:$0xff] %v1728
      %4633 = vst [vmem:[%s4527] ss:$4 sm:$0xff] %v1731
      %4634 = vst [vmem:[%s4529] ss:$4 sm:$0xff] %v1734
      %4635 = vst [vmem:[%s4531] ss:$4 sm:$0xff] %v1737
      %4636 = vst [vmem:[%s4533] ss:$4 sm:$0xff] %v1740
      %4637 = vst [vmem:[%s4535] ss:$4 sm:$0xff] %v1743
      %4638 = vst [vmem:[%s4537] ss:$4 sm:$0xff] %v1746
      %v4639 = vld.sshfl [vmem:[#allocation1] sm:$0xff pattern:$0x73625140]
      %v4640 = vld.sshfl [vmem:[#allocation1 + $0x20] sm:$0xff pattern:$0x73625140]
      %4641 = vst [vmem:[#allocation1] ss:$4 sm:$0xff] %v1750
      %4642 = vst [vmem:[%s4525] ss:$4 sm:$0xff] %v1753
      %4643 = vst [vmem:[%s4527] ss:$4 sm:$0xff] %v1756
      %4644 = vst [vmem:[%s4529] ss:$4 sm:$0xff] %v1759
      %4645 = vst [vmem:[%s4531] ss:$4 sm:$0xff] %v1762
      %4646 = vst [vmem:[%s4533] ss:$4 sm:$0xff] %v1765
      %4647 = vst [vmem:[%s4535] ss:$4 sm:$0xff] %v1768
      %4648 = vst [vmem:[%s4537] ss:$4 sm:$0xff] %v1771
      %v4649 = vld.sshfl [vmem:[#allocation1] sm:$0xff pattern:$0x73625140]
      %v4650 = vld.sshfl [vmem:[#allocation1 + $0x20] sm:$0xff pattern:$0x73625140]
      %4651 = vst [vmem:[#allocation1] ss:$4 sm:$0xff] %v1775
      %4652 = vst [vmem:[%s4525] ss:$4 sm:$0xff] %v1778
      %4653 = vst [vmem:[%s4527] ss:$4 sm:$0xff] %v1781
      %4654 = vst [vmem:[%s4529] ss:$4 sm:$0xff] %v1784
      %4655 = vst [vmem:[%s4531] ss:$4 sm:$0xff] %v1787
      %4656 = vst [vmem:[%s4533] ss:$4 sm:$0xff] %v1790
      %4657 = vst [vmem:[%s4535] ss:$4 sm:$0xff] %v1793
      %4658 = vst [vmem:[%s4537] ss:$4 sm:$0xff] %v1796
      %v4659 = vld.sshfl [vmem:[#allocation1] sm:$0xff pattern:$0x73625140]
      %v4660 = vld.sshfl [vmem:[#allocation1 + $0x20] sm:$0xff pattern:$0x73625140]
      %4661 = vst [vmem:[#allocation1] ss:$4 sm:$0xff] %v1800
      %4662 = vst [vmem:[%s4525] ss:$4 sm:$0xff] %v1803
      %4663 = vst [vmem:[%s4527] ss:$4 sm:$0xff] %v1806
      %4664 = vst [vmem:[%s4529] ss:$4 sm:$0xff] %v1809
      %4665 = vst [vmem:[%s4531] ss:$4 sm:$0xff] %v1812
      %4666 = vst [vmem:[%s4533] ss:$4 sm:$0xff] %v1815
      %4667 = vst [vmem:[%s4535] ss:$4 sm:$0xff] %v1818
      %4668 = vst [vmem:[%s4537] ss:$4 sm:$0xff] %v1821
      %v4669 = vld.sshfl [vmem:[#allocation1] sm:$0xff pattern:$0x73625140]
      %v4670 = vld.sshfl [vmem:[#allocation1 + $0x20] sm:$0xff pattern:$0x73625140]
      %4671 = vst [vmem:[#allocation1] ss:$4 sm:$0xff] %v3189
      %4672 = vst [vmem:[%s4525] ss:$4 sm:$0xff] %v3192
      %4673 = vst [vmem:[%s4527] ss:$4 sm:$0xff] %v3195
      %4674 = vst [vmem:[%s4529] ss:$4 sm:$0xff] %v3198
      %4675 = vst [vmem:[%s4531] ss:$4 sm:$0xff] %v3201
      %4676 = vst [vmem:[%s4533] ss:$4 sm:$0xff] %v3204
      %4677 = vst [vmem:[%s4535] ss:$4 sm:$0xff] %v3207
      %4678 = vst [vmem:[%s4537] ss:$4 sm:$0xff] %v3210
      %v4679 = vld.sshfl [vmem:[#allocation1] sm:$0xff pattern:$0x73625140]
      %v4680 = vld.sshfl [vmem:[#allocation1 + $0x20] sm:$0xff pattern:$0x73625140]
      %4681 = vst [vmem:[#allocation1] ss:$4 sm:$0xff] %v4502
      %4682 = vst [vmem:[%s4525] ss:$4 sm:$0xff] %v4505
      %4683 = vst [vmem:[%s4527] ss:$4 sm:$0xff] %v4508
      %4684 = vst [vmem:[%s4529] ss:$4 sm:$0xff] %v4511
      %4685 = vst [vmem:[%s4531] ss:$4 sm:$0xff] %v4514
      %4686 = vst [vmem:[%s4533] ss:$4 sm:$0xff] %v4517
      %4687 = vst [vmem:[%s4535] ss:$4 sm:$0xff] %v4520
      %4688 = vst [vmem:[%s4537] ss:$4 sm:$0xff] %v4523
      %v4689 = vld.sshfl [vmem:[#allocation1] sm:$0xff pattern:$0x73625140]
      %v4690 = vld.sshfl [vmem:[#allocation1 + $0x20] sm:$0xff pattern:$0x73625140]
      %4691 = vrot.lane.b32.xlu0 %v4539, 120
      %v4692 = vpop.permute.xlu0 %4691
      %4693 = vrot.lane.b32.xlu0 %v4540, 120
      %v4694 = vpop.permute.xlu0 %4693
      %4695 = vrot.lane.b32.xlu0 %v4549, 120
      %v4696 = vpop.permute.xlu0 %4695
      %4697 = vrot.lane.b32.xlu0 %v4550, 120
      %v4698 = vpop.permute.xlu0 %4697
      %4699 = vrot.lane.b32.xlu0 %v4559, 120
      %v4700 = vpop.permute.xlu0 %4699
      %4701 = vrot.lane.b32.xlu0 %v4560, 120
      %v4702 = vpop.permute.xlu0 %4701
      %4703 = vrot.lane.b32.xlu0 %v4569, 120
      %v4704 = vpop.permute.xlu0 %4703
      %4705 = vrot.lane.b32.xlu0 %v4570, 120
      %v4706 = vpop.permute.xlu0 %4705
      %4707 = vrot.lane.b32.xlu0 %v4579, 120
      %v4708 = vpop.permute.xlu0 %4707
      %4709 = vrot.lane.b32.xlu0 %v4580, 120
      %v4710 = vpop.permute.xlu0 %4709
      %4711 = vrot.lane.b32.xlu0 %v4589, 120
      %v4712 = vpop.permute.xlu0 %4711
      %4713 = vrot.lane.b32.xlu0 %v4590, 120
      %v4714 = vpop.permute.xlu0 %4713
      %4715 = vrot.lane.b32.xlu0 %v4599, 120
      %v4716 = vpop.permute.xlu0 %4715
      %4717 = vrot.lane.b32.xlu0 %v4600, 120
      %v4718 = vpop.permute.xlu0 %4717
      %4719 = vrot.lane.b32.xlu0 %v4609, 120
      %v4720 = vpop.permute.xlu0 %4719
      %4721 = vrot.lane.b32.xlu0 %v4610, 120
      %v4722 = vpop.permute.xlu0 %4721
      %4723 = vrot.lane.b32.xlu0 %v4619, 120
      %v4724 = vpop.permute.xlu0 %4723
      %4725 = vrot.lane.b32.xlu0 %v4620, 120
      %v4726 = vpop.permute.xlu0 %4725
      %4727 = vrot.lane.b32.xlu0 %v4629, 120
      %v4728 = vpop.permute.xlu0 %4727
      %4729 = vrot.lane.b32.xlu0 %v4630, 120
      %v4730 = vpop.permute.xlu0 %4729
      %4731 = vrot.lane.b32.xlu0 %v4639, 120
      %v4732 = vpop.permute.xlu0 %4731
      %4733 = vrot.lane.b32.xlu0 %v4640, 120
      %v4734 = vpop.permute.xlu0 %4733
      %4735 = vrot.lane.b32.xlu0 %v4649, 120
      %v4736 = vpop.permute.xlu0 %4735
      %4737 = vrot.lane.b32.xlu0 %v4650, 120
      %v4738 = vpop.permute.xlu0 %4737
      %4739 = vrot.lane.b32.xlu0 %v4659, 120
      %v4740 = vpop.permute.xlu0 %4739
      %4741 = vrot.lane.b32.xlu0 %v4660, 120
      %v4742 = vpop.permute.xlu0 %4741
      %4743 = vrot.lane.b32.xlu0 %v4669, 120
      %v4744 = vpop.permute.xlu0 %4743
      %4745 = vrot.lane.b32.xlu0 %v4670, 120
      %v4746 = vpop.permute.xlu0 %4745
      %4747 = vrot.lane.b32.xlu0 %v4679, 120
      %v4748 = vpop.permute.xlu0 %4747
      %4749 = vrot.lane.b32.xlu0 %v4680, 120
      %v4750 = vpop.permute.xlu0 %4749
      %4751 = vrot.lane.b32.xlu0 %v4689, 120
      %v4752 = vpop.permute.xlu0 %4751
      %4753 = vrot.lane.b32.xlu0 %v4690, 120
      %v4754 = vpop.permute.xlu0 %4753
      %vm4787 = vcmask 1048512
      %4788 = vst.msk [vmem:[#allocation2] sm:$0xff] %vm4787, %v4692
      %4789 = vst.msk [vmem:[#allocation2 + $0x10] sm:$0xff] %vm4787, %v4694
      %4790 = vst.msk [vmem:[#allocation2 + $0x20] sm:$0xff] %vm4787, %v4696
      %4791 = vst.msk [vmem:[#allocation2 + $0x30] sm:$0xff] %vm4787, %v4698
      %4792 = vst.msk [vmem:[#allocation2 + $0x40] sm:$0xff] %vm4787, %v4700
      %4793 = vst.msk [vmem:[#allocation2 + $0x50] sm:$0xff] %vm4787, %v4702
      %4794 = vst.msk [vmem:[#allocation2 + $0x60] sm:$0xff] %vm4787, %v4704
      %4795 = vst.msk [vmem:[#allocation2 + $0x70] sm:$0xff] %vm4787, %v4706
      %4796 = vst.msk [vmem:[#allocation2 + $0x80] sm:$0xff] %vm4787, %v4708
      %4797 = vst.msk [vmem:[#allocation2 + $0x90] sm:$0xff] %vm4787, %v4710
      %4798 = vst.msk [vmem:[#allocation2 + $0xa0] sm:$0xff] %vm4787, %v4712
      %4799 = vst.msk [vmem:[#allocation2 + $0xb0] sm:$0xff] %vm4787, %v4714
      %4800 = vst.msk [vmem:[#allocation2 + $0xc0] sm:$0xff] %vm4787, %v4716
      %4801 = vst.msk [vmem:[#allocation2 + $0xd0] sm:$0xff] %vm4787, %v4718
      %4802 = vst.msk [vmem:[#allocation2 + $0xe0] sm:$0xff] %vm4787, %v4720
      %4803 = vst.msk [vmem:[#allocation2 + $0xf0] sm:$0xff] %vm4787, %v4722
      %4804 = vst.msk [vmem:[#allocation2 + $0x100] sm:$0xff] %vm4787, %v4724
      %4805 = vst.msk [vmem:[#allocation2 + $0x110] sm:$0xff] %vm4787, %v4726
      %4806 = vst.msk [vmem:[#allocation2 + $0x120] sm:$0xff] %vm4787, %v4728
      %4807 = vst.msk [vmem:[#allocation2 + $0x130] sm:$0xff] %vm4787, %v4730
      %4808 = vst.msk [vmem:[#allocation2 + $0x140] sm:$0xff] %vm4787, %v4732
      %4809 = vst.msk [vmem:[#allocation2 + $0x150] sm:$0xff] %vm4787, %v4734
      %4810 = vst.msk [vmem:[#allocation2 + $0x160] sm:$0xff] %vm4787, %v4736
      %4811 = vst.msk [vmem:[#allocation2 + $0x170] sm:$0xff] %vm4787, %v4738
      %4812 = vst.msk [vmem:[#allocation2 + $0x180] sm:$0xff] %vm4787, %v4740
      %4813 = vst.msk [vmem:[#allocation2 + $0x190] sm:$0xff] %vm4787, %v4742
      %4814 = vst.msk [vmem:[#allocation2 + $0x1a0] sm:$0xff] %vm4787, %v4744
      %4815 = vst.msk [vmem:[#allocation2 + $0x1b0] sm:$0xff] %vm4787, %v4746
      %4816 = vst.msk [vmem:[#allocation2 + $0x1c0] sm:$0xff] %vm4787, %v4748
      %4817 = vst.msk [vmem:[#allocation2 + $0x1d0] sm:$0xff] %vm4787, %v4750
      %4818 = vst.msk [vmem:[#allocation2 + $0x1e0] sm:$0xff] %vm4787, %v4752
      %4819 = vst.msk [vmem:[#allocation2 + $0x1f0] sm:$0xff] %vm4787, %v4754
      %v4820 = vrot.slane %v825, 2
      %v4821 = vrot.slane %v826, 2
      %v4822 = vsel %vm2118, %v4820, %v4821
      %v4823 = vrot.slane %v827, 2
      %v4824 = vsel %vm2118, %v4821, %v4823
      %4857 = vst.msk [vmem:[#allocation2 + $0x8] sm:$0xff] %vm828, %v2131
      %4858 = vst.msk [vmem:[#allocation2 + $0x18] sm:$0xff] %vm828, %v2133
      %4859 = vst.msk [vmem:[#allocation2 + $0x28] sm:$0xff] %vm828, %v2136
      %4860 = vst.msk [vmem:[#allocation2 + $0x38] sm:$0xff] %vm828, %v2138
      %4861 = vst.msk [vmem:[#allocation2 + $0x48] sm:$0xff] %vm828, %v2141
      %4862 = vst.msk [vmem:[#allocation2 + $0x58] sm:$0xff] %vm828, %v2143
      %4863 = vst.msk [vmem:[#allocation2 + $0x68] sm:$0xff] %vm828, %v2146
      %4864 = vst.msk [vmem:[#allocation2 + $0x78] sm:$0xff] %vm828, %v2148
      %4865 = vst.msk [vmem:[#allocation2 + $0x88] sm:$0xff] %vm828, %v2151
      %4866 = vst.msk [vmem:[#allocation2 + $0x98] sm:$0xff] %vm828, %v2153
      %4867 = vst.msk [vmem:[#allocation2 + $0xa8] sm:$0xff] %vm828, %v2156
      %4868 = vst.msk [vmem:[#allocation2 + $0xb8] sm:$0xff] %vm828, %v2158
      %4869 = vst.msk [vmem:[#allocation2 + $0xc8] sm:$0xff] %vm828, %v2161
      %4870 = vst.msk [vmem:[#allocation2 + $0xd8] sm:$0xff] %vm828, %v2163
      %4871 = vst.msk [vmem:[#allocation2 + $0xe8] sm:$0xff] %vm828, %v2166
      %4872 = vst.msk [vmem:[#allocation2 + $0xf8] sm:$0xff] %vm828, %v2168
      %4873 = vst.msk [vmem:[#allocation2 + $0x108] sm:$0xff] %vm828, %v2171
      %4874 = vst.msk [vmem:[#allocation2 + $0x118] sm:$0xff] %vm828, %v2173
      %4875 = vst.msk [vmem:[#allocation2 + $0x128] sm:$0xff] %vm828, %v2176
      %4876 = vst.msk [vmem:[#allocation2 + $0x138] sm:$0xff] %vm828, %v2178
      %4877 = vst.msk [vmem:[#allocation2 + $0x148] sm:$0xff] %vm828, %v2181
      %4878 = vst.msk [vmem:[#allocation2 + $0x158] sm:$0xff] %vm828, %v2183
      %4879 = vst.msk [vmem:[#allocation2 + $0x168] sm:$0xff] %vm828, %v2186
      %4880 = vst.msk [vmem:[#allocation2 + $0x178] sm:$0xff] %vm828, %v2188
      %4881 = vst.msk [vmem:[#allocation2 + $0x188] sm:$0xff] %vm828, %v2191
      %4882 = vst.msk [vmem:[#allocation2 + $0x198] sm:$0xff] %vm828, %v2193
      %4883 = vst.msk [vmem:[#allocation2 + $0x1a8] sm:$0xff] %vm828, %v2196
      %4884 = vst.msk [vmem:[#allocation2 + $0x1b8] sm:$0xff] %vm828, %v2198
      %4885 = vst.msk [vmem:[#allocation2 + $0x1c8] sm:$0xff] %vm828, %v3509
      %4886 = vst.msk [vmem:[#allocation2 + $0x1d8] sm:$0xff] %vm828, %v3511
      %4887 = vst.msk [vmem:[#allocation2 + $0x1e8] sm:$0xff] %vm828, %v4822
      %4888 = vst.msk [vmem:[#allocation2 + $0x1f8] sm:$0xff] %vm828, %v4824
      %4889 = vst [vmem:[#allocation1] ss:$4 sm:$0xff] %v667
      %s4890 = scalar_lea.vmem [#allocation1], 1
      %4891 = vst [vmem:[%s4890] ss:$4 sm:$0xff] %v505
      %s4892 = scalar_lea.vmem [#allocation1], 2
      %4893 = vst [vmem:[%s4892] ss:$4 sm:$0xff] %v668
      %s4894 = scalar_lea.vmem [#allocation1], 3
      %4895 = vst [vmem:[%s4894] ss:$4 sm:$0xff] %v669
      %s4896 = scalar_lea.vmem [#allocation1], 32
      %4897 = vst [vmem:[%s4896] ss:$4 sm:$0xff] %v670
      %s4898 = scalar_lea.vmem [#allocation1], 33
      %4899 = vst [vmem:[%s4898] ss:$4 sm:$0xff] %v508
      %s4900 = scalar_lea.vmem [#allocation1], 34
      %4901 = vst [vmem:[%s4900] ss:$4 sm:$0xff] %v671
      %s4902 = scalar_lea.vmem [#allocation1], 35
      %4903 = vst [vmem:[%s4902] ss:$4 sm:$0xff] %v672
      %v4904 = vld.sshfl [vmem:[#allocation1] sm:$0xff pattern:$0x73625140]
      %v4905 = vld.sshfl [vmem:[#allocation1 + $0x20] sm:$0xff pattern:$0x73625140]
      %4906 = vst [vmem:[#allocation1] ss:$4 sm:$0xff] %v511
      %4907 = vst [vmem:[%s4890] ss:$4 sm:$0xff] %v674
      %4908 = vst [vmem:[%s4892] ss:$4 sm:$0xff] %v675
      %4909 = vst [vmem:[%s4894] ss:$4 sm:$0xff] %v676
      %4910 = vst [vmem:[%s4896] ss:$4 sm:$0xff] %v514
      %4911 = vst [vmem:[%s4898] ss:$4 sm:$0xff] %v677
      %4912 = vst [vmem:[%s4900] ss:$4 sm:$0xff] %v678
      %4913 = vst [vmem:[%s4902] ss:$4 sm:$0xff] %v679
      %v4914 = vld.sshfl [vmem:[#allocation1] sm:$0xff pattern:$0x73625140]
      %v4915 = vld.sshfl [vmem:[#allocation1 + $0x20] sm:$0xff pattern:$0x73625140]
      %4916 = vst [vmem:[#allocation1] ss:$4 sm:$0xff] %v680
      %4917 = vst [vmem:[%s4890] ss:$4 sm:$0xff] %v681
      %4918 = vst [vmem:[%s4892] ss:$4 sm:$0xff] %v682
      %4919 = vst [vmem:[%s4894] ss:$4 sm:$0xff] %v520
      %4920 = vst [vmem:[%s4896] ss:$4 sm:$0xff] %v683
      %4921 = vst [vmem:[%s4898] ss:$4 sm:$0xff] %v684
      %4922 = vst [vmem:[%s4900] ss:$4 sm:$0xff] %v685
      %4923 = vst [vmem:[%s4902] ss:$4 sm:$0xff] %v523
      %v4924 = vld.sshfl [vmem:[#allocation1] sm:$0xff pattern:$0x73625140]
      %v4925 = vld.sshfl [vmem:[#allocation1 + $0x20] sm:$0xff pattern:$0x73625140]
      %4926 = vst [vmem:[#allocation1] ss:$4 sm:$0xff] %v687
      %4927 = vst [vmem:[%s4890] ss:$4 sm:$0xff] %v688
      %4928 = vst [vmem:[%s4892] ss:$4 sm:$0xff] %v526
      %4929 = vst [vmem:[%s4894] ss:$4 sm:$0xff] %v689
      %4930 = vst [vmem:[%s4896] ss:$4 sm:$0xff] %v690
      %4931 = vst [vmem:[%s4898] ss:$4 sm:$0xff] %v691
      %4932 = vst [vmem:[%s4900] ss:$4 sm:$0xff] %v529
      %4933 = vst [vmem:[%s4902] ss:$4 sm:$0xff] %v692
      %v4934 = vld.sshfl [vmem:[#allocation1] sm:$0xff pattern:$0x73625140]
      %v4935 = vld.sshfl [vmem:[#allocation1 + $0x20] sm:$0xff pattern:$0x73625140]
      %4936 = vst [vmem:[#allocation1] ss:$4 sm:$0xff] %v694
      %4937 = vst [vmem:[%s4890] ss:$4 sm:$0xff] %v532
      %4938 = vst [vmem:[%s4892] ss:$4 sm:$0xff] %v695
      %4939 = vst [vmem:[%s4894] ss:$4 sm:$0xff] %v696
      %4940 = vst [vmem:[%s4896] ss:$4 sm:$0xff] %v697
      %4941 = vst [vmem:[%s4898] ss:$4 sm:$0xff] %v535
      %4942 = vst [vmem:[%s4900] ss:$4 sm:$0xff] %v698
      %4943 = vst [vmem:[%s4902] ss:$4 sm:$0xff] %v699
      %v4944 = vld.sshfl [vmem:[#allocation1] sm:$0xff pattern:$0x73625140]
      %v4945 = vld.sshfl [vmem:[#allocation1 + $0x20] sm:$0xff pattern:$0x73625140]
      %4946 = vst [vmem:[#allocation1] ss:$4 sm:$0xff] %v538
      %4947 = vst [vmem:[%s4890] ss:$4 sm:$0xff] %v701
      %4948 = vst [vmem:[%s4892] ss:$4 sm:$0xff] %v702
      %4949 = vst [vmem:[%s4894] ss:$4 sm:$0xff] %v703
      %4950 = vst [vmem:[%s4896] ss:$4 sm:$0xff] %v541
      %4951 = vst [vmem:[%s4898] ss:$4 sm:$0xff] %v704
      %4952 = vst [vmem:[%s4900] ss:$4 sm:$0xff] %v705
      %4953 = vst [vmem:[%s4902] ss:$4 sm:$0xff] %v706
      %v4954 = vld.sshfl [vmem:[#allocation1] sm:$0xff pattern:$0x73625140]
      %v4955 = vld.sshfl [vmem:[#allocation1 + $0x20] sm:$0xff pattern:$0x73625140]
      %4956 = vst [vmem:[#allocation1] ss:$4 sm:$0xff] %v707
      %4957 = vst [vmem:[%s4890] ss:$4 sm:$0xff] %v708
      %4958 = vst [vmem:[%s4892] ss:$4 sm:$0xff] %v709
      %4959 = vst [vmem:[%s4894] ss:$4 sm:$0xff] %v547
      %4960 = vst [vmem:[%s4896] ss:$4 sm:$0xff] %v710
      %4961 = vst [vmem:[%s4898] ss:$4 sm:$0xff] %v711
      %4962 = vst [vmem:[%s4900] ss:$4 sm:$0xff] %v712
      %4963 = vst [vmem:[%s4902] ss:$4 sm:$0xff] %v550
      %v4964 = vld.sshfl [vmem:[#allocation1] sm:$0xff pattern:$0x73625140]
      %v4965 = vld.sshfl [vmem:[#allocation1 + $0x20] sm:$0xff pattern:$0x73625140]
      %4966 = vst [vmem:[#allocation1] ss:$4 sm:$0xff] %v714
      %4967 = vst [vmem:[%s4890] ss:$4 sm:$0xff] %v715
      %4968 = vst [vmem:[%s4892] ss:$4 sm:$0xff] %v553
      %4969 = vst [vmem:[%s4894] ss:$4 sm:$0xff] %v716
      %4970 = vst [vmem:[%s4896] ss:$4 sm:$0xff] %v717
      %4971 = vst [vmem:[%s4898] ss:$4 sm:$0xff] %v718
      %4972 = vst [vmem:[%s4900] ss:$4 sm:$0xff] %v556
      %4973 = vst [vmem:[%s4902] ss:$4 sm:$0xff] %v719
      %v4974 = vld.sshfl [vmem:[#allocation1] sm:$0xff pattern:$0x73625140]
      %v4975 = vld.sshfl [vmem:[#allocation1 + $0x20] sm:$0xff pattern:$0x73625140]
      %4976 = vst [vmem:[#allocation1] ss:$4 sm:$0xff] %v721
      %4977 = vst [vmem:[%s4890] ss:$4 sm:$0xff] %v559
      %4978 = vst [vmem:[%s4892] ss:$4 sm:$0xff] %v722
      %4979 = vst [vmem:[%s4894] ss:$4 sm:$0xff] %v723
      %4980 = vst [vmem:[%s4896] ss:$4 sm:$0xff] %v724
      %4981 = vst [vmem:[%s4898] ss:$4 sm:$0xff] %v562
      %4982 = vst [vmem:[%s4900] ss:$4 sm:$0xff] %v725
      %4983 = vst [vmem:[%s4902] ss:$4 sm:$0xff] %v726
      %v4984 = vld.sshfl [vmem:[#allocation1] sm:$0xff pattern:$0x73625140]
      %v4985 = vld.sshfl [vmem:[#allocation1 + $0x20] sm:$0xff pattern:$0x73625140]
      %4986 = vst [vmem:[#allocation1] ss:$4 sm:$0xff] %v565
      %4987 = vst [vmem:[%s4890] ss:$4 sm:$0xff] %v728
      %4988 = vst [vmem:[%s4892] ss:$4 sm:$0xff] %v729
      %4989 = vst [vmem:[%s4894] ss:$4 sm:$0xff] %v730
      %4990 = vst [vmem:[%s4896] ss:$4 sm:$0xff] %v568
      %4991 = vst [vmem:[%s4898] ss:$4 sm:$0xff] %v731
      %4992 = vst [vmem:[%s4900] ss:$4 sm:$0xff] %v732
      %4993 = vst [vmem:[%s4902] ss:$4 sm:$0xff] %v733
      %v4994 = vld.sshfl [vmem:[#allocation1] sm:$0xff pattern:$0x73625140]
      %v4995 = vld.sshfl [vmem:[#allocation1 + $0x20] sm:$0xff pattern:$0x73625140]
      %4996 = vst [vmem:[#allocation1] ss:$4 sm:$0xff] %v734
      %4997 = vst [vmem:[%s4890] ss:$4 sm:$0xff] %v735
      %4998 = vst [vmem:[%s4892] ss:$4 sm:$0xff] %v736
      %4999 = vst [vmem:[%s4894] ss:$4 sm:$0xff] %v574
      %5000 = vst [vmem:[%s4896] ss:$4 sm:$0xff] %v737
      %5001 = vst [vmem:[%s4898] ss:$4 sm:$0xff] %v738
      %5002 = vst [vmem:[%s4900] ss:$4 sm:$0xff] %v739
      %5003 = vst [vmem:[%s4902] ss:$4 sm:$0xff] %v577
      %v5004 = vld.sshfl [vmem:[#allocation1] sm:$0xff pattern:$0x73625140]
      %v5005 = vld.sshfl [vmem:[#allocation1 + $0x20] sm:$0xff pattern:$0x73625140]
      %5006 = vst [vmem:[#allocation1] ss:$4 sm:$0xff] %v741
      %5007 = vst [vmem:[%s4890] ss:$4 sm:$0xff] %v742
      %5008 = vst [vmem:[%s4892] ss:$4 sm:$0xff] %v580
      %5009 = vst [vmem:[%s4894] ss:$4 sm:$0xff] %v743
      %5010 = vst [vmem:[%s4896] ss:$4 sm:$0xff] %v744
      %5011 = vst [vmem:[%s4898] ss:$4 sm:$0xff] %v745
      %5012 = vst [vmem:[%s4900] ss:$4 sm:$0xff] %v583
      %5013 = vst [vmem:[%s4902] ss:$4 sm:$0xff] %v746
      %v5014 = vld.sshfl [vmem:[#allocation1] sm:$0xff pattern:$0x73625140]
      %v5015 = vld.sshfl [vmem:[#allocation1 + $0x20] sm:$0xff pattern:$0x73625140]
      %5016 = vst [vmem:[#allocation1] ss:$4 sm:$0xff] %v748
      %5017 = vst [vmem:[%s4890] ss:$4 sm:$0xff] %v586
      %5018 = vst [vmem:[%s4892] ss:$4 sm:$0xff] %v749
      %5019 = vst [vmem:[%s4894] ss:$4 sm:$0xff] %v750
      %5020 = vst [vmem:[%s4896] ss:$4 sm:$0xff] %v751
      %5021 = vst [vmem:[%s4898] ss:$4 sm:$0xff] %v589
      %5022 = vst [vmem:[%s4900] ss:$4 sm:$0xff] %v752
      %5023 = vst [vmem:[%s4902] ss:$4 sm:$0xff] %v753
      %v5024 = vld.sshfl [vmem:[#allocation1] sm:$0xff pattern:$0x73625140]
      %v5025 = vld.sshfl [vmem:[#allocation1 + $0x20] sm:$0xff pattern:$0x73625140]
      %5026 = vst [vmem:[#allocation1] ss:$4 sm:$0xff] %v592
      %5027 = vst [vmem:[%s4890] ss:$4 sm:$0xff] %v755
      %5028 = vst [vmem:[%s4892] ss:$4 sm:$0xff] %v756
      %5029 = vst [vmem:[%s4894] ss:$4 sm:$0xff] %v757
      %5030 = vst [vmem:[%s4896] ss:$4 sm:$0xff] %v595
      %5031 = vst [vmem:[%s4898] ss:$4 sm:$0xff] %v758
      %5032 = vst [vmem:[%s4900] ss:$4 sm:$0xff] %v759
      %5033 = vst [vmem:[%s4902] ss:$4 sm:$0xff] %v760
      %v5034 = vld.sshfl [vmem:[#allocation1] sm:$0xff pattern:$0x73625140]
      %v5035 = vld.sshfl [vmem:[#allocation1 + $0x20] sm:$0xff pattern:$0x73625140]
      %5036 = vst [vmem:[#allocation1] ss:$4 sm:$0xff] %v761
      %5037 = vst [vmem:[%s4890] ss:$4 sm:$0xff] %v762
      %5038 = vst [vmem:[%s4892] ss:$4 sm:$0xff] %v763
      %5039 = vst [vmem:[%s4894] ss:$4 sm:$0xff] %v601
      %5040 = vst [vmem:[%s4896] ss:$4 sm:$0xff] %v764
      %5041 = vst [vmem:[%s4898] ss:$4 sm:$0xff] %v765
      %5042 = vst [vmem:[%s4900] ss:$4 sm:$0xff] %v766
      %5043 = vst [vmem:[%s4902] ss:$4 sm:$0xff] %v604
      %v5044 = vld.sshfl [vmem:[#allocation1] sm:$0xff pattern:$0x73625140]
      %v5045 = vld.sshfl [vmem:[#allocation1 + $0x20] sm:$0xff pattern:$0x73625140]
      %5046 = vst [vmem:[#allocation1] ss:$4 sm:$0xff] %v768
      %5047 = vst [vmem:[%s4890] ss:$4 sm:$0xff] %v769
      %5048 = vst [vmem:[%s4892] ss:$4 sm:$0xff] %v607
      %5049 = vst [vmem:[%s4894] ss:$4 sm:$0xff] %v770
      %5050 = vst [vmem:[%s4896] ss:$4 sm:$0xff] %v771
      %5051 = vst [vmem:[%s4898] ss:$4 sm:$0xff] %v772
      %5052 = vst [vmem:[%s4900] ss:$4 sm:$0xff] %v610
      %5053 = vst [vmem:[%s4902] ss:$4 sm:$0xff] %v773
      %v5054 = vld.sshfl [vmem:[#allocation1] sm:$0xff pattern:$0x73625140]
      %v5055 = vld.sshfl [vmem:[#allocation1 + $0x20] sm:$0xff pattern:$0x73625140]
      %5056 = vrot.lane.b32.xlu0 %v4904, 8
      %v5057 = vpop.permute.xlu0 %5056
      %5058 = vrot.lane.b32.xlu0 %v4905, 8
      %v5059 = vpop.permute.xlu0 %5058
      %5060 = vrot.lane.b32.xlu0 %v4914, 8
      %v5061 = vpop.permute.xlu0 %5060
      %5062 = vrot.lane.b32.xlu0 %v4915, 8
      %v5063 = vpop.permute.xlu0 %5062
      %5064 = vrot.lane.b32.xlu0 %v4924, 8
      %v5065 = vpop.permute.xlu0 %5064
      %5066 = vrot.lane.b32.xlu0 %v4925, 8
      %v5067 = vpop.permute.xlu0 %5066
      %5068 = vrot.lane.b32.xlu0 %v4934, 8
      %v5069 = vpop.permute.xlu0 %5068
      %5070 = vrot.lane.b32.xlu0 %v4935, 8
      %v5071 = vpop.permute.xlu0 %5070
      %5072 = vrot.lane.b32.xlu0 %v4944, 8
      %v5073 = vpop.permute.xlu0 %5072
      %5074 = vrot.lane.b32.xlu0 %v4945, 8
      %v5075 = vpop.permute.xlu0 %5074
      %5076 = vrot.lane.b32.xlu0 %v4954, 8
      %v5077 = vpop.permute.xlu0 %5076
      %5078 = vrot.lane.b32.xlu0 %v4955, 8
      %v5079 = vpop.permute.xlu0 %5078
      %5080 = vrot.lane.b32.xlu0 %v4964, 8
      %v5081 = vpop.permute.xlu0 %5080
      %5082 = vrot.lane.b32.xlu0 %v4965, 8
      %v5083 = vpop.permute.xlu0 %5082
      %5084 = vrot.lane.b32.xlu0 %v4974, 8
      %v5085 = vpop.permute.xlu0 %5084
      %5086 = vrot.lane.b32.xlu0 %v4975, 8
      %v5087 = vpop.permute.xlu0 %5086
      %5088 = vrot.lane.b32.xlu0 %v4984, 8
      %v5089 = vpop.permute.xlu0 %5088
      %5090 = vrot.lane.b32.xlu0 %v4985, 8
      %v5091 = vpop.permute.xlu0 %5090
      %5092 = vrot.lane.b32.xlu0 %v4994, 8
      %v5093 = vpop.permute.xlu0 %5092
      %5094 = vrot.lane.b32.xlu0 %v4995, 8
      %v5095 = vpop.permute.xlu0 %5094
      %5096 = vrot.lane.b32.xlu0 %v5004, 8
      %v5097 = vpop.permute.xlu0 %5096
      %5098 = vrot.lane.b32.xlu0 %v5005, 8
      %v5099 = vpop.permute.xlu0 %5098
      %5100 = vrot.lane.b32.xlu0 %v5014, 8
      %v5101 = vpop.permute.xlu0 %5100
      %5102 = vrot.lane.b32.xlu0 %v5015, 8
      %v5103 = vpop.permute.xlu0 %5102
      %5104 = vrot.lane.b32.xlu0 %v5024, 8
      %v5105 = vpop.permute.xlu0 %5104
      %5106 = vrot.lane.b32.xlu0 %v5025, 8
      %v5107 = vpop.permute.xlu0 %5106
      %5108 = vrot.lane.b32.xlu0 %v5034, 8
      %v5109 = vpop.permute.xlu0 %5108
      %5110 = vrot.lane.b32.xlu0 %v5035, 8
      %v5111 = vpop.permute.xlu0 %5110
      %5112 = vrot.lane.b32.xlu0 %v5044, 8
      %v5113 = vpop.permute.xlu0 %5112
      %5114 = vrot.lane.b32.xlu0 %v5045, 8
      %v5115 = vpop.permute.xlu0 %5114
      %5116 = vrot.lane.b32.xlu0 %v5054, 8
      %v5117 = vpop.permute.xlu0 %5116
      %5118 = vrot.lane.b32.xlu0 %v5055, 8
      %v5119 = vpop.permute.xlu0 %5118
      %5152 = vst.msk [vmem:[#allocation2 + $0x8] sm:$0xff] %vm1124, %v5057
      %5153 = vst.msk [vmem:[#allocation2 + $0x18] sm:$0xff] %vm1124, %v5059
      %5154 = vst.msk [vmem:[#allocation2 + $0x28] sm:$0xff] %vm1124, %v5061
      %5155 = vst.msk [vmem:[#allocation2 + $0x38] sm:$0xff] %vm1124, %v5063
      %5156 = vst.msk [vmem:[#allocation2 + $0x48] sm:$0xff] %vm1124, %v5065
      %5157 = vst.msk [vmem:[#allocation2 + $0x58] sm:$0xff] %vm1124, %v5067
      %5158 = vst.msk [vmem:[#allocation2 + $0x68] sm:$0xff] %vm1124, %v5069
      %5159 = vst.msk [vmem:[#allocation2 + $0x78] sm:$0xff] %vm1124, %v5071
      %5160 = vst.msk [vmem:[#allocation2 + $0x88] sm:$0xff] %vm1124, %v5073
      %5161 = vst.msk [vmem:[#allocation2 + $0x98] sm:$0xff] %vm1124, %v5075
      %5162 = vst.msk [vmem:[#allocation2 + $0xa8] sm:$0xff] %vm1124, %v5077
      %5163 = vst.msk [vmem:[#allocation2 + $0xb8] sm:$0xff] %vm1124, %v5079
      %5164 = vst.msk [vmem:[#allocation2 + $0xc8] sm:$0xff] %vm1124, %v5081
      %5165 = vst.msk [vmem:[#allocation2 + $0xd8] sm:$0xff] %vm1124, %v5083
      %5166 = vst.msk [vmem:[#allocation2 + $0xe8] sm:$0xff] %vm1124, %v5085
      %5167 = vst.msk [vmem:[#allocation2 + $0xf8] sm:$0xff] %vm1124, %v5087
      %5168 = vst.msk [vmem:[#allocation2 + $0x108] sm:$0xff] %vm1124, %v5089
      %5169 = vst.msk [vmem:[#allocation2 + $0x118] sm:$0xff] %vm1124, %v5091
      %5170 = vst.msk [vmem:[#allocation2 + $0x128] sm:$0xff] %vm1124, %v5093
      %5171 = vst.msk [vmem:[#allocation2 + $0x138] sm:$0xff] %vm1124, %v5095
      %5172 = vst.msk [vmem:[#allocation2 + $0x148] sm:$0xff] %vm1124, %v5097
      %5173 = vst.msk [vmem:[#allocation2 + $0x158] sm:$0xff] %vm1124, %v5099
      %5174 = vst.msk [vmem:[#allocation2 + $0x168] sm:$0xff] %vm1124, %v5101
      %5175 = vst.msk [vmem:[#allocation2 + $0x178] sm:$0xff] %vm1124, %v5103
      %5176 = vst.msk [vmem:[#allocation2 + $0x188] sm:$0xff] %vm1124, %v5105
      %5177 = vst.msk [vmem:[#allocation2 + $0x198] sm:$0xff] %vm1124, %v5107
      %5178 = vst.msk [vmem:[#allocation2 + $0x1a8] sm:$0xff] %vm1124, %v5109
      %5179 = vst.msk [vmem:[#allocation2 + $0x1b8] sm:$0xff] %vm1124, %v5111
      %5180 = vst.msk [vmem:[#allocation2 + $0x1c8] sm:$0xff] %vm1124, %v5113
      %5181 = vst.msk [vmem:[#allocation2 + $0x1d8] sm:$0xff] %vm1124, %v5115
      %5182 = vst.msk [vmem:[#allocation2 + $0x1e8] sm:$0xff] %vm1124, %v5117
      %5183 = vst.msk [vmem:[#allocation2 + $0x1f8] sm:$0xff] %vm1124, %v5119
      %v5184 = vld [vmem:[#allocation2] sm:$0xff]
      %v5185 = vld [vmem:[#allocation2 + $0x8] sm:$0xff]
      %v5186 = vld [vmem:[#allocation2 + $0x10] sm:$0xff]
      %v5187 = vld [vmem:[#allocation2 + $0x18] sm:$0xff]
      %v5188 = vld [vmem:[#allocation2 + $0x20] sm:$0xff]
      %v5189 = vld [vmem:[#allocation2 + $0x28] sm:$0xff]
      %v5190 = vld [vmem:[#allocation2 + $0x30] sm:$0xff]
      %v5191 = vld [vmem:[#allocation2 + $0x38] sm:$0xff]
      %v5192 = vld [vmem:[#allocation2 + $0x40] sm:$0xff]
      %v5193 = vld [vmem:[#allocation2 + $0x48] sm:$0xff]
      %v5194 = vld [vmem:[#allocation2 + $0x50] sm:$0xff]
      %v5195 = vld [vmem:[#allocation2 + $0x58] sm:$0xff]
      %v5196 = vld [vmem:[#allocation2 + $0x60] sm:$0xff]
      %v5197 = vld [vmem:[#allocation2 + $0x68] sm:$0xff]
      %v5198 = vld [vmem:[#allocation2 + $0x70] sm:$0xff]
      %v5199 = vld [vmem:[#allocation2 + $0x78] sm:$0xff]
      %v5200 = vld [vmem:[#allocation2 + $0x80] sm:$0xff]
      %v5201 = vld [vmem:[#allocation2 + $0x88] sm:$0xff]
      %v5202 = vld [vmem:[#allocation2 + $0x90] sm:$0xff]
      %v5203 = vld [vmem:[#allocation2 + $0x98] sm:$0xff]
      %v5204 = vld [vmem:[#allocation2 + $0xa0] sm:$0xff]
      %v5205 = vld [vmem:[#allocation2 + $0xa8] sm:$0xff]
      %v5206 = vld [vmem:[#allocation2 + $0xb0] sm:$0xff]
      %v5207 = vld [vmem:[#allocation2 + $0xb8] sm:$0xff]
      %v5208 = vld [vmem:[#allocation2 + $0xc0] sm:$0xff]
      %v5209 = vld [vmem:[#allocation2 + $0xc8] sm:$0xff]
      %v5210 = vld [vmem:[#allocation2 + $0xd0] sm:$0xff]
      %v5211 = vld [vmem:[#allocation2 + $0xd8] sm:$0xff]
      %v5212 = vld [vmem:[#allocation2 + $0xe0] sm:$0xff]
      %v5213 = vld [vmem:[#allocation2 + $0xe8] sm:$0xff]
      %v5214 = vld [vmem:[#allocation2 + $0xf0] sm:$0xff]
      %v5215 = vld [vmem:[#allocation2 + $0xf8] sm:$0xff]
      %v5216 = vld [vmem:[#allocation2 + $0x100] sm:$0xff]
      %v5217 = vld [vmem:[#allocation2 + $0x108] sm:$0xff]
      %v5218 = vld [vmem:[#allocation2 + $0x110] sm:$0xff]
      %v5219 = vld [vmem:[#allocation2 + $0x118] sm:$0xff]
      %v5220 = vld [vmem:[#allocation2 + $0x120] sm:$0xff]
      %v5221 = vld [vmem:[#allocation2 + $0x128] sm:$0xff]
      %v5222 = vld [vmem:[#allocation2 + $0x130] sm:$0xff]
      %v5223 = vld [vmem:[#allocation2 + $0x138] sm:$0xff]
      %v5224 = vld [vmem:[#allocation2 + $0x140] sm:$0xff]
      %v5225 = vld [vmem:[#allocation2 + $0x148] sm:$0xff]
      %v5226 = vld [vmem:[#allocation2 + $0x150] sm:$0xff]
      %v5227 = vld [vmem:[#allocation2 + $0x158] sm:$0xff]
      %v5228 = vld [vmem:[#allocation2 + $0x160] sm:$0xff]
      %v5229 = vld [vmem:[#allocation2 + $0x168] sm:$0xff]
      %v5230 = vld [vmem:[#allocation2 + $0x170] sm:$0xff]
      %v5231 = vld [vmem:[#allocation2 + $0x178] sm:$0xff]
      %v5232 = vld [vmem:[#allocation2 + $0x180] sm:$0xff]
      %v5233 = vld [vmem:[#allocation2 + $0x188] sm:$0xff]
      %v5234 = vld [vmem:[#allocation2 + $0x190] sm:$0xff]
      %v5235 = vld [vmem:[#allocation2 + $0x198] sm:$0xff]
      %v5236 = vld [vmem:[#allocation2 + $0x1a0] sm:$0xff]
      %v5237 = vld [vmem:[#allocation2 + $0x1a8] sm:$0xff]
      %v5238 = vld [vmem:[#allocation2 + $0x1b0] sm:$0xff]
      %v5239 = vld [vmem:[#allocation2 + $0x1b8] sm:$0xff]
      %v5240 = vld [vmem:[#allocation2 + $0x1c0] sm:$0xff]
      %v5241 = vld [vmem:[#allocation2 + $0x1c8] sm:$0xff]
      %v5242 = vld [vmem:[#allocation2 + $0x1d0] sm:$0xff]
      %v5243 = vld [vmem:[#allocation2 + $0x1d8] sm:$0xff]
      %v5244 = vld [vmem:[#allocation2 + $0x1e0] sm:$0xff]
      %v5245 = vld [vmem:[#allocation2 + $0x1e8] sm:$0xff]
      %v5246 = vld [vmem:[#allocation2 + $0x1f0] sm:$0xff]
      %v5247 = vld [vmem:[#allocation2 + $0x1f8] sm:$0xff]
      %v5248 = vld [vmem:[%s3] sm:$0xff]
      %v5249 = vld [vmem:[%s3 + $0x8] sm:$0xff]
      %v5250 = vld [vmem:[%s3 + $0x10] sm:$0xff]
      %v5251 = vld [vmem:[%s3 + $0x18] sm:$0xff]
      %v5252 = vld [vmem:[%s3 + $0x20] sm:$0xff]
      %v5253 = vld [vmem:[%s3 + $0x28] sm:$0xff]
      %v5254 = vld [vmem:[%s3 + $0x30] sm:$0xff]
      %v5255 = vld [vmem:[%s3 + $0x38] sm:$0xff]
      %v5256 = vld [vmem:[%s3 + $0x40] sm:$0xff]
      %v5257 = vld [vmem:[%s3 + $0x48] sm:$0xff]
      %v5258 = vld [vmem:[%s3 + $0x50] sm:$0xff]
      %v5259 = vld [vmem:[%s3 + $0x58] sm:$0xff]
      %v5260 = vld [vmem:[%s3 + $0x60] sm:$0xff]
      %v5261 = vld [vmem:[%s3 + $0x68] sm:$0xff]
      %v5262 = vld [vmem:[%s3 + $0x70] sm:$0xff]
      %v5263 = vld [vmem:[%s3 + $0x78] sm:$0xff]
      %v5264 = vld [vmem:[%s3 + $0x80] sm:$0xff]
      %v5265 = vld [vmem:[%s3 + $0x88] sm:$0xff]
      %v5266 = vld [vmem:[%s4] sm:$0x1]
      %v5268 = vperm.slane %v5266, 0
      %vm5270 = vcmask 130048
      %v5272 = vsel %vm5270, %v5185, 0
      %v5275 = vsel %vm5270, %v5187, 0
      %v5278 = vsel %vm5270, %v5189, 0
      %v5281 = vsel %vm5270, %v5191, 0
      %v5284 = vsel %vm5270, %v5193, 0
      %v5287 = vsel %vm5270, %v5195, 0
      %v5290 = vsel %vm5270, %v5197, 0
      %v5293 = vsel %vm5270, %v5199, 0
      %v5296 = vsel %vm5270, %v5201, 0
      %v5299 = vsel %vm5270, %v5203, 0
      %v5302 = vsel %vm5270, %v5205, 0
      %v5305 = vsel %vm5270, %v5207, 0
      %v5308 = vsel %vm5270, %v5209, 0
      %v5311 = vsel %vm5270, %v5211, 0
      %v5314 = vsel %vm5270, %v5213, 0
      %v5317 = vsel %vm5270, %v5215, 0
      %v5320 = vsel %vm5270, %v5217, 0
      %v5323 = vsel %vm5270, %v5219, 0
      %v5326 = vsel %vm5270, %v5221, 0
      %v5329 = vsel %vm5270, %v5223, 0
      %v5332 = vsel %vm5270, %v5225, 0
      %v5335 = vsel %vm5270, %v5227, 0
      %v5338 = vsel %vm5270, %v5229, 0
      %v5341 = vsel %vm5270, %v5231, 0
      %v5344 = vsel %vm5270, %v5233, 0
      %v5347 = vsel %vm5270, %v5235, 0
      %v5350 = vsel %vm5270, %v5237, 0
      %v5353 = vsel %vm5270, %v5239, 0
      %v5356 = vsel %vm5270, %v5241, 0
      %v5359 = vsel %vm5270, %v5243, 0
      %v5362 = vsel %vm5270, %v5245, 0
      %v5365 = vsel %vm5270, %v5247, 0
      %5367 = vmatpush.msra.mxu0 %v5263
      %5368 = vmatpush.msra.mxu0 %v5262
      %5369 = vmatpush.msra.mxu0 %v5261
      %5370 = vmatpush.msra.mxu0 %v5260
      %5371 = vmatpush.msra.mxu0 %v5259
      %5372 = vmatpush.msra.mxu0 %v5258
      %5373 = vmatpush.msra.mxu0 %v5257
      %5374 = vmatpush.msra.mxu0 %v5256
      %5375 = vmatpush.msra.mxu0 %v5255
      %5376 = vmatpush.msra.mxu0 %v5254
      %5377 = vmatpush.msra.mxu0 %v5253
      %5378 = vmatpush.msra.mxu0 %v5252
      %5379 = vmatpush.msra.mxu0 %v5251
      %5380 = vmatpush.msra.mxu0 %v5250
      %5381 = vmatpush.msra.mxu0 %v5249
      %5382 = vmatpush.msra.mxu0 %v5248
      %5383 = vmatmul.f32.gmra.mxu0 %v5184
      %v5384 = vpop.f32.mrf.mxu0
      %v5385 = vadd.f32 %v5268, %v5384
      %5386 = vmatmul.f32.gmra.mxu0 %v5186
      %v5387 = vpop.f32.mrf.mxu0
      %v5388 = vadd.f32 %v5268, %v5387
      %5389 = vmatmul.f32.gmra.mxu0 %v5188
      %v5390 = vpop.f32.mrf.mxu0
      %v5391 = vadd.f32 %v5268, %v5390
      %5392 = vmatmul.f32.gmra.mxu0 %v5190
      %v5393 = vpop.f32.mrf.mxu0
      %v5394 = vadd.f32 %v5268, %v5393
      %5395 = vmatmul.f32.gmra.mxu0 %v5192
      %v5396 = vpop.f32.mrf.mxu0
      %v5397 = vadd.f32 %v5268, %v5396
      %5398 = vmatmul.f32.gmra.mxu0 %v5194
      %v5399 = vpop.f32.mrf.mxu0
      %v5400 = vadd.f32 %v5268, %v5399
      %5401 = vmatmul.f32.gmra.mxu0 %v5196
      %v5402 = vpop.f32.mrf.mxu0
      %v5403 = vadd.f32 %v5268, %v5402
      %5404 = vmatmul.f32.gmra.mxu0 %v5198
      %v5405 = vpop.f32.mrf.mxu0
      %v5406 = vadd.f32 %v5268, %v5405
      %5407 = vmatmul.f32.gmra.mxu0 %v5200
      %v5408 = vpop.f32.mrf.mxu0
      %v5409 = vadd.f32 %v5268, %v5408
      %5410 = vmatmul.f32.gmra.mxu0 %v5202
      %v5411 = vpop.f32.mrf.mxu0
      %v5412 = vadd.f32 %v5268, %v5411
      %5413 = vmatmul.f32.gmra.mxu0 %v5204
      %v5414 = vpop.f32.mrf.mxu0
      %v5415 = vadd.f32 %v5268, %v5414
      %5416 = vmatmul.f32.gmra.mxu0 %v5206
      %v5417 = vpop.f32.mrf.mxu0
      %v5418 = vadd.f32 %v5268, %v5417
      %5419 = vmatmul.f32.gmra.mxu0 %v5208
      %v5420 = vpop.f32.mrf.mxu0
      %v5421 = vadd.f32 %v5268, %v5420
      %5422 = vmatmul.f32.gmra.mxu0 %v5210
      %v5423 = vpop.f32.mrf.mxu0
      %v5424 = vadd.f32 %v5268, %v5423
      %5425 = vmatmul.f32.gmra.mxu0 %v5212
      %v5426 = vpop.f32.mrf.mxu0
      %v5427 = vadd.f32 %v5268, %v5426
      %5428 = vmatmul.f32.gmra.mxu0 %v5214
      %v5429 = vpop.f32.mrf.mxu0
      %v5430 = vadd.f32 %v5268, %v5429
      %5431 = vmatmul.f32.gmra.mxu0 %v5216
      %v5432 = vpop.f32.mrf.mxu0
      %v5433 = vadd.f32 %v5268, %v5432
      %5434 = vmatmul.f32.gmra.mxu0 %v5218
      %v5435 = vpop.f32.mrf.mxu0
      %v5436 = vadd.f32 %v5268, %v5435
      %5437 = vmatmul.f32.gmra.mxu0 %v5220
      %v5438 = vpop.f32.mrf.mxu0
      %v5439 = vadd.f32 %v5268, %v5438
      %5440 = vmatmul.f32.gmra.mxu0 %v5222
      %v5441 = vpop.f32.mrf.mxu0
      %v5442 = vadd.f32 %v5268, %v5441
      %5443 = vmatmul.f32.gmra.mxu0 %v5224
      %v5444 = vpop.f32.mrf.mxu0
      %v5445 = vadd.f32 %v5268, %v5444
      %5446 = vmatmul.f32.gmra.mxu0 %v5226
      %v5447 = vpop.f32.mrf.mxu0
      %v5448 = vadd.f32 %v5268, %v5447
      %5449 = vmatmul.f32.gmra.mxu0 %v5228
      %v5450 = vpop.f32.mrf.mxu0
      %v5451 = vadd.f32 %v5268, %v5450
      %5452 = vmatmul.f32.gmra.mxu0 %v5230
      %v5453 = vpop.f32.mrf.mxu0
      %v5454 = vadd.f32 %v5268, %v5453
      %5455 = vmatmul.f32.gmra.mxu0 %v5232
      %v5456 = vpop.f32.mrf.mxu0
      %v5457 = vadd.f32 %v5268, %v5456
      %5458 = vmatmul.f32.gmra.mxu0 %v5234
      %v5459 = vpop.f32.mrf.mxu0
      %v5460 = vadd.f32 %v5268, %v5459
      %5461 = vmatmul.f32.gmra.mxu0 %v5236
      %v5462 = vpop.f32.mrf.mxu0
      %v5463 = vadd.f32 %v5268, %v5462
      %5464 = vmatmul.f32.gmra.mxu0 %v5238
      %v5465 = vpop.f32.mrf.mxu0
      %v5466 = vadd.f32 %v5268, %v5465
      %5467 = vmatmul.f32.gmra.mxu0 %v5240
      %v5468 = vpop.f32.mrf.mxu0
      %v5469 = vadd.f32 %v5268, %v5468
      %5470 = vmatmul.f32.gmra.mxu0 %v5242
      %v5471 = vpop.f32.mrf.mxu0
      %v5472 = vadd.f32 %v5268, %v5471
      %5473 = vmatmul.f32.gmra.mxu0 %v5244
      %v5474 = vpop.f32.mrf.mxu0
      %v5475 = vadd.f32 %v5268, %v5474
      %5476 = vmatmul.f32.gmra.mxu0 %v5246
      %v5477 = vpop.f32.mrf.mxu0
      %v5478 = vadd.f32 %v5268, %v5477
      %5479 = vdwg.mxu0
      %5480 = vmatpush.msra.mxu0 0.0
      %5481 = vmatpush.msra.mxu0 0.0
      %5482 = vmatpush.msra.mxu0 0.0
      %5483 = vmatpush.msra.mxu0 0.0
      %5484 = vmatpush.msra.mxu0 0.0
      %5485 = vmatpush.msra.mxu0 0.0
      %5486 = vmatpush.msra.mxu0 0.0
      %5487 = vmatpush.msra.mxu0 0.0
      %5488 = vmatpush.msra.mxu0 0.0
      %5489 = vmatpush.msra.mxu0 0.0
      %5490 = vmatpush.msra.mxu0 0.0
      %5491 = vmatpush.msra.mxu0 0.0
      %5492 = vmatpush.msra.mxu0 0.0
      %5493 = vmatpush.msra.mxu0 0.0
      %5494 = vmatpush.msra.mxu0 %v5265
      %5495 = vmatpush.msra.mxu0 %v5264
      %5496 = vmatmul.f32.gmra.mxu0 %v5272
      %v5497 = vpop.f32.mrf.mxu0
      %v5498 = vadd.f32 %v5385, %v5497
      %5499 = vmatmul.f32.gmra.mxu0 %v5275
      %v5500 = vpop.f32.mrf.mxu0
      %v5501 = vadd.f32 %v5388, %v5500
      %5502 = vmatmul.f32.gmra.mxu0 %v5278
      %v5503 = vpop.f32.mrf.mxu0
      %v5504 = vadd.f32 %v5391, %v5503
      %5505 = vmatmul.f32.gmra.mxu0 %v5281
      %v5506 = vpop.f32.mrf.mxu0
      %v5507 = vadd.f32 %v5394, %v5506
      %5508 = vmatmul.f32.gmra.mxu0 %v5284
      %v5509 = vpop.f32.mrf.mxu0
      %v5510 = vadd.f32 %v5397, %v5509
      %5511 = vmatmul.f32.gmra.mxu0 %v5287
      %v5512 = vpop.f32.mrf.mxu0
      %v5513 = vadd.f32 %v5400, %v5512
      %5514 = vmatmul.f32.gmra.mxu0 %v5290
      %v5515 = vpop.f32.mrf.mxu0
      %v5516 = vadd.f32 %v5403, %v5515
      %5517 = vmatmul.f32.gmra.mxu0 %v5293
      %v5518 = vpop.f32.mrf.mxu0
      %v5519 = vadd.f32 %v5406, %v5518
      %5520 = vmatmul.f32.gmra.mxu0 %v5296
      %v5521 = vpop.f32.mrf.mxu0
      %v5522 = vadd.f32 %v5409, %v5521
      %5523 = vmatmul.f32.gmra.mxu0 %v5299
      %v5524 = vpop.f32.mrf.mxu0
      %v5525 = vadd.f32 %v5412, %v5524
      %5526 = vmatmul.f32.gmra.mxu0 %v5302
      %v5527 = vpop.f32.mrf.mxu0
      %v5528 = vadd.f32 %v5415, %v5527
      %5529 = vmatmul.f32.gmra.mxu0 %v5305
      %v5530 = vpop.f32.mrf.mxu0
      %v5531 = vadd.f32 %v5418, %v5530
      %5532 = vmatmul.f32.gmra.mxu0 %v5308
      %v5533 = vpop.f32.mrf.mxu0
      %v5534 = vadd.f32 %v5421, %v5533
      %5535 = vmatmul.f32.gmra.mxu0 %v5311
      %v5536 = vpop.f32.mrf.mxu0
      %v5537 = vadd.f32 %v5424, %v5536
      %5538 = vmatmul.f32.gmra.mxu0 %v5314
      %v5539 = vpop.f32.mrf.mxu0
      %v5540 = vadd.f32 %v5427, %v5539
      %5541 = vmatmul.f32.gmra.mxu0 %v5317
      %v5542 = vpop.f32.mrf.mxu0
      %v5543 = vadd.f32 %v5430, %v5542
      %5544 = vmatmul.f32.gmra.mxu0 %v5320
      %v5545 = vpop.f32.mrf.mxu0
      %v5546 = vadd.f32 %v5433, %v5545
      %5547 = vmatmul.f32.gmra.mxu0 %v5323
      %v5548 = vpop.f32.mrf.mxu0
      %v5549 = vadd.f32 %v5436, %v5548
      %5550 = vmatmul.f32.gmra.mxu0 %v5326
      %v5551 = vpop.f32.mrf.mxu0
      %v5552 = vadd.f32 %v5439, %v5551
      %5553 = vmatmul.f32.gmra.mxu0 %v5329
      %v5554 = vpop.f32.mrf.mxu0
      %v5555 = vadd.f32 %v5442, %v5554
      %5556 = vmatmul.f32.gmra.mxu0 %v5332
      %v5557 = vpop.f32.mrf.mxu0
      %v5558 = vadd.f32 %v5445, %v5557
      %5559 = vmatmul.f32.gmra.mxu0 %v5335
      %v5560 = vpop.f32.mrf.mxu0
      %v5561 = vadd.f32 %v5448, %v5560
      %5562 = vmatmul.f32.gmra.mxu0 %v5338
      %v5563 = vpop.f32.mrf.mxu0
      %v5564 = vadd.f32 %v5451, %v5563
      %5565 = vmatmul.f32.gmra.mxu0 %v5341
      %v5566 = vpop.f32.mrf.mxu0
      %v5567 = vadd.f32 %v5454, %v5566
      %5568 = vmatmul.f32.gmra.mxu0 %v5344
      %v5569 = vpop.f32.mrf.mxu0
      %v5570 = vadd.f32 %v5457, %v5569
      %5571 = vmatmul.f32.gmra.mxu0 %v5347
      %v5572 = vpop.f32.mrf.mxu0
      %v5573 = vadd.f32 %v5460, %v5572
      %5574 = vmatmul.f32.gmra.mxu0 %v5350
      %v5575 = vpop.f32.mrf.mxu0
      %v5576 = vadd.f32 %v5463, %v5575
      %5577 = vmatmul.f32.gmra.mxu0 %v5353
      %v5578 = vpop.f32.mrf.mxu0
      %v5579 = vadd.f32 %v5466, %v5578
      %5580 = vmatmul.f32.gmra.mxu0 %v5356
      %v5581 = vpop.f32.mrf.mxu0
      %v5582 = vadd.f32 %v5469, %v5581
      %5583 = vmatmul.f32.gmra.mxu0 %v5359
      %v5584 = vpop.f32.mrf.mxu0
      %v5585 = vadd.f32 %v5472, %v5584
      %5586 = vmatmul.f32.gmra.mxu0 %v5362
      %v5587 = vpop.f32.mrf.mxu0
      %v5588 = vadd.f32 %v5475, %v5587
      %5589 = vmatmul.f32.gmra.mxu0 %v5365
      %v5590 = vpop.f32.mrf.mxu0
      %v5591 = vadd.f32 %v5478, %v5590
      %5592 = vdwg.mxu0
      %v5593 = vmul.f32 %v5498, 0.5
      %v5594 = vmul.f32 %v5501, 0.5
      %v5595 = vmul.f32 %v5504, 0.5
      %v5596 = vmul.f32 %v5507, 0.5
      %v5597 = vmul.f32 %v5510, 0.5
      %v5598 = vmul.f32 %v5513, 0.5
      %v5599 = vmul.f32 %v5516, 0.5
      %v5600 = vmul.f32 %v5519, 0.5
      %v5601 = vmul.f32 %v5522, 0.5
      %v5602 = vmul.f32 %v5525, 0.5
      %v5603 = vmul.f32 %v5528, 0.5
      %v5604 = vmul.f32 %v5531, 0.5
      %v5605 = vmul.f32 %v5534, 0.5
      %v5606 = vmul.f32 %v5537, 0.5
      %v5607 = vmul.f32 %v5540, 0.5
      %v5608 = vmul.f32 %v5543, 0.5
      %v5609 = vmul.f32 %v5546, 0.5
      %v5610 = vmul.f32 %v5549, 0.5
      %v5611 = vmul.f32 %v5552, 0.5
      %v5612 = vmul.f32 %v5555, 0.5
      %v5613 = vmul.f32 %v5558, 0.5
      %v5614 = vmul.f32 %v5561, 0.5
      %v5615 = vmul.f32 %v5564, 0.5
      %v5616 = vmul.f32 %v5567, 0.5
      %v5617 = vmul.f32 %v5570, 0.5
      %v5618 = vmul.f32 %v5573, 0.5
      %v5619 = vmul.f32 %v5576, 0.5
      %v5620 = vmul.f32 %v5579, 0.5
      %v5621 = vmul.f32 %v5582, 0.5
      %v5622 = vmul.f32 %v5585, 0.5
      %v5623 = vmul.f32 %v5588, 0.5
      %v5624 = vmul.f32 %v5591, 0.5
      %v5625 = vmul.f32 %v5498, 0.70710677
      %v5626 = vmul.f32 %v5501, 0.70710677
      %v5627 = vmul.f32 %v5504, 0.70710677
      %v5628 = vmul.f32 %v5507, 0.70710677
      %v5629 = vmul.f32 %v5510, 0.70710677
      %v5630 = vmul.f32 %v5513, 0.70710677
      %v5631 = vmul.f32 %v5516, 0.70710677
      %v5632 = vmul.f32 %v5519, 0.70710677
      %v5633 = vmul.f32 %v5522, 0.70710677
      %v5634 = vmul.f32 %v5525, 0.70710677
      %v5635 = vmul.f32 %v5528, 0.70710677
      %v5636 = vmul.f32 %v5531, 0.70710677
      %v5637 = vmul.f32 %v5534, 0.70710677
      %v5638 = vmul.f32 %v5537, 0.70710677
      %v5639 = vmul.f32 %v5540, 0.70710677
      %v5640 = vmul.f32 %v5543, 0.70710677
      %v5641 = vmul.f32 %v5546, 0.70710677
      %v5642 = vmul.f32 %v5549, 0.70710677
      %v5643 = vmul.f32 %v5552, 0.70710677
      %v5644 = vmul.f32 %v5555, 0.70710677
      %v5645 = vmul.f32 %v5558, 0.70710677
      %v5646 = vmul.f32 %v5561, 0.70710677
      %v5647 = vmul.f32 %v5564, 0.70710677
      %v5648 = vmul.f32 %v5567, 0.70710677
      %v5649 = vmul.f32 %v5570, 0.70710677
      %v5650 = vmul.f32 %v5573, 0.70710677
      %v5651 = vmul.f32 %v5576, 0.70710677
      %v5652 = vmul.f32 %v5579, 0.70710677
      %v5653 = vmul.f32 %v5582, 0.70710677
      %v5654 = vmul.f32 %v5585, 0.70710677
      %v5655 = vmul.f32 %v5588, 0.70710677
      %v5656 = vmul.f32 %v5591, 0.70710677
      %v5657 = vand.u32 2147483647, %v5625
      %v5658 = vand.u32 2147483647, %v5626
      %v5659 = vand.u32 2147483647, %v5627
      %v5660 = vand.u32 2147483647, %v5628
      %v5661 = vand.u32 2147483647, %v5629
      %v5662 = vand.u32 2147483647, %v5630
      %v5663 = vand.u32 2147483647, %v5631
      %v5664 = vand.u32 2147483647, %v5632
      %v5665 = vand.u32 2147483647, %v5633
      %v5666 = vand.u32 2147483647, %v5634
      %v5667 = vand.u32 2147483647, %v5635
      %v5668 = vand.u32 2147483647, %v5636
      %v5669 = vand.u32 2147483647, %v5637
      %v5670 = vand.u32 2147483647, %v5638
      %v5671 = vand.u32 2147483647, %v5639
      %v5672 = vand.u32 2147483647, %v5640
      %v5673 = vand.u32 2147483647, %v5641
      %v5674 = vand.u32 2147483647, %v5642
      %v5675 = vand.u32 2147483647, %v5643
      %v5676 = vand.u32 2147483647, %v5644
      %v5677 = vand.u32 2147483647, %v5645
      %v5678 = vand.u32 2147483647, %v5646
      %v5679 = vand.u32 2147483647, %v5647
      %v5680 = vand.u32 2147483647, %v5648
      %v5681 = vand.u32 2147483647, %v5649
      %v5682 = vand.u32 2147483647, %v5650
      %v5683 = vand.u32 2147483647, %v5651
      %v5684 = vand.u32 2147483647, %v5652
      %v5685 = vand.u32 2147483647, %v5653
      %v5686 = vand.u32 2147483647, %v5654
      %v5687 = vand.u32 2147483647, %v5655
      %v5688 = vand.u32 2147483647, %v5656
      %v5689 = vmul.f32 %v5657, 0.3275911
      %v5690 = vmul.f32 %v5658, 0.3275911
      %v5691 = vmul.f32 %v5659, 0.3275911
      %v5692 = vmul.f32 %v5660, 0.3275911
      %v5693 = vmul.f32 %v5661, 0.3275911
      %v5694 = vmul.f32 %v5662, 0.3275911
      %v5695 = vmul.f32 %v5663, 0.3275911
      %v5696 = vmul.f32 %v5664, 0.3275911
      %v5697 = vmul.f32 %v5665, 0.3275911
      %v5698 = vmul.f32 %v5666, 0.3275911
      %v5699 = vmul.f32 %v5667, 0.3275911
      %v5700 = vmul.f32 %v5668, 0.3275911
      %v5701 = vmul.f32 %v5669, 0.3275911
      %v5702 = vmul.f32 %v5670, 0.3275911
      %v5703 = vmul.f32 %v5671, 0.3275911
      %v5704 = vmul.f32 %v5672, 0.3275911
      %v5705 = vmul.f32 %v5673, 0.3275911
      %v5706 = vmul.f32 %v5674, 0.3275911
      %v5707 = vmul.f32 %v5675, 0.3275911
      %v5708 = vmul.f32 %v5676, 0.3275911
      %v5709 = vmul.f32 %v5677, 0.3275911
      %v5710 = vmul.f32 %v5678, 0.3275911
      %v5711 = vmul.f32 %v5679, 0.3275911
      %v5712 = vmul.f32 %v5680, 0.3275911
      %v5713 = vmul.f32 %v5681, 0.3275911
      %v5714 = vmul.f32 %v5682, 0.3275911
      %v5715 = vmul.f32 %v5683, 0.3275911
      %v5716 = vmul.f32 %v5684, 0.3275911
      %v5717 = vmul.f32 %v5685, 0.3275911
      %v5718 = vmul.f32 %v5686, 0.3275911
      %v5719 = vmul.f32 %v5687, 0.3275911
      %v5720 = vmul.f32 %v5688, 0.3275911
      %v5721 = vadd.f32 %v5689, 1.0
      %v5722 = vadd.f32 %v5690, 1.0
      %v5723 = vadd.f32 %v5691, 1.0
      %v5724 = vadd.f32 %v5692, 1.0
      %v5725 = vadd.f32 %v5693, 1.0
      %v5726 = vadd.f32 %v5694, 1.0
      %v5727 = vadd.f32 %v5695, 1.0
      %v5728 = vadd.f32 %v5696, 1.0
      %v5729 = vadd.f32 %v5697, 1.0
      %v5730 = vadd.f32 %v5698, 1.0
      %v5731 = vadd.f32 %v5699, 1.0
      %v5732 = vadd.f32 %v5700, 1.0
      %v5733 = vadd.f32 %v5701, 1.0
      %v5734 = vadd.f32 %v5702, 1.0
      %v5735 = vadd.f32 %v5703, 1.0
      %v5736 = vadd.f32 %v5704, 1.0
      %v5737 = vadd.f32 %v5705, 1.0
      %v5738 = vadd.f32 %v5706, 1.0
      %v5739 = vadd.f32 %v5707, 1.0
      %v5740 = vadd.f32 %v5708, 1.0
      %v5741 = vadd.f32 %v5709, 1.0
      %v5742 = vadd.f32 %v5710, 1.0
      %v5743 = vadd.f32 %v5711, 1.0
      %v5744 = vadd.f32 %v5712, 1.0
      %v5745 = vadd.f32 %v5713, 1.0
      %v5746 = vadd.f32 %v5714, 1.0
      %v5747 = vadd.f32 %v5715, 1.0
      %v5748 = vadd.f32 %v5716, 1.0
      %v5749 = vadd.f32 %v5717, 1.0
      %v5750 = vadd.f32 %v5718, 1.0
      %v5751 = vadd.f32 %v5719, 1.0
      %v5752 = vadd.f32 %v5720, 1.0
      %v5753 = vrcp.pop %v5721
      %v5754 = vrcp.pop %v5722
      %v5755 = vrcp.pop %v5723
      %v5756 = vrcp.pop %v5724
      %v5757 = vrcp.pop %v5725
      %v5758 = vrcp.pop %v5726
      %v5759 = vrcp.pop %v5727
      %v5760 = vrcp.pop %v5728
      %v5761 = vrcp.pop %v5729
      %v5762 = vrcp.pop %v5730
      %v5763 = vrcp.pop %v5731
      %v5764 = vrcp.pop %v5732
      %v5765 = vrcp.pop %v5733
      %v5766 = vrcp.pop %v5734
      %v5767 = vrcp.pop %v5735
      %v5768 = vrcp.pop %v5736
      %v5769 = vrcp.pop %v5737
      %v5770 = vrcp.pop %v5738
      %v5771 = vrcp.pop %v5739
      %v5772 = vrcp.pop %v5740
      %v5773 = vrcp.pop %v5741
      %v5774 = vrcp.pop %v5742
      %v5775 = vrcp.pop %v5743
      %v5776 = vrcp.pop %v5744
      %v5777 = vrcp.pop %v5745
      %v5778 = vrcp.pop %v5746
      %v5779 = vrcp.pop %v5747
      %v5780 = vrcp.pop %v5748
      %v5781 = vrcp.pop %v5749
      %v5782 = vrcp.pop %v5750
      %v5783 = vrcp.pop %v5751
      %v5784 = vrcp.pop %v5752
      %v5785 = vmul.f32 %v5721, %v5753
      %v5786 = vmul.f32 %v5722, %v5754
      %v5787 = vmul.f32 %v5723, %v5755
      %v5788 = vmul.f32 %v5724, %v5756
      %v5789 = vmul.f32 %v5725, %v5757
      %v5790 = vmul.f32 %v5726, %v5758
      %v5791 = vmul.f32 %v5727, %v5759
      %v5792 = vmul.f32 %v5728, %v5760
      %v5793 = vmul.f32 %v5729, %v5761
      %v5794 = vmul.f32 %v5730, %v5762
      %v5795 = vmul.f32 %v5731, %v5763
      %v5796 = vmul.f32 %v5732, %v5764
      %v5797 = vmul.f32 %v5733, %v5765
      %v5798 = vmul.f32 %v5734, %v5766
      %v5799 = vmul.f32 %v5735, %v5767
      %v5800 = vmul.f32 %v5736, %v5768
      %v5801 = vmul.f32 %v5737, %v5769
      %v5802 = vmul.f32 %v5738, %v5770
      %v5803 = vmul.f32 %v5739, %v5771
      %v5804 = vmul.f32 %v5740, %v5772
      %v5805 = vmul.f32 %v5741, %v5773
      %v5806 = vmul.f32 %v5742, %v5774
      %v5807 = vmul.f32 %v5743, %v5775
      %v5808 = vmul.f32 %v5744, %v5776
      %v5809 = vmul.f32 %v5745, %v5777
      %v5810 = vmul.f32 %v5746, %v5778
      %v5811 = vmul.f32 %v5747, %v5779
      %v5812 = vmul.f32 %v5748, %v5780
      %v5813 = vmul.f32 %v5749, %v5781
      %v5814 = vmul.f32 %v5750, %v5782
      %v5815 = vmul.f32 %v5751, %v5783
      %v5816 = vmul.f32 %v5752, %v5784
      %v5817 = vsub.f32 2.0, %v5785
      %v5818 = vsub.f32 2.0, %v5786
      %v5819 = vsub.f32 2.0, %v5787
      %v5820 = vsub.f32 2.0, %v5788
      %v5821 = vsub.f32 2.0, %v5789
      %v5822 = vsub.f32 2.0, %v5790
      %v5823 = vsub.f32 2.0, %v5791
      %v5824 = vsub.f32 2.0, %v5792
      %v5825 = vsub.f32 2.0, %v5793
      %v5826 = vsub.f32 2.0, %v5794
      %v5827 = vsub.f32 2.0, %v5795
      %v5828 = vsub.f32 2.0, %v5796
      %v5829 = vsub.f32 2.0, %v5797
      %v5830 = vsub.f32 2.0, %v5798
      %v5831 = vsub.f32 2.0, %v5799
      %v5832 = vsub.f32 2.0, %v5800
      %v5833 = vsub.f32 2.0, %v5801
      %v5834 = vsub.f32 2.0, %v5802
      %v5835 = vsub.f32 2.0, %v5803
      %v5836 = vsub.f32 2.0, %v5804
      %v5837 = vsub.f32 2.0, %v5805
      %v5838 = vsub.f32 2.0, %v5806
      %v5839 = vsub.f32 2.0, %v5807
      %v5840 = vsub.f32 2.0, %v5808
      %v5841 = vsub.f32 2.0, %v5809
      %v5842 = vsub.f32 2.0, %v5810
      %v5843 = vsub.f32 2.0, %v5811
      %v5844 = vsub.f32 2.0, %v5812
      %v5845 = vsub.f32 2.0, %v5813
      %v5846 = vsub.f32 2.0, %v5814
      %v5847 = vsub.f32 2.0, %v5815
      %v5848 = vsub.f32 2.0, %v5816
      %v5849 = vmul.f32 %v5753, %v5817
      %v5850 = vmul.f32 %v5754, %v5818
      %v5851 = vmul.f32 %v5755, %v5819
      %v5852 = vmul.f32 %v5756, %v5820
      %v5853 = vmul.f32 %v5757, %v5821
      %v5854 = vmul.f32 %v5758, %v5822
      %v5855 = vmul.f32 %v5759, %v5823
      %v5856 = vmul.f32 %v5760, %v5824
      %v5857 = vmul.f32 %v5761, %v5825
      %v5858 = vmul.f32 %v5762, %v5826
      %v5859 = vmul.f32 %v5763, %v5827
      %v5860 = vmul.f32 %v5764, %v5828
      %v5861 = vmul.f32 %v5765, %v5829
      %v5862 = vmul.f32 %v5766, %v5830
      %v5863 = vmul.f32 %v5767, %v5831
      %v5864 = vmul.f32 %v5768, %v5832
      %v5865 = vmul.f32 %v5769, %v5833
      %v5866 = vmul.f32 %v5770, %v5834
      %v5867 = vmul.f32 %v5771, %v5835
      %v5868 = vmul.f32 %v5772, %v5836
      %v5869 = vmul.f32 %v5773, %v5837
      %v5870 = vmul.f32 %v5774, %v5838
      %v5871 = vmul.f32 %v5775, %v5839
      %v5872 = vmul.f32 %v5776, %v5840
      %v5873 = vmul.f32 %v5777, %v5841
      %v5874 = vmul.f32 %v5778, %v5842
      %v5875 = vmul.f32 %v5779, %v5843
      %v5876 = vmul.f32 %v5780, %v5844
      %v5877 = vmul.f32 %v5781, %v5845
      %v5878 = vmul.f32 %v5782, %v5846
      %v5879 = vmul.f32 %v5783, %v5847
      %v5880 = vmul.f32 %v5784, %v5848
      %v5881 = vmul.f32 %v5849, 1.0614054
      %v5882 = vmul.f32 %v5850, 1.0614054
      %v5883 = vmul.f32 %v5851, 1.0614054
      %v5884 = vmul.f32 %v5852, 1.0614054
      %v5885 = vmul.f32 %v5853, 1.0614054
      %v5886 = vmul.f32 %v5854, 1.0614054
      %v5887 = vmul.f32 %v5855, 1.0614054
      %v5888 = vmul.f32 %v5856, 1.0614054
      %v5889 = vmul.f32 %v5857, 1.0614054
      %v5890 = vmul.f32 %v5858, 1.0614054
      %v5891 = vmul.f32 %v5859, 1.0614054
      %v5892 = vmul.f32 %v5860, 1.0614054
      %v5893 = vmul.f32 %v5861, 1.0614054
      %v5894 = vmul.f32 %v5862, 1.0614054
      %v5895 = vmul.f32 %v5863, 1.0614054
      %v5896 = vmul.f32 %v5864, 1.0614054
      %v5897 = vmul.f32 %v5865, 1.0614054
      %v5898 = vmul.f32 %v5866, 1.0614054
      %v5899 = vmul.f32 %v5867, 1.0614054
      %v5900 = vmul.f32 %v5868, 1.0614054
      %v5901 = vmul.f32 %v5869, 1.0614054
      %v5902 = vmul.f32 %v5870, 1.0614054
      %v5903 = vmul.f32 %v5871, 1.0614054
      %v5904 = vmul.f32 %v5872, 1.0614054
      %v5905 = vmul.f32 %v5873, 1.0614054
      %v5906 = vmul.f32 %v5874, 1.0614054
      %v5907 = vmul.f32 %v5875, 1.0614054
      %v5908 = vmul.f32 %v5876, 1.0614054
      %v5909 = vmul.f32 %v5877, 1.0614054
      %v5910 = vmul.f32 %v5878, 1.0614054
      %v5911 = vmul.f32 %v5879, 1.0614054
      %v5912 = vmul.f32 %v5880, 1.0614054
      %v5913 = vadd.f32 %v5881, -1.4531521
      %v5914 = vadd.f32 %v5882, -1.4531521
      %v5915 = vadd.f32 %v5883, -1.4531521
      %v5916 = vadd.f32 %v5884, -1.4531521
      %v5917 = vadd.f32 %v5885, -1.4531521
      %v5918 = vadd.f32 %v5886, -1.4531521
      %v5919 = vadd.f32 %v5887, -1.4531521
      %v5920 = vadd.f32 %v5888, -1.4531521
      %v5921 = vadd.f32 %v5889, -1.4531521
      %v5922 = vadd.f32 %v5890, -1.4531521
      %v5923 = vadd.f32 %v5891, -1.4531521
      %v5924 = vadd.f32 %v5892, -1.4531521
      %v5925 = vadd.f32 %v5893, -1.4531521
      %v5926 = vadd.f32 %v5894, -1.4531521
      %v5927 = vadd.f32 %v5895, -1.4531521
      %v5928 = vadd.f32 %v5896, -1.4531521
      %v5929 = vadd.f32 %v5897, -1.4531521
      %v5930 = vadd.f32 %v5898, -1.4531521
      %v5931 = vadd.f32 %v5899, -1.4531521
      %v5932 = vadd.f32 %v5900, -1.4531521
      %v5933 = vadd.f32 %v5901, -1.4531521
      %v5934 = vadd.f32 %v5902, -1.4531521
      %v5935 = vadd.f32 %v5903, -1.4531521
      %v5936 = vadd.f32 %v5904, -1.4531521
      %v5937 = vadd.f32 %v5905, -1.4531521
      %v5938 = vadd.f32 %v5906, -1.4531521
      %v5939 = vadd.f32 %v5907, -1.4531521
      %v5940 = vadd.f32 %v5908, -1.4531521
      %v5941 = vadd.f32 %v5909, -1.4531521
      %v5942 = vadd.f32 %v5910, -1.4531521
      %v5943 = vadd.f32 %v5911, -1.4531521
      %v5944 = vadd.f32 %v5912, -1.4531521
      %v5945 = vmul.f32 %v5849, %v5913
      %v5946 = vmul.f32 %v5850, %v5914
      %v5947 = vmul.f32 %v5851, %v5915
      %v5948 = vmul.f32 %v5852, %v5916
      %v5949 = vmul.f32 %v5853, %v5917
      %v5950 = vmul.f32 %v5854, %v5918
      %v5951 = vmul.f32 %v5855, %v5919
      %v5952 = vmul.f32 %v5856, %v5920
      %v5953 = vmul.f32 %v5857, %v5921
      %v5954 = vmul.f32 %v5858, %v5922
      %v5955 = vmul.f32 %v5859, %v5923
      %v5956 = vmul.f32 %v5860, %v5924
      %v5957 = vmul.f32 %v5861, %v5925
      %v5958 = vmul.f32 %v5862, %v5926
      %v5959 = vmul.f32 %v5863, %v5927
      %v5960 = vmul.f32 %v5864, %v5928
      %v5961 = vmul.f32 %v5865, %v5929
      %v5962 = vmul.f32 %v5866, %v5930
      %v5963 = vmul.f32 %v5867, %v5931
      %v5964 = vmul.f32 %v5868, %v5932
      %v5965 = vmul.f32 %v5869, %v5933
      %v5966 = vmul.f32 %v5870, %v5934
      %v5967 = vmul.f32 %v5871, %v5935
      %v5968 = vmul.f32 %v5872, %v5936
      %v5969 = vmul.f32 %v5873, %v5937
      %v5970 = vmul.f32 %v5874, %v5938
      %v5971 = vmul.f32 %v5875, %v5939
      %v5972 = vmul.f32 %v5876, %v5940
      %v5973 = vmul.f32 %v5877, %v5941
      %v5974 = vmul.f32 %v5878, %v5942
      %v5975 = vmul.f32 %v5879, %v5943
      %v5976 = vmul.f32 %v5880, %v5944
      %v5977 = vadd.f32 %v5945, 1.4214138
      %v5978 = vadd.f32 %v5946, 1.4214138
      %v5979 = vadd.f32 %v5947, 1.4214138
      %v5980 = vadd.f32 %v5948, 1.4214138
      %v5981 = vadd.f32 %v5949, 1.4214138
      %v5982 = vadd.f32 %v5950, 1.4214138
      %v5983 = vadd.f32 %v5951, 1.4214138
      %v5984 = vadd.f32 %v5952, 1.4214138
      %v5985 = vadd.f32 %v5953, 1.4214138
      %v5986 = vadd.f32 %v5954, 1.4214138
      %v5987 = vadd.f32 %v5955, 1.4214138
      %v5988 = vadd.f32 %v5956, 1.4214138
      %v5989 = vadd.f32 %v5957, 1.4214138
      %v5990 = vadd.f32 %v5958, 1.4214138
      %v5991 = vadd.f32 %v5959, 1.4214138
      %v5992 = vadd.f32 %v5960, 1.4214138
      %v5993 = vadd.f32 %v5961, 1.4214138
      %v5994 = vadd.f32 %v5962, 1.4214138
      %v5995 = vadd.f32 %v5963, 1.4214138
      %v5996 = vadd.f32 %v5964, 1.4214138
      %v5997 = vadd.f32 %v5965, 1.4214138
      %v5998 = vadd.f32 %v5966, 1.4214138
      %v5999 = vadd.f32 %v5967, 1.4214138
      %v6000 = vadd.f32 %v5968, 1.4214138
      %v6001 = vadd.f32 %v5969, 1.4214138
      %v6002 = vadd.f32 %v5970, 1.4214138
      %v6003 = vadd.f32 %v5971, 1.4214138
      %v6004 = vadd.f32 %v5972, 1.4214138
      %v6005 = vadd.f32 %v5973, 1.4214138
      %v6006 = vadd.f32 %v5974, 1.4214138
      %v6007 = vadd.f32 %v5975, 1.4214138
      %v6008 = vadd.f32 %v5976, 1.4214138
      %v6009 = vmul.f32 %v5849, %v5977
      %v6010 = vmul.f32 %v5850, %v5978
      %v6011 = vmul.f32 %v5851, %v5979
      %v6012 = vmul.f32 %v5852, %v5980
      %v6013 = vmul.f32 %v5853, %v5981
      %v6014 = vmul.f32 %v5854, %v5982
      %v6015 = vmul.f32 %v5855, %v5983
      %v6016 = vmul.f32 %v5856, %v5984
      %v6017 = vmul.f32 %v5857, %v5985
      %v6018 = vmul.f32 %v5858, %v5986
      %v6019 = vmul.f32 %v5859, %v5987
      %v6020 = vmul.f32 %v5860, %v5988
      %v6021 = vmul.f32 %v5861, %v5989
      %v6022 = vmul.f32 %v5862, %v5990
      %v6023 = vmul.f32 %v5863, %v5991
      %v6024 = vmul.f32 %v5864, %v5992
      %v6025 = vmul.f32 %v5865, %v5993
      %v6026 = vmul.f32 %v5866, %v5994
      %v6027 = vmul.f32 %v5867, %v5995
      %v6028 = vmul.f32 %v5868, %v5996
      %v6029 = vmul.f32 %v5869, %v5997
      %v6030 = vmul.f32 %v5870, %v5998
      %v6031 = vmul.f32 %v5871, %v5999
      %v6032 = vmul.f32 %v5872, %v6000
      %v6033 = vmul.f32 %v5873, %v6001
      %v6034 = vmul.f32 %v5874, %v6002
      %v6035 = vmul.f32 %v5875, %v6003
      %v6036 = vmul.f32 %v5876, %v6004
      %v6037 = vmul.f32 %v5877, %v6005
      %v6038 = vmul.f32 %v5878, %v6006
      %v6039 = vmul.f32 %v5879, %v6007
      %v6040 = vmul.f32 %v5880, %v6008
      %v6041 = vadd.f32 %v6009, -0.28449672
      %v6042 = vadd.f32 %v6010, -0.28449672
      %v6043 = vadd.f32 %v6011, -0.28449672
      %v6044 = vadd.f32 %v6012, -0.28449672
      %v6045 = vadd.f32 %v6013, -0.28449672
      %v6046 = vadd.f32 %v6014, -0.28449672
      %v6047 = vadd.f32 %v6015, -0.28449672
      %v6048 = vadd.f32 %v6016, -0.28449672
      %v6049 = vadd.f32 %v6017, -0.28449672
      %v6050 = vadd.f32 %v6018, -0.28449672
      %v6051 = vadd.f32 %v6019, -0.28449672
      %v6052 = vadd.f32 %v6020, -0.28449672
      %v6053 = vadd.f32 %v6021, -0.28449672
      %v6054 = vadd.f32 %v6022, -0.28449672
      %v6055 = vadd.f32 %v6023, -0.28449672
      %v6056 = vadd.f32 %v6024, -0.28449672
      %v6057 = vadd.f32 %v6025, -0.28449672
      %v6058 = vadd.f32 %v6026, -0.28449672
      %v6059 = vadd.f32 %v6027, -0.28449672
      %v6060 = vadd.f32 %v6028, -0.28449672
      %v6061 = vadd.f32 %v6029, -0.28449672
      %v6062 = vadd.f32 %v6030, -0.28449672
      %v6063 = vadd.f32 %v6031, -0.28449672
      %v6064 = vadd.f32 %v6032, -0.28449672
      %v6065 = vadd.f32 %v6033, -0.28449672
      %v6066 = vadd.f32 %v6034, -0.28449672
      %v6067 = vadd.f32 %v6035, -0.28449672
      %v6068 = vadd.f32 %v6036, -0.28449672
      %v6069 = vadd.f32 %v6037, -0.28449672
      %v6070 = vadd.f32 %v6038, -0.28449672
      %v6071 = vadd.f32 %v6039, -0.28449672
      %v6072 = vadd.f32 %v6040, -0.28449672
      %v6073 = vmul.f32 %v5849, %v6041
      %v6074 = vmul.f32 %v5850, %v6042
      %v6075 = vmul.f32 %v5851, %v6043
      %v6076 = vmul.f32 %v5852, %v6044
      %v6077 = vmul.f32 %v5853, %v6045
      %v6078 = vmul.f32 %v5854, %v6046
      %v6079 = vmul.f32 %v5855, %v6047
      %v6080 = vmul.f32 %v5856, %v6048
      %v6081 = vmul.f32 %v5857, %v6049
      %v6082 = vmul.f32 %v5858, %v6050
      %v6083 = vmul.f32 %v5859, %v6051
      %v6084 = vmul.f32 %v5860, %v6052
      %v6085 = vmul.f32 %v5861, %v6053
      %v6086 = vmul.f32 %v5862, %v6054
      %v6087 = vmul.f32 %v5863, %v6055
      %v6088 = vmul.f32 %v5864, %v6056
      %v6089 = vmul.f32 %v5865, %v6057
      %v6090 = vmul.f32 %v5866, %v6058
      %v6091 = vmul.f32 %v5867, %v6059
      %v6092 = vmul.f32 %v5868, %v6060
      %v6093 = vmul.f32 %v5869, %v6061
      %v6094 = vmul.f32 %v5870, %v6062
      %v6095 = vmul.f32 %v5871, %v6063
      %v6096 = vmul.f32 %v5872, %v6064
      %v6097 = vmul.f32 %v5873, %v6065
      %v6098 = vmul.f32 %v5874, %v6066
      %v6099 = vmul.f32 %v5875, %v6067
      %v6100 = vmul.f32 %v5876, %v6068
      %v6101 = vmul.f32 %v5877, %v6069
      %v6102 = vmul.f32 %v5878, %v6070
      %v6103 = vmul.f32 %v5879, %v6071
      %v6104 = vmul.f32 %v5880, %v6072
      %v6105 = vadd.f32 %v6073, 0.2548296
      %v6106 = vadd.f32 %v6074, 0.2548296
      %v6107 = vadd.f32 %v6075, 0.2548296
      %v6108 = vadd.f32 %v6076, 0.2548296
      %v6109 = vadd.f32 %v6077, 0.2548296
      %v6110 = vadd.f32 %v6078, 0.2548296
      %v6111 = vadd.f32 %v6079, 0.2548296
      %v6112 = vadd.f32 %v6080, 0.2548296
      %v6113 = vadd.f32 %v6081, 0.2548296
      %v6114 = vadd.f32 %v6082, 0.2548296
      %v6115 = vadd.f32 %v6083, 0.2548296
      %v6116 = vadd.f32 %v6084, 0.2548296
      %v6117 = vadd.f32 %v6085, 0.2548296
      %v6118 = vadd.f32 %v6086, 0.2548296
      %v6119 = vadd.f32 %v6087, 0.2548296
      %v6120 = vadd.f32 %v6088, 0.2548296
      %v6121 = vadd.f32 %v6089, 0.2548296
      %v6122 = vadd.f32 %v6090, 0.2548296
      %v6123 = vadd.f32 %v6091, 0.2548296
      %v6124 = vadd.f32 %v6092, 0.2548296
      %v6125 = vadd.f32 %v6093, 0.2548296
      %v6126 = vadd.f32 %v6094, 0.2548296
      %v6127 = vadd.f32 %v6095, 0.2548296
      %v6128 = vadd.f32 %v6096, 0.2548296
      %v6129 = vadd.f32 %v6097, 0.2548296
      %v6130 = vadd.f32 %v6098, 0.2548296
      %v6131 = vadd.f32 %v6099, 0.2548296
      %v6132 = vadd.f32 %v6100, 0.2548296
      %v6133 = vadd.f32 %v6101, 0.2548296
      %v6134 = vadd.f32 %v6102, 0.2548296
      %v6135 = vadd.f32 %v6103, 0.2548296
      %v6136 = vadd.f32 %v6104, 0.2548296
      %v6137 = vmul.f32 %v5849, %v6105
      %v6138 = vmul.f32 %v5850, %v6106
      %v6139 = vmul.f32 %v5851, %v6107
      %v6140 = vmul.f32 %v5852, %v6108
      %v6141 = vmul.f32 %v5853, %v6109
      %v6142 = vmul.f32 %v5854, %v6110
      %v6143 = vmul.f32 %v5855, %v6111
      %v6144 = vmul.f32 %v5856, %v6112
      %v6145 = vmul.f32 %v5857, %v6113
      %v6146 = vmul.f32 %v5858, %v6114
      %v6147 = vmul.f32 %v5859, %v6115
      %v6148 = vmul.f32 %v5860, %v6116
      %v6149 = vmul.f32 %v5861, %v6117
      %v6150 = vmul.f32 %v5862, %v6118
      %v6151 = vmul.f32 %v5863, %v6119
      %v6152 = vmul.f32 %v5864, %v6120
      %v6153 = vmul.f32 %v5865, %v6121
      %v6154 = vmul.f32 %v5866, %v6122
      %v6155 = vmul.f32 %v5867, %v6123
      %v6156 = vmul.f32 %v5868, %v6124
      %v6157 = vmul.f32 %v5869, %v6125
      %v6158 = vmul.f32 %v5870, %v6126
      %v6159 = vmul.f32 %v5871, %v6127
      %v6160 = vmul.f32 %v5872, %v6128
      %v6161 = vmul.f32 %v5873, %v6129
      %v6162 = vmul.f32 %v5874, %v6130
      %v6163 = vmul.f32 %v5875, %v6131
      %v6164 = vmul.f32 %v5876, %v6132
      %v6165 = vmul.f32 %v5877, %v6133
      %v6166 = vmul.f32 %v5878, %v6134
      %v6167 = vmul.f32 %v5879, %v6135
      %v6168 = vmul.f32 %v5880, %v6136
      %v6169 = vsub.f32 0.0, %v5657
      %v6170 = vsub.f32 0.0, %v5658
      %v6171 = vsub.f32 0.0, %v5659
      %v6172 = vsub.f32 0.0, %v5660
      %v6173 = vsub.f32 0.0, %v5661
      %v6174 = vsub.f32 0.0, %v5662
      %v6175 = vsub.f32 0.0, %v5663
      %v6176 = vsub.f32 0.0, %v5664
      %v6177 = vsub.f32 0.0, %v5665
      %v6178 = vsub.f32 0.0, %v5666
      %v6179 = vsub.f32 0.0, %v5667
      %v6180 = vsub.f32 0.0, %v5668
      %v6181 = vsub.f32 0.0, %v5669
      %v6182 = vsub.f32 0.0, %v5670
      %v6183 = vsub.f32 0.0, %v5671
      %v6184 = vsub.f32 0.0, %v5672
      %v6185 = vsub.f32 0.0, %v5673
      %v6186 = vsub.f32 0.0, %v5674
      %v6187 = vsub.f32 0.0, %v5675
      %v6188 = vsub.f32 0.0, %v5676
      %v6189 = vsub.f32 0.0, %v5677
      %v6190 = vsub.f32 0.0, %v5678
      %v6191 = vsub.f32 0.0, %v5679
      %v6192 = vsub.f32 0.0, %v5680
      %v6193 = vsub.f32 0.0, %v5681
      %v6194 = vsub.f32 0.0, %v5682
      %v6195 = vsub.f32 0.0, %v5683
      %v6196 = vsub.f32 0.0, %v5684
      %v6197 = vsub.f32 0.0, %v5685
      %v6198 = vsub.f32 0.0, %v5686
      %v6199 = vsub.f32 0.0, %v5687
      %v6200 = vsub.f32 0.0, %v5688
      %v6201 = vmul.f32 %v6169, %v5657
      %v6202 = vmul.f32 %v6170, %v5658
      %v6203 = vmul.f32 %v6171, %v5659
      %v6204 = vmul.f32 %v6172, %v5660
      %v6205 = vmul.f32 %v6173, %v5661
      %v6206 = vmul.f32 %v6174, %v5662
      %v6207 = vmul.f32 %v6175, %v5663
      %v6208 = vmul.f32 %v6176, %v5664
      %v6209 = vmul.f32 %v6177, %v5665
      %v6210 = vmul.f32 %v6178, %v5666
      %v6211 = vmul.f32 %v6179, %v5667
      %v6212 = vmul.f32 %v6180, %v5668
      %v6213 = vmul.f32 %v6181, %v5669
      %v6214 = vmul.f32 %v6182, %v5670
      %v6215 = vmul.f32 %v6183, %v5671
      %v6216 = vmul.f32 %v6184, %v5672
      %v6217 = vmul.f32 %v6185, %v5673
      %v6218 = vmul.f32 %v6186, %v5674
      %v6219 = vmul.f32 %v6187, %v5675
      %v6220 = vmul.f32 %v6188, %v5676
      %v6221 = vmul.f32 %v6189, %v5677
      %v6222 = vmul.f32 %v6190, %v5678
      %v6223 = vmul.f32 %v6191, %v5679
      %v6224 = vmul.f32 %v6192, %v5680
      %v6225 = vmul.f32 %v6193, %v5681
      %v6226 = vmul.f32 %v6194, %v5682
      %v6227 = vmul.f32 %v6195, %v5683
      %v6228 = vmul.f32 %v6196, %v5684
      %v6229 = vmul.f32 %v6197, %v5685
      %v6230 = vmul.f32 %v6198, %v5686
      %v6231 = vmul.f32 %v6199, %v5687
      %v6232 = vmul.f32 %v6200, %v5688
      %v6233 = vmul.f32 %v6201, 1.442695
      %v6234 = vpow.pop %v6233
      %v6235 = vmul.f32 %v6202, 1.442695
      %v6236 = vpow.pop %v6235
      %v6237 = vmul.f32 %v6203, 1.442695
      %v6238 = vpow.pop %v6237
      %v6239 = vmul.f32 %v6204, 1.442695
      %v6240 = vpow.pop %v6239
      %v6241 = vmul.f32 %v6205, 1.442695
      %v6242 = vpow.pop %v6241
      %v6243 = vmul.f32 %v6206, 1.442695
      %v6244 = vpow.pop %v6243
      %v6245 = vmul.f32 %v6207, 1.442695
      %v6246 = vpow.pop %v6245
      %v6247 = vmul.f32 %v6208, 1.442695
      %v6248 = vpow.pop %v6247
      %v6249 = vmul.f32 %v6209, 1.442695
      %v6250 = vpow.pop %v6249
      %v6251 = vmul.f32 %v6210, 1.442695
      %v6252 = vpow.pop %v6251
      %v6253 = vmul.f32 %v6211, 1.442695
      %v6254 = vpow.pop %v6253
      %v6255 = vmul.f32 %v6212, 1.442695
      %v6256 = vpow.pop %v6255
      %v6257 = vmul.f32 %v6213, 1.442695
      %v6258 = vpow.pop %v6257
      %v6259 = vmul.f32 %v6214, 1.442695
      %v6260 = vpow.pop %v6259
      %v6261 = vmul.f32 %v6215, 1.442695
      %v6262 = vpow.pop %v6261
      %v6263 = vmul.f32 %v6216, 1.442695
      %v6264 = vpow.pop %v6263
      %v6265 = vmul.f32 %v6217, 1.442695
      %v6266 = vpow.pop %v6265
      %v6267 = vmul.f32 %v6218, 1.442695
      %v6268 = vpow.pop %v6267
      %v6269 = vmul.f32 %v6219, 1.442695
      %v6270 = vpow.pop %v6269
      %v6271 = vmul.f32 %v6220, 1.442695
      %v6272 = vpow.pop %v6271
      %v6273 = vmul.f32 %v6221, 1.442695
      %v6274 = vpow.pop %v6273
      %v6275 = vmul.f32 %v6222, 1.442695
      %v6276 = vpow.pop %v6275
      %v6277 = vmul.f32 %v6223, 1.442695
      %v6278 = vpow.pop %v6277
      %v6279 = vmul.f32 %v6224, 1.442695
      %v6280 = vpow.pop %v6279
      %v6281 = vmul.f32 %v6225, 1.442695
      %v6282 = vpow.pop %v6281
      %v6283 = vmul.f32 %v6226, 1.442695
      %v6284 = vpow.pop %v6283
      %v6285 = vmul.f32 %v6227, 1.442695
      %v6286 = vpow.pop %v6285
      %v6287 = vmul.f32 %v6228, 1.442695
      %v6288 = vpow.pop %v6287
      %v6289 = vmul.f32 %v6229, 1.442695
      %v6290 = vpow.pop %v6289
      %v6291 = vmul.f32 %v6230, 1.442695
      %v6292 = vpow.pop %v6291
      %v6293 = vmul.f32 %v6231, 1.442695
      %v6294 = vpow.pop %v6293
      %v6295 = vmul.f32 %v6232, 1.442695
      %v6296 = vpow.pop %v6295
      %v6297 = vmul.f32 %v6137, %v6234
      %v6298 = vmul.f32 %v6138, %v6236
      %v6299 = vmul.f32 %v6139, %v6238
      %v6300 = vmul.f32 %v6140, %v6240
      %v6301 = vmul.f32 %v6141, %v6242
      %v6302 = vmul.f32 %v6142, %v6244
      %v6303 = vmul.f32 %v6143, %v6246
      %v6304 = vmul.f32 %v6144, %v6248
      %v6305 = vmul.f32 %v6145, %v6250
      %v6306 = vmul.f32 %v6146, %v6252
      %v6307 = vmul.f32 %v6147, %v6254
      %v6308 = vmul.f32 %v6148, %v6256
      %v6309 = vmul.f32 %v6149, %v6258
      %v6310 = vmul.f32 %v6150, %v6260
      %v6311 = vmul.f32 %v6151, %v6262
      %v6312 = vmul.f32 %v6152, %v6264
      %v6313 = vmul.f32 %v6153, %v6266
      %v6314 = vmul.f32 %v6154, %v6268
      %v6315 = vmul.f32 %v6155, %v6270
      %v6316 = vmul.f32 %v6156, %v6272
      %v6317 = vmul.f32 %v6157, %v6274
      %v6318 = vmul.f32 %v6158, %v6276
      %v6319 = vmul.f32 %v6159, %v6278
      %v6320 = vmul.f32 %v6160, %v6280
      %v6321 = vmul.f32 %v6161, %v6282
      %v6322 = vmul.f32 %v6162, %v6284
      %v6323 = vmul.f32 %v6163, %v6286
      %v6324 = vmul.f32 %v6164, %v6288
      %v6325 = vmul.f32 %v6165, %v6290
      %v6326 = vmul.f32 %v6166, %v6292
      %v6327 = vmul.f32 %v6167, %v6294
      %v6328 = vmul.f32 %v6168, %v6296
      %v6329 = vsub.f32 1.0, %v6297
      %v6330 = vsub.f32 1.0, %v6298
      %v6331 = vsub.f32 1.0, %v6299
      %v6332 = vsub.f32 1.0, %v6300
      %v6333 = vsub.f32 1.0, %v6301
      %v6334 = vsub.f32 1.0, %v6302
      %v6335 = vsub.f32 1.0, %v6303
      %v6336 = vsub.f32 1.0, %v6304
      %v6337 = vsub.f32 1.0, %v6305
      %v6338 = vsub.f32 1.0, %v6306
      %v6339 = vsub.f32 1.0, %v6307
      %v6340 = vsub.f32 1.0, %v6308
      %v6341 = vsub.f32 1.0, %v6309
      %v6342 = vsub.f32 1.0, %v6310
      %v6343 = vsub.f32 1.0, %v6311
      %v6344 = vsub.f32 1.0, %v6312
      %v6345 = vsub.f32 1.0, %v6313
      %v6346 = vsub.f32 1.0, %v6314
      %v6347 = vsub.f32 1.0, %v6315
      %v6348 = vsub.f32 1.0, %v6316
      %v6349 = vsub.f32 1.0, %v6317
      %v6350 = vsub.f32 1.0, %v6318
      %v6351 = vsub.f32 1.0, %v6319
      %v6352 = vsub.f32 1.0, %v6320
      %v6353 = vsub.f32 1.0, %v6321
      %v6354 = vsub.f32 1.0, %v6322
      %v6355 = vsub.f32 1.0, %v6323
      %v6356 = vsub.f32 1.0, %v6324
      %v6357 = vsub.f32 1.0, %v6325
      %v6358 = vsub.f32 1.0, %v6326
      %v6359 = vsub.f32 1.0, %v6327
      %v6360 = vsub.f32 1.0, %v6328
      %vm6361 = vcmp.ge.f32.partialorder %v5625, 0.0
      %vm6362 = vcmp.ge.f32.partialorder %v5626, 0.0
      %vm6363 = vcmp.ge.f32.partialorder %v5627, 0.0
      %vm6364 = vcmp.ge.f32.partialorder %v5628, 0.0
      %vm6365 = vcmp.ge.f32.partialorder %v5629, 0.0
      %vm6366 = vcmp.ge.f32.partialorder %v5630, 0.0
      %vm6367 = vcmp.ge.f32.partialorder %v5631, 0.0
      %vm6368 = vcmp.ge.f32.partialorder %v5632, 0.0
      %vm6369 = vcmp.ge.f32.partialorder %v5633, 0.0
      %vm6370 = vcmp.ge.f32.partialorder %v5634, 0.0
      %vm6371 = vcmp.ge.f32.partialorder %v5635, 0.0
      %vm6372 = vcmp.ge.f32.partialorder %v5636, 0.0
      %vm6373 = vcmp.ge.f32.partialorder %v5637, 0.0
      %vm6374 = vcmp.ge.f32.partialorder %v5638, 0.0
      %vm6375 = vcmp.ge.f32.partialorder %v5639, 0.0
      %vm6376 = vcmp.ge.f32.partialorder %v5640, 0.0
      %vm6377 = vcmp.ge.f32.partialorder %v5641, 0.0
      %vm6378 = vcmp.ge.f32.partialorder %v5642, 0.0
      %vm6379 = vcmp.ge.f32.partialorder %v5643, 0.0
      %vm6380 = vcmp.ge.f32.partialorder %v5644, 0.0
      %vm6381 = vcmp.ge.f32.partialorder %v5645, 0.0
      %vm6382 = vcmp.ge.f32.partialorder %v5646, 0.0
      %vm6383 = vcmp.ge.f32.partialorder %v5647, 0.0
      %vm6384 = vcmp.ge.f32.partialorder %v5648, 0.0
      %vm6385 = vcmp.ge.f32.partialorder %v5649, 0.0
      %vm6386 = vcmp.ge.f32.partialorder %v5650, 0.0
      %vm6387 = vcmp.ge.f32.partialorder %v5651, 0.0
      %vm6388 = vcmp.ge.f32.partialorder %v5652, 0.0
      %vm6389 = vcmp.ge.f32.partialorder %v5653, 0.0
      %vm6390 = vcmp.ge.f32.partialorder %v5654, 0.0
      %vm6391 = vcmp.ge.f32.partialorder %v5655, 0.0
      %vm6392 = vcmp.ge.f32.partialorder %v5656, 0.0
      %v6393 = vsub.f32 0.0, %v6329
      %v6394 = vsub.f32 0.0, %v6330
      %v6395 = vsub.f32 0.0, %v6331
      %v6396 = vsub.f32 0.0, %v6332
      %v6397 = vsub.f32 0.0, %v6333
      %v6398 = vsub.f32 0.0, %v6334
      %v6399 = vsub.f32 0.0, %v6335
      %v6400 = vsub.f32 0.0, %v6336
      %v6401 = vsub.f32 0.0, %v6337
      %v6402 = vsub.f32 0.0, %v6338
      %v6403 = vsub.f32 0.0, %v6339
      %v6404 = vsub.f32 0.0, %v6340
      %v6405 = vsub.f32 0.0, %v6341
      %v6406 = vsub.f32 0.0, %v6342
      %v6407 = vsub.f32 0.0, %v6343
      %v6408 = vsub.f32 0.0, %v6344
      %v6409 = vsub.f32 0.0, %v6345
      %v6410 = vsub.f32 0.0, %v6346
      %v6411 = vsub.f32 0.0, %v6347
      %v6412 = vsub.f32 0.0, %v6348
      %v6413 = vsub.f32 0.0, %v6349
      %v6414 = vsub.f32 0.0, %v6350
      %v6415 = vsub.f32 0.0, %v6351
      %v6416 = vsub.f32 0.0, %v6352
      %v6417 = vsub.f32 0.0, %v6353
      %v6418 = vsub.f32 0.0, %v6354
      %v6419 = vsub.f32 0.0, %v6355
      %v6420 = vsub.f32 0.0, %v6356
      %v6421 = vsub.f32 0.0, %v6357
      %v6422 = vsub.f32 0.0, %v6358
      %v6423 = vsub.f32 0.0, %v6359
      %v6424 = vsub.f32 0.0, %v6360
      %v6425 = vsel %vm6361, %v6329, %v6393
      %v6426 = vsel %vm6362, %v6330, %v6394
      %v6427 = vsel %vm6363, %v6331, %v6395
      %v6428 = vsel %vm6364, %v6332, %v6396
      %v6429 = vsel %vm6365, %v6333, %v6397
      %v6430 = vsel %vm6366, %v6334, %v6398
      %v6431 = vsel %vm6367, %v6335, %v6399
      %v6432 = vsel %vm6368, %v6336, %v6400
      %v6433 = vsel %vm6369, %v6337, %v6401
      %v6434 = vsel %vm6370, %v6338, %v6402
      %v6435 = vsel %vm6371, %v6339, %v6403
      %v6436 = vsel %vm6372, %v6340, %v6404
      %v6437 = vsel %vm6373, %v6341, %v6405
      %v6438 = vsel %vm6374, %v6342, %v6406
      %v6439 = vsel %vm6375, %v6343, %v6407
      %v6440 = vsel %vm6376, %v6344, %v6408
      %v6441 = vsel %vm6377, %v6345, %v6409
      %v6442 = vsel %vm6378, %v6346, %v6410
      %v6443 = vsel %vm6379, %v6347, %v6411
      %v6444 = vsel %vm6380, %v6348, %v6412
      %v6445 = vsel %vm6381, %v6349, %v6413
      %v6446 = vsel %vm6382, %v6350, %v6414
      %v6447 = vsel %vm6383, %v6351, %v6415
      %v6448 = vsel %vm6384, %v6352, %v6416
      %v6449 = vsel %vm6385, %v6353, %v6417
      %v6450 = vsel %vm6386, %v6354, %v6418
      %v6451 = vsel %vm6387, %v6355, %v6419
      %v6452 = vsel %vm6388, %v6356, %v6420
      %v6453 = vsel %vm6389, %v6357, %v6421
      %v6454 = vsel %vm6390, %v6358, %v6422
      %v6455 = vsel %vm6391, %v6359, %v6423
      %v6456 = vsel %vm6392, %v6360, %v6424
      %v6457 = vadd.f32 %v6425, 1.0
      %v6458 = vadd.f32 %v6426, 1.0
      %v6459 = vadd.f32 %v6427, 1.0
      %v6460 = vadd.f32 %v6428, 1.0
      %v6461 = vadd.f32 %v6429, 1.0
      %v6462 = vadd.f32 %v6430, 1.0
      %v6463 = vadd.f32 %v6431, 1.0
      %v6464 = vadd.f32 %v6432, 1.0
      %v6465 = vadd.f32 %v6433, 1.0
      %v6466 = vadd.f32 %v6434, 1.0
      %v6467 = vadd.f32 %v6435, 1.0
      %v6468 = vadd.f32 %v6436, 1.0
      %v6469 = vadd.f32 %v6437, 1.0
      %v6470 = vadd.f32 %v6438, 1.0
      %v6471 = vadd.f32 %v6439, 1.0
      %v6472 = vadd.f32 %v6440, 1.0
      %v6473 = vadd.f32 %v6441, 1.0
      %v6474 = vadd.f32 %v6442, 1.0
      %v6475 = vadd.f32 %v6443, 1.0
      %v6476 = vadd.f32 %v6444, 1.0
      %v6477 = vadd.f32 %v6445, 1.0
      %v6478 = vadd.f32 %v6446, 1.0
      %v6479 = vadd.f32 %v6447, 1.0
      %v6480 = vadd.f32 %v6448, 1.0
      %v6481 = vadd.f32 %v6449, 1.0
      %v6482 = vadd.f32 %v6450, 1.0
      %v6483 = vadd.f32 %v6451, 1.0
      %v6484 = vadd.f32 %v6452, 1.0
      %v6485 = vadd.f32 %v6453, 1.0
      %v6486 = vadd.f32 %v6454, 1.0
      %v6487 = vadd.f32 %v6455, 1.0
      %v6488 = vadd.f32 %v6456, 1.0
      %v6489 = vmul.f32 %v5593, %v6457
      %v6490 = vmul.f32 %v5594, %v6458
      %v6491 = vmul.f32 %v5595, %v6459
      %v6492 = vmul.f32 %v5596, %v6460
      %v6493 = vmul.f32 %v5597, %v6461
      %v6494 = vmul.f32 %v5598, %v6462
      %v6495 = vmul.f32 %v5599, %v6463
      %v6496 = vmul.f32 %v5600, %v6464
      %v6497 = vmul.f32 %v5601, %v6465
      %v6498 = vmul.f32 %v5602, %v6466
      %v6499 = vmul.f32 %v5603, %v6467
      %v6500 = vmul.f32 %v5604, %v6468
      %v6501 = vmul.f32 %v5605, %v6469
      %v6502 = vmul.f32 %v5606, %v6470
      %v6503 = vmul.f32 %v5607, %v6471
      %v6504 = vmul.f32 %v5608, %v6472
      %v6505 = vmul.f32 %v5609, %v6473
      %v6506 = vmul.f32 %v5610, %v6474
      %v6507 = vmul.f32 %v5611, %v6475
      %v6508 = vmul.f32 %v5612, %v6476
      %v6509 = vmul.f32 %v5613, %v6477
      %v6510 = vmul.f32 %v5614, %v6478
      %v6511 = vmul.f32 %v5615, %v6479
      %v6512 = vmul.f32 %v5616, %v6480
      %v6513 = vmul.f32 %v5617, %v6481
      %v6514 = vmul.f32 %v5618, %v6482
      %v6515 = vmul.f32 %v5619, %v6483
      %v6516 = vmul.f32 %v5620, %v6484
      %v6517 = vmul.f32 %v5621, %v6485
      %v6518 = vmul.f32 %v5622, %v6486
      %v6519 = vmul.f32 %v5623, %v6487
      %v6520 = vmul.f32 %v5624, %v6488
      %6521 = vst.msk [vmem:[#allocation3] sm:$0xff] %vm828, 0.0
      %6522 = vst.msk [vmem:[#allocation3 + $0x8] sm:$0xff] %vm828, 0.0
      %vm6523 = vcmask 58368
      %6524 = vst.msk [vmem:[#allocation3 + $0x10] sm:$0x3] %vm6523, 0.0
      %6525 = vst.msk [vmem:[#allocation3 + $0x18] sm:$0xff] %vm828, 0.0
      %6526 = vst.msk [vmem:[#allocation3 + $0x20] sm:$0xff] %vm828, 0.0
      %6527 = vst.msk [vmem:[#allocation3 + $0x28] sm:$0x3] %vm6523, 0.0
      %6528 = vst.msk [vmem:[#allocation3 + $0x30] sm:$0xff] %vm828, 0.0
      %6529 = vst.msk [vmem:[#allocation3 + $0x38] sm:$0xff] %vm828, 0.0
      %6530 = vst.msk [vmem:[#allocation3 + $0x40] sm:$0x3] %vm6523, 0.0
      %6531 = vst.msk [vmem:[#allocation3 + $0x48] sm:$0xff] %vm828, 0.0
      %6532 = vst.msk [vmem:[#allocation3 + $0x50] sm:$0xff] %vm828, 0.0
      %6533 = vst.msk [vmem:[#allocation3 + $0x58] sm:$0x3] %vm6523, 0.0
      %6534 = vst.msk [vmem:[#allocation3 + $0x60] sm:$0xff] %vm828, 0.0
      %6535 = vst.msk [vmem:[#allocation3 + $0x68] sm:$0xff] %vm828, 0.0
      %6536 = vst.msk [vmem:[#allocation3 + $0x70] sm:$0x3] %vm6523, 0.0
      %6537 = vst.msk [vmem:[#allocation3 + $0x78] sm:$0xff] %vm828, 0.0
      %6538 = vst.msk [vmem:[#allocation3 + $0x80] sm:$0xff] %vm828, 0.0
      %6539 = vst.msk [vmem:[#allocation3 + $0x88] sm:$0x3] %vm6523, 0.0
      %6540 = vst.msk [vmem:[#allocation3 + $0x90] sm:$0xff] %vm828, 0.0
      %6541 = vst.msk [vmem:[#allocation3 + $0x98] sm:$0xff] %vm828, 0.0
      %6542 = vst.msk [vmem:[#allocation3 + $0xa0] sm:$0x3] %vm6523, 0.0
      %6543 = vst.msk [vmem:[#allocation3 + $0xa8] sm:$0xff] %vm828, 0.0
      %6544 = vst.msk [vmem:[#allocation3 + $0xb0] sm:$0xff] %vm828, 0.0
      %6545 = vst.msk [vmem:[#allocation3 + $0xb8] sm:$0x3] %vm6523, 0.0
      %6546 = vst.msk [vmem:[#allocation3 + $0xc0] sm:$0xff] %vm828, 0.0
      %6547 = vst.msk [vmem:[#allocation3 + $0xc8] sm:$0xff] %vm828, 0.0
      %6548 = vst.msk [vmem:[#allocation3 + $0xd0] sm:$0x3] %vm6523, 0.0
      %6549 = vst.msk [vmem:[#allocation3 + $0xd8] sm:$0xff] %vm828, 0.0
      %6550 = vst.msk [vmem:[#allocation3 + $0xe0] sm:$0xff] %vm828, 0.0
      %6551 = vst.msk [vmem:[#allocation3 + $0xe8] sm:$0x3] %vm6523, 0.0
      %6552 = vst.msk [vmem:[#allocation3 + $0xf0] sm:$0xff] %vm828, 0.0
      %6553 = vst.msk [vmem:[#allocation3 + $0xf8] sm:$0xff] %vm828, 0.0
      %6554 = vst.msk [vmem:[#allocation3 + $0x100] sm:$0x3] %vm6523, 0.0
      %6555 = vst.msk [vmem:[#allocation3 + $0x108] sm:$0xff] %vm828, 0.0
      %6556 = vst.msk [vmem:[#allocation3 + $0x110] sm:$0xff] %vm828, 0.0
      %6557 = vst.msk [vmem:[#allocation3 + $0x118] sm:$0x3] %vm6523, 0.0
      %6558 = vst.msk [vmem:[#allocation3 + $0x120] sm:$0xff] %vm828, 0.0
      %6559 = vst.msk [vmem:[#allocation3 + $0x128] sm:$0xff] %vm828, 0.0
      %6560 = vst.msk [vmem:[#allocation3 + $0x130] sm:$0x3] %vm6523, 0.0
      %6561 = vst.msk [vmem:[#allocation3 + $0x138] sm:$0xff] %vm828, 0.0
      %6562 = vst.msk [vmem:[#allocation3 + $0x140] sm:$0xff] %vm828, 0.0
      %6563 = vst.msk [vmem:[#allocation3 + $0x148] sm:$0x3] %vm6523, 0.0
      %6564 = vst.msk [vmem:[#allocation3 + $0x150] sm:$0xff] %vm828, 0.0
      %6565 = vst.msk [vmem:[#allocation3 + $0x158] sm:$0xff] %vm828, 0.0
      %6566 = vst.msk [vmem:[#allocation3 + $0x160] sm:$0x3] %vm6523, 0.0
      %6567 = vst.msk [vmem:[#allocation3 + $0x168] sm:$0xff] %vm828, 0.0
      %6568 = vst.msk [vmem:[#allocation3 + $0x170] sm:$0xff] %vm828, 0.0
      %6569 = vst.msk [vmem:[#allocation3 + $0x178] sm:$0x3] %vm6523, 0.0
      %6570 = vst.msk [vmem:[#allocation3 + $0x180] sm:$0xff] %vm828, 0.0
      %6571 = vst.msk [vmem:[#allocation3 + $0x188] sm:$0xff] %vm828, 0.0
      %6572 = vst.msk [vmem:[#allocation3 + $0x190] sm:$0x3] %vm6523, 0.0
      %6573 = vst.msk [vmem:[#allocation3 + $0x198] sm:$0xff] %vm828, 0.0
      %6574 = vst.msk [vmem:[#allocation3 + $0x1a0] sm:$0xff] %vm828, 0.0
      %6575 = vst.msk [vmem:[#allocation3 + $0x1a8] sm:$0x3] %vm6523, 0.0
      %s6576 = scalar_lea.vmem [#allocation3], 24
      %6577 = vst.msk [vmem:[%s6576 + $0x1] sm:$0xff] %vm828, %v6489
      %6578 = vst.msk [vmem:[%s6576 + $0x9] sm:$0xff] %vm828, %v6490
      %6579 = vst.msk [vmem:[%s6576 + $0x19] sm:$0xff] %vm828, %v6491
      %6580 = vst.msk [vmem:[%s6576 + $0x21] sm:$0xff] %vm828, %v6492
      %6581 = vst.msk [vmem:[%s6576 + $0x31] sm:$0xff] %vm828, %v6493
      %6582 = vst.msk [vmem:[%s6576 + $0x39] sm:$0xff] %vm828, %v6494
      %6583 = vst.msk [vmem:[%s6576 + $0x49] sm:$0xff] %vm828, %v6495
      %6584 = vst.msk [vmem:[%s6576 + $0x51] sm:$0xff] %vm828, %v6496
      %6585 = vst.msk [vmem:[%s6576 + $0x61] sm:$0xff] %vm828, %v6497
      %6586 = vst.msk [vmem:[%s6576 + $0x69] sm:$0xff] %vm828, %v6498
      %6587 = vst.msk [vmem:[%s6576 + $0x79] sm:$0xff] %vm828, %v6499
      %6588 = vst.msk [vmem:[%s6576 + $0x81] sm:$0xff] %vm828, %v6500
      %6589 = vst.msk [vmem:[%s6576 + $0x91] sm:$0xff] %vm828, %v6501
      %6590 = vst.msk [vmem:[%s6576 + $0x99] sm:$0xff] %vm828, %v6502
      %6591 = vst.msk [vmem:[%s6576 + $0xa9] sm:$0xff] %vm828, %v6503
      %6592 = vst.msk [vmem:[%s6576 + $0xb1] sm:$0xff] %vm828, %v6504
      %6593 = vst.msk [vmem:[%s6576 + $0xc1] sm:$0xff] %vm828, %v6505
      %6594 = vst.msk [vmem:[%s6576 + $0xc9] sm:$0xff] %vm828, %v6506
      %6595 = vst.msk [vmem:[%s6576 + $0xd9] sm:$0xff] %vm828, %v6507
      %6596 = vst.msk [vmem:[%s6576 + $0xe1] sm:$0xff] %vm828, %v6508
      %6597 = vst.msk [vmem:[%s6576 + $0xf1] sm:$0xff] %vm828, %v6509
      %6598 = vst.msk [vmem:[%s6576 + $0xf9] sm:$0xff] %vm828, %v6510
      %6599 = vst.msk [vmem:[%s6576 + $0x109] sm:$0xff] %vm828, %v6511
      %6600 = vst.msk [vmem:[%s6576 + $0x111] sm:$0xff] %vm828, %v6512
      %6601 = vst.msk [vmem:[%s6576 + $0x121] sm:$0xff] %vm828, %v6513
      %6602 = vst.msk [vmem:[%s6576 + $0x129] sm:$0xff] %vm828, %v6514
      %6603 = vst.msk [vmem:[%s6576 + $0x139] sm:$0xff] %vm828, %v6515
      %6604 = vst.msk [vmem:[%s6576 + $0x141] sm:$0xff] %vm828, %v6516
      %6605 = vst.msk [vmem:[%s6576 + $0x151] sm:$0xff] %vm828, %v6517
      %6606 = vst.msk [vmem:[%s6576 + $0x159] sm:$0xff] %vm828, %v6518
      %6607 = vst.msk [vmem:[%s6576 + $0x169] sm:$0xff] %vm828, %v6519
      %6608 = vst.msk [vmem:[%s6576 + $0x171] sm:$0xff] %vm828, %v6520
      %v6609 = vld [vmem:[#allocation3] sm:$0xff]
      %v6610 = vld [vmem:[#allocation3 + $0x8] sm:$0xff]
      %v6611 = vld [vmem:[#allocation3 + $0x18] sm:$0xff]
      %v6612 = vld [vmem:[#allocation3 + $0x20] sm:$0xff]
      %v6613 = vld [vmem:[#allocation3 + $0x30] sm:$0xff]
      %v6614 = vld [vmem:[#allocation3 + $0x38] sm:$0xff]
      %v6615 = vld [vmem:[#allocation3 + $0x48] sm:$0xff]
      %v6616 = vld [vmem:[#allocation3 + $0x50] sm:$0xff]
      %v6617 = vld [vmem:[#allocation3 + $0x60] sm:$0xff]
      %v6618 = vld [vmem:[#allocation3 + $0x68] sm:$0xff]
      %v6619 = vld [vmem:[#allocation3 + $0x78] sm:$0xff]
      %v6620 = vld [vmem:[#allocation3 + $0x80] sm:$0xff]
      %v6621 = vld [vmem:[#allocation3 + $0x90] sm:$0xff]
      %v6622 = vld [vmem:[#allocation3 + $0x98] sm:$0xff]
      %v6623 = vld [vmem:[#allocation3 + $0xa8] sm:$0xff]
      %v6624 = vld [vmem:[#allocation3 + $0xb0] sm:$0xff]
      %v6625 = vld [vmem:[#allocation3 + $0xc0] sm:$0xff]
      %v6626 = vld [vmem:[#allocation3 + $0xc8] sm:$0xff]
      %v6627 = vld [vmem:[#allocation3 + $0xd8] sm:$0xff]
      %v6628 = vld [vmem:[#allocation3 + $0xe0] sm:$0xff]
      %v6629 = vld [vmem:[#allocation3 + $0xf0] sm:$0xff]
      %v6630 = vld [vmem:[#allocation3 + $0xf8] sm:$0xff]
      %v6631 = vld [vmem:[#allocation3 + $0x108] sm:$0xff]
      %v6632 = vld [vmem:[#allocation3 + $0x110] sm:$0xff]
      %v6633 = vld [vmem:[#allocation3 + $0x120] sm:$0xff]
      %v6634 = vld [vmem:[#allocation3 + $0x128] sm:$0xff]
      %v6635 = vld [vmem:[#allocation3 + $0x138] sm:$0xff]
      %v6636 = vld [vmem:[#allocation3 + $0x140] sm:$0xff]
      %v6637 = vld [vmem:[#allocation3 + $0x150] sm:$0xff]
      %v6638 = vld [vmem:[#allocation3 + $0x158] sm:$0xff]
      %v6639 = vld [vmem:[#allocation3 + $0x168] sm:$0xff]
      %v6640 = vld [vmem:[#allocation3 + $0x170] sm:$0xff]
      %6641 = vst.msk [vmem:[#allocation4] sm:$0xff] %vm828, %v6609
      %6642 = vst.msk [vmem:[#allocation4 + $0x8] sm:$0xff] %vm828, %v6610
      %6643 = vst.msk [vmem:[#allocation4 + $0x10] sm:$0xff] %vm828, %v6611
      %6644 = vst.msk [vmem:[#allocation4 + $0x18] sm:$0xff] %vm828, %v6612
      %6645 = vst.msk [vmem:[#allocation4 + $0x20] sm:$0xff] %vm828, %v6613
      %6646 = vst.msk [vmem:[#allocation4 + $0x28] sm:$0xff] %vm828, %v6614
      %6647 = vst.msk [vmem:[#allocation4 + $0x30] sm:$0xff] %vm828, %v6615
      %6648 = vst.msk [vmem:[#allocation4 + $0x38] sm:$0xff] %vm828, %v6616
      %6649 = vst.msk [vmem:[#allocation4 + $0x40] sm:$0xff] %vm828, %v6617
      %6650 = vst.msk [vmem:[#allocation4 + $0x48] sm:$0xff] %vm828, %v6618
      %6651 = vst.msk [vmem:[#allocation4 + $0x50] sm:$0xff] %vm828, %v6619
      %6652 = vst.msk [vmem:[#allocation4 + $0x58] sm:$0xff] %vm828, %v6620
      %6653 = vst.msk [vmem:[#allocation4 + $0x60] sm:$0xff] %vm828, %v6621
      %6654 = vst.msk [vmem:[#allocation4 + $0x68] sm:$0xff] %vm828, %v6622
      %6655 = vst.msk [vmem:[#allocation4 + $0x70] sm:$0xff] %vm828, %v6623
      %6656 = vst.msk [vmem:[#allocation4 + $0x78] sm:$0xff] %vm828, %v6624
      %6657 = vst.msk [vmem:[#allocation4 + $0x80] sm:$0xff] %vm828, %v6625
      %6658 = vst.msk [vmem:[#allocation4 + $0x88] sm:$0xff] %vm828, %v6626
      %6659 = vst.msk [vmem:[#allocation4 + $0x90] sm:$0xff] %vm828, %v6627
      %6660 = vst.msk [vmem:[#allocation4 + $0x98] sm:$0xff] %vm828, %v6628
      %6661 = vst.msk [vmem:[#allocation4 + $0xa0] sm:$0xff] %vm828, %v6629
      %6662 = vst.msk [vmem:[#allocation4 + $0xa8] sm:$0xff] %vm828, %v6630
      %6663 = vst.msk [vmem:[#allocation4 + $0xb0] sm:$0xff] %vm828, %v6631
      %6664 = vst.msk [vmem:[#allocation4 + $0xb8] sm:$0xff] %vm828, %v6632
      %6665 = vst.msk [vmem:[#allocation4 + $0xc0] sm:$0xff] %vm828, %v6633
      %6666 = vst.msk [vmem:[#allocation4 + $0xc8] sm:$0xff] %vm828, %v6634
      %6667 = vst.msk [vmem:[#allocation4 + $0xd0] sm:$0xff] %vm828, %v6635
      %6668 = vst.msk [vmem:[#allocation4 + $0xd8] sm:$0xff] %vm828, %v6636
      %6669 = vst.msk [vmem:[#allocation4 + $0xe0] sm:$0xff] %vm828, %v6637
      %6670 = vst.msk [vmem:[#allocation4 + $0xe8] sm:$0xff] %vm828, %v6638
      %6671 = vst.msk [vmem:[#allocation4 + $0xf0] sm:$0xff] %vm828, %v6639
      %6672 = vst.msk [vmem:[#allocation4 + $0xf8] sm:$0xff] %vm828, %v6640
      %v6673 = vld [vmem:[#allocation3 + $0x1] sm:$0xff]
      %v6674 = vld [vmem:[#allocation3 + $0x9] sm:$0xff]
      %v6675 = vld [vmem:[#allocation3 + $0x19] sm:$0xff]
      %v6676 = vld [vmem:[#allocation3 + $0x21] sm:$0xff]
      %v6677 = vld [vmem:[#allocation3 + $0x31] sm:$0xff]
      %v6678 = vld [vmem:[#allocation3 + $0x39] sm:$0xff]
      %v6679 = vld [vmem:[#allocation3 + $0x49] sm:$0xff]
      %v6680 = vld [vmem:[#allocation3 + $0x51] sm:$0xff]
      %v6681 = vld [vmem:[#allocation3 + $0x61] sm:$0xff]
      %v6682 = vld [vmem:[#allocation3 + $0x69] sm:$0xff]
      %v6683 = vld [vmem:[#allocation3 + $0x79] sm:$0xff]
      %v6684 = vld [vmem:[#allocation3 + $0x81] sm:$0xff]
      %v6685 = vld [vmem:[#allocation3 + $0x91] sm:$0xff]
      %v6686 = vld [vmem:[#allocation3 + $0x99] sm:$0xff]
      %v6687 = vld [vmem:[#allocation3 + $0xa9] sm:$0xff]
      %v6688 = vld [vmem:[#allocation3 + $0xb1] sm:$0xff]
      %v6689 = vld [vmem:[#allocation3 + $0xc1] sm:$0xff]
      %v6690 = vld [vmem:[#allocation3 + $0xc9] sm:$0xff]
      %v6691 = vld [vmem:[#allocation3 + $0xd9] sm:$0xff]
      %v6692 = vld [vmem:[#allocation3 + $0xe1] sm:$0xff]
      %v6693 = vld [vmem:[#allocation3 + $0xf1] sm:$0xff]
      %v6694 = vld [vmem:[#allocation3 + $0xf9] sm:$0xff]
      %v6695 = vld [vmem:[#allocation3 + $0x109] sm:$0xff]
      %v6696 = vld [vmem:[#allocation3 + $0x111] sm:$0xff]
      %v6697 = vld [vmem:[#allocation3 + $0x121] sm:$0xff]
      %v6698 = vld [vmem:[#allocation3 + $0x129] sm:$0xff]
      %v6699 = vld [vmem:[#allocation3 + $0x139] sm:$0xff]
      %v6700 = vld [vmem:[#allocation3 + $0x141] sm:$0xff]
      %v6701 = vld [vmem:[#allocation3 + $0x151] sm:$0xff]
      %v6702 = vld [vmem:[#allocation3 + $0x159] sm:$0xff]
      %v6703 = vld [vmem:[#allocation3 + $0x169] sm:$0xff]
      %v6704 = vld [vmem:[#allocation3 + $0x171] sm:$0xff]
      %6737 = vrot.lane.b32.xlu0 %v6673, 8
      %v6738 = vpop.permute.xlu0 %6737
      %6739 = vrot.lane.b32.xlu0 %v6674, 8
      %v6740 = vpop.permute.xlu0 %6739
      %6741 = vrot.lane.b32.xlu0 %v6675, 8
      %v6742 = vpop.permute.xlu0 %6741
      %6743 = vrot.lane.b32.xlu0 %v6676, 8
      %v6744 = vpop.permute.xlu0 %6743
      %6745 = vrot.lane.b32.xlu0 %v6677, 8
      %v6746 = vpop.permute.xlu0 %6745
      %6747 = vrot.lane.b32.xlu0 %v6678, 8
      %v6748 = vpop.permute.xlu0 %6747
      %6749 = vrot.lane.b32.xlu0 %v6679, 8
      %v6750 = vpop.permute.xlu0 %6749
      %6751 = vrot.lane.b32.xlu0 %v6680, 8
      %v6752 = vpop.permute.xlu0 %6751
      %6753 = vrot.lane.b32.xlu0 %v6681, 8
      %v6754 = vpop.permute.xlu0 %6753
      %6755 = vrot.lane.b32.xlu0 %v6682, 8
      %v6756 = vpop.permute.xlu0 %6755
      %6757 = vrot.lane.b32.xlu0 %v6683, 8
      %v6758 = vpop.permute.xlu0 %6757
      %6759 = vrot.lane.b32.xlu0 %v6684, 8
      %v6760 = vpop.permute.xlu0 %6759
      %6761 = vrot.lane.b32.xlu0 %v6685, 8
      %v6762 = vpop.permute.xlu0 %6761
      %6763 = vrot.lane.b32.xlu0 %v6686, 8
      %v6764 = vpop.permute.xlu0 %6763
      %6765 = vrot.lane.b32.xlu0 %v6687, 8
      %v6766 = vpop.permute.xlu0 %6765
      %6767 = vrot.lane.b32.xlu0 %v6688, 8
      %v6768 = vpop.permute.xlu0 %6767
      %6769 = vrot.lane.b32.xlu0 %v6689, 8
      %v6770 = vpop.permute.xlu0 %6769
      %6771 = vrot.lane.b32.xlu0 %v6690, 8
      %v6772 = vpop.permute.xlu0 %6771
      %6773 = vrot.lane.b32.xlu0 %v6691, 8
      %v6774 = vpop.permute.xlu0 %6773
      %6775 = vrot.lane.b32.xlu0 %v6692, 8
      %v6776 = vpop.permute.xlu0 %6775
      %6777 = vrot.lane.b32.xlu0 %v6693, 8
      %v6778 = vpop.permute.xlu0 %6777
      %6779 = vrot.lane.b32.xlu0 %v6694, 8
      %v6780 = vpop.permute.xlu0 %6779
      %6781 = vrot.lane.b32.xlu0 %v6695, 8
      %v6782 = vpop.permute.xlu0 %6781
      %6783 = vrot.lane.b32.xlu0 %v6696, 8
      %v6784 = vpop.permute.xlu0 %6783
      %6785 = vrot.lane.b32.xlu0 %v6697, 8
      %v6786 = vpop.permute.xlu0 %6785
      %6787 = vrot.lane.b32.xlu0 %v6698, 8
      %v6788 = vpop.permute.xlu0 %6787
      %6789 = vrot.lane.b32.xlu0 %v6699, 8
      %v6790 = vpop.permute.xlu0 %6789
      %6791 = vrot.lane.b32.xlu0 %v6700, 8
      %v6792 = vpop.permute.xlu0 %6791
      %6793 = vrot.lane.b32.xlu0 %v6701, 8
      %v6794 = vpop.permute.xlu0 %6793
      %6795 = vrot.lane.b32.xlu0 %v6702, 8
      %v6796 = vpop.permute.xlu0 %6795
      %6797 = vrot.lane.b32.xlu0 %v6703, 8
      %v6798 = vpop.permute.xlu0 %6797
      %6799 = vrot.lane.b32.xlu0 %v6704, 8
      %v6800 = vpop.permute.xlu0 %6799
      %6833 = vst.msk [vmem:[#allocation4] sm:$0xff] %vm1124, %v6738
      %6834 = vst.msk [vmem:[#allocation4 + $0x8] sm:$0xff] %vm1124, %v6740
      %6835 = vst.msk [vmem:[#allocation4 + $0x10] sm:$0xff] %vm1124, %v6742
      %6836 = vst.msk [vmem:[#allocation4 + $0x18] sm:$0xff] %vm1124, %v6744
      %6837 = vst.msk [vmem:[#allocation4 + $0x20] sm:$0xff] %vm1124, %v6746
      %6838 = vst.msk [vmem:[#allocation4 + $0x28] sm:$0xff] %vm1124, %v6748
      %6839 = vst.msk [vmem:[#allocation4 + $0x30] sm:$0xff] %vm1124, %v6750
      %6840 = vst.msk [vmem:[#allocation4 + $0x38] sm:$0xff] %vm1124, %v6752
      %6841 = vst.msk [vmem:[#allocation4 + $0x40] sm:$0xff] %vm1124, %v6754
      %6842 = vst.msk [vmem:[#allocation4 + $0x48] sm:$0xff] %vm1124, %v6756
      %6843 = vst.msk [vmem:[#allocation4 + $0x50] sm:$0xff] %vm1124, %v6758
      %6844 = vst.msk [vmem:[#allocation4 + $0x58] sm:$0xff] %vm1124, %v6760
      %6845 = vst.msk [vmem:[#allocation4 + $0x60] sm:$0xff] %vm1124, %v6762
      %6846 = vst.msk [vmem:[#allocation4 + $0x68] sm:$0xff] %vm1124, %v6764
      %6847 = vst.msk [vmem:[#allocation4 + $0x70] sm:$0xff] %vm1124, %v6766
      %6848 = vst.msk [vmem:[#allocation4 + $0x78] sm:$0xff] %vm1124, %v6768
      %6849 = vst.msk [vmem:[#allocation4 + $0x80] sm:$0xff] %vm1124, %v6770
      %6850 = vst.msk [vmem:[#allocation4 + $0x88] sm:$0xff] %vm1124, %v6772
      %6851 = vst.msk [vmem:[#allocation4 + $0x90] sm:$0xff] %vm1124, %v6774
      %6852 = vst.msk [vmem:[#allocation4 + $0x98] sm:$0xff] %vm1124, %v6776
      %6853 = vst.msk [vmem:[#allocation4 + $0xa0] sm:$0xff] %vm1124, %v6778
      %6854 = vst.msk [vmem:[#allocation4 + $0xa8] sm:$0xff] %vm1124, %v6780
      %6855 = vst.msk [vmem:[#allocation4 + $0xb0] sm:$0xff] %vm1124, %v6782
      %6856 = vst.msk [vmem:[#allocation4 + $0xb8] sm:$0xff] %vm1124, %v6784
      %6857 = vst.msk [vmem:[#allocation4 + $0xc0] sm:$0xff] %vm1124, %v6786
      %6858 = vst.msk [vmem:[#allocation4 + $0xc8] sm:$0xff] %vm1124, %v6788
      %6859 = vst.msk [vmem:[#allocation4 + $0xd0] sm:$0xff] %vm1124, %v6790
      %6860 = vst.msk [vmem:[#allocation4 + $0xd8] sm:$0xff] %vm1124, %v6792
      %6861 = vst.msk [vmem:[#allocation4 + $0xe0] sm:$0xff] %vm1124, %v6794
      %6862 = vst.msk [vmem:[#allocation4 + $0xe8] sm:$0xff] %vm1124, %v6796
      %6863 = vst.msk [vmem:[#allocation4 + $0xf0] sm:$0xff] %vm1124, %v6798
      %6864 = vst.msk [vmem:[#allocation4 + $0xf8] sm:$0xff] %vm1124, %v6800
      %v6865 = vld [vmem:[#allocation3 + $0x2] sm:$0xff]
      %v6866 = vld [vmem:[#allocation3 + $0xa] sm:$0xff]
      %v6867 = vld [vmem:[#allocation3 + $0x1a] sm:$0xff]
      %v6868 = vld [vmem:[#allocation3 + $0x22] sm:$0xff]
      %v6869 = vld [vmem:[#allocation3 + $0x32] sm:$0xff]
      %v6870 = vld [vmem:[#allocation3 + $0x3a] sm:$0xff]
      %v6871 = vld [vmem:[#allocation3 + $0x4a] sm:$0xff]
      %v6872 = vld [vmem:[#allocation3 + $0x52] sm:$0xff]
      %v6873 = vld [vmem:[#allocation3 + $0x62] sm:$0xff]
      %v6874 = vld [vmem:[#allocation3 + $0x6a] sm:$0xff]
      %v6875 = vld [vmem:[#allocation3 + $0x7a] sm:$0xff]
      %v6876 = vld [vmem:[#allocation3 + $0x82] sm:$0xff]
      %v6877 = vld [vmem:[#allocation3 + $0x92] sm:$0xff]
      %v6878 = vld [vmem:[#allocation3 + $0x9a] sm:$0xff]
      %v6879 = vld [vmem:[#allocation3 + $0xaa] sm:$0xff]
      %v6880 = vld [vmem:[#allocation3 + $0xb2] sm:$0xff]
      %v6881 = vld [vmem:[#allocation3 + $0xc2] sm:$0xff]
      %v6882 = vld [vmem:[#allocation3 + $0xca] sm:$0xff]
      %v6883 = vld [vmem:[#allocation3 + $0xda] sm:$0xff]
      %v6884 = vld [vmem:[#allocation3 + $0xe2] sm:$0xff]
      %v6885 = vld [vmem:[#allocation3 + $0xf2] sm:$0xff]
      %v6886 = vld [vmem:[#allocation3 + $0xfa] sm:$0xff]
      %v6887 = vld [vmem:[#allocation3 + $0x10a] sm:$0xff]
      %v6888 = vld [vmem:[#allocation3 + $0x112] sm:$0xff]
      %v6889 = vld [vmem:[#allocation3 + $0x122] sm:$0xff]
      %v6890 = vld [vmem:[#allocation3 + $0x12a] sm:$0xff]
      %v6891 = vld [vmem:[#allocation3 + $0x13a] sm:$0xff]
      %v6892 = vld [vmem:[#allocation3 + $0x142] sm:$0xff]
      %v6893 = vld [vmem:[#allocation3 + $0x152] sm:$0xff]
      %v6894 = vld [vmem:[#allocation3 + $0x15a] sm:$0xff]
      %v6895 = vld [vmem:[#allocation3 + $0x16a] sm:$0xff]
      %v6896 = vld [vmem:[#allocation3 + $0x172] sm:$0xff]
      %6929 = vrot.lane.b32.xlu0 %v6865, 16
      %v6930 = vpop.permute.xlu0 %6929
      %6931 = vrot.lane.b32.xlu0 %v6866, 16
      %v6932 = vpop.permute.xlu0 %6931
      %6933 = vrot.lane.b32.xlu0 %v6867, 16
      %v6934 = vpop.permute.xlu0 %6933
      %6935 = vrot.lane.b32.xlu0 %v6868, 16
      %v6936 = vpop.permute.xlu0 %6935
      %6937 = vrot.lane.b32.xlu0 %v6869, 16
      %v6938 = vpop.permute.xlu0 %6937
      %6939 = vrot.lane.b32.xlu0 %v6870, 16
      %v6940 = vpop.permute.xlu0 %6939
      %6941 = vrot.lane.b32.xlu0 %v6871, 16
      %v6942 = vpop.permute.xlu0 %6941
      %6943 = vrot.lane.b32.xlu0 %v6872, 16
      %v6944 = vpop.permute.xlu0 %6943
      %6945 = vrot.lane.b32.xlu0 %v6873, 16
      %v6946 = vpop.permute.xlu0 %6945
      %6947 = vrot.lane.b32.xlu0 %v6874, 16
      %v6948 = vpop.permute.xlu0 %6947
      %6949 = vrot.lane.b32.xlu0 %v6875, 16
      %v6950 = vpop.permute.xlu0 %6949
      %6951 = vrot.lane.b32.xlu0 %v6876, 16
      %v6952 = vpop.permute.xlu0 %6951
      %6953 = vrot.lane.b32.xlu0 %v6877, 16
      %v6954 = vpop.permute.xlu0 %6953
      %6955 = vrot.lane.b32.xlu0 %v6878, 16
      %v6956 = vpop.permute.xlu0 %6955
      %6957 = vrot.lane.b32.xlu0 %v6879, 16
      %v6958 = vpop.permute.xlu0 %6957
      %6959 = vrot.lane.b32.xlu0 %v6880, 16
      %v6960 = vpop.permute.xlu0 %6959
      %6961 = vrot.lane.b32.xlu0 %v6881, 16
      %v6962 = vpop.permute.xlu0 %6961
      %6963 = vrot.lane.b32.xlu0 %v6882, 16
      %v6964 = vpop.permute.xlu0 %6963
      %6965 = vrot.lane.b32.xlu0 %v6883, 16
      %v6966 = vpop.permute.xlu0 %6965
      %6967 = vrot.lane.b32.xlu0 %v6884, 16
      %v6968 = vpop.permute.xlu0 %6967
      %6969 = vrot.lane.b32.xlu0 %v6885, 16
      %v6970 = vpop.permute.xlu0 %6969
      %6971 = vrot.lane.b32.xlu0 %v6886, 16
      %v6972 = vpop.permute.xlu0 %6971
      %6973 = vrot.lane.b32.xlu0 %v6887, 16
      %v6974 = vpop.permute.xlu0 %6973
      %6975 = vrot.lane.b32.xlu0 %v6888, 16
      %v6976 = vpop.permute.xlu0 %6975
      %6977 = vrot.lane.b32.xlu0 %v6889, 16
      %v6978 = vpop.permute.xlu0 %6977
      %6979 = vrot.lane.b32.xlu0 %v6890, 16
      %v6980 = vpop.permute.xlu0 %6979
      %6981 = vrot.lane.b32.xlu0 %v6891, 16
      %v6982 = vpop.permute.xlu0 %6981
      %6983 = vrot.lane.b32.xlu0 %v6892, 16
      %v6984 = vpop.permute.xlu0 %6983
      %6985 = vrot.lane.b32.xlu0 %v6893, 16
      %v6986 = vpop.permute.xlu0 %6985
      %6987 = vrot.lane.b32.xlu0 %v6894, 16
      %v6988 = vpop.permute.xlu0 %6987
      %6989 = vrot.lane.b32.xlu0 %v6895, 16
      %v6990 = vpop.permute.xlu0 %6989
      %6991 = vrot.lane.b32.xlu0 %v6896, 16
      %v6992 = vpop.permute.xlu0 %6991
      %7025 = vst.msk [vmem:[#allocation4] sm:$0xff] %vm1382, %v6930
      %7026 = vst.msk [vmem:[#allocation4 + $0x8] sm:$0xff] %vm1382, %v6932
      %7027 = vst.msk [vmem:[#allocation4 + $0x10] sm:$0xff] %vm1382, %v6934
      %7028 = vst.msk [vmem:[#allocation4 + $0x18] sm:$0xff] %vm1382, %v6936
      %7029 = vst.msk [vmem:[#allocation4 + $0x20] sm:$0xff] %vm1382, %v6938
      %7030 = vst.msk [vmem:[#allocation4 + $0x28] sm:$0xff] %vm1382, %v6940
      %7031 = vst.msk [vmem:[#allocation4 + $0x30] sm:$0xff] %vm1382, %v6942
      %7032 = vst.msk [vmem:[#allocation4 + $0x38] sm:$0xff] %vm1382, %v6944
      %7033 = vst.msk [vmem:[#allocation4 + $0x40] sm:$0xff] %vm1382, %v6946
      %7034 = vst.msk [vmem:[#allocation4 + $0x48] sm:$0xff] %vm1382, %v6948
      %7035 = vst.msk [vmem:[#allocation4 + $0x50] sm:$0xff] %vm1382, %v6950
      %7036 = vst.msk [vmem:[#allocation4 + $0x58] sm:$0xff] %vm1382, %v6952
      %7037 = vst.msk [vmem:[#allocation4 + $0x60] sm:$0xff] %vm1382, %v6954
      %7038 = vst.msk [vmem:[#allocation4 + $0x68] sm:$0xff] %vm1382, %v6956
      %7039 = vst.msk [vmem:[#allocation4 + $0x70] sm:$0xff] %vm1382, %v6958
      %7040 = vst.msk [vmem:[#allocation4 + $0x78] sm:$0xff] %vm1382, %v6960
      %7041 = vst.msk [vmem:[#allocation4 + $0x80] sm:$0xff] %vm1382, %v6962
      %7042 = vst.msk [vmem:[#allocation4 + $0x88] sm:$0xff] %vm1382, %v6964
      %7043 = vst.msk [vmem:[#allocation4 + $0x90] sm:$0xff] %vm1382, %v6966
      %7044 = vst.msk [vmem:[#allocation4 + $0x98] sm:$0xff] %vm1382, %v6968
      %7045 = vst.msk [vmem:[#allocation4 + $0xa0] sm:$0xff] %vm1382, %v6970
      %7046 = vst.msk [vmem:[#allocation4 + $0xa8] sm:$0xff] %vm1382, %v6972
      %7047 = vst.msk [vmem:[#allocation4 + $0xb0] sm:$0xff] %vm1382, %v6974
      %7048 = vst.msk [vmem:[#allocation4 + $0xb8] sm:$0xff] %vm1382, %v6976
      %7049 = vst.msk [vmem:[#allocation4 + $0xc0] sm:$0xff] %vm1382, %v6978
      %7050 = vst.msk [vmem:[#allocation4 + $0xc8] sm:$0xff] %vm1382, %v6980
      %7051 = vst.msk [vmem:[#allocation4 + $0xd0] sm:$0xff] %vm1382, %v6982
      %7052 = vst.msk [vmem:[#allocation4 + $0xd8] sm:$0xff] %vm1382, %v6984
      %7053 = vst.msk [vmem:[#allocation4 + $0xe0] sm:$0xff] %vm1382, %v6986
      %7054 = vst.msk [vmem:[#allocation4 + $0xe8] sm:$0xff] %vm1382, %v6988
      %7055 = vst.msk [vmem:[#allocation4 + $0xf0] sm:$0xff] %vm1382, %v6990
      %7056 = vst.msk [vmem:[#allocation4 + $0xf8] sm:$0xff] %vm1382, %v6992
      %v7057 = vld [vmem:[%s6576] sm:$0xff]
      %v7058 = vld [vmem:[%s6576 + $0x8] sm:$0xff]
      %v7059 = vld [vmem:[%s6576 + $0x18] sm:$0xff]
      %v7060 = vld [vmem:[%s6576 + $0x20] sm:$0xff]
      %v7061 = vld [vmem:[%s6576 + $0x30] sm:$0xff]
      %v7062 = vld [vmem:[%s6576 + $0x38] sm:$0xff]
      %v7063 = vld [vmem:[%s6576 + $0x48] sm:$0xff]
      %v7064 = vld [vmem:[%s6576 + $0x50] sm:$0xff]
      %v7065 = vld [vmem:[%s6576 + $0x60] sm:$0xff]
      %v7066 = vld [vmem:[%s6576 + $0x68] sm:$0xff]
      %v7067 = vld [vmem:[%s6576 + $0x78] sm:$0xff]
      %v7068 = vld [vmem:[%s6576 + $0x80] sm:$0xff]
      %v7069 = vld [vmem:[%s6576 + $0x90] sm:$0xff]
      %v7070 = vld [vmem:[%s6576 + $0x98] sm:$0xff]
      %v7071 = vld [vmem:[%s6576 + $0xa8] sm:$0xff]
      %v7072 = vld [vmem:[%s6576 + $0xb0] sm:$0xff]
      %v7073 = vld [vmem:[%s6576 + $0xc0] sm:$0xff]
      %v7074 = vld [vmem:[%s6576 + $0xc8] sm:$0xff]
      %v7075 = vld [vmem:[%s6576 + $0xd8] sm:$0xff]
      %v7076 = vld [vmem:[%s6576 + $0xe0] sm:$0xff]
      %v7077 = vld [vmem:[%s6576 + $0xf0] sm:$0xff]
      %v7078 = vld [vmem:[%s6576 + $0xf8] sm:$0xff]
      %v7079 = vld [vmem:[%s6576 + $0x108] sm:$0xff]
      %v7080 = vld [vmem:[%s6576 + $0x110] sm:$0xff]
      %v7081 = vld [vmem:[%s6576 + $0x120] sm:$0xff]
      %v7082 = vld [vmem:[%s6576 + $0x128] sm:$0xff]
      %v7083 = vld [vmem:[%s6576 + $0x138] sm:$0xff]
      %v7084 = vld [vmem:[%s6576 + $0x140] sm:$0xff]
      %v7085 = vld [vmem:[%s6576 + $0x150] sm:$0xff]
      %v7086 = vld [vmem:[%s6576 + $0x158] sm:$0xff]
      %v7087 = vld [vmem:[%s6576 + $0x168] sm:$0xff]
      %v7088 = vld [vmem:[%s6576 + $0x170] sm:$0xff]
      %7121 = vrot.lane.b32.xlu0 %v7057, 24
      %v7122 = vpop.permute.xlu0 %7121
      %7123 = vrot.lane.b32.xlu0 %v7058, 24
      %v7124 = vpop.permute.xlu0 %7123
      %7125 = vrot.lane.b32.xlu0 %v7059, 24
      %v7126 = vpop.permute.xlu0 %7125
      %7127 = vrot.lane.b32.xlu0 %v7060, 24
      %v7128 = vpop.permute.xlu0 %7127
      %7129 = vrot.lane.b32.xlu0 %v7061, 24
      %v7130 = vpop.permute.xlu0 %7129
      %7131 = vrot.lane.b32.xlu0 %v7062, 24
      %v7132 = vpop.permute.xlu0 %7131
      %7133 = vrot.lane.b32.xlu0 %v7063, 24
      %v7134 = vpop.permute.xlu0 %7133
      %7135 = vrot.lane.b32.xlu0 %v7064, 24
      %v7136 = vpop.permute.xlu0 %7135
      %7137 = vrot.lane.b32.xlu0 %v7065, 24
      %v7138 = vpop.permute.xlu0 %7137
      %7139 = vrot.lane.b32.xlu0 %v7066, 24
      %v7140 = vpop.permute.xlu0 %7139
      %7141 = vrot.lane.b32.xlu0 %v7067, 24
      %v7142 = vpop.permute.xlu0 %7141
      %7143 = vrot.lane.b32.xlu0 %v7068, 24
      %v7144 = vpop.permute.xlu0 %7143
      %7145 = vrot.lane.b32.xlu0 %v7069, 24
      %v7146 = vpop.permute.xlu0 %7145
      %7147 = vrot.lane.b32.xlu0 %v7070, 24
      %v7148 = vpop.permute.xlu0 %7147
      %7149 = vrot.lane.b32.xlu0 %v7071, 24
      %v7150 = vpop.permute.xlu0 %7149
      %7151 = vrot.lane.b32.xlu0 %v7072, 24
      %v7152 = vpop.permute.xlu0 %7151
      %7153 = vrot.lane.b32.xlu0 %v7073, 24
      %v7154 = vpop.permute.xlu0 %7153
      %7155 = vrot.lane.b32.xlu0 %v7074, 24
      %v7156 = vpop.permute.xlu0 %7155
      %7157 = vrot.lane.b32.xlu0 %v7075, 24
      %v7158 = vpop.permute.xlu0 %7157
      %7159 = vrot.lane.b32.xlu0 %v7076, 24
      %v7160 = vpop.permute.xlu0 %7159
      %7161 = vrot.lane.b32.xlu0 %v7077, 24
      %v7162 = vpop.permute.xlu0 %7161
      %7163 = vrot.lane.b32.xlu0 %v7078, 24
      %v7164 = vpop.permute.xlu0 %7163
      %7165 = vrot.lane.b32.xlu0 %v7079, 24
      %v7166 = vpop.permute.xlu0 %7165
      %7167 = vrot.lane.b32.xlu0 %v7080, 24
      %v7168 = vpop.permute.xlu0 %7167
      %7169 = vrot.lane.b32.xlu0 %v7081, 24
      %v7170 = vpop.permute.xlu0 %7169
      %7171 = vrot.lane.b32.xlu0 %v7082, 24
      %v7172 = vpop.permute.xlu0 %7171
      %7173 = vrot.lane.b32.xlu0 %v7083, 24
      %v7174 = vpop.permute.xlu0 %7173
      %7175 = vrot.lane.b32.xlu0 %v7084, 24
      %v7176 = vpop.permute.xlu0 %7175
      %7177 = vrot.lane.b32.xlu0 %v7085, 24
      %v7178 = vpop.permute.xlu0 %7177
      %7179 = vrot.lane.b32.xlu0 %v7086, 24
      %v7180 = vpop.permute.xlu0 %7179
      %7181 = vrot.lane.b32.xlu0 %v7087, 24
      %v7182 = vpop.permute.xlu0 %7181
      %7183 = vrot.lane.b32.xlu0 %v7088, 24
      %v7184 = vpop.permute.xlu0 %7183
      %7217 = vst.msk [vmem:[#allocation4] sm:$0xff] %vm2085, %v7122
      %7218 = vst.msk [vmem:[#allocation4 + $0x8] sm:$0xff] %vm2085, %v7124
      %7219 = vst.msk [vmem:[#allocation4 + $0x10] sm:$0xff] %vm2085, %v7126
      %7220 = vst.msk [vmem:[#allocation4 + $0x18] sm:$0xff] %vm2085, %v7128
      %7221 = vst.msk [vmem:[#allocation4 + $0x20] sm:$0xff] %vm2085, %v7130
      %7222 = vst.msk [vmem:[#allocation4 + $0x28] sm:$0xff] %vm2085, %v7132
      %7223 = vst.msk [vmem:[#allocation4 + $0x30] sm:$0xff] %vm2085, %v7134
      %7224 = vst.msk [vmem:[#allocation4 + $0x38] sm:$0xff] %vm2085, %v7136
      %7225 = vst.msk [vmem:[#allocation4 + $0x40] sm:$0xff] %vm2085, %v7138
      %7226 = vst.msk [vmem:[#allocation4 + $0x48] sm:$0xff] %vm2085, %v7140
      %7227 = vst.msk [vmem:[#allocation4 + $0x50] sm:$0xff] %vm2085, %v7142
      %7228 = vst.msk [vmem:[#allocation4 + $0x58] sm:$0xff] %vm2085, %v7144
      %7229 = vst.msk [vmem:[#allocation4 + $0x60] sm:$0xff] %vm2085, %v7146
      %7230 = vst.msk [vmem:[#allocation4 + $0x68] sm:$0xff] %vm2085, %v7148
      %7231 = vst.msk [vmem:[#allocation4 + $0x70] sm:$0xff] %vm2085, %v7150
      %7232 = vst.msk [vmem:[#allocation4 + $0x78] sm:$0xff] %vm2085, %v7152
      %7233 = vst.msk [vmem:[#allocation4 + $0x80] sm:$0xff] %vm2085, %v7154
      %7234 = vst.msk [vmem:[#allocation4 + $0x88] sm:$0xff] %vm2085, %v7156
      %7235 = vst.msk [vmem:[#allocation4 + $0x90] sm:$0xff] %vm2085, %v7158
      %7236 = vst.msk [vmem:[#allocation4 + $0x98] sm:$0xff] %vm2085, %v7160
      %7237 = vst.msk [vmem:[#allocation4 + $0xa0] sm:$0xff] %vm2085, %v7162
      %7238 = vst.msk [vmem:[#allocation4 + $0xa8] sm:$0xff] %vm2085, %v7164
      %7239 = vst.msk [vmem:[#allocation4 + $0xb0] sm:$0xff] %vm2085, %v7166
      %7240 = vst.msk [vmem:[#allocation4 + $0xb8] sm:$0xff] %vm2085, %v7168
      %7241 = vst.msk [vmem:[#allocation4 + $0xc0] sm:$0xff] %vm2085, %v7170
      %7242 = vst.msk [vmem:[#allocation4 + $0xc8] sm:$0xff] %vm2085, %v7172
      %7243 = vst.msk [vmem:[#allocation4 + $0xd0] sm:$0xff] %vm2085, %v7174
      %7244 = vst.msk [vmem:[#allocation4 + $0xd8] sm:$0xff] %vm2085, %v7176
      %7245 = vst.msk [vmem:[#allocation4 + $0xe0] sm:$0xff] %vm2085, %v7178
      %7246 = vst.msk [vmem:[#allocation4 + $0xe8] sm:$0xff] %vm2085, %v7180
      %7247 = vst.msk [vmem:[#allocation4 + $0xf0] sm:$0xff] %vm2085, %v7182
      %7248 = vst.msk [vmem:[#allocation4 + $0xf8] sm:$0xff] %vm2085, %v7184
      %v7249 = vld [vmem:[%s6576 + $0x1] sm:$0xff]
      %v7250 = vld [vmem:[%s6576 + $0x9] sm:$0xff]
      %v7251 = vld [vmem:[%s6576 + $0x19] sm:$0xff]
      %v7252 = vld [vmem:[%s6576 + $0x21] sm:$0xff]
      %v7253 = vld [vmem:[%s6576 + $0x31] sm:$0xff]
      %v7254 = vld [vmem:[%s6576 + $0x39] sm:$0xff]
      %v7255 = vld [vmem:[%s6576 + $0x49] sm:$0xff]
      %v7256 = vld [vmem:[%s6576 + $0x51] sm:$0xff]
      %v7257 = vld [vmem:[%s6576 + $0x61] sm:$0xff]
      %v7258 = vld [vmem:[%s6576 + $0x69] sm:$0xff]
      %v7259 = vld [vmem:[%s6576 + $0x79] sm:$0xff]
      %v7260 = vld [vmem:[%s6576 + $0x81] sm:$0xff]
      %v7261 = vld [vmem:[%s6576 + $0x91] sm:$0xff]
      %v7262 = vld [vmem:[%s6576 + $0x99] sm:$0xff]
      %v7263 = vld [vmem:[%s6576 + $0xa9] sm:$0xff]
      %v7264 = vld [vmem:[%s6576 + $0xb1] sm:$0xff]
      %v7265 = vld [vmem:[%s6576 + $0xc1] sm:$0xff]
      %v7266 = vld [vmem:[%s6576 + $0xc9] sm:$0xff]
      %v7267 = vld [vmem:[%s6576 + $0xd9] sm:$0xff]
      %v7268 = vld [vmem:[%s6576 + $0xe1] sm:$0xff]
      %v7269 = vld [vmem:[%s6576 + $0xf1] sm:$0xff]
      %v7270 = vld [vmem:[%s6576 + $0xf9] sm:$0xff]
      %v7271 = vld [vmem:[%s6576 + $0x109] sm:$0xff]
      %v7272 = vld [vmem:[%s6576 + $0x111] sm:$0xff]
      %v7273 = vld [vmem:[%s6576 + $0x121] sm:$0xff]
      %v7274 = vld [vmem:[%s6576 + $0x129] sm:$0xff]
      %v7275 = vld [vmem:[%s6576 + $0x139] sm:$0xff]
      %v7276 = vld [vmem:[%s6576 + $0x141] sm:$0xff]
      %v7277 = vld [vmem:[%s6576 + $0x151] sm:$0xff]
      %v7278 = vld [vmem:[%s6576 + $0x159] sm:$0xff]
      %v7279 = vld [vmem:[%s6576 + $0x169] sm:$0xff]
      %v7280 = vld [vmem:[%s6576 + $0x171] sm:$0xff]
      %7313 = vrot.lane.b32.xlu0 %v7249, 32
      %v7314 = vpop.permute.xlu0 %7313
      %7315 = vrot.lane.b32.xlu0 %v7250, 32
      %v7316 = vpop.permute.xlu0 %7315
      %7317 = vrot.lane.b32.xlu0 %v7251, 32
      %v7318 = vpop.permute.xlu0 %7317
      %7319 = vrot.lane.b32.xlu0 %v7252, 32
      %v7320 = vpop.permute.xlu0 %7319
      %7321 = vrot.lane.b32.xlu0 %v7253, 32
      %v7322 = vpop.permute.xlu0 %7321
      %7323 = vrot.lane.b32.xlu0 %v7254, 32
      %v7324 = vpop.permute.xlu0 %7323
      %7325 = vrot.lane.b32.xlu0 %v7255, 32
      %v7326 = vpop.permute.xlu0 %7325
      %7327 = vrot.lane.b32.xlu0 %v7256, 32
      %v7328 = vpop.permute.xlu0 %7327
      %7329 = vrot.lane.b32.xlu0 %v7257, 32
      %v7330 = vpop.permute.xlu0 %7329
      %7331 = vrot.lane.b32.xlu0 %v7258, 32
      %v7332 = vpop.permute.xlu0 %7331
      %7333 = vrot.lane.b32.xlu0 %v7259, 32
      %v7334 = vpop.permute.xlu0 %7333
      %7335 = vrot.lane.b32.xlu0 %v7260, 32
      %v7336 = vpop.permute.xlu0 %7335
      %7337 = vrot.lane.b32.xlu0 %v7261, 32
      %v7338 = vpop.permute.xlu0 %7337
      %7339 = vrot.lane.b32.xlu0 %v7262, 32
      %v7340 = vpop.permute.xlu0 %7339
      %7341 = vrot.lane.b32.xlu0 %v7263, 32
      %v7342 = vpop.permute.xlu0 %7341
      %7343 = vrot.lane.b32.xlu0 %v7264, 32
      %v7344 = vpop.permute.xlu0 %7343
      %7345 = vrot.lane.b32.xlu0 %v7265, 32
      %v7346 = vpop.permute.xlu0 %7345
      %7347 = vrot.lane.b32.xlu0 %v7266, 32
      %v7348 = vpop.permute.xlu0 %7347
      %7349 = vrot.lane.b32.xlu0 %v7267, 32
      %v7350 = vpop.permute.xlu0 %7349
      %7351 = vrot.lane.b32.xlu0 %v7268, 32
      %v7352 = vpop.permute.xlu0 %7351
      %7353 = vrot.lane.b32.xlu0 %v7269, 32
      %v7354 = vpop.permute.xlu0 %7353
      %7355 = vrot.lane.b32.xlu0 %v7270, 32
      %v7356 = vpop.permute.xlu0 %7355
      %7357 = vrot.lane.b32.xlu0 %v7271, 32
      %v7358 = vpop.permute.xlu0 %7357
      %7359 = vrot.lane.b32.xlu0 %v7272, 32
      %v7360 = vpop.permute.xlu0 %7359
      %7361 = vrot.lane.b32.xlu0 %v7273, 32
      %v7362 = vpop.permute.xlu0 %7361
      %7363 = vrot.lane.b32.xlu0 %v7274, 32
      %v7364 = vpop.permute.xlu0 %7363
      %7365 = vrot.lane.b32.xlu0 %v7275, 32
      %v7366 = vpop.permute.xlu0 %7365
      %7367 = vrot.lane.b32.xlu0 %v7276, 32
      %v7368 = vpop.permute.xlu0 %7367
      %7369 = vrot.lane.b32.xlu0 %v7277, 32
      %v7370 = vpop.permute.xlu0 %7369
      %7371 = vrot.lane.b32.xlu0 %v7278, 32
      %v7372 = vpop.permute.xlu0 %7371
      %7373 = vrot.lane.b32.xlu0 %v7279, 32
      %v7374 = vpop.permute.xlu0 %7373
      %7375 = vrot.lane.b32.xlu0 %v7280, 32
      %v7376 = vpop.permute.xlu0 %7375
      %7409 = vst.msk [vmem:[#allocation4] sm:$0xff] %vm2295, %v7314
      %7410 = vst.msk [vmem:[#allocation4 + $0x8] sm:$0xff] %vm2295, %v7316
      %7411 = vst.msk [vmem:[#allocation4 + $0x10] sm:$0xff] %vm2295, %v7318
      %7412 = vst.msk [vmem:[#allocation4 + $0x18] sm:$0xff] %vm2295, %v7320
      %7413 = vst.msk [vmem:[#allocation4 + $0x20] sm:$0xff] %vm2295, %v7322
      %7414 = vst.msk [vmem:[#allocation4 + $0x28] sm:$0xff] %vm2295, %v7324
      %7415 = vst.msk [vmem:[#allocation4 + $0x30] sm:$0xff] %vm2295, %v7326
      %7416 = vst.msk [vmem:[#allocation4 + $0x38] sm:$0xff] %vm2295, %v7328
      %7417 = vst.msk [vmem:[#allocation4 + $0x40] sm:$0xff] %vm2295, %v7330
      %7418 = vst.msk [vmem:[#allocation4 + $0x48] sm:$0xff] %vm2295, %v7332
      %7419 = vst.msk [vmem:[#allocation4 + $0x50] sm:$0xff] %vm2295, %v7334
      %7420 = vst.msk [vmem:[#allocation4 + $0x58] sm:$0xff] %vm2295, %v7336
      %7421 = vst.msk [vmem:[#allocation4 + $0x60] sm:$0xff] %vm2295, %v7338
      %7422 = vst.msk [vmem:[#allocation4 + $0x68] sm:$0xff] %vm2295, %v7340
      %7423 = vst.msk [vmem:[#allocation4 + $0x70] sm:$0xff] %vm2295, %v7342
      %7424 = vst.msk [vmem:[#allocation4 + $0x78] sm:$0xff] %vm2295, %v7344
      %7425 = vst.msk [vmem:[#allocation4 + $0x80] sm:$0xff] %vm2295, %v7346
      %7426 = vst.msk [vmem:[#allocation4 + $0x88] sm:$0xff] %vm2295, %v7348
      %7427 = vst.msk [vmem:[#allocation4 + $0x90] sm:$0xff] %vm2295, %v7350
      %7428 = vst.msk [vmem:[#allocation4 + $0x98] sm:$0xff] %vm2295, %v7352
      %7429 = vst.msk [vmem:[#allocation4 + $0xa0] sm:$0xff] %vm2295, %v7354
      %7430 = vst.msk [vmem:[#allocation4 + $0xa8] sm:$0xff] %vm2295, %v7356
      %7431 = vst.msk [vmem:[#allocation4 + $0xb0] sm:$0xff] %vm2295, %v7358
      %7432 = vst.msk [vmem:[#allocation4 + $0xb8] sm:$0xff] %vm2295, %v7360
      %7433 = vst.msk [vmem:[#allocation4 + $0xc0] sm:$0xff] %vm2295, %v7362
      %7434 = vst.msk [vmem:[#allocation4 + $0xc8] sm:$0xff] %vm2295, %v7364
      %7435 = vst.msk [vmem:[#allocation4 + $0xd0] sm:$0xff] %vm2295, %v7366
      %7436 = vst.msk [vmem:[#allocation4 + $0xd8] sm:$0xff] %vm2295, %v7368
      %7437 = vst.msk [vmem:[#allocation4 + $0xe0] sm:$0xff] %vm2295, %v7370
      %7438 = vst.msk [vmem:[#allocation4 + $0xe8] sm:$0xff] %vm2295, %v7372
      %7439 = vst.msk [vmem:[#allocation4 + $0xf0] sm:$0xff] %vm2295, %v7374
      %7440 = vst.msk [vmem:[#allocation4 + $0xf8] sm:$0xff] %vm2295, %v7376
      %v7441 = vld [vmem:[%s6576 + $0x2] sm:$0xff]
      %v7442 = vld [vmem:[%s6576 + $0xa] sm:$0xff]
      %v7443 = vld [vmem:[%s6576 + $0x1a] sm:$0xff]
      %v7444 = vld [vmem:[%s6576 + $0x22] sm:$0xff]
      %v7445 = vld [vmem:[%s6576 + $0x32] sm:$0xff]
      %v7446 = vld [vmem:[%s6576 + $0x3a] sm:$0xff]
      %v7447 = vld [vmem:[%s6576 + $0x4a] sm:$0xff]
      %v7448 = vld [vmem:[%s6576 + $0x52] sm:$0xff]
      %v7449 = vld [vmem:[%s6576 + $0x62] sm:$0xff]
      %v7450 = vld [vmem:[%s6576 + $0x6a] sm:$0xff]
      %v7451 = vld [vmem:[%s6576 + $0x7a] sm:$0xff]
      %v7452 = vld [vmem:[%s6576 + $0x82] sm:$0xff]
      %v7453 = vld [vmem:[%s6576 + $0x92] sm:$0xff]
      %v7454 = vld [vmem:[%s6576 + $0x9a] sm:$0xff]
      %v7455 = vld [vmem:[%s6576 + $0xaa] sm:$0xff]
      %v7456 = vld [vmem:[%s6576 + $0xb2] sm:$0xff]
      %v7457 = vld [vmem:[%s6576 + $0xc2] sm:$0xff]
      %v7458 = vld [vmem:[%s6576 + $0xca] sm:$0xff]
      %v7459 = vld [vmem:[%s6576 + $0xda] sm:$0xff]
      %v7460 = vld [vmem:[%s6576 + $0xe2] sm:$0xff]
      %v7461 = vld [vmem:[%s6576 + $0xf2] sm:$0xff]
      %v7462 = vld [vmem:[%s6576 + $0xfa] sm:$0xff]
      %v7463 = vld [vmem:[%s6576 + $0x10a] sm:$0xff]
      %v7464 = vld [vmem:[%s6576 + $0x112] sm:$0xff]
      %v7465 = vld [vmem:[%s6576 + $0x122] sm:$0xff]
      %v7466 = vld [vmem:[%s6576 + $0x12a] sm:$0xff]
      %v7467 = vld [vmem:[%s6576 + $0x13a] sm:$0xff]
      %v7468 = vld [vmem:[%s6576 + $0x142] sm:$0xff]
      %v7469 = vld [vmem:[%s6576 + $0x152] sm:$0xff]
      %v7470 = vld [vmem:[%s6576 + $0x15a] sm:$0xff]
      %v7471 = vld [vmem:[%s6576 + $0x16a] sm:$0xff]
      %v7472 = vld [vmem:[%s6576 + $0x172] sm:$0xff]
      %7505 = vrot.lane.b32.xlu0 %v7441, 40
      %v7506 = vpop.permute.xlu0 %7505
      %7507 = vrot.lane.b32.xlu0 %v7442, 40
      %v7508 = vpop.permute.xlu0 %7507
      %7509 = vrot.lane.b32.xlu0 %v7443, 40
      %v7510 = vpop.permute.xlu0 %7509
      %7511 = vrot.lane.b32.xlu0 %v7444, 40
      %v7512 = vpop.permute.xlu0 %7511
      %7513 = vrot.lane.b32.xlu0 %v7445, 40
      %v7514 = vpop.permute.xlu0 %7513
      %7515 = vrot.lane.b32.xlu0 %v7446, 40
      %v7516 = vpop.permute.xlu0 %7515
      %7517 = vrot.lane.b32.xlu0 %v7447, 40
      %v7518 = vpop.permute.xlu0 %7517
      %7519 = vrot.lane.b32.xlu0 %v7448, 40
      %v7520 = vpop.permute.xlu0 %7519
      %7521 = vrot.lane.b32.xlu0 %v7449, 40
      %v7522 = vpop.permute.xlu0 %7521
      %7523 = vrot.lane.b32.xlu0 %v7450, 40
      %v7524 = vpop.permute.xlu0 %7523
      %7525 = vrot.lane.b32.xlu0 %v7451, 40
      %v7526 = vpop.permute.xlu0 %7525
      %7527 = vrot.lane.b32.xlu0 %v7452, 40
      %v7528 = vpop.permute.xlu0 %7527
      %7529 = vrot.lane.b32.xlu0 %v7453, 40
      %v7530 = vpop.permute.xlu0 %7529
      %7531 = vrot.lane.b32.xlu0 %v7454, 40
      %v7532 = vpop.permute.xlu0 %7531
      %7533 = vrot.lane.b32.xlu0 %v7455, 40
      %v7534 = vpop.permute.xlu0 %7533
      %7535 = vrot.lane.b32.xlu0 %v7456, 40
      %v7536 = vpop.permute.xlu0 %7535
      %7537 = vrot.lane.b32.xlu0 %v7457, 40
      %v7538 = vpop.permute.xlu0 %7537
      %7539 = vrot.lane.b32.xlu0 %v7458, 40
      %v7540 = vpop.permute.xlu0 %7539
      %7541 = vrot.lane.b32.xlu0 %v7459, 40
      %v7542 = vpop.permute.xlu0 %7541
      %7543 = vrot.lane.b32.xlu0 %v7460, 40
      %v7544 = vpop.permute.xlu0 %7543
      %7545 = vrot.lane.b32.xlu0 %v7461, 40
      %v7546 = vpop.permute.xlu0 %7545
      %7547 = vrot.lane.b32.xlu0 %v7462, 40
      %v7548 = vpop.permute.xlu0 %7547
      %7549 = vrot.lane.b32.xlu0 %v7463, 40
      %v7550 = vpop.permute.xlu0 %7549
      %7551 = vrot.lane.b32.xlu0 %v7464, 40
      %v7552 = vpop.permute.xlu0 %7551
      %7553 = vrot.lane.b32.xlu0 %v7465, 40
      %v7554 = vpop.permute.xlu0 %7553
      %7555 = vrot.lane.b32.xlu0 %v7466, 40
      %v7556 = vpop.permute.xlu0 %7555
      %7557 = vrot.lane.b32.xlu0 %v7467, 40
      %v7558 = vpop.permute.xlu0 %7557
      %7559 = vrot.lane.b32.xlu0 %v7468, 40
      %v7560 = vpop.permute.xlu0 %7559
      %7561 = vrot.lane.b32.xlu0 %v7469, 40
      %v7562 = vpop.permute.xlu0 %7561
      %7563 = vrot.lane.b32.xlu0 %v7470, 40
      %v7564 = vpop.permute.xlu0 %7563
      %7565 = vrot.lane.b32.xlu0 %v7471, 40
      %v7566 = vpop.permute.xlu0 %7565
      %7567 = vrot.lane.b32.xlu0 %v7472, 40
      %v7568 = vpop.permute.xlu0 %7567
      %7601 = vst.msk [vmem:[#allocation4] sm:$0xff] %vm2591, %v7506
      %7602 = vst.msk [vmem:[#allocation4 + $0x8] sm:$0xff] %vm2591, %v7508
      %7603 = vst.msk [vmem:[#allocation4 + $0x10] sm:$0xff] %vm2591, %v7510
      %7604 = vst.msk [vmem:[#allocation4 + $0x18] sm:$0xff] %vm2591, %v7512
      %7605 = vst.msk [vmem:[#allocation4 + $0x20] sm:$0xff] %vm2591, %v7514
      %7606 = vst.msk [vmem:[#allocation4 + $0x28] sm:$0xff] %vm2591, %v7516
      %7607 = vst.msk [vmem:[#allocation4 + $0x30] sm:$0xff] %vm2591, %v7518
      %7608 = vst.msk [vmem:[#allocation4 + $0x38] sm:$0xff] %vm2591, %v7520
      %7609 = vst.msk [vmem:[#allocation4 + $0x40] sm:$0xff] %vm2591, %v7522
      %7610 = vst.msk [vmem:[#allocation4 + $0x48] sm:$0xff] %vm2591, %v7524
      %7611 = vst.msk [vmem:[#allocation4 + $0x50] sm:$0xff] %vm2591, %v7526
      %7612 = vst.msk [vmem:[#allocation4 + $0x58] sm:$0xff] %vm2591, %v7528
      %7613 = vst.msk [vmem:[#allocation4 + $0x60] sm:$0xff] %vm2591, %v7530
      %7614 = vst.msk [vmem:[#allocation4 + $0x68] sm:$0xff] %vm2591, %v7532
      %7615 = vst.msk [vmem:[#allocation4 + $0x70] sm:$0xff] %vm2591, %v7534
      %7616 = vst.msk [vmem:[#allocation4 + $0x78] sm:$0xff] %vm2591, %v7536
      %7617 = vst.msk [vmem:[#allocation4 + $0x80] sm:$0xff] %vm2591, %v7538
      %7618 = vst.msk [vmem:[#allocation4 + $0x88] sm:$0xff] %vm2591, %v7540
      %7619 = vst.msk [vmem:[#allocation4 + $0x90] sm:$0xff] %vm2591, %v7542
      %7620 = vst.msk [vmem:[#allocation4 + $0x98] sm:$0xff] %vm2591, %v7544
      %7621 = vst.msk [vmem:[#allocation4 + $0xa0] sm:$0xff] %vm2591, %v7546
      %7622 = vst.msk [vmem:[#allocation4 + $0xa8] sm:$0xff] %vm2591, %v7548
      %7623 = vst.msk [vmem:[#allocation4 + $0xb0] sm:$0xff] %vm2591, %v7550
      %7624 = vst.msk [vmem:[#allocation4 + $0xb8] sm:$0xff] %vm2591, %v7552
      %7625 = vst.msk [vmem:[#allocation4 + $0xc0] sm:$0xff] %vm2591, %v7554
      %7626 = vst.msk [vmem:[#allocation4 + $0xc8] sm:$0xff] %vm2591, %v7556
      %7627 = vst.msk [vmem:[#allocation4 + $0xd0] sm:$0xff] %vm2591, %v7558
      %7628 = vst.msk [vmem:[#allocation4 + $0xd8] sm:$0xff] %vm2591, %v7560
      %7629 = vst.msk [vmem:[#allocation4 + $0xe0] sm:$0xff] %vm2591, %v7562
      %7630 = vst.msk [vmem:[#allocation4 + $0xe8] sm:$0xff] %vm2591, %v7564
      %7631 = vst.msk [vmem:[#allocation4 + $0xf0] sm:$0xff] %vm2591, %v7566
      %7632 = vst.msk [vmem:[#allocation4 + $0xf8] sm:$0xff] %vm2591, %v7568
      %s7633 = scalar_lea.vmem [#allocation3], 48
      %v7634 = vld [vmem:[%s7633] sm:$0xff]
      %v7635 = vld [vmem:[%s7633 + $0x8] sm:$0xff]
      %v7636 = vld [vmem:[%s7633 + $0x18] sm:$0xff]
      %v7637 = vld [vmem:[%s7633 + $0x20] sm:$0xff]
      %v7638 = vld [vmem:[%s7633 + $0x30] sm:$0xff]
      %v7639 = vld [vmem:[%s7633 + $0x38] sm:$0xff]
      %v7640 = vld [vmem:[%s7633 + $0x48] sm:$0xff]
      %v7641 = vld [vmem:[%s7633 + $0x50] sm:$0xff]
      %v7642 = vld [vmem:[%s7633 + $0x60] sm:$0xff]
      %v7643 = vld [vmem:[%s7633 + $0x68] sm:$0xff]
      %v7644 = vld [vmem:[%s7633 + $0x78] sm:$0xff]
      %v7645 = vld [vmem:[%s7633 + $0x80] sm:$0xff]
      %v7646 = vld [vmem:[%s7633 + $0x90] sm:$0xff]
      %v7647 = vld [vmem:[%s7633 + $0x98] sm:$0xff]
      %v7648 = vld [vmem:[%s7633 + $0xa8] sm:$0xff]
      %v7649 = vld [vmem:[%s7633 + $0xb0] sm:$0xff]
      %v7650 = vld [vmem:[%s7633 + $0xc0] sm:$0xff]
      %v7651 = vld [vmem:[%s7633 + $0xc8] sm:$0xff]
      %v7652 = vld [vmem:[%s7633 + $0xd8] sm:$0xff]
      %v7653 = vld [vmem:[%s7633 + $0xe0] sm:$0xff]
      %v7654 = vld [vmem:[%s7633 + $0xf0] sm:$0xff]
      %v7655 = vld [vmem:[%s7633 + $0xf8] sm:$0xff]
      %v7656 = vld [vmem:[%s7633 + $0x108] sm:$0xff]
      %v7657 = vld [vmem:[%s7633 + $0x110] sm:$0xff]
      %v7658 = vld [vmem:[%s7633 + $0x120] sm:$0xff]
      %v7659 = vld [vmem:[%s7633 + $0x128] sm:$0xff]
      %v7660 = vld [vmem:[%s7633 + $0x138] sm:$0xff]
      %v7661 = vld [vmem:[%s7633 + $0x140] sm:$0xff]
      %v7662 = vld [vmem:[%s7633 + $0x150] sm:$0xff]
      %v7663 = vld [vmem:[%s7633 + $0x158] sm:$0xff]
      %v7664 = vld [vmem:[%s7633 + $0x168] sm:$0xff]
      %v7665 = vld [vmem:[%s7633 + $0x170] sm:$0xff]
      %7698 = vrot.lane.b32.xlu0 %v7634, 48
      %v7699 = vpop.permute.xlu0 %7698
      %7700 = vrot.lane.b32.xlu0 %v7635, 48
      %v7701 = vpop.permute.xlu0 %7700
      %7702 = vrot.lane.b32.xlu0 %v7636, 48
      %v7703 = vpop.permute.xlu0 %7702
      %7704 = vrot.lane.b32.xlu0 %v7637, 48
      %v7705 = vpop.permute.xlu0 %7704
      %7706 = vrot.lane.b32.xlu0 %v7638, 48
      %v7707 = vpop.permute.xlu0 %7706
      %7708 = vrot.lane.b32.xlu0 %v7639, 48
      %v7709 = vpop.permute.xlu0 %7708
      %7710 = vrot.lane.b32.xlu0 %v7640, 48
      %v7711 = vpop.permute.xlu0 %7710
      %7712 = vrot.lane.b32.xlu0 %v7641, 48
      %v7713 = vpop.permute.xlu0 %7712
      %7714 = vrot.lane.b32.xlu0 %v7642, 48
      %v7715 = vpop.permute.xlu0 %7714
      %7716 = vrot.lane.b32.xlu0 %v7643, 48
      %v7717 = vpop.permute.xlu0 %7716
      %7718 = vrot.lane.b32.xlu0 %v7644, 48
      %v7719 = vpop.permute.xlu0 %7718
      %7720 = vrot.lane.b32.xlu0 %v7645, 48
      %v7721 = vpop.permute.xlu0 %7720
      %7722 = vrot.lane.b32.xlu0 %v7646, 48
      %v7723 = vpop.permute.xlu0 %7722
      %7724 = vrot.lane.b32.xlu0 %v7647, 48
      %v7725 = vpop.permute.xlu0 %7724
      %7726 = vrot.lane.b32.xlu0 %v7648, 48
      %v7727 = vpop.permute.xlu0 %7726
      %7728 = vrot.lane.b32.xlu0 %v7649, 48
      %v7729 = vpop.permute.xlu0 %7728
      %7730 = vrot.lane.b32.xlu0 %v7650, 48
      %v7731 = vpop.permute.xlu0 %7730
      %7732 = vrot.lane.b32.xlu0 %v7651, 48
      %v7733 = vpop.permute.xlu0 %7732
      %7734 = vrot.lane.b32.xlu0 %v7652, 48
      %v7735 = vpop.permute.xlu0 %7734
      %7736 = vrot.lane.b32.xlu0 %v7653, 48
      %v7737 = vpop.permute.xlu0 %7736
      %7738 = vrot.lane.b32.xlu0 %v7654, 48
      %v7739 = vpop.permute.xlu0 %7738
      %7740 = vrot.lane.b32.xlu0 %v7655, 48
      %v7741 = vpop.permute.xlu0 %7740
      %7742 = vrot.lane.b32.xlu0 %v7656, 48
      %v7743 = vpop.permute.xlu0 %7742
      %7744 = vrot.lane.b32.xlu0 %v7657, 48
      %v7745 = vpop.permute.xlu0 %7744
      %7746 = vrot.lane.b32.xlu0 %v7658, 48
      %v7747 = vpop.permute.xlu0 %7746
      %7748 = vrot.lane.b32.xlu0 %v7659, 48
      %v7749 = vpop.permute.xlu0 %7748
      %7750 = vrot.lane.b32.xlu0 %v7660, 48
      %v7751 = vpop.permute.xlu0 %7750
      %7752 = vrot.lane.b32.xlu0 %v7661, 48
      %v7753 = vpop.permute.xlu0 %7752
      %7754 = vrot.lane.b32.xlu0 %v7662, 48
      %v7755 = vpop.permute.xlu0 %7754
      %7756 = vrot.lane.b32.xlu0 %v7663, 48
      %v7757 = vpop.permute.xlu0 %7756
      %7758 = vrot.lane.b32.xlu0 %v7664, 48
      %v7759 = vpop.permute.xlu0 %7758
      %7760 = vrot.lane.b32.xlu0 %v7665, 48
      %v7761 = vpop.permute.xlu0 %7760
      %7794 = vst.msk [vmem:[#allocation4] sm:$0xff] %vm2722, %v7699
      %7795 = vst.msk [vmem:[#allocation4 + $0x8] sm:$0xff] %vm2722, %v7701
      %7796 = vst.msk [vmem:[#allocation4 + $0x10] sm:$0xff] %vm2722, %v7703
      %7797 = vst.msk [vmem:[#allocation4 + $0x18] sm:$0xff] %vm2722, %v7705
      %7798 = vst.msk [vmem:[#allocation4 + $0x20] sm:$0xff] %vm2722, %v7707
      %7799 = vst.msk [vmem:[#allocation4 + $0x28] sm:$0xff] %vm2722, %v7709
      %7800 = vst.msk [vmem:[#allocation4 + $0x30] sm:$0xff] %vm2722, %v7711
      %7801 = vst.msk [vmem:[#allocation4 + $0x38] sm:$0xff] %vm2722, %v7713
      %7802 = vst.msk [vmem:[#allocation4 + $0x40] sm:$0xff] %vm2722, %v7715
      %7803 = vst.msk [vmem:[#allocation4 + $0x48] sm:$0xff] %vm2722, %v7717
      %7804 = vst.msk [vmem:[#allocation4 + $0x50] sm:$0xff] %vm2722, %v7719
      %7805 = vst.msk [vmem:[#allocation4 + $0x58] sm:$0xff] %vm2722, %v7721
      %7806 = vst.msk [vmem:[#allocation4 + $0x60] sm:$0xff] %vm2722, %v7723
      %7807 = vst.msk [vmem:[#allocation4 + $0x68] sm:$0xff] %vm2722, %v7725
      %7808 = vst.msk [vmem:[#allocation4 + $0x70] sm:$0xff] %vm2722, %v7727
      %7809 = vst.msk [vmem:[#allocation4 + $0x78] sm:$0xff] %vm2722, %v7729
      %7810 = vst.msk [vmem:[#allocation4 + $0x80] sm:$0xff] %vm2722, %v7731
      %7811 = vst.msk [vmem:[#allocation4 + $0x88] sm:$0xff] %vm2722, %v7733
      %7812 = vst.msk [vmem:[#allocation4 + $0x90] sm:$0xff] %vm2722, %v7735
      %7813 = vst.msk [vmem:[#allocation4 + $0x98] sm:$0xff] %vm2722, %v7737
      %7814 = vst.msk [vmem:[#allocation4 + $0xa0] sm:$0xff] %vm2722, %v7739
      %7815 = vst.msk [vmem:[#allocation4 + $0xa8] sm:$0xff] %vm2722, %v7741
      %7816 = vst.msk [vmem:[#allocation4 + $0xb0] sm:$0xff] %vm2722, %v7743
      %7817 = vst.msk [vmem:[#allocation4 + $0xb8] sm:$0xff] %vm2722, %v7745
      %7818 = vst.msk [vmem:[#allocation4 + $0xc0] sm:$0xff] %vm2722, %v7747
      %7819 = vst.msk [vmem:[#allocation4 + $0xc8] sm:$0xff] %vm2722, %v7749
      %7820 = vst.msk [vmem:[#allocation4 + $0xd0] sm:$0xff] %vm2722, %v7751
      %7821 = vst.msk [vmem:[#allocation4 + $0xd8] sm:$0xff] %vm2722, %v7753
      %7822 = vst.msk [vmem:[#allocation4 + $0xe0] sm:$0xff] %vm2722, %v7755
      %7823 = vst.msk [vmem:[#allocation4 + $0xe8] sm:$0xff] %vm2722, %v7757
      %7824 = vst.msk [vmem:[#allocation4 + $0xf0] sm:$0xff] %vm2722, %v7759
      %7825 = vst.msk [vmem:[#allocation4 + $0xf8] sm:$0xff] %vm2722, %v7761
      %v7826 = vld [vmem:[%s7633 + $0x1] sm:$0xff]
      %v7827 = vld [vmem:[%s7633 + $0x9] sm:$0xff]
      %v7828 = vld [vmem:[%s7633 + $0x19] sm:$0xff]
      %v7829 = vld [vmem:[%s7633 + $0x21] sm:$0xff]
      %v7830 = vld [vmem:[%s7633 + $0x31] sm:$0xff]
      %v7831 = vld [vmem:[%s7633 + $0x39] sm:$0xff]
      %v7832 = vld [vmem:[%s7633 + $0x49] sm:$0xff]
      %v7833 = vld [vmem:[%s7633 + $0x51] sm:$0xff]
      %v7834 = vld [vmem:[%s7633 + $0x61] sm:$0xff]
      %v7835 = vld [vmem:[%s7633 + $0x69] sm:$0xff]
      %v7836 = vld [vmem:[%s7633 + $0x79] sm:$0xff]
      %v7837 = vld [vmem:[%s7633 + $0x81] sm:$0xff]
      %v7838 = vld [vmem:[%s7633 + $0x91] sm:$0xff]
      %v7839 = vld [vmem:[%s7633 + $0x99] sm:$0xff]
      %v7840 = vld [vmem:[%s7633 + $0xa9] sm:$0xff]
      %v7841 = vld [vmem:[%s7633 + $0xb1] sm:$0xff]
      %v7842 = vld [vmem:[%s7633 + $0xc1] sm:$0xff]
      %v7843 = vld [vmem:[%s7633 + $0xc9] sm:$0xff]
      %v7844 = vld [vmem:[%s7633 + $0xd9] sm:$0xff]
      %v7845 = vld [vmem:[%s7633 + $0xe1] sm:$0xff]
      %v7846 = vld [vmem:[%s7633 + $0xf1] sm:$0xff]
      %v7847 = vld [vmem:[%s7633 + $0xf9] sm:$0xff]
      %v7848 = vld [vmem:[%s7633 + $0x109] sm:$0xff]
      %v7849 = vld [vmem:[%s7633 + $0x111] sm:$0xff]
      %v7850 = vld [vmem:[%s7633 + $0x121] sm:$0xff]
      %v7851 = vld [vmem:[%s7633 + $0x129] sm:$0xff]
      %v7852 = vld [vmem:[%s7633 + $0x139] sm:$0xff]
      %v7853 = vld [vmem:[%s7633 + $0x141] sm:$0xff]
      %v7854 = vld [vmem:[%s7633 + $0x151] sm:$0xff]
      %v7855 = vld [vmem:[%s7633 + $0x159] sm:$0xff]
      %v7856 = vld [vmem:[%s7633 + $0x169] sm:$0xff]
      %v7857 = vld [vmem:[%s7633 + $0x171] sm:$0xff]
      %7890 = vrot.lane.b32.xlu0 %v7826, 56
      %v7891 = vpop.permute.xlu0 %7890
      %7892 = vrot.lane.b32.xlu0 %v7827, 56
      %v7893 = vpop.permute.xlu0 %7892
      %7894 = vrot.lane.b32.xlu0 %v7828, 56
      %v7895 = vpop.permute.xlu0 %7894
      %7896 = vrot.lane.b32.xlu0 %v7829, 56
      %v7897 = vpop.permute.xlu0 %7896
      %7898 = vrot.lane.b32.xlu0 %v7830, 56
      %v7899 = vpop.permute.xlu0 %7898
      %7900 = vrot.lane.b32.xlu0 %v7831, 56
      %v7901 = vpop.permute.xlu0 %7900
      %7902 = vrot.lane.b32.xlu0 %v7832, 56
      %v7903 = vpop.permute.xlu0 %7902
      %7904 = vrot.lane.b32.xlu0 %v7833, 56
      %v7905 = vpop.permute.xlu0 %7904
      %7906 = vrot.lane.b32.xlu0 %v7834, 56
      %v7907 = vpop.permute.xlu0 %7906
      %7908 = vrot.lane.b32.xlu0 %v7835, 56
      %v7909 = vpop.permute.xlu0 %7908
      %7910 = vrot.lane.b32.xlu0 %v7836, 56
      %v7911 = vpop.permute.xlu0 %7910
      %7912 = vrot.lane.b32.xlu0 %v7837, 56
      %v7913 = vpop.permute.xlu0 %7912
      %7914 = vrot.lane.b32.xlu0 %v7838, 56
      %v7915 = vpop.permute.xlu0 %7914
      %7916 = vrot.lane.b32.xlu0 %v7839, 56
      %v7917 = vpop.permute.xlu0 %7916
      %7918 = vrot.lane.b32.xlu0 %v7840, 56
      %v7919 = vpop.permute.xlu0 %7918
      %7920 = vrot.lane.b32.xlu0 %v7841, 56
      %v7921 = vpop.permute.xlu0 %7920
      %7922 = vrot.lane.b32.xlu0 %v7842, 56
      %v7923 = vpop.permute.xlu0 %7922
      %7924 = vrot.lane.b32.xlu0 %v7843, 56
      %v7925 = vpop.permute.xlu0 %7924
      %7926 = vrot.lane.b32.xlu0 %v7844, 56
      %v7927 = vpop.permute.xlu0 %7926
      %7928 = vrot.lane.b32.xlu0 %v7845, 56
      %v7929 = vpop.permute.xlu0 %7928
      %7930 = vrot.lane.b32.xlu0 %v7846, 56
      %v7931 = vpop.permute.xlu0 %7930
      %7932 = vrot.lane.b32.xlu0 %v7847, 56
      %v7933 = vpop.permute.xlu0 %7932
      %7934 = vrot.lane.b32.xlu0 %v7848, 56
      %v7935 = vpop.permute.xlu0 %7934
      %7936 = vrot.lane.b32.xlu0 %v7849, 56
      %v7937 = vpop.permute.xlu0 %7936
      %7938 = vrot.lane.b32.xlu0 %v7850, 56
      %v7939 = vpop.permute.xlu0 %7938
      %7940 = vrot.lane.b32.xlu0 %v7851, 56
      %v7941 = vpop.permute.xlu0 %7940
      %7942 = vrot.lane.b32.xlu0 %v7852, 56
      %v7943 = vpop.permute.xlu0 %7942
      %7944 = vrot.lane.b32.xlu0 %v7853, 56
      %v7945 = vpop.permute.xlu0 %7944
      %7946 = vrot.lane.b32.xlu0 %v7854, 56
      %v7947 = vpop.permute.xlu0 %7946
      %7948 = vrot.lane.b32.xlu0 %v7855, 56
      %v7949 = vpop.permute.xlu0 %7948
      %7950 = vrot.lane.b32.xlu0 %v7856, 56
      %v7951 = vpop.permute.xlu0 %7950
      %7952 = vrot.lane.b32.xlu0 %v7857, 56
      %v7953 = vpop.permute.xlu0 %7952
      %7986 = vst.msk [vmem:[#allocation4] sm:$0xff] %vm3018, %v7891
      %7987 = vst.msk [vmem:[#allocation4 + $0x8] sm:$0xff] %vm3018, %v7893
      %7988 = vst.msk [vmem:[#allocation4 + $0x10] sm:$0xff] %vm3018, %v7895
      %7989 = vst.msk [vmem:[#allocation4 + $0x18] sm:$0xff] %vm3018, %v7897
      %7990 = vst.msk [vmem:[#allocation4 + $0x20] sm:$0xff] %vm3018, %v7899
      %7991 = vst.msk [vmem:[#allocation4 + $0x28] sm:$0xff] %vm3018, %v7901
      %7992 = vst.msk [vmem:[#allocation4 + $0x30] sm:$0xff] %vm3018, %v7903
      %7993 = vst.msk [vmem:[#allocation4 + $0x38] sm:$0xff] %vm3018, %v7905
      %7994 = vst.msk [vmem:[#allocation4 + $0x40] sm:$0xff] %vm3018, %v7907
      %7995 = vst.msk [vmem:[#allocation4 + $0x48] sm:$0xff] %vm3018, %v7909
      %7996 = vst.msk [vmem:[#allocation4 + $0x50] sm:$0xff] %vm3018, %v7911
      %7997 = vst.msk [vmem:[#allocation4 + $0x58] sm:$0xff] %vm3018, %v7913
      %7998 = vst.msk [vmem:[#allocation4 + $0x60] sm:$0xff] %vm3018, %v7915
      %7999 = vst.msk [vmem:[#allocation4 + $0x68] sm:$0xff] %vm3018, %v7917
      %8000 = vst.msk [vmem:[#allocation4 + $0x70] sm:$0xff] %vm3018, %v7919
      %8001 = vst.msk [vmem:[#allocation4 + $0x78] sm:$0xff] %vm3018, %v7921
      %8002 = vst.msk [vmem:[#allocation4 + $0x80] sm:$0xff] %vm3018, %v7923
      %8003 = vst.msk [vmem:[#allocation4 + $0x88] sm:$0xff] %vm3018, %v7925
      %8004 = vst.msk [vmem:[#allocation4 + $0x90] sm:$0xff] %vm3018, %v7927
      %8005 = vst.msk [vmem:[#allocation4 + $0x98] sm:$0xff] %vm3018, %v7929
      %8006 = vst.msk [vmem:[#allocation4 + $0xa0] sm:$0xff] %vm3018, %v7931
      %8007 = vst.msk [vmem:[#allocation4 + $0xa8] sm:$0xff] %vm3018, %v7933
      %8008 = vst.msk [vmem:[#allocation4 + $0xb0] sm:$0xff] %vm3018, %v7935
      %8009 = vst.msk [vmem:[#allocation4 + $0xb8] sm:$0xff] %vm3018, %v7937
      %8010 = vst.msk [vmem:[#allocation4 + $0xc0] sm:$0xff] %vm3018, %v7939
      %8011 = vst.msk [vmem:[#allocation4 + $0xc8] sm:$0xff] %vm3018, %v7941
      %8012 = vst.msk [vmem:[#allocation4 + $0xd0] sm:$0xff] %vm3018, %v7943
      %8013 = vst.msk [vmem:[#allocation4 + $0xd8] sm:$0xff] %vm3018, %v7945
      %8014 = vst.msk [vmem:[#allocation4 + $0xe0] sm:$0xff] %vm3018, %v7947
      %8015 = vst.msk [vmem:[#allocation4 + $0xe8] sm:$0xff] %vm3018, %v7949
      %8016 = vst.msk [vmem:[#allocation4 + $0xf0] sm:$0xff] %vm3018, %v7951
      %8017 = vst.msk [vmem:[#allocation4 + $0xf8] sm:$0xff] %vm3018, %v7953
      %v8018 = vld [vmem:[%s7633 + $0x2] sm:$0xff]
      %v8019 = vld [vmem:[%s7633 + $0xa] sm:$0xff]
      %v8020 = vld [vmem:[%s7633 + $0x1a] sm:$0xff]
      %v8021 = vld [vmem:[%s7633 + $0x22] sm:$0xff]
      %v8022 = vld [vmem:[%s7633 + $0x32] sm:$0xff]
      %v8023 = vld [vmem:[%s7633 + $0x3a] sm:$0xff]
      %v8024 = vld [vmem:[%s7633 + $0x4a] sm:$0xff]
      %v8025 = vld [vmem:[%s7633 + $0x52] sm:$0xff]
      %v8026 = vld [vmem:[%s7633 + $0x62] sm:$0xff]
      %v8027 = vld [vmem:[%s7633 + $0x6a] sm:$0xff]
      %v8028 = vld [vmem:[%s7633 + $0x7a] sm:$0xff]
      %v8029 = vld [vmem:[%s7633 + $0x82] sm:$0xff]
      %v8030 = vld [vmem:[%s7633 + $0x92] sm:$0xff]
      %v8031 = vld [vmem:[%s7633 + $0x9a] sm:$0xff]
      %v8032 = vld [vmem:[%s7633 + $0xaa] sm:$0xff]
      %v8033 = vld [vmem:[%s7633 + $0xb2] sm:$0xff]
      %v8034 = vld [vmem:[%s7633 + $0xc2] sm:$0xff]
      %v8035 = vld [vmem:[%s7633 + $0xca] sm:$0xff]
      %v8036 = vld [vmem:[%s7633 + $0xda] sm:$0xff]
      %v8037 = vld [vmem:[%s7633 + $0xe2] sm:$0xff]
      %v8038 = vld [vmem:[%s7633 + $0xf2] sm:$0xff]
      %v8039 = vld [vmem:[%s7633 + $0xfa] sm:$0xff]
      %v8040 = vld [vmem:[%s7633 + $0x10a] sm:$0xff]
      %v8041 = vld [vmem:[%s7633 + $0x112] sm:$0xff]
      %v8042 = vld [vmem:[%s7633 + $0x122] sm:$0xff]
      %v8043 = vld [vmem:[%s7633 + $0x12a] sm:$0xff]
      %v8044 = vld [vmem:[%s7633 + $0x13a] sm:$0xff]
      %v8045 = vld [vmem:[%s7633 + $0x142] sm:$0xff]
      %v8046 = vld [vmem:[%s7633 + $0x152] sm:$0xff]
      %v8047 = vld [vmem:[%s7633 + $0x15a] sm:$0xff]
      %v8048 = vld [vmem:[%s7633 + $0x16a] sm:$0xff]
      %v8049 = vld [vmem:[%s7633 + $0x172] sm:$0xff]
      %8082 = vrot.lane.b32.xlu0 %v8018, 64
      %v8083 = vpop.permute.xlu0 %8082
      %8084 = vrot.lane.b32.xlu0 %v8019, 64
      %v8085 = vpop.permute.xlu0 %8084
      %8086 = vrot.lane.b32.xlu0 %v8020, 64
      %v8087 = vpop.permute.xlu0 %8086
      %8088 = vrot.lane.b32.xlu0 %v8021, 64
      %v8089 = vpop.permute.xlu0 %8088
      %8090 = vrot.lane.b32.xlu0 %v8022, 64
      %v8091 = vpop.permute.xlu0 %8090
      %8092 = vrot.lane.b32.xlu0 %v8023, 64
      %v8093 = vpop.permute.xlu0 %8092
      %8094 = vrot.lane.b32.xlu0 %v8024, 64
      %v8095 = vpop.permute.xlu0 %8094
      %8096 = vrot.lane.b32.xlu0 %v8025, 64
      %v8097 = vpop.permute.xlu0 %8096
      %8098 = vrot.lane.b32.xlu0 %v8026, 64
      %v8099 = vpop.permute.xlu0 %8098
      %8100 = vrot.lane.b32.xlu0 %v8027, 64
      %v8101 = vpop.permute.xlu0 %8100
      %8102 = vrot.lane.b32.xlu0 %v8028, 64
      %v8103 = vpop.permute.xlu0 %8102
      %8104 = vrot.lane.b32.xlu0 %v8029, 64
      %v8105 = vpop.permute.xlu0 %8104
      %8106 = vrot.lane.b32.xlu0 %v8030, 64
      %v8107 = vpop.permute.xlu0 %8106
      %8108 = vrot.lane.b32.xlu0 %v8031, 64
      %v8109 = vpop.permute.xlu0 %8108
      %8110 = vrot.lane.b32.xlu0 %v8032, 64
      %v8111 = vpop.permute.xlu0 %8110
      %8112 = vrot.lane.b32.xlu0 %v8033, 64
      %v8113 = vpop.permute.xlu0 %8112
      %8114 = vrot.lane.b32.xlu0 %v8034, 64
      %v8115 = vpop.permute.xlu0 %8114
      %8116 = vrot.lane.b32.xlu0 %v8035, 64
      %v8117 = vpop.permute.xlu0 %8116
      %8118 = vrot.lane.b32.xlu0 %v8036, 64
      %v8119 = vpop.permute.xlu0 %8118
      %8120 = vrot.lane.b32.xlu0 %v8037, 64
      %v8121 = vpop.permute.xlu0 %8120
      %8122 = vrot.lane.b32.xlu0 %v8038, 64
      %v8123 = vpop.permute.xlu0 %8122
      %8124 = vrot.lane.b32.xlu0 %v8039, 64
      %v8125 = vpop.permute.xlu0 %8124
      %8126 = vrot.lane.b32.xlu0 %v8040, 64
      %v8127 = vpop.permute.xlu0 %8126
      %8128 = vrot.lane.b32.xlu0 %v8041, 64
      %v8129 = vpop.permute.xlu0 %8128
      %8130 = vrot.lane.b32.xlu0 %v8042, 64
      %v8131 = vpop.permute.xlu0 %8130
      %8132 = vrot.lane.b32.xlu0 %v8043, 64
      %v8133 = vpop.permute.xlu0 %8132
      %8134 = vrot.lane.b32.xlu0 %v8044, 64
      %v8135 = vpop.permute.xlu0 %8134
      %8136 = vrot.lane.b32.xlu0 %v8045, 64
      %v8137 = vpop.permute.xlu0 %8136
      %8138 = vrot.lane.b32.xlu0 %v8046, 64
      %v8139 = vpop.permute.xlu0 %8138
      %8140 = vrot.lane.b32.xlu0 %v8047, 64
      %v8141 = vpop.permute.xlu0 %8140
      %8142 = vrot.lane.b32.xlu0 %v8048, 64
      %v8143 = vpop.permute.xlu0 %8142
      %8144 = vrot.lane.b32.xlu0 %v8049, 64
      %v8145 = vpop.permute.xlu0 %8144
      %8178 = vst.msk [vmem:[#allocation4] sm:$0xff] %vm3153, %v8083
      %8179 = vst.msk [vmem:[#allocation4 + $0x8] sm:$0xff] %vm3153, %v8085
      %8180 = vst.msk [vmem:[#allocation4 + $0x10] sm:$0xff] %vm3153, %v8087
      %8181 = vst.msk [vmem:[#allocation4 + $0x18] sm:$0xff] %vm3153, %v8089
      %8182 = vst.msk [vmem:[#allocation4 + $0x20] sm:$0xff] %vm3153, %v8091
      %8183 = vst.msk [vmem:[#allocation4 + $0x28] sm:$0xff] %vm3153, %v8093
      %8184 = vst.msk [vmem:[#allocation4 + $0x30] sm:$0xff] %vm3153, %v8095
      %8185 = vst.msk [vmem:[#allocation4 + $0x38] sm:$0xff] %vm3153, %v8097
      %8186 = vst.msk [vmem:[#allocation4 + $0x40] sm:$0xff] %vm3153, %v8099
      %8187 = vst.msk [vmem:[#allocation4 + $0x48] sm:$0xff] %vm3153, %v8101
      %8188 = vst.msk [vmem:[#allocation4 + $0x50] sm:$0xff] %vm3153, %v8103
      %8189 = vst.msk [vmem:[#allocation4 + $0x58] sm:$0xff] %vm3153, %v8105
      %8190 = vst.msk [vmem:[#allocation4 + $0x60] sm:$0xff] %vm3153, %v8107
      %8191 = vst.msk [vmem:[#allocation4 + $0x68] sm:$0xff] %vm3153, %v8109
      %8192 = vst.msk [vmem:[#allocation4 + $0x70] sm:$0xff] %vm3153, %v8111
      %8193 = vst.msk [vmem:[#allocation4 + $0x78] sm:$0xff] %vm3153, %v8113
      %8194 = vst.msk [vmem:[#allocation4 + $0x80] sm:$0xff] %vm3153, %v8115
      %8195 = vst.msk [vmem:[#allocation4 + $0x88] sm:$0xff] %vm3153, %v8117
      %8196 = vst.msk [vmem:[#allocation4 + $0x90] sm:$0xff] %vm3153, %v8119
      %8197 = vst.msk [vmem:[#allocation4 + $0x98] sm:$0xff] %vm3153, %v8121
      %8198 = vst.msk [vmem:[#allocation4 + $0xa0] sm:$0xff] %vm3153, %v8123
      %8199 = vst.msk [vmem:[#allocation4 + $0xa8] sm:$0xff] %vm3153, %v8125
      %8200 = vst.msk [vmem:[#allocation4 + $0xb0] sm:$0xff] %vm3153, %v8127
      %8201 = vst.msk [vmem:[#allocation4 + $0xb8] sm:$0xff] %vm3153, %v8129
      %8202 = vst.msk [vmem:[#allocation4 + $0xc0] sm:$0xff] %vm3153, %v8131
      %8203 = vst.msk [vmem:[#allocation4 + $0xc8] sm:$0xff] %vm3153, %v8133
      %8204 = vst.msk [vmem:[#allocation4 + $0xd0] sm:$0xff] %vm3153, %v8135
      %8205 = vst.msk [vmem:[#allocation4 + $0xd8] sm:$0xff] %vm3153, %v8137
      %8206 = vst.msk [vmem:[#allocation4 + $0xe0] sm:$0xff] %vm3153, %v8139
      %8207 = vst.msk [vmem:[#allocation4 + $0xe8] sm:$0xff] %vm3153, %v8141
      %8208 = vst.msk [vmem:[#allocation4 + $0xf0] sm:$0xff] %vm3153, %v8143
      %8209 = vst.msk [vmem:[#allocation4 + $0xf8] sm:$0xff] %vm3153, %v8145
      %v8210 = vld [vmem:[#allocation4] sm:$0xff]
      %v8211 = vld [vmem:[#allocation4 + $0x8] sm:$0xff]
      %v8212 = vld [vmem:[#allocation4 + $0x10] sm:$0xff]
      %v8213 = vld [vmem:[#allocation4 + $0x18] sm:$0xff]
      %v8214 = vld [vmem:[#allocation4 + $0x20] sm:$0xff]
      %v8215 = vld [vmem:[#allocation4 + $0x28] sm:$0xff]
      %v8216 = vld [vmem:[#allocation4 + $0x30] sm:$0xff]
      %v8217 = vld [vmem:[#allocation4 + $0x38] sm:$0xff]
      %v8218 = vld [vmem:[#allocation4 + $0x40] sm:$0xff]
      %v8219 = vld [vmem:[#allocation4 + $0x48] sm:$0xff]
      %v8220 = vld [vmem:[#allocation4 + $0x50] sm:$0xff]
      %v8221 = vld [vmem:[#allocation4 + $0x58] sm:$0xff]
      %v8222 = vld [vmem:[#allocation4 + $0x60] sm:$0xff]
      %v8223 = vld [vmem:[#allocation4 + $0x68] sm:$0xff]
      %v8224 = vld [vmem:[#allocation4 + $0x70] sm:$0xff]
      %v8225 = vld [vmem:[#allocation4 + $0x78] sm:$0xff]
      %v8226 = vld [vmem:[#allocation4 + $0x80] sm:$0xff]
      %v8227 = vld [vmem:[#allocation4 + $0x88] sm:$0xff]
      %v8228 = vld [vmem:[#allocation4 + $0x90] sm:$0xff]
      %v8229 = vld [vmem:[#allocation4 + $0x98] sm:$0xff]
      %v8230 = vld [vmem:[#allocation4 + $0xa0] sm:$0xff]
      %v8231 = vld [vmem:[#allocation4 + $0xa8] sm:$0xff]
      %v8232 = vld [vmem:[#allocation4 + $0xb0] sm:$0xff]
      %v8233 = vld [vmem:[#allocation4 + $0xb8] sm:$0xff]
      %v8234 = vld [vmem:[#allocation4 + $0xc0] sm:$0xff]
      %v8235 = vld [vmem:[#allocation4 + $0xc8] sm:$0xff]
      %v8236 = vld [vmem:[#allocation4 + $0xd0] sm:$0xff]
      %v8237 = vld [vmem:[#allocation4 + $0xd8] sm:$0xff]
      %v8238 = vld [vmem:[#allocation4 + $0xe0] sm:$0xff]
      %v8239 = vld [vmem:[#allocation4 + $0xe8] sm:$0xff]
      %v8240 = vld [vmem:[#allocation4 + $0xf0] sm:$0xff]
      %v8241 = vld [vmem:[#allocation4 + $0xf8] sm:$0xff]
      %v8242 = vld [vmem:[%s5] sm:$0xff]
      %v8243 = vld [vmem:[%s5 + $0x8] sm:$0xff]
      %v8244 = vld [vmem:[%s5 + $0x10] sm:$0xff]
      %v8245 = vld [vmem:[%s5 + $0x18] sm:$0xff]
      %v8246 = vld [vmem:[%s5 + $0x20] sm:$0xff]
      %v8247 = vld [vmem:[%s5 + $0x28] sm:$0xff]
      %v8248 = vld [vmem:[%s5 + $0x30] sm:$0xff]
      %v8249 = vld [vmem:[%s5 + $0x38] sm:$0xff]
      %v8250 = vld [vmem:[%s5 + $0x40] sm:$0xff]
      %v8251 = vld [vmem:[%s6] sm:$0x1]
      %v8253 = vperm.slane %v8251, 0
      %vm8255 = vcmask 588800
      %v8257 = vsel %vm8255, %v8210, 0
      %v8260 = vsel %vm8255, %v8211, 0
      %v8263 = vsel %vm8255, %v8212, 0
      %v8266 = vsel %vm8255, %v8213, 0
      %v8269 = vsel %vm8255, %v8214, 0
      %v8272 = vsel %vm8255, %v8215, 0
      %v8275 = vsel %vm8255, %v8216, 0
      %v8278 = vsel %vm8255, %v8217, 0
      %v8281 = vsel %vm8255, %v8218, 0
      %v8284 = vsel %vm8255, %v8219, 0
      %v8287 = vsel %vm8255, %v8220, 0
      %v8290 = vsel %vm8255, %v8221, 0
      %v8293 = vsel %vm8255, %v8222, 0
      %v8296 = vsel %vm8255, %v8223, 0
      %v8299 = vsel %vm8255, %v8224, 0
      %v8302 = vsel %vm8255, %v8225, 0
      %v8305 = vsel %vm8255, %v8226, 0
      %v8308 = vsel %vm8255, %v8227, 0
      %v8311 = vsel %vm8255, %v8228, 0
      %v8314 = vsel %vm8255, %v8229, 0
      %v8317 = vsel %vm8255, %v8230, 0
      %v8320 = vsel %vm8255, %v8231, 0
      %v8323 = vsel %vm8255, %v8232, 0
      %v8326 = vsel %vm8255, %v8233, 0
      %v8329 = vsel %vm8255, %v8234, 0
      %v8332 = vsel %vm8255, %v8235, 0
      %v8335 = vsel %vm8255, %v8236, 0
      %v8338 = vsel %vm8255, %v8237, 0
      %v8341 = vsel %vm8255, %v8238, 0
      %v8344 = vsel %vm8255, %v8239, 0
      %v8347 = vsel %vm8255, %v8240, 0
      %v8350 = vsel %vm8255, %v8241, 0
      %8352 = vmatpush.msra.mxu0 0.0
      %8353 = vmatpush.msra.mxu0 0.0
      %8354 = vmatpush.msra.mxu0 0.0
      %8355 = vmatpush.msra.mxu0 0.0
      %8356 = vmatpush.msra.mxu0 0.0
      %8357 = vmatpush.msra.mxu0 0.0
      %8358 = vmatpush.msra.mxu0 0.0
      %8359 = vmatpush.msra.mxu0 %v8250
      %8360 = vmatpush.msra.mxu0 %v8249
      %8361 = vmatpush.msra.mxu0 %v8248
      %8362 = vmatpush.msra.mxu0 %v8247
      %8363 = vmatpush.msra.mxu0 %v8246
      %8364 = vmatpush.msra.mxu0 %v8245
      %8365 = vmatpush.msra.mxu0 %v8244
      %8366 = vmatpush.msra.mxu0 %v8243
      %8367 = vmatpush.msra.mxu0 %v8242
      %8368 = vmatmul.f32.gmra.mxu0 %v8257
      %v8369 = vpop.f32.mrf.mxu0
      %v8370 = vadd.f32 %v8253, %v8369
      %8371 = vmatmul.f32.gmra.mxu0 %v8260
      %v8372 = vpop.f32.mrf.mxu0
      %v8373 = vadd.f32 %v8253, %v8372
      %8374 = vmatmul.f32.gmra.mxu0 %v8263
      %v8375 = vpop.f32.mrf.mxu0
      %v8376 = vadd.f32 %v8253, %v8375
      %8377 = vmatmul.f32.gmra.mxu0 %v8266
      %v8378 = vpop.f32.mrf.mxu0
      %v8379 = vadd.f32 %v8253, %v8378
      %8380 = vmatmul.f32.gmra.mxu0 %v8269
      %v8381 = vpop.f32.mrf.mxu0
      %v8382 = vadd.f32 %v8253, %v8381
      %8383 = vmatmul.f32.gmra.mxu0 %v8272
      %v8384 = vpop.f32.mrf.mxu0
      %v8385 = vadd.f32 %v8253, %v8384
      %8386 = vmatmul.f32.gmra.mxu0 %v8275
      %v8387 = vpop.f32.mrf.mxu0
      %v8388 = vadd.f32 %v8253, %v8387
      %8389 = vmatmul.f32.gmra.mxu0 %v8278
      %v8390 = vpop.f32.mrf.mxu0
      %v8391 = vadd.f32 %v8253, %v8390
      %8392 = vmatmul.f32.gmra.mxu0 %v8281
      %v8393 = vpop.f32.mrf.mxu0
      %v8394 = vadd.f32 %v8253, %v8393
      %8395 = vmatmul.f32.gmra.mxu0 %v8284
      %v8396 = vpop.f32.mrf.mxu0
      %v8397 = vadd.f32 %v8253, %v8396
      %8398 = vmatmul.f32.gmra.mxu0 %v8287
      %v8399 = vpop.f32.mrf.mxu0
      %v8400 = vadd.f32 %v8253, %v8399
      %8401 = vmatmul.f32.gmra.mxu0 %v8290
      %v8402 = vpop.f32.mrf.mxu0
      %v8403 = vadd.f32 %v8253, %v8402
      %8404 = vmatmul.f32.gmra.mxu0 %v8293
      %v8405 = vpop.f32.mrf.mxu0
      %v8406 = vadd.f32 %v8253, %v8405
      %8407 = vmatmul.f32.gmra.mxu0 %v8296
      %v8408 = vpop.f32.mrf.mxu0
      %v8409 = vadd.f32 %v8253, %v8408
      %8410 = vmatmul.f32.gmra.mxu0 %v8299
      %v8411 = vpop.f32.mrf.mxu0
      %v8412 = vadd.f32 %v8253, %v8411
      %8413 = vmatmul.f32.gmra.mxu0 %v8302
      %v8414 = vpop.f32.mrf.mxu0
      %v8415 = vadd.f32 %v8253, %v8414
      %8416 = vmatmul.f32.gmra.mxu0 %v8305
      %v8417 = vpop.f32.mrf.mxu0
      %v8418 = vadd.f32 %v8253, %v8417
      %8419 = vmatmul.f32.gmra.mxu0 %v8308
      %v8420 = vpop.f32.mrf.mxu0
      %v8421 = vadd.f32 %v8253, %v8420
      %8422 = vmatmul.f32.gmra.mxu0 %v8311
      %v8423 = vpop.f32.mrf.mxu0
      %v8424 = vadd.f32 %v8253, %v8423
      %8425 = vmatmul.f32.gmra.mxu0 %v8314
      %v8426 = vpop.f32.mrf.mxu0
      %v8427 = vadd.f32 %v8253, %v8426
      %8428 = vmatmul.f32.gmra.mxu0 %v8317
      %v8429 = vpop.f32.mrf.mxu0
      %v8430 = vadd.f32 %v8253, %v8429
      %8431 = vmatmul.f32.gmra.mxu0 %v8320
      %v8432 = vpop.f32.mrf.mxu0
      %v8433 = vadd.f32 %v8253, %v8432
      %8434 = vmatmul.f32.gmra.mxu0 %v8323
      %v8435 = vpop.f32.mrf.mxu0
      %v8436 = vadd.f32 %v8253, %v8435
      %8437 = vmatmul.f32.gmra.mxu0 %v8326
      %v8438 = vpop.f32.mrf.mxu0
      %v8439 = vadd.f32 %v8253, %v8438
      %8440 = vmatmul.f32.gmra.mxu0 %v8329
      %v8441 = vpop.f32.mrf.mxu0
      %v8442 = vadd.f32 %v8253, %v8441
      %8443 = vmatmul.f32.gmra.mxu0 %v8332
      %v8444 = vpop.f32.mrf.mxu0
      %v8445 = vadd.f32 %v8253, %v8444
      %8446 = vmatmul.f32.gmra.mxu0 %v8335
      %v8447 = vpop.f32.mrf.mxu0
      %v8448 = vadd.f32 %v8253, %v8447
      %8449 = vmatmul.f32.gmra.mxu0 %v8338
      %v8450 = vpop.f32.mrf.mxu0
      %v8451 = vadd.f32 %v8253, %v8450
      %8452 = vmatmul.f32.gmra.mxu0 %v8341
      %v8453 = vpop.f32.mrf.mxu0
      %v8454 = vadd.f32 %v8253, %v8453
      %8455 = vmatmul.f32.gmra.mxu0 %v8344
      %v8456 = vpop.f32.mrf.mxu0
      %v8457 = vadd.f32 %v8253, %v8456
      %8458 = vmatmul.f32.gmra.mxu0 %v8347
      %v8459 = vpop.f32.mrf.mxu0
      %v8460 = vadd.f32 %v8253, %v8459
      %8461 = vmatmul.f32.gmra.mxu0 %v8350
      %v8462 = vpop.f32.mrf.mxu0
      %v8463 = vadd.f32 %v8253, %v8462
      %8464 = vdwg.mxu0
      %v8465 = vmul.f32 %v8370, 0.5
      %v8466 = vmul.f32 %v8373, 0.5
      %v8467 = vmul.f32 %v8376, 0.5
      %v8468 = vmul.f32 %v8379, 0.5
      %v8469 = vmul.f32 %v8382, 0.5
      %v8470 = vmul.f32 %v8385, 0.5
      %v8471 = vmul.f32 %v8388, 0.5
      %v8472 = vmul.f32 %v8391, 0.5
      %v8473 = vmul.f32 %v8394, 0.5
      %v8474 = vmul.f32 %v8397, 0.5
      %v8475 = vmul.f32 %v8400, 0.5
      %v8476 = vmul.f32 %v8403, 0.5
      %v8477 = vmul.f32 %v8406, 0.5
      %v8478 = vmul.f32 %v8409, 0.5
      %v8479 = vmul.f32 %v8412, 0.5
      %v8480 = vmul.f32 %v8415, 0.5
      %v8481 = vmul.f32 %v8418, 0.5
      %v8482 = vmul.f32 %v8421, 0.5
      %v8483 = vmul.f32 %v8424, 0.5
      %v8484 = vmul.f32 %v8427, 0.5
      %v8485 = vmul.f32 %v8430, 0.5
      %v8486 = vmul.f32 %v8433, 0.5
      %v8487 = vmul.f32 %v8436, 0.5
      %v8488 = vmul.f32 %v8439, 0.5
      %v8489 = vmul.f32 %v8442, 0.5
      %v8490 = vmul.f32 %v8445, 0.5
      %v8491 = vmul.f32 %v8448, 0.5
      %v8492 = vmul.f32 %v8451, 0.5
      %v8493 = vmul.f32 %v8454, 0.5
      %v8494 = vmul.f32 %v8457, 0.5
      %v8495 = vmul.f32 %v8460, 0.5
      %v8496 = vmul.f32 %v8463, 0.5
      %v8497 = vmul.f32 %v8370, 0.70710677
      %v8498 = vmul.f32 %v8373, 0.70710677
      %v8499 = vmul.f32 %v8376, 0.70710677
      %v8500 = vmul.f32 %v8379, 0.70710677
      %v8501 = vmul.f32 %v8382, 0.70710677
      %v8502 = vmul.f32 %v8385, 0.70710677
      %v8503 = vmul.f32 %v8388, 0.70710677
      %v8504 = vmul.f32 %v8391, 0.70710677
      %v8505 = vmul.f32 %v8394, 0.70710677
      %v8506 = vmul.f32 %v8397, 0.70710677
      %v8507 = vmul.f32 %v8400, 0.70710677
      %v8508 = vmul.f32 %v8403, 0.70710677
      %v8509 = vmul.f32 %v8406, 0.70710677
      %v8510 = vmul.f32 %v8409, 0.70710677
      %v8511 = vmul.f32 %v8412, 0.70710677
      %v8512 = vmul.f32 %v8415, 0.70710677
      %v8513 = vmul.f32 %v8418, 0.70710677
      %v8514 = vmul.f32 %v8421, 0.70710677
      %v8515 = vmul.f32 %v8424, 0.70710677
      %v8516 = vmul.f32 %v8427, 0.70710677
      %v8517 = vmul.f32 %v8430, 0.70710677
      %v8518 = vmul.f32 %v8433, 0.70710677
      %v8519 = vmul.f32 %v8436, 0.70710677
      %v8520 = vmul.f32 %v8439, 0.70710677
      %v8521 = vmul.f32 %v8442, 0.70710677
      %v8522 = vmul.f32 %v8445, 0.70710677
      %v8523 = vmul.f32 %v8448, 0.70710677
      %v8524 = vmul.f32 %v8451, 0.70710677
      %v8525 = vmul.f32 %v8454, 0.70710677
      %v8526 = vmul.f32 %v8457, 0.70710677
      %v8527 = vmul.f32 %v8460, 0.70710677
      %v8528 = vmul.f32 %v8463, 0.70710677
      %v8529 = vand.u32 2147483647, %v8497
      %v8530 = vand.u32 2147483647, %v8498
      %v8531 = vand.u32 2147483647, %v8499
      %v8532 = vand.u32 2147483647, %v8500
      %v8533 = vand.u32 2147483647, %v8501
      %v8534 = vand.u32 2147483647, %v8502
      %v8535 = vand.u32 2147483647, %v8503
      %v8536 = vand.u32 2147483647, %v8504
      %v8537 = vand.u32 2147483647, %v8505
      %v8538 = vand.u32 2147483647, %v8506
      %v8539 = vand.u32 2147483647, %v8507
      %v8540 = vand.u32 2147483647, %v8508
      %v8541 = vand.u32 2147483647, %v8509
      %v8542 = vand.u32 2147483647, %v8510
      %v8543 = vand.u32 2147483647, %v8511
      %v8544 = vand.u32 2147483647, %v8512
      %v8545 = vand.u32 2147483647, %v8513
      %v8546 = vand.u32 2147483647, %v8514
      %v8547 = vand.u32 2147483647, %v8515
      %v8548 = vand.u32 2147483647, %v8516
      %v8549 = vand.u32 2147483647, %v8517
      %v8550 = vand.u32 2147483647, %v8518
      %v8551 = vand.u32 2147483647, %v8519
      %v8552 = vand.u32 2147483647, %v8520
      %v8553 = vand.u32 2147483647, %v8521
      %v8554 = vand.u32 2147483647, %v8522
      %v8555 = vand.u32 2147483647, %v8523
      %v8556 = vand.u32 2147483647, %v8524
      %v8557 = vand.u32 2147483647, %v8525
      %v8558 = vand.u32 2147483647, %v8526
      %v8559 = vand.u32 2147483647, %v8527
      %v8560 = vand.u32 2147483647, %v8528
      %v8561 = vmul.f32 %v8529, 0.3275911
      %v8562 = vmul.f32 %v8530, 0.3275911
      %v8563 = vmul.f32 %v8531, 0.3275911
      %v8564 = vmul.f32 %v8532, 0.3275911
      %v8565 = vmul.f32 %v8533, 0.3275911
      %v8566 = vmul.f32 %v8534, 0.3275911
      %v8567 = vmul.f32 %v8535, 0.3275911
      %v8568 = vmul.f32 %v8536, 0.3275911
      %v8569 = vmul.f32 %v8537, 0.3275911
      %v8570 = vmul.f32 %v8538, 0.3275911
      %v8571 = vmul.f32 %v8539, 0.3275911
      %v8572 = vmul.f32 %v8540, 0.3275911
      %v8573 = vmul.f32 %v8541, 0.3275911
      %v8574 = vmul.f32 %v8542, 0.3275911
      %v8575 = vmul.f32 %v8543, 0.3275911
      %v8576 = vmul.f32 %v8544, 0.3275911
      %v8577 = vmul.f32 %v8545, 0.3275911
      %v8578 = vmul.f32 %v8546, 0.3275911
      %v8579 = vmul.f32 %v8547, 0.3275911
      %v8580 = vmul.f32 %v8548, 0.3275911
      %v8581 = vmul.f32 %v8549, 0.3275911
      %v8582 = vmul.f32 %v8550, 0.3275911
      %v8583 = vmul.f32 %v8551, 0.3275911
      %v8584 = vmul.f32 %v8552, 0.3275911
      %v8585 = vmul.f32 %v8553, 0.3275911
      %v8586 = vmul.f32 %v8554, 0.3275911
      %v8587 = vmul.f32 %v8555, 0.3275911
      %v8588 = vmul.f32 %v8556, 0.3275911
      %v8589 = vmul.f32 %v8557, 0.3275911
      %v8590 = vmul.f32 %v8558, 0.3275911
      %v8591 = vmul.f32 %v8559, 0.3275911
      %v8592 = vmul.f32 %v8560, 0.3275911
      %v8593 = vadd.f32 %v8561, 1.0
      %v8594 = vadd.f32 %v8562, 1.0
      %v8595 = vadd.f32 %v8563, 1.0
      %v8596 = vadd.f32 %v8564, 1.0
      %v8597 = vadd.f32 %v8565, 1.0
      %v8598 = vadd.f32 %v8566, 1.0
      %v8599 = vadd.f32 %v8567, 1.0
      %v8600 = vadd.f32 %v8568, 1.0
      %v8601 = vadd.f32 %v8569, 1.0
      %v8602 = vadd.f32 %v8570, 1.0
      %v8603 = vadd.f32 %v8571, 1.0
      %v8604 = vadd.f32 %v8572, 1.0
      %v8605 = vadd.f32 %v8573, 1.0
      %v8606 = vadd.f32 %v8574, 1.0
      %v8607 = vadd.f32 %v8575, 1.0
      %v8608 = vadd.f32 %v8576, 1.0
      %v8609 = vadd.f32 %v8577, 1.0
      %v8610 = vadd.f32 %v8578, 1.0
      %v8611 = vadd.f32 %v8579, 1.0
      %v8612 = vadd.f32 %v8580, 1.0
      %v8613 = vadd.f32 %v8581, 1.0
      %v8614 = vadd.f32 %v8582, 1.0
      %v8615 = vadd.f32 %v8583, 1.0
      %v8616 = vadd.f32 %v8584, 1.0
      %v8617 = vadd.f32 %v8585, 1.0
      %v8618 = vadd.f32 %v8586, 1.0
      %v8619 = vadd.f32 %v8587, 1.0
      %v8620 = vadd.f32 %v8588, 1.0
      %v8621 = vadd.f32 %v8589, 1.0
      %v8622 = vadd.f32 %v8590, 1.0
      %v8623 = vadd.f32 %v8591, 1.0
      %v8624 = vadd.f32 %v8592, 1.0
      %v8625 = vrcp.pop %v8593
      %v8626 = vrcp.pop %v8594
      %v8627 = vrcp.pop %v8595
      %v8628 = vrcp.pop %v8596
      %v8629 = vrcp.pop %v8597
      %v8630 = vrcp.pop %v8598
      %v8631 = vrcp.pop %v8599
      %v8632 = vrcp.pop %v8600
      %v8633 = vrcp.pop %v8601
      %v8634 = vrcp.pop %v8602
      %v8635 = vrcp.pop %v8603
      %v8636 = vrcp.pop %v8604
      %v8637 = vrcp.pop %v8605
      %v8638 = vrcp.pop %v8606
      %v8639 = vrcp.pop %v8607
      %v8640 = vrcp.pop %v8608
      %v8641 = vrcp.pop %v8609
      %v8642 = vrcp.pop %v8610
      %v8643 = vrcp.pop %v8611
      %v8644 = vrcp.pop %v8612
      %v8645 = vrcp.pop %v8613
      %v8646 = vrcp.pop %v8614
      %v8647 = vrcp.pop %v8615
      %v8648 = vrcp.pop %v8616
      %v8649 = vrcp.pop %v8617
      %v8650 = vrcp.pop %v8618
      %v8651 = vrcp.pop %v8619
      %v8652 = vrcp.pop %v8620
      %v8653 = vrcp.pop %v8621
      %v8654 = vrcp.pop %v8622
      %v8655 = vrcp.pop %v8623
      %v8656 = vrcp.pop %v8624
      %v8657 = vmul.f32 %v8593, %v8625
      %v8658 = vmul.f32 %v8594, %v8626
      %v8659 = vmul.f32 %v8595, %v8627
      %v8660 = vmul.f32 %v8596, %v8628
      %v8661 = vmul.f32 %v8597, %v8629
      %v8662 = vmul.f32 %v8598, %v8630
      %v8663 = vmul.f32 %v8599, %v8631
      %v8664 = vmul.f32 %v8600, %v8632
      %v8665 = vmul.f32 %v8601, %v8633
      %v8666 = vmul.f32 %v8602, %v8634
      %v8667 = vmul.f32 %v8603, %v8635
      %v8668 = vmul.f32 %v8604, %v8636
      %v8669 = vmul.f32 %v8605, %v8637
      %v8670 = vmul.f32 %v8606, %v8638
      %v8671 = vmul.f32 %v8607, %v8639
      %v8672 = vmul.f32 %v8608, %v8640
      %v8673 = vmul.f32 %v8609, %v8641
      %v8674 = vmul.f32 %v8610, %v8642
      %v8675 = vmul.f32 %v8611, %v8643
      %v8676 = vmul.f32 %v8612, %v8644
      %v8677 = vmul.f32 %v8613, %v8645
      %v8678 = vmul.f32 %v8614, %v8646
      %v8679 = vmul.f32 %v8615, %v8647
      %v8680 = vmul.f32 %v8616, %v8648
      %v8681 = vmul.f32 %v8617, %v8649
      %v8682 = vmul.f32 %v8618, %v8650
      %v8683 = vmul.f32 %v8619, %v8651
      %v8684 = vmul.f32 %v8620, %v8652
      %v8685 = vmul.f32 %v8621, %v8653
      %v8686 = vmul.f32 %v8622, %v8654
      %v8687 = vmul.f32 %v8623, %v8655
      %v8688 = vmul.f32 %v8624, %v8656
      %v8689 = vsub.f32 2.0, %v8657
      %v8690 = vsub.f32 2.0, %v8658
      %v8691 = vsub.f32 2.0, %v8659
      %v8692 = vsub.f32 2.0, %v8660
      %v8693 = vsub.f32 2.0, %v8661
      %v8694 = vsub.f32 2.0, %v8662
      %v8695 = vsub.f32 2.0, %v8663
      %v8696 = vsub.f32 2.0, %v8664
      %v8697 = vsub.f32 2.0, %v8665
      %v8698 = vsub.f32 2.0, %v8666
      %v8699 = vsub.f32 2.0, %v8667
      %v8700 = vsub.f32 2.0, %v8668
      %v8701 = vsub.f32 2.0, %v8669
      %v8702 = vsub.f32 2.0, %v8670
      %v8703 = vsub.f32 2.0, %v8671
      %v8704 = vsub.f32 2.0, %v8672
      %v8705 = vsub.f32 2.0, %v8673
      %v8706 = vsub.f32 2.0, %v8674
      %v8707 = vsub.f32 2.0, %v8675
      %v8708 = vsub.f32 2.0, %v8676
      %v8709 = vsub.f32 2.0, %v8677
      %v8710 = vsub.f32 2.0, %v8678
      %v8711 = vsub.f32 2.0, %v8679
      %v8712 = vsub.f32 2.0, %v8680
      %v8713 = vsub.f32 2.0, %v8681
      %v8714 = vsub.f32 2.0, %v8682
      %v8715 = vsub.f32 2.0, %v8683
      %v8716 = vsub.f32 2.0, %v8684
      %v8717 = vsub.f32 2.0, %v8685
      %v8718 = vsub.f32 2.0, %v8686
      %v8719 = vsub.f32 2.0, %v8687
      %v8720 = vsub.f32 2.0, %v8688
      %v8721 = vmul.f32 %v8625, %v8689
      %v8722 = vmul.f32 %v8626, %v8690
      %v8723 = vmul.f32 %v8627, %v8691
      %v8724 = vmul.f32 %v8628, %v8692
      %v8725 = vmul.f32 %v8629, %v8693
      %v8726 = vmul.f32 %v8630, %v8694
      %v8727 = vmul.f32 %v8631, %v8695
      %v8728 = vmul.f32 %v8632, %v8696
      %v8729 = vmul.f32 %v8633, %v8697
      %v8730 = vmul.f32 %v8634, %v8698
      %v8731 = vmul.f32 %v8635, %v8699
      %v8732 = vmul.f32 %v8636, %v8700
      %v8733 = vmul.f32 %v8637, %v8701
      %v8734 = vmul.f32 %v8638, %v8702
      %v8735 = vmul.f32 %v8639, %v8703
      %v8736 = vmul.f32 %v8640, %v8704
      %v8737 = vmul.f32 %v8641, %v8705
      %v8738 = vmul.f32 %v8642, %v8706
      %v8739 = vmul.f32 %v8643, %v8707
      %v8740 = vmul.f32 %v8644, %v8708
      %v8741 = vmul.f32 %v8645, %v8709
      %v8742 = vmul.f32 %v8646, %v8710
      %v8743 = vmul.f32 %v8647, %v8711
      %v8744 = vmul.f32 %v8648, %v8712
      %v8745 = vmul.f32 %v8649, %v8713
      %v8746 = vmul.f32 %v8650, %v8714
      %v8747 = vmul.f32 %v8651, %v8715
      %v8748 = vmul.f32 %v8652, %v8716
      %v8749 = vmul.f32 %v8653, %v8717
      %v8750 = vmul.f32 %v8654, %v8718
      %v8751 = vmul.f32 %v8655, %v8719
      %v8752 = vmul.f32 %v8656, %v8720
      %v8753 = vmul.f32 %v8721, 1.0614054
      %v8754 = vmul.f32 %v8722, 1.0614054
      %v8755 = vmul.f32 %v8723, 1.0614054
      %v8756 = vmul.f32 %v8724, 1.0614054
      %v8757 = vmul.f32 %v8725, 1.0614054
      %v8758 = vmul.f32 %v8726, 1.0614054
      %v8759 = vmul.f32 %v8727, 1.0614054
      %v8760 = vmul.f32 %v8728, 1.0614054
      %v8761 = vmul.f32 %v8729, 1.0614054
      %v8762 = vmul.f32 %v8730, 1.0614054
      %v8763 = vmul.f32 %v8731, 1.0614054
      %v8764 = vmul.f32 %v8732, 1.0614054
      %v8765 = vmul.f32 %v8733, 1.0614054
      %v8766 = vmul.f32 %v8734, 1.0614054
      %v8767 = vmul.f32 %v8735, 1.0614054
      %v8768 = vmul.f32 %v8736, 1.0614054
      %v8769 = vmul.f32 %v8737, 1.0614054
      %v8770 = vmul.f32 %v8738, 1.0614054
      %v8771 = vmul.f32 %v8739, 1.0614054
      %v8772 = vmul.f32 %v8740, 1.0614054
      %v8773 = vmul.f32 %v8741, 1.0614054
      %v8774 = vmul.f32 %v8742, 1.0614054
      %v8775 = vmul.f32 %v8743, 1.0614054
      %v8776 = vmul.f32 %v8744, 1.0614054
      %v8777 = vmul.f32 %v8745, 1.0614054
      %v8778 = vmul.f32 %v8746, 1.0614054
      %v8779 = vmul.f32 %v8747, 1.0614054
      %v8780 = vmul.f32 %v8748, 1.0614054
      %v8781 = vmul.f32 %v8749, 1.0614054
      %v8782 = vmul.f32 %v8750, 1.0614054
      %v8783 = vmul.f32 %v8751, 1.0614054
      %v8784 = vmul.f32 %v8752, 1.0614054
      %v8785 = vadd.f32 %v8753, -1.4531521
      %v8786 = vadd.f32 %v8754, -1.4531521
      %v8787 = vadd.f32 %v8755, -1.4531521
      %v8788 = vadd.f32 %v8756, -1.4531521
      %v8789 = vadd.f32 %v8757, -1.4531521
      %v8790 = vadd.f32 %v8758, -1.4531521
      %v8791 = vadd.f32 %v8759, -1.4531521
      %v8792 = vadd.f32 %v8760, -1.4531521
      %v8793 = vadd.f32 %v8761, -1.4531521
      %v8794 = vadd.f32 %v8762, -1.4531521
      %v8795 = vadd.f32 %v8763, -1.4531521
      %v8796 = vadd.f32 %v8764, -1.4531521
      %v8797 = vadd.f32 %v8765, -1.4531521
      %v8798 = vadd.f32 %v8766, -1.4531521
      %v8799 = vadd.f32 %v8767, -1.4531521
      %v8800 = vadd.f32 %v8768, -1.4531521
      %v8801 = vadd.f32 %v8769, -1.4531521
      %v8802 = vadd.f32 %v8770, -1.4531521
      %v8803 = vadd.f32 %v8771, -1.4531521
      %v8804 = vadd.f32 %v8772, -1.4531521
      %v8805 = vadd.f32 %v8773, -1.4531521
      %v8806 = vadd.f32 %v8774, -1.4531521
      %v8807 = vadd.f32 %v8775, -1.4531521
      %v8808 = vadd.f32 %v8776, -1.4531521
      %v8809 = vadd.f32 %v8777, -1.4531521
      %v8810 = vadd.f32 %v8778, -1.4531521
      %v8811 = vadd.f32 %v8779, -1.4531521
      %v8812 = vadd.f32 %v8780, -1.4531521
      %v8813 = vadd.f32 %v8781, -1.4531521
      %v8814 = vadd.f32 %v8782, -1.4531521
      %v8815 = vadd.f32 %v8783, -1.4531521
      %v8816 = vadd.f32 %v8784, -1.4531521
      %v8817 = vmul.f32 %v8721, %v8785
      %v8818 = vmul.f32 %v8722, %v8786
      %v8819 = vmul.f32 %v8723, %v8787
      %v8820 = vmul.f32 %v8724, %v8788
      %v8821 = vmul.f32 %v8725, %v8789
      %v8822 = vmul.f32 %v8726, %v8790
      %v8823 = vmul.f32 %v8727, %v8791
      %v8824 = vmul.f32 %v8728, %v8792
      %v8825 = vmul.f32 %v8729, %v8793
      %v8826 = vmul.f32 %v8730, %v8794
      %v8827 = vmul.f32 %v8731, %v8795
      %v8828 = vmul.f32 %v8732, %v8796
      %v8829 = vmul.f32 %v8733, %v8797
      %v8830 = vmul.f32 %v8734, %v8798
      %v8831 = vmul.f32 %v8735, %v8799
      %v8832 = vmul.f32 %v8736, %v8800
      %v8833 = vmul.f32 %v8737, %v8801
      %v8834 = vmul.f32 %v8738, %v8802
      %v8835 = vmul.f32 %v8739, %v8803
      %v8836 = vmul.f32 %v8740, %v8804
      %v8837 = vmul.f32 %v8741, %v8805
      %v8838 = vmul.f32 %v8742, %v8806
      %v8839 = vmul.f32 %v8743, %v8807
      %v8840 = vmul.f32 %v8744, %v8808
      %v8841 = vmul.f32 %v8745, %v8809
      %v8842 = vmul.f32 %v8746, %v8810
      %v8843 = vmul.f32 %v8747, %v8811
      %v8844 = vmul.f32 %v8748, %v8812
      %v8845 = vmul.f32 %v8749, %v8813
      %v8846 = vmul.f32 %v8750, %v8814
      %v8847 = vmul.f32 %v8751, %v8815
      %v8848 = vmul.f32 %v8752, %v8816
      %v8849 = vadd.f32 %v8817, 1.4214138
      %v8850 = vadd.f32 %v8818, 1.4214138
      %v8851 = vadd.f32 %v8819, 1.4214138
      %v8852 = vadd.f32 %v8820, 1.4214138
      %v8853 = vadd.f32 %v8821, 1.4214138
      %v8854 = vadd.f32 %v8822, 1.4214138
      %v8855 = vadd.f32 %v8823, 1.4214138
      %v8856 = vadd.f32 %v8824, 1.4214138
      %v8857 = vadd.f32 %v8825, 1.4214138
      %v8858 = vadd.f32 %v8826, 1.4214138
      %v8859 = vadd.f32 %v8827, 1.4214138
      %v8860 = vadd.f32 %v8828, 1.4214138
      %v8861 = vadd.f32 %v8829, 1.4214138
      %v8862 = vadd.f32 %v8830, 1.4214138
      %v8863 = vadd.f32 %v8831, 1.4214138
      %v8864 = vadd.f32 %v8832, 1.4214138
      %v8865 = vadd.f32 %v8833, 1.4214138
      %v8866 = vadd.f32 %v8834, 1.4214138
      %v8867 = vadd.f32 %v8835, 1.4214138
      %v8868 = vadd.f32 %v8836, 1.4214138
      %v8869 = vadd.f32 %v8837, 1.4214138
      %v8870 = vadd.f32 %v8838, 1.4214138
      %v8871 = vadd.f32 %v8839, 1.4214138
      %v8872 = vadd.f32 %v8840, 1.4214138
      %v8873 = vadd.f32 %v8841, 1.4214138
      %v8874 = vadd.f32 %v8842, 1.4214138
      %v8875 = vadd.f32 %v8843, 1.4214138
      %v8876 = vadd.f32 %v8844, 1.4214138
      %v8877 = vadd.f32 %v8845, 1.4214138
      %v8878 = vadd.f32 %v8846, 1.4214138
      %v8879 = vadd.f32 %v8847, 1.4214138
      %v8880 = vadd.f32 %v8848, 1.4214138
      %v8881 = vmul.f32 %v8721, %v8849
      %v8882 = vmul.f32 %v8722, %v8850
      %v8883 = vmul.f32 %v8723, %v8851
      %v8884 = vmul.f32 %v8724, %v8852
      %v8885 = vmul.f32 %v8725, %v8853
      %v8886 = vmul.f32 %v8726, %v8854
      %v8887 = vmul.f32 %v8727, %v8855
      %v8888 = vmul.f32 %v8728, %v8856
      %v8889 = vmul.f32 %v8729, %v8857
      %v8890 = vmul.f32 %v8730, %v8858
      %v8891 = vmul.f32 %v8731, %v8859
      %v8892 = vmul.f32 %v8732, %v8860
      %v8893 = vmul.f32 %v8733, %v8861
      %v8894 = vmul.f32 %v8734, %v8862
      %v8895 = vmul.f32 %v8735, %v8863
      %v8896 = vmul.f32 %v8736, %v8864
      %v8897 = vmul.f32 %v8737, %v8865
      %v8898 = vmul.f32 %v8738, %v8866
      %v8899 = vmul.f32 %v8739, %v8867
      %v8900 = vmul.f32 %v8740, %v8868
      %v8901 = vmul.f32 %v8741, %v8869
      %v8902 = vmul.f32 %v8742, %v8870
      %v8903 = vmul.f32 %v8743, %v8871
      %v8904 = vmul.f32 %v8744, %v8872
      %v8905 = vmul.f32 %v8745, %v8873
      %v8906 = vmul.f32 %v8746, %v8874
      %v8907 = vmul.f32 %v8747, %v8875
      %v8908 = vmul.f32 %v8748, %v8876
      %v8909 = vmul.f32 %v8749, %v8877
      %v8910 = vmul.f32 %v8750, %v8878
      %v8911 = vmul.f32 %v8751, %v8879
      %v8912 = vmul.f32 %v8752, %v8880
      %v8913 = vadd.f32 %v8881, -0.28449672
      %v8914 = vadd.f32 %v8882, -0.28449672
      %v8915 = vadd.f32 %v8883, -0.28449672
      %v8916 = vadd.f32 %v8884, -0.28449672
      %v8917 = vadd.f32 %v8885, -0.28449672
      %v8918 = vadd.f32 %v8886, -0.28449672
      %v8919 = vadd.f32 %v8887, -0.28449672
      %v8920 = vadd.f32 %v8888, -0.28449672
      %v8921 = vadd.f32 %v8889, -0.28449672
      %v8922 = vadd.f32 %v8890, -0.28449672
      %v8923 = vadd.f32 %v8891, -0.28449672
      %v8924 = vadd.f32 %v8892, -0.28449672
      %v8925 = vadd.f32 %v8893, -0.28449672
      %v8926 = vadd.f32 %v8894, -0.28449672
      %v8927 = vadd.f32 %v8895, -0.28449672
      %v8928 = vadd.f32 %v8896, -0.28449672
      %v8929 = vadd.f32 %v8897, -0.28449672
      %v8930 = vadd.f32 %v8898, -0.28449672
      %v8931 = vadd.f32 %v8899, -0.28449672
      %v8932 = vadd.f32 %v8900, -0.28449672
      %v8933 = vadd.f32 %v8901, -0.28449672
      %v8934 = vadd.f32 %v8902, -0.28449672
      %v8935 = vadd.f32 %v8903, -0.28449672
      %v8936 = vadd.f32 %v8904, -0.28449672
      %v8937 = vadd.f32 %v8905, -0.28449672
      %v8938 = vadd.f32 %v8906, -0.28449672
      %v8939 = vadd.f32 %v8907, -0.28449672
      %v8940 = vadd.f32 %v8908, -0.28449672
      %v8941 = vadd.f32 %v8909, -0.28449672
      %v8942 = vadd.f32 %v8910, -0.28449672
      %v8943 = vadd.f32 %v8911, -0.28449672
      %v8944 = vadd.f32 %v8912, -0.28449672
      %v8945 = vmul.f32 %v8721, %v8913
      %v8946 = vmul.f32 %v8722, %v8914
      %v8947 = vmul.f32 %v8723, %v8915
      %v8948 = vmul.f32 %v8724, %v8916
      %v8949 = vmul.f32 %v8725, %v8917
      %v8950 = vmul.f32 %v8726, %v8918
      %v8951 = vmul.f32 %v8727, %v8919
      %v8952 = vmul.f32 %v8728, %v8920
      %v8953 = vmul.f32 %v8729, %v8921
      %v8954 = vmul.f32 %v8730, %v8922
      %v8955 = vmul.f32 %v8731, %v8923
      %v8956 = vmul.f32 %v8732, %v8924
      %v8957 = vmul.f32 %v8733, %v8925
      %v8958 = vmul.f32 %v8734, %v8926
      %v8959 = vmul.f32 %v8735, %v8927
      %v8960 = vmul.f32 %v8736, %v8928
      %v8961 = vmul.f32 %v8737, %v8929
      %v8962 = vmul.f32 %v8738, %v8930
      %v8963 = vmul.f32 %v8739, %v8931
      %v8964 = vmul.f32 %v8740, %v8932
      %v8965 = vmul.f32 %v8741, %v8933
      %v8966 = vmul.f32 %v8742, %v8934
      %v8967 = vmul.f32 %v8743, %v8935
      %v8968 = vmul.f32 %v8744, %v8936
      %v8969 = vmul.f32 %v8745, %v8937
      %v8970 = vmul.f32 %v8746, %v8938
      %v8971 = vmul.f32 %v8747, %v8939
      %v8972 = vmul.f32 %v8748, %v8940
      %v8973 = vmul.f32 %v8749, %v8941
      %v8974 = vmul.f32 %v8750, %v8942
      %v8975 = vmul.f32 %v8751, %v8943
      %v8976 = vmul.f32 %v8752, %v8944
      %v8977 = vadd.f32 %v8945, 0.2548296
      %v8978 = vadd.f32 %v8946, 0.2548296
      %v8979 = vadd.f32 %v8947, 0.2548296
      %v8980 = vadd.f32 %v8948, 0.2548296
      %v8981 = vadd.f32 %v8949, 0.2548296
      %v8982 = vadd.f32 %v8950, 0.2548296
      %v8983 = vadd.f32 %v8951, 0.2548296
      %v8984 = vadd.f32 %v8952, 0.2548296
      %v8985 = vadd.f32 %v8953, 0.2548296
      %v8986 = vadd.f32 %v8954, 0.2548296
      %v8987 = vadd.f32 %v8955, 0.2548296
      %v8988 = vadd.f32 %v8956, 0.2548296
      %v8989 = vadd.f32 %v8957, 0.2548296
      %v8990 = vadd.f32 %v8958, 0.2548296
      %v8991 = vadd.f32 %v8959, 0.2548296
      %v8992 = vadd.f32 %v8960, 0.2548296
      %v8993 = vadd.f32 %v8961, 0.2548296
      %v8994 = vadd.f32 %v8962, 0.2548296
      %v8995 = vadd.f32 %v8963, 0.2548296
      %v8996 = vadd.f32 %v8964, 0.2548296
      %v8997 = vadd.f32 %v8965, 0.2548296
      %v8998 = vadd.f32 %v8966, 0.2548296
      %v8999 = vadd.f32 %v8967, 0.2548296
      %v9000 = vadd.f32 %v8968, 0.2548296
      %v9001 = vadd.f32 %v8969, 0.2548296
      %v9002 = vadd.f32 %v8970, 0.2548296
      %v9003 = vadd.f32 %v8971, 0.2548296
      %v9004 = vadd.f32 %v8972, 0.2548296
      %v9005 = vadd.f32 %v8973, 0.2548296
      %v9006 = vadd.f32 %v8974, 0.2548296
      %v9007 = vadd.f32 %v8975, 0.2548296
      %v9008 = vadd.f32 %v8976, 0.2548296
      %v9009 = vmul.f32 %v8721, %v8977
      %v9010 = vmul.f32 %v8722, %v8978
      %v9011 = vmul.f32 %v8723, %v8979
      %v9012 = vmul.f32 %v8724, %v8980
      %v9013 = vmul.f32 %v8725, %v8981
      %v9014 = vmul.f32 %v8726, %v8982
      %v9015 = vmul.f32 %v8727, %v8983
      %v9016 = vmul.f32 %v8728, %v8984
      %v9017 = vmul.f32 %v8729, %v8985
      %v9018 = vmul.f32 %v8730, %v8986
      %v9019 = vmul.f32 %v8731, %v8987
      %v9020 = vmul.f32 %v8732, %v8988
      %v9021 = vmul.f32 %v8733, %v8989
      %v9022 = vmul.f32 %v8734, %v8990
      %v9023 = vmul.f32 %v8735, %v8991
      %v9024 = vmul.f32 %v8736, %v8992
      %v9025 = vmul.f32 %v8737, %v8993
      %v9026 = vmul.f32 %v8738, %v8994
      %v9027 = vmul.f32 %v8739, %v8995
      %v9028 = vmul.f32 %v8740, %v8996
      %v9029 = vmul.f32 %v8741, %v8997
      %v9030 = vmul.f32 %v8742, %v8998
      %v9031 = vmul.f32 %v8743, %v8999
      %v9032 = vmul.f32 %v8744, %v9000
      %v9033 = vmul.f32 %v8745, %v9001
      %v9034 = vmul.f32 %v8746, %v9002
      %v9035 = vmul.f32 %v8747, %v9003
      %v9036 = vmul.f32 %v8748, %v9004
      %v9037 = vmul.f32 %v8749, %v9005
      %v9038 = vmul.f32 %v8750, %v9006
      %v9039 = vmul.f32 %v8751, %v9007
      %v9040 = vmul.f32 %v8752, %v9008
      %v9041 = vsub.f32 0.0, %v8529
      %v9042 = vsub.f32 0.0, %v8530
      %v9043 = vsub.f32 0.0, %v8531
      %v9044 = vsub.f32 0.0, %v8532
      %v9045 = vsub.f32 0.0, %v8533
      %v9046 = vsub.f32 0.0, %v8534
      %v9047 = vsub.f32 0.0, %v8535
      %v9048 = vsub.f32 0.0, %v8536
      %v9049 = vsub.f32 0.0, %v8537
      %v9050 = vsub.f32 0.0, %v8538
      %v9051 = vsub.f32 0.0, %v8539
      %v9052 = vsub.f32 0.0, %v8540
      %v9053 = vsub.f32 0.0, %v8541
      %v9054 = vsub.f32 0.0, %v8542
      %v9055 = vsub.f32 0.0, %v8543
      %v9056 = vsub.f32 0.0, %v8544
      %v9057 = vsub.f32 0.0, %v8545
      %v9058 = vsub.f32 0.0, %v8546
      %v9059 = vsub.f32 0.0, %v8547
      %v9060 = vsub.f32 0.0, %v8548
      %v9061 = vsub.f32 0.0, %v8549
      %v9062 = vsub.f32 0.0, %v8550
      %v9063 = vsub.f32 0.0, %v8551
      %v9064 = vsub.f32 0.0, %v8552
      %v9065 = vsub.f32 0.0, %v8553
      %v9066 = vsub.f32 0.0, %v8554
      %v9067 = vsub.f32 0.0, %v8555
      %v9068 = vsub.f32 0.0, %v8556
      %v9069 = vsub.f32 0.0, %v8557
      %v9070 = vsub.f32 0.0, %v8558
      %v9071 = vsub.f32 0.0, %v8559
      %v9072 = vsub.f32 0.0, %v8560
      %v9073 = vmul.f32 %v9041, %v8529
      %v9074 = vmul.f32 %v9042, %v8530
      %v9075 = vmul.f32 %v9043, %v8531
      %v9076 = vmul.f32 %v9044, %v8532
      %v9077 = vmul.f32 %v9045, %v8533
      %v9078 = vmul.f32 %v9046, %v8534
      %v9079 = vmul.f32 %v9047, %v8535
      %v9080 = vmul.f32 %v9048, %v8536
      %v9081 = vmul.f32 %v9049, %v8537
      %v9082 = vmul.f32 %v9050, %v8538
      %v9083 = vmul.f32 %v9051, %v8539
      %v9084 = vmul.f32 %v9052, %v8540
      %v9085 = vmul.f32 %v9053, %v8541
      %v9086 = vmul.f32 %v9054, %v8542
      %v9087 = vmul.f32 %v9055, %v8543
      %v9088 = vmul.f32 %v9056, %v8544
      %v9089 = vmul.f32 %v9057, %v8545
      %v9090 = vmul.f32 %v9058, %v8546
      %v9091 = vmul.f32 %v9059, %v8547
      %v9092 = vmul.f32 %v9060, %v8548
      %v9093 = vmul.f32 %v9061, %v8549
      %v9094 = vmul.f32 %v9062, %v8550
      %v9095 = vmul.f32 %v9063, %v8551
      %v9096 = vmul.f32 %v9064, %v8552
      %v9097 = vmul.f32 %v9065, %v8553
      %v9098 = vmul.f32 %v9066, %v8554
      %v9099 = vmul.f32 %v9067, %v8555
      %v9100 = vmul.f32 %v9068, %v8556
      %v9101 = vmul.f32 %v9069, %v8557
      %v9102 = vmul.f32 %v9070, %v8558
      %v9103 = vmul.f32 %v9071, %v8559
      %v9104 = vmul.f32 %v9072, %v8560
      %v9105 = vmul.f32 %v9073, 1.442695
      %v9106 = vpow.pop %v9105
      %v9107 = vmul.f32 %v9074, 1.442695
      %v9108 = vpow.pop %v9107
      %v9109 = vmul.f32 %v9075, 1.442695
      %v9110 = vpow.pop %v9109
      %v9111 = vmul.f32 %v9076, 1.442695
      %v9112 = vpow.pop %v9111
      %v9113 = vmul.f32 %v9077, 1.442695
      %v9114 = vpow.pop %v9113
      %v9115 = vmul.f32 %v9078, 1.442695
      %v9116 = vpow.pop %v9115
      %v9117 = vmul.f32 %v9079, 1.442695
      %v9118 = vpow.pop %v9117
      %v9119 = vmul.f32 %v9080, 1.442695
      %v9120 = vpow.pop %v9119
      %v9121 = vmul.f32 %v9081, 1.442695
      %v9122 = vpow.pop %v9121
      %v9123 = vmul.f32 %v9082, 1.442695
      %v9124 = vpow.pop %v9123
      %v9125 = vmul.f32 %v9083, 1.442695
      %v9126 = vpow.pop %v9125
      %v9127 = vmul.f32 %v9084, 1.442695
      %v9128 = vpow.pop %v9127
      %v9129 = vmul.f32 %v9085, 1.442695
      %v9130 = vpow.pop %v9129
      %v9131 = vmul.f32 %v9086, 1.442695
      %v9132 = vpow.pop %v9131
      %v9133 = vmul.f32 %v9087, 1.442695
      %v9134 = vpow.pop %v9133
      %v9135 = vmul.f32 %v9088, 1.442695
      %v9136 = vpow.pop %v9135
      %v9137 = vmul.f32 %v9089, 1.442695
      %v9138 = vpow.pop %v9137
      %v9139 = vmul.f32 %v9090, 1.442695
      %v9140 = vpow.pop %v9139
      %v9141 = vmul.f32 %v9091, 1.442695
      %v9142 = vpow.pop %v9141
      %v9143 = vmul.f32 %v9092, 1.442695
      %v9144 = vpow.pop %v9143
      %v9145 = vmul.f32 %v9093, 1.442695
      %v9146 = vpow.pop %v9145
      %v9147 = vmul.f32 %v9094, 1.442695
      %v9148 = vpow.pop %v9147
      %v9149 = vmul.f32 %v9095, 1.442695
      %v9150 = vpow.pop %v9149
      %v9151 = vmul.f32 %v9096, 1.442695
      %v9152 = vpow.pop %v9151
      %v9153 = vmul.f32 %v9097, 1.442695
      %v9154 = vpow.pop %v9153
      %v9155 = vmul.f32 %v9098, 1.442695
      %v9156 = vpow.pop %v9155
      %v9157 = vmul.f32 %v9099, 1.442695
      %v9158 = vpow.pop %v9157
      %v9159 = vmul.f32 %v9100, 1.442695
      %v9160 = vpow.pop %v9159
      %v9161 = vmul.f32 %v9101, 1.442695
      %v9162 = vpow.pop %v9161
      %v9163 = vmul.f32 %v9102, 1.442695
      %v9164 = vpow.pop %v9163
      %v9165 = vmul.f32 %v9103, 1.442695
      %v9166 = vpow.pop %v9165
      %v9167 = vmul.f32 %v9104, 1.442695
      %v9168 = vpow.pop %v9167
      %v9169 = vmul.f32 %v9009, %v9106
      %v9170 = vmul.f32 %v9010, %v9108
      %v9171 = vmul.f32 %v9011, %v9110
      %v9172 = vmul.f32 %v9012, %v9112
      %v9173 = vmul.f32 %v9013, %v9114
      %v9174 = vmul.f32 %v9014, %v9116
      %v9175 = vmul.f32 %v9015, %v9118
      %v9176 = vmul.f32 %v9016, %v9120
      %v9177 = vmul.f32 %v9017, %v9122
      %v9178 = vmul.f32 %v9018, %v9124
      %v9179 = vmul.f32 %v9019, %v9126
      %v9180 = vmul.f32 %v9020, %v9128
      %v9181 = vmul.f32 %v9021, %v9130
      %v9182 = vmul.f32 %v9022, %v9132
      %v9183 = vmul.f32 %v9023, %v9134
      %v9184 = vmul.f32 %v9024, %v9136
      %v9185 = vmul.f32 %v9025, %v9138
      %v9186 = vmul.f32 %v9026, %v9140
      %v9187 = vmul.f32 %v9027, %v9142
      %v9188 = vmul.f32 %v9028, %v9144
      %v9189 = vmul.f32 %v9029, %v9146
      %v9190 = vmul.f32 %v9030, %v9148
      %v9191 = vmul.f32 %v9031, %v9150
      %v9192 = vmul.f32 %v9032, %v9152
      %v9193 = vmul.f32 %v9033, %v9154
      %v9194 = vmul.f32 %v9034, %v9156
      %v9195 = vmul.f32 %v9035, %v9158
      %v9196 = vmul.f32 %v9036, %v9160
      %v9197 = vmul.f32 %v9037, %v9162
      %v9198 = vmul.f32 %v9038, %v9164
      %v9199 = vmul.f32 %v9039, %v9166
      %v9200 = vmul.f32 %v9040, %v9168
      %v9201 = vsub.f32 1.0, %v9169
      %v9202 = vsub.f32 1.0, %v9170
      %v9203 = vsub.f32 1.0, %v9171
      %v9204 = vsub.f32 1.0, %v9172
      %v9205 = vsub.f32 1.0, %v9173
      %v9206 = vsub.f32 1.0, %v9174
      %v9207 = vsub.f32 1.0, %v9175
      %v9208 = vsub.f32 1.0, %v9176
      %v9209 = vsub.f32 1.0, %v9177
      %v9210 = vsub.f32 1.0, %v9178
      %v9211 = vsub.f32 1.0, %v9179
      %v9212 = vsub.f32 1.0, %v9180
      %v9213 = vsub.f32 1.0, %v9181
      %v9214 = vsub.f32 1.0, %v9182
      %v9215 = vsub.f32 1.0, %v9183
      %v9216 = vsub.f32 1.0, %v9184
      %v9217 = vsub.f32 1.0, %v9185
      %v9218 = vsub.f32 1.0, %v9186
      %v9219 = vsub.f32 1.0, %v9187
      %v9220 = vsub.f32 1.0, %v9188
      %v9221 = vsub.f32 1.0, %v9189
      %v9222 = vsub.f32 1.0, %v9190
      %v9223 = vsub.f32 1.0, %v9191
      %v9224 = vsub.f32 1.0, %v9192
      %v9225 = vsub.f32 1.0, %v9193
      %v9226 = vsub.f32 1.0, %v9194
      %v9227 = vsub.f32 1.0, %v9195
      %v9228 = vsub.f32 1.0, %v9196
      %v9229 = vsub.f32 1.0, %v9197
      %v9230 = vsub.f32 1.0, %v9198
      %v9231 = vsub.f32 1.0, %v9199
      %v9232 = vsub.f32 1.0, %v9200
      %vm9233 = vcmp.ge.f32.partialorder %v8497, 0.0
      %vm9234 = vcmp.ge.f32.partialorder %v8498, 0.0
      %vm9235 = vcmp.ge.f32.partialorder %v8499, 0.0
      %vm9236 = vcmp.ge.f32.partialorder %v8500, 0.0
      %vm9237 = vcmp.ge.f32.partialorder %v8501, 0.0
      %vm9238 = vcmp.ge.f32.partialorder %v8502, 0.0
      %vm9239 = vcmp.ge.f32.partialorder %v8503, 0.0
      %vm9240 = vcmp.ge.f32.partialorder %v8504, 0.0
      %vm9241 = vcmp.ge.f32.partialorder %v8505, 0.0
      %vm9242 = vcmp.ge.f32.partialorder %v8506, 0.0
      %vm9243 = vcmp.ge.f32.partialorder %v8507, 0.0
      %vm9244 = vcmp.ge.f32.partialorder %v8508, 0.0
      %vm9245 = vcmp.ge.f32.partialorder %v8509, 0.0
      %vm9246 = vcmp.ge.f32.partialorder %v8510, 0.0
      %vm9247 = vcmp.ge.f32.partialorder %v8511, 0.0
      %vm9248 = vcmp.ge.f32.partialorder %v8512, 0.0
      %vm9249 = vcmp.ge.f32.partialorder %v8513, 0.0
      %vm9250 = vcmp.ge.f32.partialorder %v8514, 0.0
      %vm9251 = vcmp.ge.f32.partialorder %v8515, 0.0
      %vm9252 = vcmp.ge.f32.partialorder %v8516, 0.0
      %vm9253 = vcmp.ge.f32.partialorder %v8517, 0.0
      %vm9254 = vcmp.ge.f32.partialorder %v8518, 0.0
      %vm9255 = vcmp.ge.f32.partialorder %v8519, 0.0
      %vm9256 = vcmp.ge.f32.partialorder %v8520, 0.0
      %vm9257 = vcmp.ge.f32.partialorder %v8521, 0.0
      %vm9258 = vcmp.ge.f32.partialorder %v8522, 0.0
      %vm9259 = vcmp.ge.f32.partialorder %v8523, 0.0
      %vm9260 = vcmp.ge.f32.partialorder %v8524, 0.0
      %vm9261 = vcmp.ge.f32.partialorder %v8525, 0.0
      %vm9262 = vcmp.ge.f32.partialorder %v8526, 0.0
      %vm9263 = vcmp.ge.f32.partialorder %v8527, 0.0
      %vm9264 = vcmp.ge.f32.partialorder %v8528, 0.0
      %v9265 = vsub.f32 0.0, %v9201
      %v9266 = vsub.f32 0.0, %v9202
      %v9267 = vsub.f32 0.0, %v9203
      %v9268 = vsub.f32 0.0, %v9204
      %v9269 = vsub.f32 0.0, %v9205
      %v9270 = vsub.f32 0.0, %v9206
      %v9271 = vsub.f32 0.0, %v9207
      %v9272 = vsub.f32 0.0, %v9208
      %v9273 = vsub.f32 0.0, %v9209
      %v9274 = vsub.f32 0.0, %v9210
      %v9275 = vsub.f32 0.0, %v9211
      %v9276 = vsub.f32 0.0, %v9212
      %v9277 = vsub.f32 0.0, %v9213
      %v9278 = vsub.f32 0.0, %v9214
      %v9279 = vsub.f32 0.0, %v9215
      %v9280 = vsub.f32 0.0, %v9216
      %v9281 = vsub.f32 0.0, %v9217
      %v9282 = vsub.f32 0.0, %v9218
      %v9283 = vsub.f32 0.0, %v9219
      %v9284 = vsub.f32 0.0, %v9220
      %v9285 = vsub.f32 0.0, %v9221
      %v9286 = vsub.f32 0.0, %v9222
      %v9287 = vsub.f32 0.0, %v9223
      %v9288 = vsub.f32 0.0, %v9224
      %v9289 = vsub.f32 0.0, %v9225
      %v9290 = vsub.f32 0.0, %v9226
      %v9291 = vsub.f32 0.0, %v9227
      %v9292 = vsub.f32 0.0, %v9228
      %v9293 = vsub.f32 0.0, %v9229
      %v9294 = vsub.f32 0.0, %v9230
      %v9295 = vsub.f32 0.0, %v9231
      %v9296 = vsub.f32 0.0, %v9232
      %v9297 = vsel %vm9233, %v9201, %v9265
      %v9298 = vsel %vm9234, %v9202, %v9266
      %v9299 = vsel %vm9235, %v9203, %v9267
      %v9300 = vsel %vm9236, %v9204, %v9268
      %v9301 = vsel %vm9237, %v9205, %v9269
      %v9302 = vsel %vm9238, %v9206, %v9270
      %v9303 = vsel %vm9239, %v9207, %v9271
      %v9304 = vsel %vm9240, %v9208, %v9272
      %v9305 = vsel %vm9241, %v9209, %v9273
      %v9306 = vsel %vm9242, %v9210, %v9274
      %v9307 = vsel %vm9243, %v9211, %v9275
      %v9308 = vsel %vm9244, %v9212, %v9276
      %v9309 = vsel %vm9245, %v9213, %v9277
      %v9310 = vsel %vm9246, %v9214, %v9278
      %v9311 = vsel %vm9247, %v9215, %v9279
      %v9312 = vsel %vm9248, %v9216, %v9280
      %v9313 = vsel %vm9249, %v9217, %v9281
      %v9314 = vsel %vm9250, %v9218, %v9282
      %v9315 = vsel %vm9251, %v9219, %v9283
      %v9316 = vsel %vm9252, %v9220, %v9284
      %v9317 = vsel %vm9253, %v9221, %v9285
      %v9318 = vsel %vm9254, %v9222, %v9286
      %v9319 = vsel %vm9255, %v9223, %v9287
      %v9320 = vsel %vm9256, %v9224, %v9288
      %v9321 = vsel %vm9257, %v9225, %v9289
      %v9322 = vsel %vm9258, %v9226, %v9290
      %v9323 = vsel %vm9259, %v9227, %v9291
      %v9324 = vsel %vm9260, %v9228, %v9292
      %v9325 = vsel %vm9261, %v9229, %v9293
      %v9326 = vsel %vm9262, %v9230, %v9294
      %v9327 = vsel %vm9263, %v9231, %v9295
      %v9328 = vsel %vm9264, %v9232, %v9296
      %v9329 = vadd.f32 %v9297, 1.0
      %v9330 = vadd.f32 %v9298, 1.0
      %v9331 = vadd.f32 %v9299, 1.0
      %v9332 = vadd.f32 %v9300, 1.0
      %v9333 = vadd.f32 %v9301, 1.0
      %v9334 = vadd.f32 %v9302, 1.0
      %v9335 = vadd.f32 %v9303, 1.0
      %v9336 = vadd.f32 %v9304, 1.0
      %v9337 = vadd.f32 %v9305, 1.0
      %v9338 = vadd.f32 %v9306, 1.0
      %v9339 = vadd.f32 %v9307, 1.0
      %v9340 = vadd.f32 %v9308, 1.0
      %v9341 = vadd.f32 %v9309, 1.0
      %v9342 = vadd.f32 %v9310, 1.0
      %v9343 = vadd.f32 %v9311, 1.0
      %v9344 = vadd.f32 %v9312, 1.0
      %v9345 = vadd.f32 %v9313, 1.0
      %v9346 = vadd.f32 %v9314, 1.0
      %v9347 = vadd.f32 %v9315, 1.0
      %v9348 = vadd.f32 %v9316, 1.0
      %v9349 = vadd.f32 %v9317, 1.0
      %v9350 = vadd.f32 %v9318, 1.0
      %v9351 = vadd.f32 %v9319, 1.0
      %v9352 = vadd.f32 %v9320, 1.0
      %v9353 = vadd.f32 %v9321, 1.0
      %v9354 = vadd.f32 %v9322, 1.0
      %v9355 = vadd.f32 %v9323, 1.0
      %v9356 = vadd.f32 %v9324, 1.0
      %v9357 = vadd.f32 %v9325, 1.0
      %v9358 = vadd.f32 %v9326, 1.0
      %v9359 = vadd.f32 %v9327, 1.0
      %v9360 = vadd.f32 %v9328, 1.0
      %v9361 = vmul.f32 %v8465, %v9329
      %v9362 = vmul.f32 %v8466, %v9330
      %v9363 = vmul.f32 %v8467, %v9331
      %v9364 = vmul.f32 %v8468, %v9332
      %v9365 = vmul.f32 %v8469, %v9333
      %v9366 = vmul.f32 %v8470, %v9334
      %v9367 = vmul.f32 %v8471, %v9335
      %v9368 = vmul.f32 %v8472, %v9336
      %v9369 = vmul.f32 %v8473, %v9337
      %v9370 = vmul.f32 %v8474, %v9338
      %v9371 = vmul.f32 %v8475, %v9339
      %v9372 = vmul.f32 %v8476, %v9340
      %v9373 = vmul.f32 %v8477, %v9341
      %v9374 = vmul.f32 %v8478, %v9342
      %v9375 = vmul.f32 %v8479, %v9343
      %v9376 = vmul.f32 %v8480, %v9344
      %v9377 = vmul.f32 %v8481, %v9345
      %v9378 = vmul.f32 %v8482, %v9346
      %v9379 = vmul.f32 %v8483, %v9347
      %v9380 = vmul.f32 %v8484, %v9348
      %v9381 = vmul.f32 %v8485, %v9349
      %v9382 = vmul.f32 %v8486, %v9350
      %v9383 = vmul.f32 %v8487, %v9351
      %v9384 = vmul.f32 %v8488, %v9352
      %v9385 = vmul.f32 %v8489, %v9353
      %v9386 = vmul.f32 %v8490, %v9354
      %v9387 = vmul.f32 %v8491, %v9355
      %v9388 = vmul.f32 %v8492, %v9356
      %v9389 = vmul.f32 %v8493, %v9357
      %v9390 = vmul.f32 %v8494, %v9358
      %v9391 = vmul.f32 %v8495, %v9359
      %v9392 = vmul.f32 %v8496, %v9360
      %9393 = vst.msk [vmem:[%s298] sm:$0xff] %vm828, %v9361
      %9394 = vst.msk [vmem:[%s298 + $0x8] sm:$0xff] %vm828, %v9362
      %9395 = vst.msk [vmem:[%s298 + $0x10] sm:$0xff] %vm828, %v9363
      %9396 = vst.msk [vmem:[%s298 + $0x18] sm:$0xff] %vm828, %v9364
      %9397 = vst.msk [vmem:[%s298 + $0x20] sm:$0xff] %vm828, %v9365
      %9398 = vst.msk [vmem:[%s298 + $0x28] sm:$0xff] %vm828, %v9366
      %9399 = vst.msk [vmem:[%s298 + $0x30] sm:$0xff] %vm828, %v9367
      %9400 = vst.msk [vmem:[%s298 + $0x38] sm:$0xff] %vm828, %v9368
      %9401 = vst.msk [vmem:[%s298 + $0x40] sm:$0xff] %vm828, %v9369
      %9402 = vst.msk [vmem:[%s298 + $0x48] sm:$0xff] %vm828, %v9370
      %9403 = vst.msk [vmem:[%s298 + $0x50] sm:$0xff] %vm828, %v9371
      %9404 = vst.msk [vmem:[%s298 + $0x58] sm:$0xff] %vm828, %v9372
      %9405 = vst.msk [vmem:[%s298 + $0x60] sm:$0xff] %vm828, %v9373
      %9406 = vst.msk [vmem:[%s298 + $0x68] sm:$0xff] %vm828, %v9374
      %9407 = vst.msk [vmem:[%s298 + $0x70] sm:$0xff] %vm828, %v9375
      %9408 = vst.msk [vmem:[%s298 + $0x78] sm:$0xff] %vm828, %v9376
      %9409 = vst.msk [vmem:[%s298 + $0x80] sm:$0xff] %vm828, %v9377
      %9410 = vst.msk [vmem:[%s298 + $0x88] sm:$0xff] %vm828, %v9378
      %9411 = vst.msk [vmem:[%s298 + $0x90] sm:$0xff] %vm828, %v9379
      %9412 = vst.msk [vmem:[%s298 + $0x98] sm:$0xff] %vm828, %v9380
      %9413 = vst.msk [vmem:[%s298 + $0xa0] sm:$0xff] %vm828, %v9381
      %9414 = vst.msk [vmem:[%s298 + $0xa8] sm:$0xff] %vm828, %v9382
      %9415 = vst.msk [vmem:[%s298 + $0xb0] sm:$0xff] %vm828, %v9383
      %9416 = vst.msk [vmem:[%s298 + $0xb8] sm:$0xff] %vm828, %v9384
      %9417 = vst.msk [vmem:[%s298 + $0xc0] sm:$0xff] %vm828, %v9385
      %9418 = vst.msk [vmem:[%s298 + $0xc8] sm:$0xff] %vm828, %v9386
      %9419 = vst.msk [vmem:[%s298 + $0xd0] sm:$0xff] %vm828, %v9387
      %9420 = vst.msk [vmem:[%s298 + $0xd8] sm:$0xff] %vm828, %v9388
      %9421 = vst.msk [vmem:[%s298 + $0xe0] sm:$0xff] %vm828, %v9389
      %9422 = vst.msk [vmem:[%s298 + $0xe8] sm:$0xff] %vm828, %v9390
      %9423 = vst.msk [vmem:[%s298 + $0xf0] sm:$0xff] %vm828, %v9391
      %9424 = vst.msk [vmem:[%s298 + $0xf8] sm:$0xff] %vm828, %v9392
      %p9425 = scmp.lt.s32.totalorder %s18, 1
      %s9426 = scalar_select %p9425, %s18, 1
      %s9427 = smul.addr %s9426, 32
      %s9428 = smul.addr %s9427, 8
      %s9429 = scalar_lea.vmem %s7, %s9428
      // Predicated region
      $region49: #{unet_up_forward.1} parent=47 // pred_check
        %p9430 = pneg %p193
      $region50: #{unet_up_forward.1} parent=47 // pred_check_branch
        %9432 = sbr.rel (%p9430) target = $region52
      $region51: #{unet_up_forward.1} parent=47 // pred_region
        _
      $region52: #{unet_up_forward.1} parent=47 // pred_fallthru
        _
    $region48: #{unet_up_forward.1} parent=5 // pred_fallthru
      _
    %p9433 = scmp.le.s32.totalorder 2, %s13
    // Predicated region
    $region53: #{unet_up_forward.1} parent=5 // pred_check
      %p9434 = pneg %p9433
    $region54: #{unet_up_forward.1} parent=5 // pred_check_branch
      %9436 = sbr.rel (%p9434) target = $region56
    $region55: #{unet_up_forward.1} parent=5 // pred_region
      %s9437 = ssub.s32 %s13, 2
      // Predicated region
      $region57: #{unet_up_forward.1} parent=55 // pred_check
        %p9438 = pneg %p199
      $region58: #{unet_up_forward.1} parent=55 // pred_check_branch
        %9440 = sbr.rel (%p9438) target = $region60
      $region59: #{unet_up_forward.1} parent=55 // pred_region
        %p9441 = scmp.lt.s32.totalorder %s19, 1
        %s9442 = scalar_select %p9441, %s19, 1
        %s9443 = smul.addr %s9442, 32
        %s9444 = smul.addr %s9443, 8
        %s9445 = scalar_lea.vmem %s7, %s9444
      $region60: #{unet_up_forward.1} parent=55 // pred_fallthru
        _
    $region56: #{unet_up_forward.1} parent=5 // pred_fallthru
      _
  $region6: #{unet_up_forward.1} parent=0 // loop_footer
    %s17 = sadd.s32 1, %s13
  $region7: #{unet_up_forward.1} parent=0 // loop_footer_branch
    %12 = sbr.rel target = $region3
  $region8: #{unet_up_forward.1} parent=0 // loop_exit
    _

</llo_original>
